<compile_context>
chip_gen: v5e
topology: v5e:2x2
jax: 0.10.0
libtpu: 0.0.40
codegen_flags: <defaults>
</compile_context>

<pallas_src>
import numpy as np
import jax
import jax.numpy as jnp
from jax import lax
from jax.experimental import pallas as pl
from jax.experimental.pallas import tpu as pltpu

# TODO(synk): PyTorch BatchNorm2d in train() mode uses batch statistics; here we use
# eval-mode (running-stat) semantics, folded into per-channel scale/bias.

H_IN, W_IN = 28, 28
H1, W1 = 24, 24            # after 5x5 valid conv
H2, W2 = 22, 22            # after 3x3 valid conv
C1, C2, NCLS = 16, 8, 10
EPS = 1e-5

F1 = W1 * C1               # 384  conv1 activation lanes (w*16 + c)
F2 = W2 * C2               # 176  conv2 activation lanes (w*8  + c)
FC_K = H2 * W2 * C2        # 3872 FC contraction size


def cnn_kernel(x_ref, w1b_ref, s1_ref, b1_ref, w2b_ref, s2_ref, b2_ref,
               wfc_ref, bfc_ref, o_ref, h1_buf, h2_rows, h2_buf):
    # x_ref:   (TB, 28, 28)
    # w1b_ref: (5, 28, 384) banded conv1 weight  [ki, j, w*16+c]
    # w2b_ref: (3, 384, 176) banded conv2 weight [ki, j*16+cin, w*8+cout]
    # s*/b*:   (1, 384) / (1, 176) folded BN scale/bias tiled over w
    # wfc_ref: (3872, 10); bfc_ref: (1, 10); o_ref: (TB, 10)
    # scratch: h1_buf (TB, 26, 384), h2_rows (TB, 24, 176), h2_buf (TB, 3872)
    tb = x_ref.shape[0]
    f32 = jnp.float32

    # ---- conv1 (5x5, 1->16): 5 banded MXU matmuls, lane-dense (TB*24, 384) ----
    # acc1[b*24+h, w*16+c] = sum_{ki,kj} x[b, h+ki, w+kj] * w1[c, 0, ki, kj]
    acc1 = jnp.zeros((tb * H1, F1), f32)
    for ki in range(5):
        lhs = x_ref[:, ki:ki + H1, :].reshape(tb * H1, W_IN)       # (TB*24, 28)
        acc1 = acc1 + jnp.dot(lhs, w1b_ref[ki], preferred_element_type=f32)
    h1 = jnp.maximum(acc1 * s1_ref[...] + b1_ref[...], 0.0)        # (TB*24, 384)

    # Stash conv1 activations (+2 zero pad rows per sample) so conv2 can slide
    # 24-row slabs; rows are 8-aligned so the reshapes are layout-preserving.
    h1_buf[:, 0:H1, :] = h1.reshape(tb, H1, F1)
    h1_buf[:, H1:H1 + 2, :] = jnp.zeros((tb, 2, F1), f32)

    # ---- conv2 (3x3, 16->8): 3 banded MXU matmuls over 24 padded rows ----
    # rows h in [0,24); only h < 22 are valid conv outputs (rest use zero pad).
    acc2 = jnp.zeros((tb * H1, F2), f32)
    for ki in range(3):
        lhs = h1_buf[:, ki:ki + H1, :].reshape(tb * H1, F1)        # (TB*24, 384)
        acc2 = acc2 + jnp.dot(lhs, w2b_ref[ki], preferred_element_type=f32)
    h2 = jnp.maximum(acc2 * s2_ref[...] + b2_ref[...], 0.0)        # (TB*24, 176)
    h2_rows[...] = h2.reshape(tb, H1, F2)

    # ---- pack the 22 valid rows into a lane-dense (TB, 3872) FC input slab ----
    # (NCHW flatten order is handled by pre-permuting wfc on the host.)
    for h in range(H2):
        h2_buf[:, h * F2:(h + 1) * F2] = h2_rows[:, h, :]

    # ---- fully connected (3872 -> 10) on the MXU + softmax ----
    logits = jnp.dot(h2_buf[...], wfc_ref[...],
                     preferred_element_type=f32) + bfc_ref[...]    # (TB, 10)
    m = jnp.max(logits, axis=1, keepdims=True)
    e = jnp.exp(logits - m)
    o_ref[...] = (e / jnp.sum(e, axis=1, keepdims=True)).astype(o_ref.dtype)


def cnn_forward(x_nchw, folded, tb=8):
    (w1_band, s1t, b1t, w2_band, s2t, b2t, wfc_mat, bfc) = folded
    n = x_nchw.shape[0]
    assert tb % 8 == 0, "tb must be a multiple of 8 (output sublane tiling)"
    n_pad = ((n + tb - 1) // tb) * tb
    x3 = x_nchw[:, 0, :, :].astype(jnp.float32)                    # (N, 28, 28)
    if n_pad != n:
        x3 = jnp.pad(x3, ((0, n_pad - n), (0, 0), (0, 0)))

    out = pl.pallas_call(
        cnn_kernel,
        out_shape=jax.ShapeDtypeStruct((n_pad, NCLS), jnp.float32),
        grid_spec=pltpu.PrefetchScalarGridSpec(
            num_scalar_prefetch=0,
            grid=(n_pad // tb,),
            in_specs=[
                pl.BlockSpec((tb, H_IN, W_IN), lambda b: (b, 0, 0)),
                pl.BlockSpec((5, W_IN, F1), lambda b: (0, 0, 0)),
                pl.BlockSpec((1, F1), lambda b: (0, 0)),
                pl.BlockSpec((1, F1), lambda b: (0, 0)),
                pl.BlockSpec((3, F1, F2), lambda b: (0, 0, 0)),
                pl.BlockSpec((1, F2), lambda b: (0, 0)),
                pl.BlockSpec((1, F2), lambda b: (0, 0)),
                pl.BlockSpec((FC_K, NCLS), lambda b: (0, 0)),
                pl.BlockSpec((1, NCLS), lambda b: (0, 0)),
            ],
            out_specs=pl.BlockSpec((tb, NCLS), lambda b: (b, 0)),
            scratch_shapes=[
                pltpu.VMEM((tb, H1 + 2, F1), jnp.float32),  # conv1 acts + 2 pad rows
                pltpu.VMEM((tb, H1, F2), jnp.float32),      # conv2 acts (24 rows, 22 valid)
                pltpu.VMEM((tb, FC_K), jnp.float32),        # lane-dense FC input slab
            ],
        ),
        compiler_params=pltpu.CompilerParams(
            dimension_semantics=("parallel",)),
    )(x3, w1_band, s1t, b1t, w2_band, s2t, b2t, wfc_mat, bfc)
    return out[:n]


def fold_params(p):
    """Host-side folding: banded conv weights, folded BN scale/bias, permuted FC."""
    # conv1 banded weight: [ki, j, w*16 + c_out] = w1[c_out, 0, ki, j - w]
    w1 = np.asarray(p["w1"], np.float32)                     # (16, 1, 5, 5) OIHW
    w1_band = np.zeros((5, W_IN, F1), np.float32)
    for ki in range(5):
        for w in range(W1):
            for kj in range(5):
                w1_band[ki, w + kj, w * C1:(w + 1) * C1] = w1[:, 0, ki, kj]

    # conv2 banded weight: [ki, j*16 + c_in, w*8 + c_out] = w2[c_out, c_in, ki, j - w]
    w2 = np.asarray(p["w2"], np.float32)                     # (8, 16, 3, 3) OIHW
    w2_band = np.zeros((3, F1, F2), np.float32)
    for ki in range(3):
        for w in range(W2):
            for kj in range(3):
                w2_band[ki, (w + kj) * C1:(w + kj + 1) * C1,
                        w * C2:(w + 1) * C2] = w2[:, :, ki, kj].T   # (c_in, c_out)

    # folded BatchNorm (eval) + conv bias, tiled to the (w*C + c) lane layout
    s1v = np.asarray(p["g1"]) / np.sqrt(np.asarray(p["v1"]) + EPS)
    b1v = (np.asarray(p["b1"]) - np.asarray(p["m1"])) * s1v + np.asarray(p["be1"])
    s2v = np.asarray(p["g2"]) / np.sqrt(np.asarray(p["v2"]) + EPS)
    b2v = (np.asarray(p["b2"]) - np.asarray(p["m2"])) * s2v + np.asarray(p["be2"])
    s1t = np.tile(s1v.astype(np.float32), W1)[None, :]       # (1, 384)
    b1t = np.tile(b1v.astype(np.float32), W1)[None, :]
    s2t = np.tile(s2v.astype(np.float32), W2)[None, :]       # (1, 176)
    b2t = np.tile(b2v.astype(np.float32), W2)[None, :]

    # FC: PyTorch flatten index c*484 + h*22 + w  ->  kernel index h*176 + w*8 + c
    wfc = np.asarray(p["wfc"], np.float32).reshape(NCLS, C2, H2, W2)
    wfc_mat = np.transpose(wfc, (2, 3, 1, 0)).reshape(FC_K, NCLS)
    bfc = np.asarray(p["bfc"], np.float32)[None, :]

    return tuple(jnp.asarray(a, jnp.float32) for a in
                 (w1_band, s1t, b1t, w2_band, s2t, b2t, wfc_mat, bfc))


def reference_forward(x, p):
    """Pure-JAX NCHW reference matching the PyTorch forward (BN in eval mode)."""
    def bn(y, g, b, m, v):
        sh = (1, -1, 1, 1)
        return (y - m.reshape(sh)) / jnp.sqrt(v.reshape(sh) + EPS) * g.reshape(sh) + b.reshape(sh)

    y = lax.conv_general_dilated(x, p["w1"], (1, 1), "VALID",
                                 dimension_numbers=("NCHW", "OIHW", "NCHW"))
    y = y + p["b1"].reshape(1, -1, 1, 1)
    y = jnp.maximum(bn(y, p["g1"], p["be1"], p["m1"], p["v1"]), 0.0)

    y = lax.conv_general_dilated(y, p["w2"], (1, 1), "VALID",
                                 dimension_numbers=("NCHW", "OIHW", "NCHW"))
    y = y + p["b2"].reshape(1, -1, 1, 1)
    y = jnp.maximum(bn(y, p["g2"], p["be2"], p["m2"], p["v2"]), 0.0)

    flat = y.reshape(y.shape[0], -1)                      # NCHW flatten: c*484 + h*22 + w
    logits = flat @ p["wfc"].T + p["bfc"]
    return jax.nn.softmax(logits, axis=1)


if __name__ == "__main__":
    key = jax.random.PRNGKey(0)
    keys = jax.random.split(key, 16)

    N, TB = 16, 8                      # 2 grid steps -> both v7x TensorCores get work
    x = jax.random.normal(keys[0], (N, 1, H_IN, W_IN), jnp.float32)

    # Deterministic synthetic parameters (PyTorch-equivalent shapes).
    params = {
        "w1": 0.1 * jax.random.normal(keys[1], (C1, 1, 5, 5), jnp.float32),     # OIHW
        "b1": 0.1 * jax.random.normal(keys[2], (C1,), jnp.float32),
        "g1": 1.0 + 0.1 * jax.random.normal(keys[3], (C1,), jnp.float32),
        "be1": 0.1 * jax.random.normal(keys[4], (C1,), jnp.float32),
        "m1": 0.1 * jax.random.normal(keys[5], (C1,), jnp.float32),
        "v1": jax.random.uniform(keys[6], (C1,), jnp.float32, 0.5, 1.5),
        "w2": 0.1 * jax.random.normal(keys[7], (C2, C1, 3, 3), jnp.float32),    # OIHW
        "b2": 0.1 * jax.random.normal(keys[8], (C2,), jnp.float32),
        "g2": 1.0 + 0.1 * jax.random.normal(keys[9], (C2,), jnp.float32),
        "be2": 0.1 * jax.random.normal(keys[10], (C2,), jnp.float32),
        "m2": 0.1 * jax.random.normal(keys[11], (C2,), jnp.float32),
        "v2": jax.random.uniform(keys[12], (C2,), jnp.float32, 0.5, 1.5),
        "wfc": 0.02 * jax.random.normal(keys[13], (NCLS, H2 * W2 * C2), jnp.float32),
        "bfc": 0.1 * jax.random.normal(keys[14], (NCLS,), jnp.float32),
    }

    folded = fold_params(params)
    out = jax.block_until_ready(cnn_forward(x, folded, tb=TB))

    with jax.default_matmul_precision("highest"):
        ref = jax.block_until_ready(reference_forward(x, params))

    assert out.shape == (N, NCLS)
    # Tolerance loosened vs. the pure-VPU v1: the contractions now run on the MXU,
    # whose f32 pass decomposition may differ slightly from the XLA f32 reference.
    err = float(jnp.max(jnp.abs(out - ref)))
    assert bool(jnp.allclose(out, ref, rtol=1e-2, atol=1e-3)), f"mismatch: max abs err {err}"
    print("KERNEL_OK")
</pallas_src>

<mosaic_0001>
module attributes {stable_mosaic.version = 11 : i64} {
  func.func @cnn_kernel(%arg0: i32, %arg1: memref<8x28x28xf32, #tpu.memory_space<vmem>>, %arg2: memref<5x28x384xf32, #tpu.memory_space<vmem>>, %arg3: memref<1x384xf32, #tpu.memory_space<vmem>>, %arg4: memref<1x384xf32, #tpu.memory_space<vmem>>, %arg5: memref<3x384x176xf32, #tpu.memory_space<vmem>>, %arg6: memref<1x176xf32, #tpu.memory_space<vmem>>, %arg7: memref<1x176xf32, #tpu.memory_space<vmem>>, %arg8: memref<3872x10xf32, #tpu.memory_space<vmem>>, %arg9: memref<1x10xf32, #tpu.memory_space<vmem>>, %arg10: memref<8x10xf32, #tpu.memory_space<vmem>>, %arg11: memref<8x26x384xf32, #tpu.memory_space<vmem>>, %arg12: memref<8x24x176xf32, #tpu.memory_space<vmem>>, %arg13: memref<8x3872xf32, #tpu.memory_space<vmem>>) attributes {dimension_semantics = [#tpu.dimension_semantics<parallel>], iteration_bounds = array<i64: 2>, scalar_prefetch = 0 : i64, scratch_operands = 3 : i64, tpu.core_type = #tpu.core_type<tc>, window_params = [{transform_indices = @transform_0, window_bounds = array<i64: 8, 28, 28>}, {pipeline_mode = #tpu.pipeline_mode<synchronous>, transform_indices = @transform_1, window_bounds = array<i64: 5, 28, 384>}, {pipeline_mode = #tpu.pipeline_mode<synchronous>, transform_indices = @transform_2, window_bounds = array<i64: 1, 384>}, {pipeline_mode = #tpu.pipeline_mode<synchronous>, transform_indices = @transform_3, window_bounds = array<i64: 1, 384>}, {pipeline_mode = #tpu.pipeline_mode<synchronous>, transform_indices = @transform_4, window_bounds = array<i64: 3, 384, 176>}, {pipeline_mode = #tpu.pipeline_mode<synchronous>, transform_indices = @transform_5, window_bounds = array<i64: 1, 176>}, {pipeline_mode = #tpu.pipeline_mode<synchronous>, transform_indices = @transform_6, window_bounds = array<i64: 1, 176>}, {pipeline_mode = #tpu.pipeline_mode<synchronous>, transform_indices = @transform_7, window_bounds = array<i64: 3872, 10>}, {pipeline_mode = #tpu.pipeline_mode<synchronous>, transform_indices = @transform_8, window_bounds = array<i64: 1, 10>}, {transform_indices = @transform_9, window_bounds = array<i64: 8, 10>}]} {
    %cst = arith.constant 0.000000e+00 : f32
    %0 = vector.broadcast %cst : f32 to vector<192x384xf32>
    %c0 = arith.constant 0 : index
    %c0_0 = arith.constant 0 : index
    %c0_1 = arith.constant 0 : index
    %1 = vector.load %arg1[%c0, %c0_0, %c0_1] : memref<8x28x28xf32, #tpu.memory_space<vmem>>, vector<8x24x28xf32>
    %2 = vector.shape_cast %1 : vector<8x24x28xf32> to vector<192x28xf32>
    %c0_2 = arith.constant 0 : index
    %c0_3 = arith.constant 0 : index
    %c0_4 = arith.constant 0 : index
    %3 = vector.load %arg2[%c0_2, %c0_3, %c0_4] : memref<5x28x384xf32, #tpu.memory_space<vmem>>, vector<1x28x384xf32>
    %4 = vector.shape_cast %3 : vector<1x28x384xf32> to vector<28x384xf32>
    %cst_5 = arith.constant dense<0.000000e+00> : vector<192x384xf32>
    %5 = tpu.matmul %2, %4, %cst_5 {dimension_numbers = #tpu.dot_dimension_numbers<[1], [0], [0], [1], [0, 0, 1, 1], [], []>} : vector<192x28xf32>, vector<28x384xf32>, vector<192x384xf32> -> vector<192x384xf32>
    %6 = arith.addf %0, %5 : vector<192x384xf32>
    %c0_6 = arith.constant 0 : index
    %c1 = arith.constant 1 : index
    %c0_7 = arith.constant 0 : index
    %7 = vector.load %arg1[%c0_6, %c1, %c0_7] : memref<8x28x28xf32, #tpu.memory_space<vmem>>, vector<8x24x28xf32>
    %8 = vector.shape_cast %7 : vector<8x24x28xf32> to vector<192x28xf32>
    %c1_8 = arith.constant 1 : index
    %c0_9 = arith.constant 0 : index
    %c0_10 = arith.constant 0 : index
    %9 = vector.load %arg2[%c1_8, %c0_9, %c0_10] : memref<5x28x384xf32, #tpu.memory_space<vmem>>, vector<1x28x384xf32>
    %10 = vector.shape_cast %9 : vector<1x28x384xf32> to vector<28x384xf32>
    %cst_11 = arith.constant dense<0.000000e+00> : vector<192x384xf32>
    %11 = tpu.matmul %8, %10, %cst_11 {dimension_numbers = #tpu.dot_dimension_numbers<[1], [0], [0], [1], [0, 0, 1, 1], [], []>} : vector<192x28xf32>, vector<28x384xf32>, vector<192x384xf32> -> vector<192x384xf32>
    %12 = arith.addf %6, %11 : vector<192x384xf32>
    %c0_12 = arith.constant 0 : index
    %c2 = arith.constant 2 : index
    %c0_13 = arith.constant 0 : index
    %13 = vector.load %arg1[%c0_12, %c2, %c0_13] : memref<8x28x28xf32, #tpu.memory_space<vmem>>, vector<8x24x28xf32>
    %14 = vector.shape_cast %13 : vector<8x24x28xf32> to vector<192x28xf32>
    %c2_14 = arith.constant 2 : index
    %c0_15 = arith.constant 0 : index
    %c0_16 = arith.constant 0 : index
    %15 = vector.load %arg2[%c2_14, %c0_15, %c0_16] : memref<5x28x384xf32, #tpu.memory_space<vmem>>, vector<1x28x384xf32>
    %16 = vector.shape_cast %15 : vector<1x28x384xf32> to vector<28x384xf32>
    %cst_17 = arith.constant dense<0.000000e+00> : vector<192x384xf32>
    %17 = tpu.matmul %14, %16, %cst_17 {dimension_numbers = #tpu.dot_dimension_numbers<[1], [0], [0], [1], [0, 0, 1, 1], [], []>} : vector<192x28xf32>, vector<28x384xf32>, vector<192x384xf32> -> vector<192x384xf32>
    %18 = arith.addf %12, %17 : vector<192x384xf32>
    %c0_18 = arith.constant 0 : index
    %c3 = arith.constant 3 : index
    %c0_19 = arith.constant 0 : index
    %19 = vector.load %arg1[%c0_18, %c3, %c0_19] : memref<8x28x28xf32, #tpu.memory_space<vmem>>, vector<8x24x28xf32>
    %20 = vector.shape_cast %19 : vector<8x24x28xf32> to vector<192x28xf32>
    %c3_20 = arith.constant 3 : index
    %c0_21 = arith.constant 0 : index
    %c0_22 = arith.constant 0 : index
    %21 = vector.load %arg2[%c3_20, %c0_21, %c0_22] : memref<5x28x384xf32, #tpu.memory_space<vmem>>, vector<1x28x384xf32>
    %22 = vector.shape_cast %21 : vector<1x28x384xf32> to vector<28x384xf32>
    %cst_23 = arith.constant dense<0.000000e+00> : vector<192x384xf32>
    %23 = tpu.matmul %20, %22, %cst_23 {dimension_numbers = #tpu.dot_dimension_numbers<[1], [0], [0], [1], [0, 0, 1, 1], [], []>} : vector<192x28xf32>, vector<28x384xf32>, vector<192x384xf32> -> vector<192x384xf32>
    %24 = arith.addf %18, %23 : vector<192x384xf32>
    %c0_24 = arith.constant 0 : index
    %c4 = arith.constant 4 : index
    %c0_25 = arith.constant 0 : index
    %25 = vector.load %arg1[%c0_24, %c4, %c0_25] : memref<8x28x28xf32, #tpu.memory_space<vmem>>, vector<8x24x28xf32>
    %26 = vector.shape_cast %25 : vector<8x24x28xf32> to vector<192x28xf32>
    %c4_26 = arith.constant 4 : index
    %c0_27 = arith.constant 0 : index
    %c0_28 = arith.constant 0 : index
    %27 = vector.load %arg2[%c4_26, %c0_27, %c0_28] : memref<5x28x384xf32, #tpu.memory_space<vmem>>, vector<1x28x384xf32>
    %28 = vector.shape_cast %27 : vector<1x28x384xf32> to vector<28x384xf32>
    %cst_29 = arith.constant dense<0.000000e+00> : vector<192x384xf32>
    %29 = tpu.matmul %26, %28, %cst_29 {dimension_numbers = #tpu.dot_dimension_numbers<[1], [0], [0], [1], [0, 0, 1, 1], [], []>} : vector<192x28xf32>, vector<28x384xf32>, vector<192x384xf32> -> vector<192x384xf32>
    %30 = arith.addf %24, %29 : vector<192x384xf32>
    %c0_30 = arith.constant 0 : index
    %c0_31 = arith.constant 0 : index
    %31 = vector.load %arg3[%c0_30, %c0_31] : memref<1x384xf32, #tpu.memory_space<vmem>>, vector<1x384xf32>
    %32 = vector.broadcast %31 : vector<1x384xf32> to vector<192x384xf32>
    %33 = arith.mulf %30, %32 : vector<192x384xf32>
    %c0_32 = arith.constant 0 : index
    %c0_33 = arith.constant 0 : index
    %34 = vector.load %arg4[%c0_32, %c0_33] : memref<1x384xf32, #tpu.memory_space<vmem>>, vector<1x384xf32>
    %35 = vector.broadcast %34 : vector<1x384xf32> to vector<192x384xf32>
    %36 = arith.addf %33, %35 : vector<192x384xf32>
    %cst_34 = arith.constant 0.000000e+00 : f32
    %37 = vector.broadcast %cst_34 : f32 to vector<192x384xf32>
    %38 = arith.maximumf %36, %37 : vector<192x384xf32>
    %39 = vector.shape_cast %38 : vector<192x384xf32> to vector<8x24x384xf32>
    %c0_35 = arith.constant 0 : index
    %c0_36 = arith.constant 0 : index
    %c0_37 = arith.constant 0 : index
    %40 = vector.load %arg11[%c0_35, %c0_36, %c0_37] : memref<8x26x384xf32, #tpu.memory_space<vmem>>, vector<8x24x384xf32>
    tpu.vector_store %arg11[%c0_35, %c0_36, %c0_37], %39 {strides = array<i32>} : memref<8x26x384xf32, #tpu.memory_space<vmem>>, vector<8x24x384xf32>,
    %cst_38 = arith.constant 0.000000e+00 : f32
    %41 = vector.broadcast %cst_38 : f32 to vector<8x2x384xf32>
    %c0_39 = arith.constant 0 : index
    %c24 = arith.constant 24 : index
    %c0_40 = arith.constant 0 : index
    %42 = vector.load %arg11[%c0_39, %c24, %c0_40] : memref<8x26x384xf32, #tpu.memory_space<vmem>>, vector<8x2x384xf32>
    tpu.vector_store %arg11[%c0_39, %c24, %c0_40], %41 {strides = array<i32>} : memref<8x26x384xf32, #tpu.memory_space<vmem>>, vector<8x2x384xf32>,
    %cst_41 = arith.constant 0.000000e+00 : f32
    %43 = vector.broadcast %cst_41 : f32 to vector<192x176xf32>
    %c0_42 = arith.constant 0 : index
    %c0_43 = arith.constant 0 : index
    %c0_44 = arith.constant 0 : index
    %44 = vector.load %arg11[%c0_42, %c0_43, %c0_44] : memref<8x26x384xf32, #tpu.memory_space<vmem>>, vector<8x24x384xf32>
    %45 = vector.shape_cast %44 : vector<8x24x384xf32> to vector<192x384xf32>
    %c0_45 = arith.constant 0 : index
    %c0_46 = arith.constant 0 : index
    %c0_47 = arith.constant 0 : index
    %46 = vector.load %arg5[%c0_45, %c0_46, %c0_47] : memref<3x384x176xf32, #tpu.memory_space<vmem>>, vector<1x384x176xf32>
    %47 = vector.shape_cast %46 : vector<1x384x176xf32> to vector<384x176xf32>
    %cst_48 = arith.constant dense<0.000000e+00> : vector<192x176xf32>
    %48 = tpu.matmul %45, %47, %cst_48 {dimension_numbers = #tpu.dot_dimension_numbers<[1], [0], [0], [1], [0, 0, 1, 1], [], []>} : vector<192x384xf32>, vector<384x176xf32>, vector<192x176xf32> -> vector<192x176xf32>
    %49 = arith.addf %43, %48 : vector<192x176xf32>
    %c0_49 = arith.constant 0 : index
    %c1_50 = arith.constant 1 : index
    %c0_51 = arith.constant 0 : index
    %50 = vector.load %arg11[%c0_49, %c1_50, %c0_51] : memref<8x26x384xf32, #tpu.memory_space<vmem>>, vector<8x24x384xf32>
    %51 = vector.shape_cast %50 : vector<8x24x384xf32> to vector<192x384xf32>
    %c1_52 = arith.constant 1 : index
    %c0_53 = arith.constant 0 : index
    %c0_54 = arith.constant 0 : index
    %52 = vector.load %arg5[%c1_52, %c0_53, %c0_54] : memref<3x384x176xf32, #tpu.memory_space<vmem>>, vector<1x384x176xf32>
    %53 = vector.shape_cast %52 : vector<1x384x176xf32> to vector<384x176xf32>
    %cst_55 = arith.constant dense<0.000000e+00> : vector<192x176xf32>
    %54 = tpu.matmul %51, %53, %cst_55 {dimension_numbers = #tpu.dot_dimension_numbers<[1], [0], [0], [1], [0, 0, 1, 1], [], []>} : vector<192x384xf32>, vector<384x176xf32>, vector<192x176xf32> -> vector<192x176xf32>
    %55 = arith.addf %49, %54 : vector<192x176xf32>
    %c0_56 = arith.constant 0 : index
    %c2_57 = arith.constant 2 : index
    %c0_58 = arith.constant 0 : index
    %56 = vector.load %arg11[%c0_56, %c2_57, %c0_58] : memref<8x26x384xf32, #tpu.memory_space<vmem>>, vector<8x24x384xf32>
    %57 = vector.shape_cast %56 : vector<8x24x384xf32> to vector<192x384xf32>
    %c2_59 = arith.constant 2 : index
    %c0_60 = arith.constant 0 : index
    %c0_61 = arith.constant 0 : index
    %58 = vector.load %arg5[%c2_59, %c0_60, %c0_61] : memref<3x384x176xf32, #tpu.memory_space<vmem>>, vector<1x384x176xf32>
    %59 = vector.shape_cast %58 : vector<1x384x176xf32> to vector<384x176xf32>
    %cst_62 = arith.constant dense<0.000000e+00> : vector<192x176xf32>
    %60 = tpu.matmul %57, %59, %cst_62 {dimension_numbers = #tpu.dot_dimension_numbers<[1], [0], [0], [1], [0, 0, 1, 1], [], []>} : vector<192x384xf32>, vector<384x176xf32>, vector<192x176xf32> -> vector<192x176xf32>
    %61 = arith.addf %55, %60 : vector<192x176xf32>
    %c0_63 = arith.constant 0 : index
    %c0_64 = arith.constant 0 : index
    %62 = vector.load %arg6[%c0_63, %c0_64] : memref<1x176xf32, #tpu.memory_space<vmem>>, vector<1x176xf32>
    %63 = vector.broadcast %62 : vector<1x176xf32> to vector<192x176xf32>
    %64 = arith.mulf %61, %63 : vector<192x176xf32>
    %c0_65 = arith.constant 0 : index
    %c0_66 = arith.constant 0 : index
    %65 = vector.load %arg7[%c0_65, %c0_66] : memref<1x176xf32, #tpu.memory_space<vmem>>, vector<1x176xf32>
    %66 = vector.broadcast %65 : vector<1x176xf32> to vector<192x176xf32>
    %67 = arith.addf %64, %66 : vector<192x176xf32>
    %cst_67 = arith.constant 0.000000e+00 : f32
    %68 = vector.broadcast %cst_67 : f32 to vector<192x176xf32>
    %69 = arith.maximumf %67, %68 : vector<192x176xf32>
    %70 = vector.shape_cast %69 : vector<192x176xf32> to vector<8x24x176xf32>
    %c0_68 = arith.constant 0 : index
    %c0_69 = arith.constant 0 : index
    %c0_70 = arith.constant 0 : index
    %71 = vector.load %arg12[%c0_68, %c0_69, %c0_70] : memref<8x24x176xf32, #tpu.memory_space<vmem>>, vector<8x24x176xf32>
    tpu.vector_store %arg12[%c0_68, %c0_69, %c0_70], %70 {strides = array<i32>} : memref<8x24x176xf32, #tpu.memory_space<vmem>>, vector<8x24x176xf32>,
    %c0_71 = arith.constant 0 : index
    %c0_72 = arith.constant 0 : index
    %c0_73 = arith.constant 0 : index
    %72 = vector.load %arg12[%c0_71, %c0_72, %c0_73] : memref<8x24x176xf32, #tpu.memory_space<vmem>>, vector<8x1x176xf32>
    %73 = vector.shape_cast %72 : vector<8x1x176xf32> to vector<8x176xf32>
    %c0_74 = arith.constant 0 : index
    %c0_75 = arith.constant 0 : index
    %74 = vector.load %arg13[%c0_74, %c0_75] : memref<8x3872xf32, #tpu.memory_space<vmem>>, vector<8x176xf32>
    tpu.vector_store %arg13[%c0_74, %c0_75], %73 {strides = array<i32>} : memref<8x3872xf32, #tpu.memory_space<vmem>>, vector<8x176xf32>,
    %c0_76 = arith.constant 0 : index
    %c1_77 = arith.constant 1 : index
    %c0_78 = arith.constant 0 : index
    %75 = vector.load %arg12[%c0_76, %c1_77, %c0_78] : memref<8x24x176xf32, #tpu.memory_space<vmem>>, vector<8x1x176xf32>
    %76 = vector.shape_cast %75 : vector<8x1x176xf32> to vector<8x176xf32>
    %c0_79 = arith.constant 0 : index
    %c176 = arith.constant 176 : index
    %77 = vector.load %arg13[%c0_79, %c176] : memref<8x3872xf32, #tpu.memory_space<vmem>>, vector<8x176xf32>
    tpu.vector_store %arg13[%c0_79, %c176], %76 {strides = array<i32>} : memref<8x3872xf32, #tpu.memory_space<vmem>>, vector<8x176xf32>,
    %c0_80 = arith.constant 0 : index
    %c2_81 = arith.constant 2 : index
    %c0_82 = arith.constant 0 : index
    %78 = vector.load %arg12[%c0_80, %c2_81, %c0_82] : memref<8x24x176xf32, #tpu.memory_space<vmem>>, vector<8x1x176xf32>
    %79 = vector.shape_cast %78 : vector<8x1x176xf32> to vector<8x176xf32>
    %c0_83 = arith.constant 0 : index
    %c352 = arith.constant 352 : index
    %80 = vector.load %arg13[%c0_83, %c352] : memref<8x3872xf32, #tpu.memory_space<vmem>>, vector<8x176xf32>
    tpu.vector_store %arg13[%c0_83, %c352], %79 {strides = array<i32>} : memref<8x3872xf32, #tpu.memory_space<vmem>>, vector<8x176xf32>,
    %c0_84 = arith.constant 0 : index
    %c3_85 = arith.constant 3 : index
    %c0_86 = arith.constant 0 : index
    %81 = vector.load %arg12[%c0_84, %c3_85, %c0_86] : memref<8x24x176xf32, #tpu.memory_space<vmem>>, vector<8x1x176xf32>
    %82 = vector.shape_cast %81 : vector<8x1x176xf32> to vector<8x176xf32>
    %c0_87 = arith.constant 0 : index
    %c528 = arith.constant 528 : index
    %83 = vector.load %arg13[%c0_87, %c528] : memref<8x3872xf32, #tpu.memory_space<vmem>>, vector<8x176xf32>
    tpu.vector_store %arg13[%c0_87, %c528], %82 {strides = array<i32>} : memref<8x3872xf32, #tpu.memory_space<vmem>>, vector<8x176xf32>,
    %c0_88 = arith.constant 0 : index
    %c4_89 = arith.constant 4 : index
    %c0_90 = arith.constant 0 : index
    %84 = vector.load %arg12[%c0_88, %c4_89, %c0_90] : memref<8x24x176xf32, #tpu.memory_space<vmem>>, vector<8x1x176xf32>
    %85 = vector.shape_cast %84 : vector<8x1x176xf32> to vector<8x176xf32>
    %c0_91 = arith.constant 0 : index
    %c704 = arith.constant 704 : index
    %86 = vector.load %arg13[%c0_91, %c704] : memref<8x3872xf32, #tpu.memory_space<vmem>>, vector<8x176xf32>
    tpu.vector_store %arg13[%c0_91, %c704], %85 {strides = array<i32>} : memref<8x3872xf32, #tpu.memory_space<vmem>>, vector<8x176xf32>,
    %c0_92 = arith.constant 0 : index
    %c5 = arith.constant 5 : index
    %c0_93 = arith.constant 0 : index
    %87 = vector.load %arg12[%c0_92, %c5, %c0_93] : memref<8x24x176xf32, #tpu.memory_space<vmem>>, vector<8x1x176xf32>
    %88 = vector.shape_cast %87 : vector<8x1x176xf32> to vector<8x176xf32>
    %c0_94 = arith.constant 0 : index
    %c880 = arith.constant 880 : index
    %89 = vector.load %arg13[%c0_94, %c880] : memref<8x3872xf32, #tpu.memory_space<vmem>>, vector<8x176xf32>
    tpu.vector_store %arg13[%c0_94, %c880], %88 {strides = array<i32>} : memref<8x3872xf32, #tpu.memory_space<vmem>>, vector<8x176xf32>,
    %c0_95 = arith.constant 0 : index
    %c6 = arith.constant 6 : index
    %c0_96 = arith.constant 0 : index
    %90 = vector.load %arg12[%c0_95, %c6, %c0_96] : memref<8x24x176xf32, #tpu.memory_space<vmem>>, vector<8x1x176xf32>
    %91 = vector.shape_cast %90 : vector<8x1x176xf32> to vector<8x176xf32>
    %c0_97 = arith.constant 0 : index
    %c1056 = arith.constant 1056 : index
    %92 = vector.load %arg13[%c0_97, %c1056] : memref<8x3872xf32, #tpu.memory_space<vmem>>, vector<8x176xf32>
    tpu.vector_store %arg13[%c0_97, %c1056], %91 {strides = array<i32>} : memref<8x3872xf32, #tpu.memory_space<vmem>>, vector<8x176xf32>,
    %c0_98 = arith.constant 0 : index
    %c7 = arith.constant 7 : index
    %c0_99 = arith.constant 0 : index
    %93 = vector.load %arg12[%c0_98, %c7, %c0_99] : memref<8x24x176xf32, #tpu.memory_space<vmem>>, vector<8x1x176xf32>
    %94 = vector.shape_cast %93 : vector<8x1x176xf32> to vector<8x176xf32>
    %c0_100 = arith.constant 0 : index
    %c1232 = arith.constant 1232 : index
    %95 = vector.load %arg13[%c0_100, %c1232] : memref<8x3872xf32, #tpu.memory_space<vmem>>, vector<8x176xf32>
    tpu.vector_store %arg13[%c0_100, %c1232], %94 {strides = array<i32>} : memref<8x3872xf32, #tpu.memory_space<vmem>>, vector<8x176xf32>,
    %c0_101 = arith.constant 0 : index
    %c8 = arith.constant 8 : index
    %c0_102 = arith.constant 0 : index
    %96 = vector.load %arg12[%c0_101, %c8, %c0_102] : memref<8x24x176xf32, #tpu.memory_space<vmem>>, vector<8x1x176xf32>
    %97 = vector.shape_cast %96 : vector<8x1x176xf32> to vector<8x176xf32>
    %c0_103 = arith.constant 0 : index
    %c1408 = arith.constant 1408 : index
    %98 = vector.load %arg13[%c0_103, %c1408] : memref<8x3872xf32, #tpu.memory_space<vmem>>, vector<8x176xf32>
    tpu.vector_store %arg13[%c0_103, %c1408], %97 {strides = array<i32>} : memref<8x3872xf32, #tpu.memory_space<vmem>>, vector<8x176xf32>,
    %c0_104 = arith.constant 0 : index
    %c9 = arith.constant 9 : index
    %c0_105 = arith.constant 0 : index
    %99 = vector.load %arg12[%c0_104, %c9, %c0_105] : memref<8x24x176xf32, #tpu.memory_space<vmem>>, vector<8x1x176xf32>
    %100 = vector.shape_cast %99 : vector<8x1x176xf32> to vector<8x176xf32>
    %c0_106 = arith.constant 0 : index
    %c1584 = arith.constant 1584 : index
    %101 = vector.load %arg13[%c0_106, %c1584] : memref<8x3872xf32, #tpu.memory_space<vmem>>, vector<8x176xf32>
    tpu.vector_store %arg13[%c0_106, %c1584], %100 {strides = array<i32>} : memref<8x3872xf32, #tpu.memory_space<vmem>>, vector<8x176xf32>,
    %c0_107 = arith.constant 0 : index
    %c10 = arith.constant 10 : index
    %c0_108 = arith.constant 0 : index
    %102 = vector.load %arg12[%c0_107, %c10, %c0_108] : memref<8x24x176xf32, #tpu.memory_space<vmem>>, vector<8x1x176xf32>
    %103 = vector.shape_cast %102 : vector<8x1x176xf32> to vector<8x176xf32>
    %c0_109 = arith.constant 0 : index
    %c1760 = arith.constant 1760 : index
    %104 = vector.load %arg13[%c0_109, %c1760] : memref<8x3872xf32, #tpu.memory_space<vmem>>, vector<8x176xf32>
    tpu.vector_store %arg13[%c0_109, %c1760], %103 {strides = array<i32>} : memref<8x3872xf32, #tpu.memory_space<vmem>>, vector<8x176xf32>,
    %c0_110 = arith.constant 0 : index
    %c11 = arith.constant 11 : index
    %c0_111 = arith.constant 0 : index
    %105 = vector.load %arg12[%c0_110, %c11, %c0_111] : memref<8x24x176xf32, #tpu.memory_space<vmem>>, vector<8x1x176xf32>
    %106 = vector.shape_cast %105 : vector<8x1x176xf32> to vector<8x176xf32>
    %c0_112 = arith.constant 0 : index
    %c1936 = arith.constant 1936 : index
    %107 = vector.load %arg13[%c0_112, %c1936] : memref<8x3872xf32, #tpu.memory_space<vmem>>, vector<8x176xf32>
    tpu.vector_store %arg13[%c0_112, %c1936], %106 {strides = array<i32>} : memref<8x3872xf32, #tpu.memory_space<vmem>>, vector<8x176xf32>,
    %c0_113 = arith.constant 0 : index
    %c12 = arith.constant 12 : index
    %c0_114 = arith.constant 0 : index
    %108 = vector.load %arg12[%c0_113, %c12, %c0_114] : memref<8x24x176xf32, #tpu.memory_space<vmem>>, vector<8x1x176xf32>
    %109 = vector.shape_cast %108 : vector<8x1x176xf32> to vector<8x176xf32>
    %c0_115 = arith.constant 0 : index
    %c2112 = arith.constant 2112 : index
    %110 = vector.load %arg13[%c0_115, %c2112] : memref<8x3872xf32, #tpu.memory_space<vmem>>, vector<8x176xf32>
    tpu.vector_store %arg13[%c0_115, %c2112], %109 {strides = array<i32>} : memref<8x3872xf32, #tpu.memory_space<vmem>>, vector<8x176xf32>,
    %c0_116 = arith.constant 0 : index
    %c13 = arith.constant 13 : index
    %c0_117 = arith.constant 0 : index
    %111 = vector.load %arg12[%c0_116, %c13, %c0_117] : memref<8x24x176xf32, #tpu.memory_space<vmem>>, vector<8x1x176xf32>
    %112 = vector.shape_cast %111 : vector<8x1x176xf32> to vector<8x176xf32>
    %c0_118 = arith.constant 0 : index
    %c2288 = arith.constant 2288 : index
    %113 = vector.load %arg13[%c0_118, %c2288] : memref<8x3872xf32, #tpu.memory_space<vmem>>, vector<8x176xf32>
    tpu.vector_store %arg13[%c0_118, %c2288], %112 {strides = array<i32>} : memref<8x3872xf32, #tpu.memory_space<vmem>>, vector<8x176xf32>,
    %c0_119 = arith.constant 0 : index
    %c14 = arith.constant 14 : index
    %c0_120 = arith.constant 0 : index
    %114 = vector.load %arg12[%c0_119, %c14, %c0_120] : memref<8x24x176xf32, #tpu.memory_space<vmem>>, vector<8x1x176xf32>
    %115 = vector.shape_cast %114 : vector<8x1x176xf32> to vector<8x176xf32>
    %c0_121 = arith.constant 0 : index
    %c2464 = arith.constant 2464 : index
    %116 = vector.load %arg13[%c0_121, %c2464] : memref<8x3872xf32, #tpu.memory_space<vmem>>, vector<8x176xf32>
    tpu.vector_store %arg13[%c0_121, %c2464], %115 {strides = array<i32>} : memref<8x3872xf32, #tpu.memory_space<vmem>>, vector<8x176xf32>,
    %c0_122 = arith.constant 0 : index
    %c15 = arith.constant 15 : index
    %c0_123 = arith.constant 0 : index
    %117 = vector.load %arg12[%c0_122, %c15, %c0_123] : memref<8x24x176xf32, #tpu.memory_space<vmem>>, vector<8x1x176xf32>
    %118 = vector.shape_cast %117 : vector<8x1x176xf32> to vector<8x176xf32>
    %c0_124 = arith.constant 0 : index
    %c2640 = arith.constant 2640 : index
    %119 = vector.load %arg13[%c0_124, %c2640] : memref<8x3872xf32, #tpu.memory_space<vmem>>, vector<8x176xf32>
    tpu.vector_store %arg13[%c0_124, %c2640], %118 {strides = array<i32>} : memref<8x3872xf32, #tpu.memory_space<vmem>>, vector<8x176xf32>,
    %c0_125 = arith.constant 0 : index
    %c16 = arith.constant 16 : index
    %c0_126 = arith.constant 0 : index
    %120 = vector.load %arg12[%c0_125, %c16, %c0_126] : memref<8x24x176xf32, #tpu.memory_space<vmem>>, vector<8x1x176xf32>
    %121 = vector.shape_cast %120 : vector<8x1x176xf32> to vector<8x176xf32>
    %c0_127 = arith.constant 0 : index
    %c2816 = arith.constant 2816 : index
    %122 = vector.load %arg13[%c0_127, %c2816] : memref<8x3872xf32, #tpu.memory_space<vmem>>, vector<8x176xf32>
    tpu.vector_store %arg13[%c0_127, %c2816], %121 {strides = array<i32>} : memref<8x3872xf32, #tpu.memory_space<vmem>>, vector<8x176xf32>,
    %c0_128 = arith.constant 0 : index
    %c17 = arith.constant 17 : index
    %c0_129 = arith.constant 0 : index
    %123 = vector.load %arg12[%c0_128, %c17, %c0_129] : memref<8x24x176xf32, #tpu.memory_space<vmem>>, vector<8x1x176xf32>
    %124 = vector.shape_cast %123 : vector<8x1x176xf32> to vector<8x176xf32>
    %c0_130 = arith.constant 0 : index
    %c2992 = arith.constant 2992 : index
    %125 = vector.load %arg13[%c0_130, %c2992] : memref<8x3872xf32, #tpu.memory_space<vmem>>, vector<8x176xf32>
    tpu.vector_store %arg13[%c0_130, %c2992], %124 {strides = array<i32>} : memref<8x3872xf32, #tpu.memory_space<vmem>>, vector<8x176xf32>,
    %c0_131 = arith.constant 0 : index
    %c18 = arith.constant 18 : index
    %c0_132 = arith.constant 0 : index
    %126 = vector.load %arg12[%c0_131, %c18, %c0_132] : memref<8x24x176xf32, #tpu.memory_space<vmem>>, vector<8x1x176xf32>
    %127 = vector.shape_cast %126 : vector<8x1x176xf32> to vector<8x176xf32>
    %c0_133 = arith.constant 0 : index
    %c3168 = arith.constant 3168 : index
    %128 = vector.load %arg13[%c0_133, %c3168] : memref<8x3872xf32, #tpu.memory_space<vmem>>, vector<8x176xf32>
    tpu.vector_store %arg13[%c0_133, %c3168], %127 {strides = array<i32>} : memref<8x3872xf32, #tpu.memory_space<vmem>>, vector<8x176xf32>,
    %c0_134 = arith.constant 0 : index
    %c19 = arith.constant 19 : index
    %c0_135 = arith.constant 0 : index
    %129 = vector.load %arg12[%c0_134, %c19, %c0_135] : memref<8x24x176xf32, #tpu.memory_space<vmem>>, vector<8x1x176xf32>
    %130 = vector.shape_cast %129 : vector<8x1x176xf32> to vector<8x176xf32>
    %c0_136 = arith.constant 0 : index
    %c3344 = arith.constant 3344 : index
    %131 = vector.load %arg13[%c0_136, %c3344] : memref<8x3872xf32, #tpu.memory_space<vmem>>, vector<8x176xf32>
    tpu.vector_store %arg13[%c0_136, %c3344], %130 {strides = array<i32>} : memref<8x3872xf32, #tpu.memory_space<vmem>>, vector<8x176xf32>,
    %c0_137 = arith.constant 0 : index
    %c20 = arith.constant 20 : index
    %c0_138 = arith.constant 0 : index
    %132 = vector.load %arg12[%c0_137, %c20, %c0_138] : memref<8x24x176xf32, #tpu.memory_space<vmem>>, vector<8x1x176xf32>
    %133 = vector.shape_cast %132 : vector<8x1x176xf32> to vector<8x176xf32>
    %c0_139 = arith.constant 0 : index
    %c3520 = arith.constant 3520 : index
    %134 = vector.load %arg13[%c0_139, %c3520] : memref<8x3872xf32, #tpu.memory_space<vmem>>, vector<8x176xf32>
    tpu.vector_store %arg13[%c0_139, %c3520], %133 {strides = array<i32>} : memref<8x3872xf32, #tpu.memory_space<vmem>>, vector<8x176xf32>,
    %c0_140 = arith.constant 0 : index
    %c21 = arith.constant 21 : index
    %c0_141 = arith.constant 0 : index
    %135 = vector.load %arg12[%c0_140, %c21, %c0_141] : memref<8x24x176xf32, #tpu.memory_space<vmem>>, vector<8x1x176xf32>
    %136 = vector.shape_cast %135 : vector<8x1x176xf32> to vector<8x176xf32>
    %c0_142 = arith.constant 0 : index
    %c3696 = arith.constant 3696 : index
    %137 = vector.load %arg13[%c0_142, %c3696] : memref<8x3872xf32, #tpu.memory_space<vmem>>, vector<8x176xf32>
    tpu.vector_store %arg13[%c0_142, %c3696], %136 {strides = array<i32>} : memref<8x3872xf32, #tpu.memory_space<vmem>>, vector<8x176xf32>,
    %c0_143 = arith.constant 0 : index
    %c0_144 = arith.constant 0 : index
    %138 = vector.load %arg13[%c0_143, %c0_144] : memref<8x3872xf32, #tpu.memory_space<vmem>>, vector<8x3872xf32>
    %c0_145 = arith.constant 0 : index
    %c0_146 = arith.constant 0 : index
    %139 = vector.load %arg8[%c0_145, %c0_146] : memref<3872x10xf32, #tpu.memory_space<vmem>>, vector<3872x10xf32>
    %cst_147 = arith.constant dense<0.000000e+00> : vector<8x10xf32>
    %140 = tpu.matmul %138, %139, %cst_147 {dimension_numbers = #tpu.dot_dimension_numbers<[1], [0], [0], [1], [0, 0, 1, 1], [], []>} : vector<8x3872xf32>, vector<3872x10xf32>, vector<8x10xf32> -> vector<8x10xf32>
    %c0_148 = arith.constant 0 : index
    %c0_149 = arith.constant 0 : index
    %141 = vector.load %arg9[%c0_148, %c0_149] : memref<1x10xf32, #tpu.memory_space<vmem>>, vector<1x10xf32>
    %142 = vector.broadcast %141 : vector<1x10xf32> to vector<8x10xf32>
    %143 = arith.addf %140, %142 : vector<8x10xf32>
    %cst_150 = arith.constant dense<0xFF800000> : vector<8xf32>
    %144 = vector.multi_reduction <maximumf>, %143, %cst_150 [1] : vector<8x10xf32> to vector<8xf32>
    %145 = vector.shape_cast %144 : vector<8xf32> to vector<8x1xf32>
    %146 = vector.broadcast %145 : vector<8x1xf32> to vector<8x10xf32>
    %147 = arith.subf %143, %146 : vector<8x10xf32>
    %148 = math.exp %147 : vector<8x10xf32>
    %cst_151 = arith.constant dense<0.000000e+00> : vector<8xf32>
    %149 = vector.multi_reduction <add>, %148, %cst_151 [1] : vector<8x10xf32> to vector<8xf32>
    %150 = vector.shape_cast %149 : vector<8xf32> to vector<8x1xf32>
    %151 = vector.broadcast %150 : vector<8x1xf32> to vector<8x10xf32>
    %152 = arith.divf %148, %151 : vector<8x10xf32>
    %c0_152 = arith.constant 0 : index
    %c0_153 = arith.constant 0 : index
    %153 = vector.load %arg10[%c0_152, %c0_153] : memref<8x10xf32, #tpu.memory_space<vmem>>, vector<8x10xf32>
    tpu.vector_store %arg10[%c0_152, %c0_153], %152 {strides = array<i32>} : memref<8x10xf32, #tpu.memory_space<vmem>>, vector<8x10xf32>,
    return
  }
  func.func @transform_0(%arg0: i32) -> (i32, i32, i32) {
    %c0_i32 = arith.constant 0 : i32
    %c0_i32_0 = arith.constant 0 : i32
    %c0_i32_1 = arith.constant 0 : i32
    return %arg0, %c0_i32, %c0_i32_0 : i32, i32, i32
  }
  func.func @transform_1(%arg0: i32) -> (i32, i32, i32) {
    %c0_i32 = arith.constant 0 : i32
    %c0_i32_0 = arith.constant 0 : i32
    %c0_i32_1 = arith.constant 0 : i32
    %c0_i32_2 = arith.constant 0 : i32
    return %c0_i32, %c0_i32_0, %c0_i32_1 : i32, i32, i32
  }
  func.func @transform_2(%arg0: i32) -> (i32, i32) {
    %c0_i32 = arith.constant 0 : i32
    %c0_i32_0 = arith.constant 0 : i32
    %c0_i32_1 = arith.constant 0 : i32
    return %c0_i32, %c0_i32_0 : i32, i32
  }
  func.func @transform_3(%arg0: i32) -> (i32, i32) {
    %c0_i32 = arith.constant 0 : i32
    %c0_i32_0 = arith.constant 0 : i32
    %c0_i32_1 = arith.constant 0 : i32
    return %c0_i32, %c0_i32_0 : i32, i32
  }
  func.func @transform_4(%arg0: i32) -> (i32, i32, i32) {
    %c0_i32 = arith.constant 0 : i32
    %c0_i32_0 = arith.constant 0 : i32
    %c0_i32_1 = arith.constant 0 : i32
    %c0_i32_2 = arith.constant 0 : i32
    return %c0_i32, %c0_i32_0, %c0_i32_1 : i32, i32, i32
  }
  func.func @transform_5(%arg0: i32) -> (i32, i32) {
    %c0_i32 = arith.constant 0 : i32
    %c0_i32_0 = arith.constant 0 : i32
    %c0_i32_1 = arith.constant 0 : i32
    return %c0_i32, %c0_i32_0 : i32, i32
  }
  func.func @transform_6(%arg0: i32) -> (i32, i32) {
    %c0_i32 = arith.constant 0 : i32
    %c0_i32_0 = arith.constant 0 : i32
    %c0_i32_1 = arith.constant 0 : i32
    return %c0_i32, %c0_i32_0 : i32, i32
  }
  func.func @transform_7(%arg0: i32) -> (i32, i32) {
    %c0_i32 = arith.constant 0 : i32
    %c0_i32_0 = arith.constant 0 : i32
    %c0_i32_1 = arith.constant 0 : i32
    return %c0_i32, %c0_i32_0 : i32, i32
  }
  func.func @transform_8(%arg0: i32) -> (i32, i32) {
    %c0_i32 = arith.constant 0 : i32
    %c0_i32_0 = arith.constant 0 : i32
    %c0_i32_1 = arith.constant 0 : i32
    return %c0_i32, %c0_i32_0 : i32, i32
  }
  func.func @transform_9(%arg0: i32) -> (i32, i32) {
    %c0_i32 = arith.constant 0 : i32
    %c0_i32_0 = arith.constant 0 : i32
    return %arg0, %c0_i32 : i32, i32
  }
}

</mosaic_0001>

<llo_original>
// kernel: tpu_custom_call.1
$region0: #{tpu_custom_call.1}
  #allocation0 [shape = 'u32[]', space=smem, size = 0x4, offset = 0x4, fixed_abs, tag = 'smem constant byte address 0x4 - core index']
  #allocation1 [shape = 'u32[72,128]{1,0:T(1,128)}', space=vmem, size = 0x9000, scoped, tag = 'internal scratch']
  #allocation2 [shape = 'f32[8,26,384]{2,1,0:T(8,128)}', space=vmem, size = 0x60000, scoped, tag = 'scratch operand']
  #allocation3 [shape = 'f32[8,24,176]{2,1,0:T(8,128)}', space=vmem, size = 0x30000, scoped, tag = 'scratch operand']
  #allocation4 [shape = 'f32[8,3872]{1,0:T(8,128)}', space=vmem, size = 0x1f000, scoped, tag = 'scratch operand']
  %s0 = inlined_call_operand.vmem [shape: f32[16,28,28], index: 0, kind: input, shape index: {}]
  %s1 = inlined_call_operand.vmem [shape: f32[5,28,384], index: 1, kind: input, shape index: {}]
  %s2 = inlined_call_operand.vmem [shape: f32[1,384], index: 2, kind: input, shape index: {}]
  %s3 = inlined_call_operand.vmem [shape: f32[1,384], index: 3, kind: input, shape index: {}]
  %s4 = inlined_call_operand.vmem [shape: f32[3,384,176], index: 4, kind: input, shape index: {}]
  %s5 = inlined_call_operand.vmem [shape: f32[1,176], index: 5, kind: input, shape index: {}]
  %s6 = inlined_call_operand.vmem [shape: f32[1,176], index: 6, kind: input, shape index: {}]
  %s7 = inlined_call_operand.vmem [shape: f32[3872,10], index: 7, kind: input, shape index: {}]
  %s8 = inlined_call_operand.vmem [shape: f32[1,10], index: 8, kind: input, shape index: {}]
  %s9 = inlined_call_operand.hbm [shape: f32[16,10], index: 9, kind: output, shape index: {}]
  %s10 = sld [smem:[#allocation0]]
  $region69: #{tpu_custom_call.1} parent=0
    _
  %s12 = ssub.s32 1, %s10
  %s13 = scalar_select 0, %s12, %s10
  $region1: #{tpu_custom_call.1} parent=0
    #allocation5 [shape = 'u8[8192]{0}', space=vmem, size = 0x2000, scoped, tag = 'output window, operand 0']
    #allocation6 [shape = 's32[2]{0}', space=sflag, size = 0x8, scoped, tag = 'scoped memory for tpu_custom_call.1']
    %14 = vsyncpa [#allocation6], 0
    %s15 = scalar_lea.sflag [#allocation6], 1
    %16 = vsyncpa %s15, 0
    loop: start=0, step=1, limit=4
    $region2: #{tpu_custom_call.1} parent=1 // loop_pre_header
      _
    $region3: #{tpu_custom_call.1} parent=1 // loop_header
      %s18 = sphi 0, %s22
      %p19 = scmp.ge.s32.totalorder %s18, 4
      %s28 = sphi 0, %s30
      %s31 = sphi 0, %s28
      %s32 = sphi 0, %s31
      %s48 = sphi 0, %s32
      %s52 = sphi 0, %s52
      %s54 = sphi 0, %s52
      %s55 = sphi 0, %s54
      %s69 = sphi 0, %s55
      %s73 = sphi 0, %s73
      %s75 = sphi 0, %s73
      %s76 = sphi 0, %s75
      %s90 = sphi 0, %s76
      %s94 = sphi 0, %s94
      %s96 = sphi 0, %s94
      %s97 = sphi 0, %s96
      %s111 = sphi 0, %s97
      %s115 = sphi 0, %s115
      %s117 = sphi 0, %s115
      %s118 = sphi 0, %s117
      %s132 = sphi 0, %s118
      %s136 = sphi 0, %s136
      %s138 = sphi 0, %s136
      %s139 = sphi 0, %s138
      %s153 = sphi 0, %s139
      %s157 = sphi 0, %s157
      %s159 = sphi 0, %s157
      %s160 = sphi 0, %s159
      %s174 = sphi 0, %s160
      %s178 = sphi 0, %s178
      %s180 = sphi 0, %s178
      %s181 = sphi 0, %s180
      %s195 = sphi 0, %s181
      %s199 = sphi 0, %s199
      %s201 = sphi 0, %s199
      %s202 = sphi 0, %s201
      %s216 = sphi 0, %s202
      %s222 = sphi 0, %s224
      %s225 = sphi 0, %s222
      %s226 = sphi 0, %s225
      %s242 = sphi 0, %s226
    $region4: #{tpu_custom_call.1} parent=1 // loop_header_branch
      %21 = sbr.rel (%p19) target = $region8
    $region5: #{tpu_custom_call.1} parent=1 // loop_body
      %s23 = ssub.s32 %s18, 1
      %s24 = ssub.s32 %s18, 2
      %s25 = sadd.s32 %s18, 1
      %s26 = ssub.s32 %s18, %s25
      %p27 = scmp.eq.s32.totalorder %s26, 0
      %s29 = sadd.s32 %s28, 1
      %s30 = scalar_select %p27, %s28, %s29
      %p33 = pneg %p27
      %p34 = scmp.eq.s32.totalorder %s18, 1
      %p35 = por %p33, %p34
      %p36 = scmp.ne.s32.totalorder %s28, %s31
      %p37 = scmp.eq.s32.totalorder %s18, 0
      %p38 = por %p36, %p37
      %p39 = scmp.ne.s32.totalorder %s28, %s31
      %p40 = scmp.eq.s32.totalorder %s23, 1
      %p41 = por %p39, %p40
      %p42 = scmp.ne.s32.totalorder %s31, %s32
      %p43 = scmp.eq.s32.totalorder %s23, 0
      %p44 = por %p42, %p43
      %p45 = scmp.ne.s32.totalorder %s31, %s32
      %p46 = scmp.eq.s32.totalorder %s24, 1
      %p47 = por %p45, %p46
      %p49 = scmp.ne.s32.totalorder %s32, %s48
      %p50 = scmp.eq.s32.totalorder %s24, 0
      %p51 = por %p49, %p50
      %s53 = sadd.s32 %s52, 1
      %p56 = scmp.eq.s32.totalorder %s18, 1
      %p57 = scmp.ne.s32.totalorder %s52, %s54
      %p58 = scmp.eq.s32.totalorder %s18, 0
      %p59 = por %p57, %p58
      %p60 = scmp.ne.s32.totalorder %s52, %s54
      %p61 = scmp.eq.s32.totalorder %s23, 1
      %p62 = por %p60, %p61
      %p63 = scmp.ne.s32.totalorder %s54, %s55
      %p64 = scmp.eq.s32.totalorder %s23, 0
      %p65 = por %p63, %p64
      %p66 = scmp.ne.s32.totalorder %s54, %s55
      %p67 = scmp.eq.s32.totalorder %s24, 1
      %p68 = por %p66, %p67
      %p70 = scmp.ne.s32.totalorder %s55, %s69
      %p71 = scmp.eq.s32.totalorder %s24, 0
      %p72 = por %p70, %p71
      %s74 = sadd.s32 %s73, 1
      %p77 = scmp.eq.s32.totalorder %s18, 1
      %p78 = scmp.ne.s32.totalorder %s73, %s75
      %p79 = scmp.eq.s32.totalorder %s18, 0
      %p80 = por %p78, %p79
      %p81 = scmp.ne.s32.totalorder %s73, %s75
      %p82 = scmp.eq.s32.totalorder %s23, 1
      %p83 = por %p81, %p82
      %p84 = scmp.ne.s32.totalorder %s75, %s76
      %p85 = scmp.eq.s32.totalorder %s23, 0
      %p86 = por %p84, %p85
      %p87 = scmp.ne.s32.totalorder %s75, %s76
      %p88 = scmp.eq.s32.totalorder %s24, 1
      %p89 = por %p87, %p88
      %p91 = scmp.ne.s32.totalorder %s76, %s90
      %p92 = scmp.eq.s32.totalorder %s24, 0
      %p93 = por %p91, %p92
      %s95 = sadd.s32 %s94, 1
      %p98 = scmp.eq.s32.totalorder %s18, 1
      %p99 = scmp.ne.s32.totalorder %s94, %s96
      %p100 = scmp.eq.s32.totalorder %s18, 0
      %p101 = por %p99, %p100
      %p102 = scmp.ne.s32.totalorder %s94, %s96
      %p103 = scmp.eq.s32.totalorder %s23, 1
      %p104 = por %p102, %p103
      %p105 = scmp.ne.s32.totalorder %s96, %s97
      %p106 = scmp.eq.s32.totalorder %s23, 0
      %p107 = por %p105, %p106
      %p108 = scmp.ne.s32.totalorder %s96, %s97
      %p109 = scmp.eq.s32.totalorder %s24, 1
      %p110 = por %p108, %p109
      %p112 = scmp.ne.s32.totalorder %s97, %s111
      %p113 = scmp.eq.s32.totalorder %s24, 0
      %p114 = por %p112, %p113
      %s116 = sadd.s32 %s115, 1
      %p119 = scmp.eq.s32.totalorder %s18, 1
      %p120 = scmp.ne.s32.totalorder %s115, %s117
      %p121 = scmp.eq.s32.totalorder %s18, 0
      %p122 = por %p120, %p121
      %p123 = scmp.ne.s32.totalorder %s115, %s117
      %p124 = scmp.eq.s32.totalorder %s23, 1
      %p125 = por %p123, %p124
      %p126 = scmp.ne.s32.totalorder %s117, %s118
      %p127 = scmp.eq.s32.totalorder %s23, 0
      %p128 = por %p126, %p127
      %p129 = scmp.ne.s32.totalorder %s117, %s118
      %p130 = scmp.eq.s32.totalorder %s24, 1
      %p131 = por %p129, %p130
      %p133 = scmp.ne.s32.totalorder %s118, %s132
      %p134 = scmp.eq.s32.totalorder %s24, 0
      %p135 = por %p133, %p134
      %s137 = sadd.s32 %s136, 1
      %p140 = scmp.eq.s32.totalorder %s18, 1
      %p141 = scmp.ne.s32.totalorder %s136, %s138
      %p142 = scmp.eq.s32.totalorder %s18, 0
      %p143 = por %p141, %p142
      %p144 = scmp.ne.s32.totalorder %s136, %s138
      %p145 = scmp.eq.s32.totalorder %s23, 1
      %p146 = por %p144, %p145
      %p147 = scmp.ne.s32.totalorder %s138, %s139
      %p148 = scmp.eq.s32.totalorder %s23, 0
      %p149 = por %p147, %p148
      %p150 = scmp.ne.s32.totalorder %s138, %s139
      %p151 = scmp.eq.s32.totalorder %s24, 1
      %p152 = por %p150, %p151
      %p154 = scmp.ne.s32.totalorder %s139, %s153
      %p155 = scmp.eq.s32.totalorder %s24, 0
      %p156 = por %p154, %p155
      %s158 = sadd.s32 %s157, 1
      %p161 = scmp.eq.s32.totalorder %s18, 1
      %p162 = scmp.ne.s32.totalorder %s157, %s159
      %p163 = scmp.eq.s32.totalorder %s18, 0
      %p164 = por %p162, %p163
      %p165 = scmp.ne.s32.totalorder %s157, %s159
      %p166 = scmp.eq.s32.totalorder %s23, 1
      %p167 = por %p165, %p166
      %p168 = scmp.ne.s32.totalorder %s159, %s160
      %p169 = scmp.eq.s32.totalorder %s23, 0
      %p170 = por %p168, %p169
      %p171 = scmp.ne.s32.totalorder %s159, %s160
      %p172 = scmp.eq.s32.totalorder %s24, 1
      %p173 = por %p171, %p172
      %p175 = scmp.ne.s32.totalorder %s160, %s174
      %p176 = scmp.eq.s32.totalorder %s24, 0
      %p177 = por %p175, %p176
      %s179 = sadd.s32 %s178, 1
      %p182 = scmp.eq.s32.totalorder %s18, 1
      %p183 = scmp.ne.s32.totalorder %s178, %s180
      %p184 = scmp.eq.s32.totalorder %s18, 0
      %p185 = por %p183, %p184
      %p186 = scmp.ne.s32.totalorder %s178, %s180
      %p187 = scmp.eq.s32.totalorder %s23, 1
      %p188 = por %p186, %p187
      %p189 = scmp.ne.s32.totalorder %s180, %s181
      %p190 = scmp.eq.s32.totalorder %s23, 0
      %p191 = por %p189, %p190
      %p192 = scmp.ne.s32.totalorder %s180, %s181
      %p193 = scmp.eq.s32.totalorder %s24, 1
      %p194 = por %p192, %p193
      %p196 = scmp.ne.s32.totalorder %s181, %s195
      %p197 = scmp.eq.s32.totalorder %s24, 0
      %p198 = por %p196, %p197
      %s200 = sadd.s32 %s199, 1
      %p203 = scmp.eq.s32.totalorder %s18, 1
      %p204 = scmp.ne.s32.totalorder %s199, %s201
      %p205 = scmp.eq.s32.totalorder %s18, 0
      %p206 = por %p204, %p205
      %p207 = scmp.ne.s32.totalorder %s199, %s201
      %p208 = scmp.eq.s32.totalorder %s23, 1
      %p209 = por %p207, %p208
      %p210 = scmp.ne.s32.totalorder %s201, %s202
      %p211 = scmp.eq.s32.totalorder %s23, 0
      %p212 = por %p210, %p211
      %p213 = scmp.ne.s32.totalorder %s201, %s202
      %p214 = scmp.eq.s32.totalorder %s24, 1
      %p215 = por %p213, %p214
      %p217 = scmp.ne.s32.totalorder %s202, %s216
      %p218 = scmp.eq.s32.totalorder %s24, 0
      %p219 = por %p217, %p218
      %s220 = ssub.s32 %s18, %s25
      %p221 = scmp.eq.s32.totalorder %s220, 0
      %s223 = sadd.s32 %s222, 1
      %s224 = scalar_select %p221, %s222, %s223
      %p227 = pneg %p221
      %p228 = scmp.eq.s32.totalorder %s18, 1
      %p229 = por %p227, %p228
      %p230 = scmp.ne.s32.totalorder %s222, %s225
      %p231 = scmp.eq.s32.totalorder %s18, 0
      %p232 = por %p230, %p231
      %p233 = scmp.ne.s32.totalorder %s222, %s225
      %p234 = scmp.eq.s32.totalorder %s23, 1
      %p235 = por %p233, %p234
      %p236 = scmp.ne.s32.totalorder %s225, %s226
      %p237 = scmp.eq.s32.totalorder %s23, 0
      %p238 = por %p236, %p237
      %p239 = scmp.ne.s32.totalorder %s225, %s226
      %p240 = scmp.eq.s32.totalorder %s24, 1
      %p241 = por %p239, %p240
      %p243 = scmp.ne.s32.totalorder %s226, %s242
      %p244 = scmp.eq.s32.totalorder %s24, 0
      %p245 = por %p243, %p244
      %p246 = scmp.le.s32.totalorder 1, %s18
      %p247 = scmp.lt.s32.totalorder %s18, 3
      %p248 = pnand %p246, %p247
      %p249 = pneg %p248
      // Predicated region
      $region9: #{tpu_custom_call.1} parent=5 // pred_check
        _
      $region10: #{tpu_custom_call.1} parent=5 // pred_check_branch
        %251 = sbr.rel (%p248) target = $region12
      $region11: #{tpu_custom_call.1} parent=5 // pred_region
        %s252 = ssub.s32 %s18, 1
        // Predicated region
        $region13: #{tpu_custom_call.1} parent=11 // pred_check
          %p253 = pneg %p65
        $region14: #{tpu_custom_call.1} parent=11 // pred_check_branch
          %255 = sbr.rel (%p253) target = $region16
        $region15: #{tpu_custom_call.1} parent=11 // pred_region
          _
        $region16: #{tpu_custom_call.1} parent=11 // pred_fallthru
          _
        // Predicated region
        $region17: #{tpu_custom_call.1} parent=11 // pred_check
          %p256 = pneg %p86
        $region18: #{tpu_custom_call.1} parent=11 // pred_check_branch
          %258 = sbr.rel (%p256) target = $region20
        $region19: #{tpu_custom_call.1} parent=11 // pred_region
          _
        $region20: #{tpu_custom_call.1} parent=11 // pred_fallthru
          _
        // Predicated region
        $region21: #{tpu_custom_call.1} parent=11 // pred_check
          %p259 = pneg %p107
        $region22: #{tpu_custom_call.1} parent=11 // pred_check_branch
          %261 = sbr.rel (%p259) target = $region24
        $region23: #{tpu_custom_call.1} parent=11 // pred_region
          _
        $region24: #{tpu_custom_call.1} parent=11 // pred_fallthru
          _
        // Predicated region
        $region25: #{tpu_custom_call.1} parent=11 // pred_check
          %p262 = pneg %p128
        $region26: #{tpu_custom_call.1} parent=11 // pred_check_branch
          %264 = sbr.rel (%p262) target = $region28
        $region27: #{tpu_custom_call.1} parent=11 // pred_region
          _
        $region28: #{tpu_custom_call.1} parent=11 // pred_fallthru
          _
        // Predicated region
        $region29: #{tpu_custom_call.1} parent=11 // pred_check
          %p265 = pneg %p149
        $region30: #{tpu_custom_call.1} parent=11 // pred_check_branch
          %267 = sbr.rel (%p265) target = $region32
        $region31: #{tpu_custom_call.1} parent=11 // pred_region
          _
        $region32: #{tpu_custom_call.1} parent=11 // pred_fallthru
          _
        // Predicated region
        $region33: #{tpu_custom_call.1} parent=11 // pred_check
          %p268 = pneg %p170
        $region34: #{tpu_custom_call.1} parent=11 // pred_check_branch
          %270 = sbr.rel (%p268) target = $region36
        $region35: #{tpu_custom_call.1} parent=11 // pred_region
          _
        $region36: #{tpu_custom_call.1} parent=11 // pred_fallthru
          _
        // Predicated region
        $region37: #{tpu_custom_call.1} parent=11 // pred_check
          %p271 = pneg %p191
        $region38: #{tpu_custom_call.1} parent=11 // pred_check_branch
          %273 = sbr.rel (%p271) target = $region40
        $region39: #{tpu_custom_call.1} parent=11 // pred_region
          _
        $region40: #{tpu_custom_call.1} parent=11 // pred_fallthru
          _
        // Predicated region
        $region41: #{tpu_custom_call.1} parent=11 // pred_check
          %p274 = pneg %p212
        $region42: #{tpu_custom_call.1} parent=11 // pred_check_branch
          %276 = sbr.rel (%p274) target = $region44
        $region43: #{tpu_custom_call.1} parent=11 // pred_region
          _
        $region44: #{tpu_custom_call.1} parent=11 // pred_fallthru
          _
      $region12: #{tpu_custom_call.1} parent=5 // pred_fallthru
        _
      %p277 = scmp.lt.s32.totalorder %s18, 2
      // Predicated region
      $region45: #{tpu_custom_call.1} parent=5 // pred_check
        %p278 = pneg %p277
      $region46: #{tpu_custom_call.1} parent=5 // pred_check_branch
        %280 = sbr.rel (%p278) target = $region48
      $region47: #{tpu_custom_call.1} parent=5 // pred_region
        // Predicated region
        $region49: #{tpu_custom_call.1} parent=47 // pred_check
          %p281 = pneg %p38
        $region50: #{tpu_custom_call.1} parent=47 // pred_check_branch
          %283 = sbr.rel (%p281) target = $region52
        $region51: #{tpu_custom_call.1} parent=47 // pred_region
          %s284 = smul.u32 8, %s18
          %p285 = scmp.lt.s32.totalorder %s284, 15
          %s286 = scalar_select %p285, %s284, 15
          %s287 = smul.addr %s286, 4
          %s288 = smul.addr %s287, 8
          %s289 = scalar_lea.vmem %s0, %s288
          %s290 = smul.u32 8, %s18
        $region52: #{tpu_custom_call.1} parent=47 // pred_fallthru
          _
      $region48: #{tpu_custom_call.1} parent=5 // pred_fallthru
        _
      %p291 = scmp.le.s32.totalorder 1, %s18
      %p292 = scmp.lt.s32.totalorder %s18, 3
      %p293 = pnand %p291, %p292
      %p294 = pneg %p293
      // Predicated region
      $region53: #{tpu_custom_call.1} parent=5 // pred_check
        _
      $region54: #{tpu_custom_call.1} parent=5 // pred_check_branch
        %296 = sbr.rel (%p293) target = $region56
      $region55: #{tpu_custom_call.1} parent=5 // pred_region
        %s297 = ssub.s32 %s18, 1
        %s298 = smul.u32 8, %s23
        %p299 = scmp.lt.s32.totalorder %s298, 15
        %s300 = scalar_select %p299, %s298, 15
        %s301 = smul.addr %s300, 4
        %s302 = smul.addr %s301, 8
        %s303 = scalar_lea.vmem %s0, %s302
        %p304 = pneg %p44
        %p305 = pneg %p41
        %p306 = pneg %p65
        %p307 = pneg %p62
        %p308 = pneg %p86
        %p309 = pneg %p83
        %p310 = pneg %p107
        %p311 = pneg %p104
        %p312 = pneg %p128
        %p313 = pneg %p125
        %p314 = pneg %p149
        %p315 = pneg %p146
        %p316 = pneg %p170
        %p317 = pneg %p167
        %p318 = pneg %p191
        %p319 = pneg %p188
        %p320 = pneg %p212
        %p321 = pneg %p209
        %p322 = pneg %p238
        %p323 = pneg %p235
        %s324 = sand.u32 %s225, 1
        %s325 = scalar_lea.sflag [#allocation6], %s324
        %s326 = sand.u32 %s225, 1
        %s327 = smul.addr %s326, 8
        %s328 = scalar_lea.vmem [#allocation5], %s327
        %s329 = smul.u32 8, %s23
        %p330 = scmp.lt.s32.totalorder %s329, 15
        %s331 = scalar_select %p330, %s329, 15
        %s332 = smul.addr %s331, 4
        %s333 = smul.addr %s332, 8
        %s334 = scalar_lea.vmem %s0, %s333
        %s335 = smul.u32 8, %s23
        %v336 = vld [vmem:[%s334] sm:$0xff]
        %v337 = vld [vmem:[%s334 + $0x8] sm:$0xff]
        %v338 = vld [vmem:[%s334 + $0x10] sm:$0xff]
        %v339 = vld [vmem:[%s334 + $0x20] sm:$0xff]
        %v340 = vld [vmem:[%s334 + $0x28] sm:$0xff]
        %v341 = vld [vmem:[%s334 + $0x30] sm:$0xff]
        %v342 = vld [vmem:[%s334 + $0x40] sm:$0xff]
        %v343 = vld [vmem:[%s334 + $0x48] sm:$0xff]
        %v344 = vld [vmem:[%s334 + $0x50] sm:$0xff]
        %v345 = vld [vmem:[%s334 + $0x60] sm:$0xff]
        %v346 = vld [vmem:[%s334 + $0x68] sm:$0xff]
        %v347 = vld [vmem:[%s334 + $0x70] sm:$0xff]
        %v348 = vld [vmem:[%s334 + $0x80] sm:$0xff]
        %v349 = vld [vmem:[%s334 + $0x88] sm:$0xff]
        %v350 = vld [vmem:[%s334 + $0x90] sm:$0xff]
        %v351 = vld [vmem:[%s334 + $0xa0] sm:$0xff]
        %v352 = vld [vmem:[%s334 + $0xa8] sm:$0xff]
        %v353 = vld [vmem:[%s334 + $0xb0] sm:$0xff]
        %v354 = vld [vmem:[%s334 + $0xc0] sm:$0xff]
        %v355 = vld [vmem:[%s334 + $0xc8] sm:$0xff]
        %v356 = vld [vmem:[%s334 + $0xd0] sm:$0xff]
        %v357 = vld [vmem:[%s334 + $0xe0] sm:$0xff]
        %v358 = vld [vmem:[%s334 + $0xe8] sm:$0xff]
        %v359 = vld [vmem:[%s334 + $0xf0] sm:$0xff]
        %v360 = vld [vmem:[%s1] sm:$0xff]
        %v361 = vld [vmem:[%s1 + $0x8] sm:$0xff]
        %v362 = vld [vmem:[%s1 + $0x10] sm:$0xff]
        %v363 = vld [vmem:[%s1 + $0x18] sm:$0xff]
        %v364 = vld [vmem:[%s1 + $0x20] sm:$0xff]
        %v365 = vld [vmem:[%s1 + $0x28] sm:$0xff]
        %v366 = vld [vmem:[%s1 + $0x30] sm:$0xff]
        %v367 = vld [vmem:[%s1 + $0x38] sm:$0xff]
        %v368 = vld [vmem:[%s1 + $0x40] sm:$0xff]
        %v369 = vld [vmem:[%s1 + $0x48] sm:$0xf]
        %v370 = vld [vmem:[%s1 + $0x50] sm:$0xf]
        %v371 = vld [vmem:[%s1 + $0x58] sm:$0xf]
        %v372 = vld [vmem:[%s334 + $0x1] sm:$0xff]
        %v373 = vld [vmem:[%s334 + $0x9] sm:$0xff]
        %v374 = vld [vmem:[%s334 + $0x11] sm:$0xff]
        %v375 = vld [vmem:[%s334 + $0x21] sm:$0xff]
        %v376 = vld [vmem:[%s334 + $0x29] sm:$0xff]
        %v377 = vld [vmem:[%s334 + $0x31] sm:$0xff]
        %v378 = vld [vmem:[%s334 + $0x41] sm:$0xff]
        %v379 = vld [vmem:[%s334 + $0x49] sm:$0xff]
        %v380 = vld [vmem:[%s334 + $0x51] sm:$0xff]
        %v381 = vld [vmem:[%s334 + $0x61] sm:$0xff]
        %v382 = vld [vmem:[%s334 + $0x69] sm:$0xff]
        %v383 = vld [vmem:[%s334 + $0x71] sm:$0xff]
        %v384 = vld [vmem:[%s334 + $0x81] sm:$0xff]
        %v385 = vld [vmem:[%s334 + $0x89] sm:$0xff]
        %v386 = vld [vmem:[%s334 + $0x91] sm:$0xff]
        %v387 = vld [vmem:[%s334 + $0xa1] sm:$0xff]
        %v388 = vld [vmem:[%s334 + $0xa9] sm:$0xff]
        %v389 = vld [vmem:[%s334 + $0xb1] sm:$0xff]
        %v390 = vld [vmem:[%s334 + $0xc1] sm:$0xff]
        %v391 = vld [vmem:[%s334 + $0xc9] sm:$0xff]
        %v392 = vld [vmem:[%s334 + $0xd1] sm:$0xff]
        %v393 = vld [vmem:[%s334 + $0xe1] sm:$0xff]
        %v394 = vld [vmem:[%s334 + $0xe9] sm:$0xff]
        %v395 = vld [vmem:[%s334 + $0xf1] sm:$0xff]
        %s396 = scalar_lea.vmem %s1, 96
        %v397 = vld [vmem:[%s396] sm:$0xff]
        %v398 = vld [vmem:[%s396 + $0x8] sm:$0xff]
        %v399 = vld [vmem:[%s396 + $0x10] sm:$0xff]
        %v400 = vld [vmem:[%s396 + $0x18] sm:$0xff]
        %v401 = vld [vmem:[%s396 + $0x20] sm:$0xff]
        %v402 = vld [vmem:[%s396 + $0x28] sm:$0xff]
        %v403 = vld [vmem:[%s396 + $0x30] sm:$0xff]
        %v404 = vld [vmem:[%s396 + $0x38] sm:$0xff]
        %v405 = vld [vmem:[%s396 + $0x40] sm:$0xff]
        %v406 = vld [vmem:[%s396 + $0x48] sm:$0xf]
        %v407 = vld [vmem:[%s396 + $0x50] sm:$0xf]
        %v408 = vld [vmem:[%s396 + $0x58] sm:$0xf]
        %vm409 = vcmask 228352
        %v411 = vsel %vm409, %v372, 0
        %v414 = vsel %vm409, %v373, 0
        %v417 = vsel %vm409, %v374, 0
        %v420 = vsel %vm409, %v375, 0
        %v423 = vsel %vm409, %v376, 0
        %v426 = vsel %vm409, %v377, 0
        %v429 = vsel %vm409, %v378, 0
        %v432 = vsel %vm409, %v379, 0
        %v435 = vsel %vm409, %v380, 0
        %v438 = vsel %vm409, %v381, 0
        %v441 = vsel %vm409, %v382, 0
        %v444 = vsel %vm409, %v383, 0
        %v447 = vsel %vm409, %v384, 0
        %v450 = vsel %vm409, %v385, 0
        %v453 = vsel %vm409, %v386, 0
        %v456 = vsel %vm409, %v387, 0
        %v459 = vsel %vm409, %v388, 0
        %v462 = vsel %vm409, %v389, 0
        %v465 = vsel %vm409, %v390, 0
        %v468 = vsel %vm409, %v391, 0
        %v471 = vsel %vm409, %v392, 0
        %v474 = vsel %vm409, %v393, 0
        %v477 = vsel %vm409, %v394, 0
        %v480 = vsel %vm409, %v395, 0
        %vm482 = vcmask 1043456
        %v484 = vsel %vm482, %v406, 0
        %v487 = vsel %vm482, %v407, 0
        %v490 = vsel %vm482, %v408, 0
        %492 = vmatpush.msra.mxu0 0.0
        %493 = vmatpush.msra.mxu0 0.0
        %494 = vmatpush.msra.mxu0 0.0
        %495 = vmatpush.msra.mxu0 0.0
        %496 = vmatpush.msra.mxu0 0.0
        %497 = vmatpush.msra.mxu0 0.0
        %498 = vmatpush.msra.mxu0 0.0
        %499 = vmatpush.msra.mxu0 0.0
        %500 = vmatpush.msra.mxu0 0.0
        %501 = vmatpush.msra.mxu0 0.0
        %502 = vmatpush.msra.mxu0 0.0
        %503 = vmatpush.msra.mxu0 0.0
        %504 = vmatpush.msra.mxu0 %v484
        %505 = vmatpush.msra.mxu0 %v403
        %506 = vmatpush.msra.mxu0 %v400
        %507 = vmatpush.msra.mxu0 %v397
        %508 = vmatmul.f32.gmra.mxu0 %v411
        %v509 = vpop.f32.mrf.mxu0
        %v510 = vadd.f32 0.0, %v509
        %511 = vmatmul.f32.gmra.mxu0 %v414
        %v512 = vpop.f32.mrf.mxu0
        %v513 = vadd.f32 0.0, %v512
        %514 = vmatmul.f32.gmra.mxu0 %v417
        %v515 = vpop.f32.mrf.mxu0
        %v516 = vadd.f32 0.0, %v515
        %517 = vmatmul.f32.gmra.mxu0 %v420
        %v518 = vpop.f32.mrf.mxu0
        %v519 = vadd.f32 0.0, %v518
        %520 = vmatmul.f32.gmra.mxu0 %v423
        %v521 = vpop.f32.mrf.mxu0
        %v522 = vadd.f32 0.0, %v521
        %523 = vmatmul.f32.gmra.mxu0 %v426
        %v524 = vpop.f32.mrf.mxu0
        %v525 = vadd.f32 0.0, %v524
        %526 = vmatmul.f32.gmra.mxu0 %v429
        %v527 = vpop.f32.mrf.mxu0
        %v528 = vadd.f32 0.0, %v527
        %529 = vmatmul.f32.gmra.mxu0 %v432
        %v530 = vpop.f32.mrf.mxu0
        %v531 = vadd.f32 0.0, %v530
        %532 = vmatmul.f32.gmra.mxu0 %v435
        %v533 = vpop.f32.mrf.mxu0
        %v534 = vadd.f32 0.0, %v533
        %535 = vmatmul.f32.gmra.mxu0 %v438
        %v536 = vpop.f32.mrf.mxu0
        %v537 = vadd.f32 0.0, %v536
        %538 = vmatmul.f32.gmra.mxu0 %v441
        %v539 = vpop.f32.mrf.mxu0
        %v540 = vadd.f32 0.0, %v539
        %541 = vmatmul.f32.gmra.mxu0 %v444
        %v542 = vpop.f32.mrf.mxu0
        %v543 = vadd.f32 0.0, %v542
        %544 = vmatmul.f32.gmra.mxu0 %v447
        %v545 = vpop.f32.mrf.mxu0
        %v546 = vadd.f32 0.0, %v545
        %547 = vmatmul.f32.gmra.mxu0 %v450
        %v548 = vpop.f32.mrf.mxu0
        %v549 = vadd.f32 0.0, %v548
        %550 = vmatmul.f32.gmra.mxu0 %v453
        %v551 = vpop.f32.mrf.mxu0
        %v552 = vadd.f32 0.0, %v551
        %553 = vmatmul.f32.gmra.mxu0 %v456
        %v554 = vpop.f32.mrf.mxu0
        %v555 = vadd.f32 0.0, %v554
        %556 = vmatmul.f32.gmra.mxu0 %v459
        %v557 = vpop.f32.mrf.mxu0
        %v558 = vadd.f32 0.0, %v557
        %559 = vmatmul.f32.gmra.mxu0 %v462
        %v560 = vpop.f32.mrf.mxu0
        %v561 = vadd.f32 0.0, %v560
        %562 = vmatmul.f32.gmra.mxu0 %v465
        %v563 = vpop.f32.mrf.mxu0
        %v564 = vadd.f32 0.0, %v563
        %565 = vmatmul.f32.gmra.mxu0 %v468
        %v566 = vpop.f32.mrf.mxu0
        %v567 = vadd.f32 0.0, %v566
        %568 = vmatmul.f32.gmra.mxu0 %v471
        %v569 = vpop.f32.mrf.mxu0
        %v570 = vadd.f32 0.0, %v569
        %571 = vmatmul.f32.gmra.mxu0 %v474
        %v572 = vpop.f32.mrf.mxu0
        %v573 = vadd.f32 0.0, %v572
        %574 = vmatmul.f32.gmra.mxu0 %v477
        %v575 = vpop.f32.mrf.mxu0
        %v576 = vadd.f32 0.0, %v575
        %577 = vmatmul.f32.gmra.mxu0 %v480
        %v578 = vpop.f32.mrf.mxu0
        %v579 = vadd.f32 0.0, %v578
        %580 = vdwg.mxu0
        %581 = vmatpush.msra.mxu0 0.0
        %582 = vmatpush.msra.mxu0 0.0
        %583 = vmatpush.msra.mxu0 0.0
        %584 = vmatpush.msra.mxu0 0.0
        %585 = vmatpush.msra.mxu0 0.0
        %586 = vmatpush.msra.mxu0 0.0
        %587 = vmatpush.msra.mxu0 0.0
        %588 = vmatpush.msra.mxu0 0.0
        %589 = vmatpush.msra.mxu0 0.0
        %590 = vmatpush.msra.mxu0 0.0
        %591 = vmatpush.msra.mxu0 0.0
        %592 = vmatpush.msra.mxu0 0.0
        %593 = vmatpush.msra.mxu0 %v487
        %594 = vmatpush.msra.mxu0 %v404
        %595 = vmatpush.msra.mxu0 %v401
        %596 = vmatpush.msra.mxu0 %v398
        %597 = vmatmul.f32.gmra.mxu0 %v411
        %v598 = vpop.f32.mrf.mxu0
        %v599 = vadd.f32 0.0, %v598
        %600 = vmatmul.f32.gmra.mxu0 %v414
        %v601 = vpop.f32.mrf.mxu0
        %v602 = vadd.f32 0.0, %v601
        %603 = vmatmul.f32.gmra.mxu0 %v417
        %v604 = vpop.f32.mrf.mxu0
        %v605 = vadd.f32 0.0, %v604
        %606 = vmatmul.f32.gmra.mxu0 %v420
        %v607 = vpop.f32.mrf.mxu0
        %v608 = vadd.f32 0.0, %v607
        %609 = vmatmul.f32.gmra.mxu0 %v423
        %v610 = vpop.f32.mrf.mxu0
        %v611 = vadd.f32 0.0, %v610
        %612 = vmatmul.f32.gmra.mxu0 %v426
        %v613 = vpop.f32.mrf.mxu0
        %v614 = vadd.f32 0.0, %v613
        %615 = vmatmul.f32.gmra.mxu0 %v429
        %v616 = vpop.f32.mrf.mxu0
        %v617 = vadd.f32 0.0, %v616
        %618 = vmatmul.f32.gmra.mxu0 %v432
        %v619 = vpop.f32.mrf.mxu0
        %v620 = vadd.f32 0.0, %v619
        %621 = vmatmul.f32.gmra.mxu0 %v435
        %v622 = vpop.f32.mrf.mxu0
        %v623 = vadd.f32 0.0, %v622
        %624 = vmatmul.f32.gmra.mxu0 %v438
        %v625 = vpop.f32.mrf.mxu0
        %v626 = vadd.f32 0.0, %v625
        %627 = vmatmul.f32.gmra.mxu0 %v441
        %v628 = vpop.f32.mrf.mxu0
        %v629 = vadd.f32 0.0, %v628
        %630 = vmatmul.f32.gmra.mxu0 %v444
        %v631 = vpop.f32.mrf.mxu0
        %v632 = vadd.f32 0.0, %v631
        %633 = vmatmul.f32.gmra.mxu0 %v447
        %v634 = vpop.f32.mrf.mxu0
        %v635 = vadd.f32 0.0, %v634
        %636 = vmatmul.f32.gmra.mxu0 %v450
        %v637 = vpop.f32.mrf.mxu0
        %v638 = vadd.f32 0.0, %v637
        %639 = vmatmul.f32.gmra.mxu0 %v453
        %v640 = vpop.f32.mrf.mxu0
        %v641 = vadd.f32 0.0, %v640
        %642 = vmatmul.f32.gmra.mxu0 %v456
        %v643 = vpop.f32.mrf.mxu0
        %v644 = vadd.f32 0.0, %v643
        %645 = vmatmul.f32.gmra.mxu0 %v459
        %v646 = vpop.f32.mrf.mxu0
        %v647 = vadd.f32 0.0, %v646
        %648 = vmatmul.f32.gmra.mxu0 %v462
        %v649 = vpop.f32.mrf.mxu0
        %v650 = vadd.f32 0.0, %v649
        %651 = vmatmul.f32.gmra.mxu0 %v465
        %v652 = vpop.f32.mrf.mxu0
        %v653 = vadd.f32 0.0, %v652
        %654 = vmatmul.f32.gmra.mxu0 %v468
        %v655 = vpop.f32.mrf.mxu0
        %v656 = vadd.f32 0.0, %v655
        %657 = vmatmul.f32.gmra.mxu0 %v471
        %v658 = vpop.f32.mrf.mxu0
        %v659 = vadd.f32 0.0, %v658
        %660 = vmatmul.f32.gmra.mxu0 %v474
        %v661 = vpop.f32.mrf.mxu0
        %v662 = vadd.f32 0.0, %v661
        %663 = vmatmul.f32.gmra.mxu0 %v477
        %v664 = vpop.f32.mrf.mxu0
        %v665 = vadd.f32 0.0, %v664
        %666 = vmatmul.f32.gmra.mxu0 %v480
        %v667 = vpop.f32.mrf.mxu0
        %v668 = vadd.f32 0.0, %v667
        %669 = vdwg.mxu0
        %670 = vmatpush.msra.mxu0 0.0
        %671 = vmatpush.msra.mxu0 0.0
        %672 = vmatpush.msra.mxu0 0.0
        %673 = vmatpush.msra.mxu0 0.0
        %674 = vmatpush.msra.mxu0 0.0
        %675 = vmatpush.msra.mxu0 0.0
        %676 = vmatpush.msra.mxu0 0.0
        %677 = vmatpush.msra.mxu0 0.0
        %678 = vmatpush.msra.mxu0 0.0
        %679 = vmatpush.msra.mxu0 0.0
        %680 = vmatpush.msra.mxu0 0.0
        %681 = vmatpush.msra.mxu0 0.0
        %682 = vmatpush.msra.mxu0 %v490
        %683 = vmatpush.msra.mxu0 %v405
        %684 = vmatpush.msra.mxu0 %v402
        %685 = vmatpush.msra.mxu0 %v399
        %686 = vmatmul.f32.gmra.mxu0 %v411
        %v687 = vpop.f32.mrf.mxu0
        %v688 = vadd.f32 0.0, %v687
        %689 = vmatmul.f32.gmra.mxu0 %v414
        %v690 = vpop.f32.mrf.mxu0
        %v691 = vadd.f32 0.0, %v690
        %692 = vmatmul.f32.gmra.mxu0 %v417
        %v693 = vpop.f32.mrf.mxu0
        %v694 = vadd.f32 0.0, %v693
        %695 = vmatmul.f32.gmra.mxu0 %v420
        %v696 = vpop.f32.mrf.mxu0
        %v697 = vadd.f32 0.0, %v696
        %698 = vmatmul.f32.gmra.mxu0 %v423
        %v699 = vpop.f32.mrf.mxu0
        %v700 = vadd.f32 0.0, %v699
        %701 = vmatmul.f32.gmra.mxu0 %v426
        %v702 = vpop.f32.mrf.mxu0
        %v703 = vadd.f32 0.0, %v702
        %704 = vmatmul.f32.gmra.mxu0 %v429
        %v705 = vpop.f32.mrf.mxu0
        %v706 = vadd.f32 0.0, %v705
        %707 = vmatmul.f32.gmra.mxu0 %v432
        %v708 = vpop.f32.mrf.mxu0
        %v709 = vadd.f32 0.0, %v708
        %710 = vmatmul.f32.gmra.mxu0 %v435
        %v711 = vpop.f32.mrf.mxu0
        %v712 = vadd.f32 0.0, %v711
        %713 = vmatmul.f32.gmra.mxu0 %v438
        %v714 = vpop.f32.mrf.mxu0
        %v715 = vadd.f32 0.0, %v714
        %716 = vmatmul.f32.gmra.mxu0 %v441
        %v717 = vpop.f32.mrf.mxu0
        %v718 = vadd.f32 0.0, %v717
        %719 = vmatmul.f32.gmra.mxu0 %v444
        %v720 = vpop.f32.mrf.mxu0
        %v721 = vadd.f32 0.0, %v720
        %722 = vmatmul.f32.gmra.mxu0 %v447
        %v723 = vpop.f32.mrf.mxu0
        %v724 = vadd.f32 0.0, %v723
        %725 = vmatmul.f32.gmra.mxu0 %v450
        %v726 = vpop.f32.mrf.mxu0
        %v727 = vadd.f32 0.0, %v726
        %728 = vmatmul.f32.gmra.mxu0 %v453
        %v729 = vpop.f32.mrf.mxu0
        %v730 = vadd.f32 0.0, %v729
        %731 = vmatmul.f32.gmra.mxu0 %v456
        %v732 = vpop.f32.mrf.mxu0
        %v733 = vadd.f32 0.0, %v732
        %734 = vmatmul.f32.gmra.mxu0 %v459
        %v735 = vpop.f32.mrf.mxu0
        %v736 = vadd.f32 0.0, %v735
        %737 = vmatmul.f32.gmra.mxu0 %v462
        %v738 = vpop.f32.mrf.mxu0
        %v739 = vadd.f32 0.0, %v738
        %740 = vmatmul.f32.gmra.mxu0 %v465
        %v741 = vpop.f32.mrf.mxu0
        %v742 = vadd.f32 0.0, %v741
        %743 = vmatmul.f32.gmra.mxu0 %v468
        %v744 = vpop.f32.mrf.mxu0
        %v745 = vadd.f32 0.0, %v744
        %746 = vmatmul.f32.gmra.mxu0 %v471
        %v747 = vpop.f32.mrf.mxu0
        %v748 = vadd.f32 0.0, %v747
        %749 = vmatmul.f32.gmra.mxu0 %v474
        %v750 = vpop.f32.mrf.mxu0
        %v751 = vadd.f32 0.0, %v750
        %752 = vmatmul.f32.gmra.mxu0 %v477
        %v753 = vpop.f32.mrf.mxu0
        %v754 = vadd.f32 0.0, %v753
        %755 = vmatmul.f32.gmra.mxu0 %v480
        %v756 = vpop.f32.mrf.mxu0
        %v757 = vadd.f32 0.0, %v756
        %758 = vdwg.mxu0
        %v760 = vsel %vm409, %v336, 0
        %v763 = vsel %vm409, %v337, 0
        %v766 = vsel %vm409, %v338, 0
        %v769 = vsel %vm409, %v339, 0
        %v772 = vsel %vm409, %v340, 0
        %v775 = vsel %vm409, %v341, 0
        %v778 = vsel %vm409, %v342, 0
        %v781 = vsel %vm409, %v343, 0
        %v784 = vsel %vm409, %v344, 0
        %v787 = vsel %vm409, %v345, 0
        %v790 = vsel %vm409, %v346, 0
        %v793 = vsel %vm409, %v347, 0
        %v796 = vsel %vm409, %v348, 0
        %v799 = vsel %vm409, %v349, 0
        %v802 = vsel %vm409, %v350, 0
        %v805 = vsel %vm409, %v351, 0
        %v808 = vsel %vm409, %v352, 0
        %v811 = vsel %vm409, %v353, 0
        %v814 = vsel %vm409, %v354, 0
        %v817 = vsel %vm409, %v355, 0
        %v820 = vsel %vm409, %v356, 0
        %v823 = vsel %vm409, %v357, 0
        %v826 = vsel %vm409, %v358, 0
        %v829 = vsel %vm409, %v359, 0
        %v832 = vsel %vm482, %v369, 0
        %v835 = vsel %vm482, %v370, 0
        %v838 = vsel %vm482, %v371, 0
        %840 = vmatpush.msra.mxu0 0.0
        %841 = vmatpush.msra.mxu0 0.0
        %842 = vmatpush.msra.mxu0 0.0
        %843 = vmatpush.msra.mxu0 0.0
        %844 = vmatpush.msra.mxu0 0.0
        %845 = vmatpush.msra.mxu0 0.0
        %846 = vmatpush.msra.mxu0 0.0
        %847 = vmatpush.msra.mxu0 0.0
        %848 = vmatpush.msra.mxu0 0.0
        %849 = vmatpush.msra.mxu0 0.0
        %850 = vmatpush.msra.mxu0 0.0
        %851 = vmatpush.msra.mxu0 0.0
        %852 = vmatpush.msra.mxu0 %v832
        %853 = vmatpush.msra.mxu0 %v366
        %854 = vmatpush.msra.mxu0 %v363
        %855 = vmatpush.msra.mxu0 %v360
        %856 = vmatmul.f32.gmra.mxu0 %v760
        %v857 = vpop.f32.mrf.mxu0
        %v858 = vadd.f32 %v510, %v857
        %859 = vmatmul.f32.gmra.mxu0 %v763
        %v860 = vpop.f32.mrf.mxu0
        %v861 = vadd.f32 %v513, %v860
        %862 = vmatmul.f32.gmra.mxu0 %v766
        %v863 = vpop.f32.mrf.mxu0
        %v864 = vadd.f32 %v516, %v863
        %865 = vmatmul.f32.gmra.mxu0 %v769
        %v866 = vpop.f32.mrf.mxu0
        %v867 = vadd.f32 %v519, %v866
        %868 = vmatmul.f32.gmra.mxu0 %v772
        %v869 = vpop.f32.mrf.mxu0
        %v870 = vadd.f32 %v522, %v869
        %871 = vmatmul.f32.gmra.mxu0 %v775
        %v872 = vpop.f32.mrf.mxu0
        %v873 = vadd.f32 %v525, %v872
        %874 = vmatmul.f32.gmra.mxu0 %v778
        %v875 = vpop.f32.mrf.mxu0
        %v876 = vadd.f32 %v528, %v875
        %877 = vmatmul.f32.gmra.mxu0 %v781
        %v878 = vpop.f32.mrf.mxu0
        %v879 = vadd.f32 %v531, %v878
        %880 = vmatmul.f32.gmra.mxu0 %v784
        %v881 = vpop.f32.mrf.mxu0
        %v882 = vadd.f32 %v534, %v881
        %883 = vmatmul.f32.gmra.mxu0 %v787
        %v884 = vpop.f32.mrf.mxu0
        %v885 = vadd.f32 %v537, %v884
        %886 = vmatmul.f32.gmra.mxu0 %v790
        %v887 = vpop.f32.mrf.mxu0
        %v888 = vadd.f32 %v540, %v887
        %889 = vmatmul.f32.gmra.mxu0 %v793
        %v890 = vpop.f32.mrf.mxu0
        %v891 = vadd.f32 %v543, %v890
        %892 = vmatmul.f32.gmra.mxu0 %v796
        %v893 = vpop.f32.mrf.mxu0
        %v894 = vadd.f32 %v546, %v893
        %895 = vmatmul.f32.gmra.mxu0 %v799
        %v896 = vpop.f32.mrf.mxu0
        %v897 = vadd.f32 %v549, %v896
        %898 = vmatmul.f32.gmra.mxu0 %v802
        %v899 = vpop.f32.mrf.mxu0
        %v900 = vadd.f32 %v552, %v899
        %901 = vmatmul.f32.gmra.mxu0 %v805
        %v902 = vpop.f32.mrf.mxu0
        %v903 = vadd.f32 %v555, %v902
        %904 = vmatmul.f32.gmra.mxu0 %v808
        %v905 = vpop.f32.mrf.mxu0
        %v906 = vadd.f32 %v558, %v905
        %907 = vmatmul.f32.gmra.mxu0 %v811
        %v908 = vpop.f32.mrf.mxu0
        %v909 = vadd.f32 %v561, %v908
        %910 = vmatmul.f32.gmra.mxu0 %v814
        %v911 = vpop.f32.mrf.mxu0
        %v912 = vadd.f32 %v564, %v911
        %913 = vmatmul.f32.gmra.mxu0 %v817
        %v914 = vpop.f32.mrf.mxu0
        %v915 = vadd.f32 %v567, %v914
        %916 = vmatmul.f32.gmra.mxu0 %v820
        %v917 = vpop.f32.mrf.mxu0
        %v918 = vadd.f32 %v570, %v917
        %919 = vmatmul.f32.gmra.mxu0 %v823
        %v920 = vpop.f32.mrf.mxu0
        %v921 = vadd.f32 %v573, %v920
        %922 = vmatmul.f32.gmra.mxu0 %v826
        %v923 = vpop.f32.mrf.mxu0
        %v924 = vadd.f32 %v576, %v923
        %925 = vmatmul.f32.gmra.mxu0 %v829
        %v926 = vpop.f32.mrf.mxu0
        %v927 = vadd.f32 %v579, %v926
        %928 = vdwg.mxu0
        %929 = vmatpush.msra.mxu0 0.0
        %930 = vmatpush.msra.mxu0 0.0
        %931 = vmatpush.msra.mxu0 0.0
        %932 = vmatpush.msra.mxu0 0.0
        %933 = vmatpush.msra.mxu0 0.0
        %934 = vmatpush.msra.mxu0 0.0
        %935 = vmatpush.msra.mxu0 0.0
        %936 = vmatpush.msra.mxu0 0.0
        %937 = vmatpush.msra.mxu0 0.0
        %938 = vmatpush.msra.mxu0 0.0
        %939 = vmatpush.msra.mxu0 0.0
        %940 = vmatpush.msra.mxu0 0.0
        %941 = vmatpush.msra.mxu0 %v835
        %942 = vmatpush.msra.mxu0 %v367
        %943 = vmatpush.msra.mxu0 %v364
        %944 = vmatpush.msra.mxu0 %v361
        %945 = vmatmul.f32.gmra.mxu0 %v760
        %v946 = vpop.f32.mrf.mxu0
        %v947 = vadd.f32 %v599, %v946
        %948 = vmatmul.f32.gmra.mxu0 %v763
        %v949 = vpop.f32.mrf.mxu0
        %v950 = vadd.f32 %v602, %v949
        %951 = vmatmul.f32.gmra.mxu0 %v766
        %v952 = vpop.f32.mrf.mxu0
        %v953 = vadd.f32 %v605, %v952
        %954 = vmatmul.f32.gmra.mxu0 %v769
        %v955 = vpop.f32.mrf.mxu0
        %v956 = vadd.f32 %v608, %v955
        %957 = vmatmul.f32.gmra.mxu0 %v772
        %v958 = vpop.f32.mrf.mxu0
        %v959 = vadd.f32 %v611, %v958
        %960 = vmatmul.f32.gmra.mxu0 %v775
        %v961 = vpop.f32.mrf.mxu0
        %v962 = vadd.f32 %v614, %v961
        %963 = vmatmul.f32.gmra.mxu0 %v778
        %v964 = vpop.f32.mrf.mxu0
        %v965 = vadd.f32 %v617, %v964
        %966 = vmatmul.f32.gmra.mxu0 %v781
        %v967 = vpop.f32.mrf.mxu0
        %v968 = vadd.f32 %v620, %v967
        %969 = vmatmul.f32.gmra.mxu0 %v784
        %v970 = vpop.f32.mrf.mxu0
        %v971 = vadd.f32 %v623, %v970
        %972 = vmatmul.f32.gmra.mxu0 %v787
        %v973 = vpop.f32.mrf.mxu0
        %v974 = vadd.f32 %v626, %v973
        %975 = vmatmul.f32.gmra.mxu0 %v790
        %v976 = vpop.f32.mrf.mxu0
        %v977 = vadd.f32 %v629, %v976
        %978 = vmatmul.f32.gmra.mxu0 %v793
        %v979 = vpop.f32.mrf.mxu0
        %v980 = vadd.f32 %v632, %v979
        %981 = vmatmul.f32.gmra.mxu0 %v796
        %v982 = vpop.f32.mrf.mxu0
        %v983 = vadd.f32 %v635, %v982
        %984 = vmatmul.f32.gmra.mxu0 %v799
        %v985 = vpop.f32.mrf.mxu0
        %v986 = vadd.f32 %v638, %v985
        %987 = vmatmul.f32.gmra.mxu0 %v802
        %v988 = vpop.f32.mrf.mxu0
        %v989 = vadd.f32 %v641, %v988
        %990 = vmatmul.f32.gmra.mxu0 %v805
        %v991 = vpop.f32.mrf.mxu0
        %v992 = vadd.f32 %v644, %v991
        %993 = vmatmul.f32.gmra.mxu0 %v808
        %v994 = vpop.f32.mrf.mxu0
        %v995 = vadd.f32 %v647, %v994
        %996 = vmatmul.f32.gmra.mxu0 %v811
        %v997 = vpop.f32.mrf.mxu0
        %v998 = vadd.f32 %v650, %v997
        %999 = vmatmul.f32.gmra.mxu0 %v814
        %v1000 = vpop.f32.mrf.mxu0
        %v1001 = vadd.f32 %v653, %v1000
        %1002 = vmatmul.f32.gmra.mxu0 %v817
        %v1003 = vpop.f32.mrf.mxu0
        %v1004 = vadd.f32 %v656, %v1003
        %1005 = vmatmul.f32.gmra.mxu0 %v820
        %v1006 = vpop.f32.mrf.mxu0
        %v1007 = vadd.f32 %v659, %v1006
        %1008 = vmatmul.f32.gmra.mxu0 %v823
        %v1009 = vpop.f32.mrf.mxu0
        %v1010 = vadd.f32 %v662, %v1009
        %1011 = vmatmul.f32.gmra.mxu0 %v826
        %v1012 = vpop.f32.mrf.mxu0
        %v1013 = vadd.f32 %v665, %v1012
        %1014 = vmatmul.f32.gmra.mxu0 %v829
        %v1015 = vpop.f32.mrf.mxu0
        %v1016 = vadd.f32 %v668, %v1015
        %1017 = vdwg.mxu0
        %1018 = vmatpush.msra.mxu0 0.0
        %1019 = vmatpush.msra.mxu0 0.0
        %1020 = vmatpush.msra.mxu0 0.0
        %1021 = vmatpush.msra.mxu0 0.0
        %1022 = vmatpush.msra.mxu0 0.0
        %1023 = vmatpush.msra.mxu0 0.0
        %1024 = vmatpush.msra.mxu0 0.0
        %1025 = vmatpush.msra.mxu0 0.0
        %1026 = vmatpush.msra.mxu0 0.0
        %1027 = vmatpush.msra.mxu0 0.0
        %1028 = vmatpush.msra.mxu0 0.0
        %1029 = vmatpush.msra.mxu0 0.0
        %1030 = vmatpush.msra.mxu0 %v838
        %1031 = vmatpush.msra.mxu0 %v368
        %1032 = vmatpush.msra.mxu0 %v365
        %1033 = vmatpush.msra.mxu0 %v362
        %1034 = vmatmul.f32.gmra.mxu0 %v760
        %v1035 = vpop.f32.mrf.mxu0
        %v1036 = vadd.f32 %v688, %v1035
        %1037 = vmatmul.f32.gmra.mxu0 %v763
        %v1038 = vpop.f32.mrf.mxu0
        %v1039 = vadd.f32 %v691, %v1038
        %1040 = vmatmul.f32.gmra.mxu0 %v766
        %v1041 = vpop.f32.mrf.mxu0
        %v1042 = vadd.f32 %v694, %v1041
        %1043 = vmatmul.f32.gmra.mxu0 %v769
        %v1044 = vpop.f32.mrf.mxu0
        %v1045 = vadd.f32 %v697, %v1044
        %1046 = vmatmul.f32.gmra.mxu0 %v772
        %v1047 = vpop.f32.mrf.mxu0
        %v1048 = vadd.f32 %v700, %v1047
        %1049 = vmatmul.f32.gmra.mxu0 %v775
        %v1050 = vpop.f32.mrf.mxu0
        %v1051 = vadd.f32 %v703, %v1050
        %1052 = vmatmul.f32.gmra.mxu0 %v778
        %v1053 = vpop.f32.mrf.mxu0
        %v1054 = vadd.f32 %v706, %v1053
        %1055 = vmatmul.f32.gmra.mxu0 %v781
        %v1056 = vpop.f32.mrf.mxu0
        %v1057 = vadd.f32 %v709, %v1056
        %1058 = vmatmul.f32.gmra.mxu0 %v784
        %v1059 = vpop.f32.mrf.mxu0
        %v1060 = vadd.f32 %v712, %v1059
        %1061 = vmatmul.f32.gmra.mxu0 %v787
        %v1062 = vpop.f32.mrf.mxu0
        %v1063 = vadd.f32 %v715, %v1062
        %1064 = vmatmul.f32.gmra.mxu0 %v790
        %v1065 = vpop.f32.mrf.mxu0
        %v1066 = vadd.f32 %v718, %v1065
        %1067 = vmatmul.f32.gmra.mxu0 %v793
        %v1068 = vpop.f32.mrf.mxu0
        %v1069 = vadd.f32 %v721, %v1068
        %1070 = vmatmul.f32.gmra.mxu0 %v796
        %v1071 = vpop.f32.mrf.mxu0
        %v1072 = vadd.f32 %v724, %v1071
        %1073 = vmatmul.f32.gmra.mxu0 %v799
        %v1074 = vpop.f32.mrf.mxu0
        %v1075 = vadd.f32 %v727, %v1074
        %1076 = vmatmul.f32.gmra.mxu0 %v802
        %v1077 = vpop.f32.mrf.mxu0
        %v1078 = vadd.f32 %v730, %v1077
        %1079 = vmatmul.f32.gmra.mxu0 %v805
        %v1080 = vpop.f32.mrf.mxu0
        %v1081 = vadd.f32 %v733, %v1080
        %1082 = vmatmul.f32.gmra.mxu0 %v808
        %v1083 = vpop.f32.mrf.mxu0
        %v1084 = vadd.f32 %v736, %v1083
        %1085 = vmatmul.f32.gmra.mxu0 %v811
        %v1086 = vpop.f32.mrf.mxu0
        %v1087 = vadd.f32 %v739, %v1086
        %1088 = vmatmul.f32.gmra.mxu0 %v814
        %v1089 = vpop.f32.mrf.mxu0
        %v1090 = vadd.f32 %v742, %v1089
        %1091 = vmatmul.f32.gmra.mxu0 %v817
        %v1092 = vpop.f32.mrf.mxu0
        %v1093 = vadd.f32 %v745, %v1092
        %1094 = vmatmul.f32.gmra.mxu0 %v820
        %v1095 = vpop.f32.mrf.mxu0
        %v1096 = vadd.f32 %v748, %v1095
        %1097 = vmatmul.f32.gmra.mxu0 %v823
        %v1098 = vpop.f32.mrf.mxu0
        %v1099 = vadd.f32 %v751, %v1098
        %1100 = vmatmul.f32.gmra.mxu0 %v826
        %v1101 = vpop.f32.mrf.mxu0
        %v1102 = vadd.f32 %v754, %v1101
        %1103 = vmatmul.f32.gmra.mxu0 %v829
        %v1104 = vpop.f32.mrf.mxu0
        %v1105 = vadd.f32 %v757, %v1104
        %1106 = vdwg.mxu0
        %v1107 = vld [vmem:[%s334 + $0x2] sm:$0xff]
        %v1108 = vld [vmem:[%s334 + $0xa] sm:$0xff]
        %v1109 = vld [vmem:[%s334 + $0x12] sm:$0xff]
        %v1110 = vld [vmem:[%s334 + $0x22] sm:$0xff]
        %v1111 = vld [vmem:[%s334 + $0x2a] sm:$0xff]
        %v1112 = vld [vmem:[%s334 + $0x32] sm:$0xff]
        %v1113 = vld [vmem:[%s334 + $0x42] sm:$0xff]
        %v1114 = vld [vmem:[%s334 + $0x4a] sm:$0xff]
        %v1115 = vld [vmem:[%s334 + $0x52] sm:$0xff]
        %v1116 = vld [vmem:[%s334 + $0x62] sm:$0xff]
        %v1117 = vld [vmem:[%s334 + $0x6a] sm:$0xff]
        %v1118 = vld [vmem:[%s334 + $0x72] sm:$0xff]
        %v1119 = vld [vmem:[%s334 + $0x82] sm:$0xff]
        %v1120 = vld [vmem:[%s334 + $0x8a] sm:$0xff]
        %v1121 = vld [vmem:[%s334 + $0x92] sm:$0xff]
        %v1122 = vld [vmem:[%s334 + $0xa2] sm:$0xff]
        %v1123 = vld [vmem:[%s334 + $0xaa] sm:$0xff]
        %v1124 = vld [vmem:[%s334 + $0xb2] sm:$0xff]
        %v1125 = vld [vmem:[%s334 + $0xc2] sm:$0xff]
        %v1126 = vld [vmem:[%s334 + $0xca] sm:$0xff]
        %v1127 = vld [vmem:[%s334 + $0xd2] sm:$0xff]
        %v1128 = vld [vmem:[%s334 + $0xe2] sm:$0xff]
        %v1129 = vld [vmem:[%s334 + $0xea] sm:$0xff]
        %v1130 = vld [vmem:[%s334 + $0xf2] sm:$0xff]
        %s1131 = scalar_lea.vmem %s1, 192
        %v1132 = vld [vmem:[%s1131] sm:$0xff]
        %v1133 = vld [vmem:[%s1131 + $0x8] sm:$0xff]
        %v1134 = vld [vmem:[%s1131 + $0x10] sm:$0xff]
        %v1135 = vld [vmem:[%s1131 + $0x18] sm:$0xff]
        %v1136 = vld [vmem:[%s1131 + $0x20] sm:$0xff]
        %v1137 = vld [vmem:[%s1131 + $0x28] sm:$0xff]
        %v1138 = vld [vmem:[%s1131 + $0x30] sm:$0xff]
        %v1139 = vld [vmem:[%s1131 + $0x38] sm:$0xff]
        %v1140 = vld [vmem:[%s1131 + $0x40] sm:$0xff]
        %v1141 = vld [vmem:[%s1131 + $0x48] sm:$0xf]
        %v1142 = vld [vmem:[%s1131 + $0x50] sm:$0xf]
        %v1143 = vld [vmem:[%s1131 + $0x58] sm:$0xf]
        %v1145 = vsel %vm409, %v1107, 0
        %v1148 = vsel %vm409, %v1108, 0
        %v1151 = vsel %vm409, %v1109, 0
        %v1154 = vsel %vm409, %v1110, 0
        %v1157 = vsel %vm409, %v1111, 0
        %v1160 = vsel %vm409, %v1112, 0
        %v1163 = vsel %vm409, %v1113, 0
        %v1166 = vsel %vm409, %v1114, 0
        %v1169 = vsel %vm409, %v1115, 0
        %v1172 = vsel %vm409, %v1116, 0
        %v1175 = vsel %vm409, %v1117, 0
        %v1178 = vsel %vm409, %v1118, 0
        %v1181 = vsel %vm409, %v1119, 0
        %v1184 = vsel %vm409, %v1120, 0
        %v1187 = vsel %vm409, %v1121, 0
        %v1190 = vsel %vm409, %v1122, 0
        %v1193 = vsel %vm409, %v1123, 0
        %v1196 = vsel %vm409, %v1124, 0
        %v1199 = vsel %vm409, %v1125, 0
        %v1202 = vsel %vm409, %v1126, 0
        %v1205 = vsel %vm409, %v1127, 0
        %v1208 = vsel %vm409, %v1128, 0
        %v1211 = vsel %vm409, %v1129, 0
        %v1214 = vsel %vm409, %v1130, 0
        %v1217 = vsel %vm482, %v1141, 0
        %v1220 = vsel %vm482, %v1142, 0
        %v1223 = vsel %vm482, %v1143, 0
        %1225 = vmatpush.msra.mxu0 0.0
        %1226 = vmatpush.msra.mxu0 0.0
        %1227 = vmatpush.msra.mxu0 0.0
        %1228 = vmatpush.msra.mxu0 0.0
        %1229 = vmatpush.msra.mxu0 0.0
        %1230 = vmatpush.msra.mxu0 0.0
        %1231 = vmatpush.msra.mxu0 0.0
        %1232 = vmatpush.msra.mxu0 0.0
        %1233 = vmatpush.msra.mxu0 0.0
        %1234 = vmatpush.msra.mxu0 0.0
        %1235 = vmatpush.msra.mxu0 0.0
        %1236 = vmatpush.msra.mxu0 0.0
        %1237 = vmatpush.msra.mxu0 %v1217
        %1238 = vmatpush.msra.mxu0 %v1138
        %1239 = vmatpush.msra.mxu0 %v1135
        %1240 = vmatpush.msra.mxu0 %v1132
        %1241 = vmatmul.f32.gmra.mxu0 %v1145
        %v1242 = vpop.f32.mrf.mxu0
        %v1243 = vadd.f32 0.0, %v1242
        %1244 = vmatmul.f32.gmra.mxu0 %v1148
        %v1245 = vpop.f32.mrf.mxu0
        %v1246 = vadd.f32 0.0, %v1245
        %1247 = vmatmul.f32.gmra.mxu0 %v1151
        %v1248 = vpop.f32.mrf.mxu0
        %v1249 = vadd.f32 0.0, %v1248
        %1250 = vmatmul.f32.gmra.mxu0 %v1154
        %v1251 = vpop.f32.mrf.mxu0
        %v1252 = vadd.f32 0.0, %v1251
        %1253 = vmatmul.f32.gmra.mxu0 %v1157
        %v1254 = vpop.f32.mrf.mxu0
        %v1255 = vadd.f32 0.0, %v1254
        %1256 = vmatmul.f32.gmra.mxu0 %v1160
        %v1257 = vpop.f32.mrf.mxu0
        %v1258 = vadd.f32 0.0, %v1257
        %1259 = vmatmul.f32.gmra.mxu0 %v1163
        %v1260 = vpop.f32.mrf.mxu0
        %v1261 = vadd.f32 0.0, %v1260
        %1262 = vmatmul.f32.gmra.mxu0 %v1166
        %v1263 = vpop.f32.mrf.mxu0
        %v1264 = vadd.f32 0.0, %v1263
        %1265 = vmatmul.f32.gmra.mxu0 %v1169
        %v1266 = vpop.f32.mrf.mxu0
        %v1267 = vadd.f32 0.0, %v1266
        %1268 = vmatmul.f32.gmra.mxu0 %v1172
        %v1269 = vpop.f32.mrf.mxu0
        %v1270 = vadd.f32 0.0, %v1269
        %1271 = vmatmul.f32.gmra.mxu0 %v1175
        %v1272 = vpop.f32.mrf.mxu0
        %v1273 = vadd.f32 0.0, %v1272
        %1274 = vmatmul.f32.gmra.mxu0 %v1178
        %v1275 = vpop.f32.mrf.mxu0
        %v1276 = vadd.f32 0.0, %v1275
        %1277 = vmatmul.f32.gmra.mxu0 %v1181
        %v1278 = vpop.f32.mrf.mxu0
        %v1279 = vadd.f32 0.0, %v1278
        %1280 = vmatmul.f32.gmra.mxu0 %v1184
        %v1281 = vpop.f32.mrf.mxu0
        %v1282 = vadd.f32 0.0, %v1281
        %1283 = vmatmul.f32.gmra.mxu0 %v1187
        %v1284 = vpop.f32.mrf.mxu0
        %v1285 = vadd.f32 0.0, %v1284
        %1286 = vmatmul.f32.gmra.mxu0 %v1190
        %v1287 = vpop.f32.mrf.mxu0
        %v1288 = vadd.f32 0.0, %v1287
        %1289 = vmatmul.f32.gmra.mxu0 %v1193
        %v1290 = vpop.f32.mrf.mxu0
        %v1291 = vadd.f32 0.0, %v1290
        %1292 = vmatmul.f32.gmra.mxu0 %v1196
        %v1293 = vpop.f32.mrf.mxu0
        %v1294 = vadd.f32 0.0, %v1293
        %1295 = vmatmul.f32.gmra.mxu0 %v1199
        %v1296 = vpop.f32.mrf.mxu0
        %v1297 = vadd.f32 0.0, %v1296
        %1298 = vmatmul.f32.gmra.mxu0 %v1202
        %v1299 = vpop.f32.mrf.mxu0
        %v1300 = vadd.f32 0.0, %v1299
        %1301 = vmatmul.f32.gmra.mxu0 %v1205
        %v1302 = vpop.f32.mrf.mxu0
        %v1303 = vadd.f32 0.0, %v1302
        %1304 = vmatmul.f32.gmra.mxu0 %v1208
        %v1305 = vpop.f32.mrf.mxu0
        %v1306 = vadd.f32 0.0, %v1305
        %1307 = vmatmul.f32.gmra.mxu0 %v1211
        %v1308 = vpop.f32.mrf.mxu0
        %v1309 = vadd.f32 0.0, %v1308
        %1310 = vmatmul.f32.gmra.mxu0 %v1214
        %v1311 = vpop.f32.mrf.mxu0
        %v1312 = vadd.f32 0.0, %v1311
        %1313 = vdwg.mxu0
        %1314 = vmatpush.msra.mxu0 0.0
        %1315 = vmatpush.msra.mxu0 0.0
        %1316 = vmatpush.msra.mxu0 0.0
        %1317 = vmatpush.msra.mxu0 0.0
        %1318 = vmatpush.msra.mxu0 0.0
        %1319 = vmatpush.msra.mxu0 0.0
        %1320 = vmatpush.msra.mxu0 0.0
        %1321 = vmatpush.msra.mxu0 0.0
        %1322 = vmatpush.msra.mxu0 0.0
        %1323 = vmatpush.msra.mxu0 0.0
        %1324 = vmatpush.msra.mxu0 0.0
        %1325 = vmatpush.msra.mxu0 0.0
        %1326 = vmatpush.msra.mxu0 %v1220
        %1327 = vmatpush.msra.mxu0 %v1139
        %1328 = vmatpush.msra.mxu0 %v1136
        %1329 = vmatpush.msra.mxu0 %v1133
        %1330 = vmatmul.f32.gmra.mxu0 %v1145
        %v1331 = vpop.f32.mrf.mxu0
        %v1332 = vadd.f32 0.0, %v1331
        %1333 = vmatmul.f32.gmra.mxu0 %v1148
        %v1334 = vpop.f32.mrf.mxu0
        %v1335 = vadd.f32 0.0, %v1334
        %1336 = vmatmul.f32.gmra.mxu0 %v1151
        %v1337 = vpop.f32.mrf.mxu0
        %v1338 = vadd.f32 0.0, %v1337
        %1339 = vmatmul.f32.gmra.mxu0 %v1154
        %v1340 = vpop.f32.mrf.mxu0
        %v1341 = vadd.f32 0.0, %v1340
        %1342 = vmatmul.f32.gmra.mxu0 %v1157
        %v1343 = vpop.f32.mrf.mxu0
        %v1344 = vadd.f32 0.0, %v1343
        %1345 = vmatmul.f32.gmra.mxu0 %v1160
        %v1346 = vpop.f32.mrf.mxu0
        %v1347 = vadd.f32 0.0, %v1346
        %1348 = vmatmul.f32.gmra.mxu0 %v1163
        %v1349 = vpop.f32.mrf.mxu0
        %v1350 = vadd.f32 0.0, %v1349
        %1351 = vmatmul.f32.gmra.mxu0 %v1166
        %v1352 = vpop.f32.mrf.mxu0
        %v1353 = vadd.f32 0.0, %v1352
        %1354 = vmatmul.f32.gmra.mxu0 %v1169
        %v1355 = vpop.f32.mrf.mxu0
        %v1356 = vadd.f32 0.0, %v1355
        %1357 = vmatmul.f32.gmra.mxu0 %v1172
        %v1358 = vpop.f32.mrf.mxu0
        %v1359 = vadd.f32 0.0, %v1358
        %1360 = vmatmul.f32.gmra.mxu0 %v1175
        %v1361 = vpop.f32.mrf.mxu0
        %v1362 = vadd.f32 0.0, %v1361
        %1363 = vmatmul.f32.gmra.mxu0 %v1178
        %v1364 = vpop.f32.mrf.mxu0
        %v1365 = vadd.f32 0.0, %v1364
        %1366 = vmatmul.f32.gmra.mxu0 %v1181
        %v1367 = vpop.f32.mrf.mxu0
        %v1368 = vadd.f32 0.0, %v1367
        %1369 = vmatmul.f32.gmra.mxu0 %v1184
        %v1370 = vpop.f32.mrf.mxu0
        %v1371 = vadd.f32 0.0, %v1370
        %1372 = vmatmul.f32.gmra.mxu0 %v1187
        %v1373 = vpop.f32.mrf.mxu0
        %v1374 = vadd.f32 0.0, %v1373
        %1375 = vmatmul.f32.gmra.mxu0 %v1190
        %v1376 = vpop.f32.mrf.mxu0
        %v1377 = vadd.f32 0.0, %v1376
        %1378 = vmatmul.f32.gmra.mxu0 %v1193
        %v1379 = vpop.f32.mrf.mxu0
        %v1380 = vadd.f32 0.0, %v1379
        %1381 = vmatmul.f32.gmra.mxu0 %v1196
        %v1382 = vpop.f32.mrf.mxu0
        %v1383 = vadd.f32 0.0, %v1382
        %1384 = vmatmul.f32.gmra.mxu0 %v1199
        %v1385 = vpop.f32.mrf.mxu0
        %v1386 = vadd.f32 0.0, %v1385
        %1387 = vmatmul.f32.gmra.mxu0 %v1202
        %v1388 = vpop.f32.mrf.mxu0
        %v1389 = vadd.f32 0.0, %v1388
        %1390 = vmatmul.f32.gmra.mxu0 %v1205
        %v1391 = vpop.f32.mrf.mxu0
        %v1392 = vadd.f32 0.0, %v1391
        %1393 = vmatmul.f32.gmra.mxu0 %v1208
        %v1394 = vpop.f32.mrf.mxu0
        %v1395 = vadd.f32 0.0, %v1394
        %1396 = vmatmul.f32.gmra.mxu0 %v1211
        %v1397 = vpop.f32.mrf.mxu0
        %v1398 = vadd.f32 0.0, %v1397
        %1399 = vmatmul.f32.gmra.mxu0 %v1214
        %v1400 = vpop.f32.mrf.mxu0
        %v1401 = vadd.f32 0.0, %v1400
        %1402 = vdwg.mxu0
        %1403 = vmatpush.msra.mxu0 0.0
        %1404 = vmatpush.msra.mxu0 0.0
        %1405 = vmatpush.msra.mxu0 0.0
        %1406 = vmatpush.msra.mxu0 0.0
        %1407 = vmatpush.msra.mxu0 0.0
        %1408 = vmatpush.msra.mxu0 0.0
        %1409 = vmatpush.msra.mxu0 0.0
        %1410 = vmatpush.msra.mxu0 0.0
        %1411 = vmatpush.msra.mxu0 0.0
        %1412 = vmatpush.msra.mxu0 0.0
        %1413 = vmatpush.msra.mxu0 0.0
        %1414 = vmatpush.msra.mxu0 0.0
        %1415 = vmatpush.msra.mxu0 %v1223
        %1416 = vmatpush.msra.mxu0 %v1140
        %1417 = vmatpush.msra.mxu0 %v1137
        %1418 = vmatpush.msra.mxu0 %v1134
        %1419 = vmatmul.f32.gmra.mxu0 %v1145
        %v1420 = vpop.f32.mrf.mxu0
        %v1421 = vadd.f32 0.0, %v1420
        %1422 = vmatmul.f32.gmra.mxu0 %v1148
        %v1423 = vpop.f32.mrf.mxu0
        %v1424 = vadd.f32 0.0, %v1423
        %1425 = vmatmul.f32.gmra.mxu0 %v1151
        %v1426 = vpop.f32.mrf.mxu0
        %v1427 = vadd.f32 0.0, %v1426
        %1428 = vmatmul.f32.gmra.mxu0 %v1154
        %v1429 = vpop.f32.mrf.mxu0
        %v1430 = vadd.f32 0.0, %v1429
        %1431 = vmatmul.f32.gmra.mxu0 %v1157
        %v1432 = vpop.f32.mrf.mxu0
        %v1433 = vadd.f32 0.0, %v1432
        %1434 = vmatmul.f32.gmra.mxu0 %v1160
        %v1435 = vpop.f32.mrf.mxu0
        %v1436 = vadd.f32 0.0, %v1435
        %1437 = vmatmul.f32.gmra.mxu0 %v1163
        %v1438 = vpop.f32.mrf.mxu0
        %v1439 = vadd.f32 0.0, %v1438
        %1440 = vmatmul.f32.gmra.mxu0 %v1166
        %v1441 = vpop.f32.mrf.mxu0
        %v1442 = vadd.f32 0.0, %v1441
        %1443 = vmatmul.f32.gmra.mxu0 %v1169
        %v1444 = vpop.f32.mrf.mxu0
        %v1445 = vadd.f32 0.0, %v1444
        %1446 = vmatmul.f32.gmra.mxu0 %v1172
        %v1447 = vpop.f32.mrf.mxu0
        %v1448 = vadd.f32 0.0, %v1447
        %1449 = vmatmul.f32.gmra.mxu0 %v1175
        %v1450 = vpop.f32.mrf.mxu0
        %v1451 = vadd.f32 0.0, %v1450
        %1452 = vmatmul.f32.gmra.mxu0 %v1178
        %v1453 = vpop.f32.mrf.mxu0
        %v1454 = vadd.f32 0.0, %v1453
        %1455 = vmatmul.f32.gmra.mxu0 %v1181
        %v1456 = vpop.f32.mrf.mxu0
        %v1457 = vadd.f32 0.0, %v1456
        %1458 = vmatmul.f32.gmra.mxu0 %v1184
        %v1459 = vpop.f32.mrf.mxu0
        %v1460 = vadd.f32 0.0, %v1459
        %1461 = vmatmul.f32.gmra.mxu0 %v1187
        %v1462 = vpop.f32.mrf.mxu0
        %v1463 = vadd.f32 0.0, %v1462
        %1464 = vmatmul.f32.gmra.mxu0 %v1190
        %v1465 = vpop.f32.mrf.mxu0
        %v1466 = vadd.f32 0.0, %v1465
        %1467 = vmatmul.f32.gmra.mxu0 %v1193
        %v1468 = vpop.f32.mrf.mxu0
        %v1469 = vadd.f32 0.0, %v1468
        %1470 = vmatmul.f32.gmra.mxu0 %v1196
        %v1471 = vpop.f32.mrf.mxu0
        %v1472 = vadd.f32 0.0, %v1471
        %1473 = vmatmul.f32.gmra.mxu0 %v1199
        %v1474 = vpop.f32.mrf.mxu0
        %v1475 = vadd.f32 0.0, %v1474
        %1476 = vmatmul.f32.gmra.mxu0 %v1202
        %v1477 = vpop.f32.mrf.mxu0
        %v1478 = vadd.f32 0.0, %v1477
        %1479 = vmatmul.f32.gmra.mxu0 %v1205
        %v1480 = vpop.f32.mrf.mxu0
        %v1481 = vadd.f32 0.0, %v1480
        %1482 = vmatmul.f32.gmra.mxu0 %v1208
        %v1483 = vpop.f32.mrf.mxu0
        %v1484 = vadd.f32 0.0, %v1483
        %1485 = vmatmul.f32.gmra.mxu0 %v1211
        %v1486 = vpop.f32.mrf.mxu0
        %v1487 = vadd.f32 0.0, %v1486
        %1488 = vmatmul.f32.gmra.mxu0 %v1214
        %v1489 = vpop.f32.mrf.mxu0
        %v1490 = vadd.f32 0.0, %v1489
        %1491 = vdwg.mxu0
        %v1492 = vadd.f32 %v858, %v1243
        %v1493 = vadd.f32 %v947, %v1332
        %v1494 = vadd.f32 %v1036, %v1421
        %v1495 = vadd.f32 %v861, %v1246
        %v1496 = vadd.f32 %v950, %v1335
        %v1497 = vadd.f32 %v1039, %v1424
        %v1498 = vadd.f32 %v864, %v1249
        %v1499 = vadd.f32 %v953, %v1338
        %v1500 = vadd.f32 %v1042, %v1427
        %v1501 = vadd.f32 %v867, %v1252
        %v1502 = vadd.f32 %v956, %v1341
        %v1503 = vadd.f32 %v1045, %v1430
        %v1504 = vadd.f32 %v870, %v1255
        %v1505 = vadd.f32 %v959, %v1344
        %v1506 = vadd.f32 %v1048, %v1433
        %v1507 = vadd.f32 %v873, %v1258
        %v1508 = vadd.f32 %v962, %v1347
        %v1509 = vadd.f32 %v1051, %v1436
        %v1510 = vadd.f32 %v876, %v1261
        %v1511 = vadd.f32 %v965, %v1350
        %v1512 = vadd.f32 %v1054, %v1439
        %v1513 = vadd.f32 %v879, %v1264
        %v1514 = vadd.f32 %v968, %v1353
        %v1515 = vadd.f32 %v1057, %v1442
        %v1516 = vadd.f32 %v882, %v1267
        %v1517 = vadd.f32 %v971, %v1356
        %v1518 = vadd.f32 %v1060, %v1445
        %v1519 = vadd.f32 %v885, %v1270
        %v1520 = vadd.f32 %v974, %v1359
        %v1521 = vadd.f32 %v1063, %v1448
        %v1522 = vadd.f32 %v888, %v1273
        %v1523 = vadd.f32 %v977, %v1362
        %v1524 = vadd.f32 %v1066, %v1451
        %v1525 = vadd.f32 %v891, %v1276
        %v1526 = vadd.f32 %v980, %v1365
        %v1527 = vadd.f32 %v1069, %v1454
        %v1528 = vadd.f32 %v894, %v1279
        %v1529 = vadd.f32 %v983, %v1368
        %v1530 = vadd.f32 %v1072, %v1457
        %v1531 = vadd.f32 %v897, %v1282
        %v1532 = vadd.f32 %v986, %v1371
        %v1533 = vadd.f32 %v1075, %v1460
        %v1534 = vadd.f32 %v900, %v1285
        %v1535 = vadd.f32 %v989, %v1374
        %v1536 = vadd.f32 %v1078, %v1463
        %v1537 = vadd.f32 %v903, %v1288
        %v1538 = vadd.f32 %v992, %v1377
        %v1539 = vadd.f32 %v1081, %v1466
        %v1540 = vadd.f32 %v906, %v1291
        %v1541 = vadd.f32 %v995, %v1380
        %v1542 = vadd.f32 %v1084, %v1469
        %v1543 = vadd.f32 %v909, %v1294
        %v1544 = vadd.f32 %v998, %v1383
        %v1545 = vadd.f32 %v1087, %v1472
        %v1546 = vadd.f32 %v912, %v1297
        %v1547 = vadd.f32 %v1001, %v1386
        %v1548 = vadd.f32 %v1090, %v1475
        %v1549 = vadd.f32 %v915, %v1300
        %v1550 = vadd.f32 %v1004, %v1389
        %v1551 = vadd.f32 %v1093, %v1478
        %v1552 = vadd.f32 %v918, %v1303
        %v1553 = vadd.f32 %v1007, %v1392
        %v1554 = vadd.f32 %v1096, %v1481
        %v1555 = vadd.f32 %v921, %v1306
        %v1556 = vadd.f32 %v1010, %v1395
        %v1557 = vadd.f32 %v1099, %v1484
        %v1558 = vadd.f32 %v924, %v1309
        %v1559 = vadd.f32 %v1013, %v1398
        %v1560 = vadd.f32 %v1102, %v1487
        %v1561 = vadd.f32 %v927, %v1312
        %v1562 = vadd.f32 %v1016, %v1401
        %v1563 = vadd.f32 %v1105, %v1490
        %v1564 = vld [vmem:[%s334 + $0x3] sm:$0xff]
        %v1565 = vld [vmem:[%s334 + $0xb] sm:$0xff]
        %v1566 = vld [vmem:[%s334 + $0x13] sm:$0xff]
        %v1567 = vld [vmem:[%s334 + $0x23] sm:$0xff]
        %v1568 = vld [vmem:[%s334 + $0x2b] sm:$0xff]
        %v1569 = vld [vmem:[%s334 + $0x33] sm:$0xff]
        %v1570 = vld [vmem:[%s334 + $0x43] sm:$0xff]
        %v1571 = vld [vmem:[%s334 + $0x4b] sm:$0xff]
        %v1572 = vld [vmem:[%s334 + $0x53] sm:$0xff]
        %v1573 = vld [vmem:[%s334 + $0x63] sm:$0xff]
        %v1574 = vld [vmem:[%s334 + $0x6b] sm:$0xff]
        %v1575 = vld [vmem:[%s334 + $0x73] sm:$0xff]
        %v1576 = vld [vmem:[%s334 + $0x83] sm:$0xff]
        %v1577 = vld [vmem:[%s334 + $0x8b] sm:$0xff]
        %v1578 = vld [vmem:[%s334 + $0x93] sm:$0xff]
        %v1579 = vld [vmem:[%s334 + $0xa3] sm:$0xff]
        %v1580 = vld [vmem:[%s334 + $0xab] sm:$0xff]
        %v1581 = vld [vmem:[%s334 + $0xb3] sm:$0xff]
        %v1582 = vld [vmem:[%s334 + $0xc3] sm:$0xff]
        %v1583 = vld [vmem:[%s334 + $0xcb] sm:$0xff]
        %v1584 = vld [vmem:[%s334 + $0xd3] sm:$0xff]
        %v1585 = vld [vmem:[%s334 + $0xe3] sm:$0xff]
        %v1586 = vld [vmem:[%s334 + $0xeb] sm:$0xff]
        %v1587 = vld [vmem:[%s334 + $0xf3] sm:$0xff]
        %s1588 = scalar_lea.vmem %s1, 288
        %v1589 = vld [vmem:[%s1588] sm:$0xff]
        %v1590 = vld [vmem:[%s1588 + $0x8] sm:$0xff]
        %v1591 = vld [vmem:[%s1588 + $0x10] sm:$0xff]
        %v1592 = vld [vmem:[%s1588 + $0x18] sm:$0xff]
        %v1593 = vld [vmem:[%s1588 + $0x20] sm:$0xff]
        %v1594 = vld [vmem:[%s1588 + $0x28] sm:$0xff]
        %v1595 = vld [vmem:[%s1588 + $0x30] sm:$0xff]
        %v1596 = vld [vmem:[%s1588 + $0x38] sm:$0xff]
        %v1597 = vld [vmem:[%s1588 + $0x40] sm:$0xff]
        %v1598 = vld [vmem:[%s1588 + $0x48] sm:$0xf]
        %v1599 = vld [vmem:[%s1588 + $0x50] sm:$0xf]
        %v1600 = vld [vmem:[%s1588 + $0x58] sm:$0xf]
        %v1602 = vsel %vm409, %v1564, 0
        %v1605 = vsel %vm409, %v1565, 0
        %v1608 = vsel %vm409, %v1566, 0
        %v1611 = vsel %vm409, %v1567, 0
        %v1614 = vsel %vm409, %v1568, 0
        %v1617 = vsel %vm409, %v1569, 0
        %v1620 = vsel %vm409, %v1570, 0
        %v1623 = vsel %vm409, %v1571, 0
        %v1626 = vsel %vm409, %v1572, 0
        %v1629 = vsel %vm409, %v1573, 0
        %v1632 = vsel %vm409, %v1574, 0
        %v1635 = vsel %vm409, %v1575, 0
        %v1638 = vsel %vm409, %v1576, 0
        %v1641 = vsel %vm409, %v1577, 0
        %v1644 = vsel %vm409, %v1578, 0
        %v1647 = vsel %vm409, %v1579, 0
        %v1650 = vsel %vm409, %v1580, 0
        %v1653 = vsel %vm409, %v1581, 0
        %v1656 = vsel %vm409, %v1582, 0
        %v1659 = vsel %vm409, %v1583, 0
        %v1662 = vsel %vm409, %v1584, 0
        %v1665 = vsel %vm409, %v1585, 0
        %v1668 = vsel %vm409, %v1586, 0
        %v1671 = vsel %vm409, %v1587, 0
        %v1674 = vsel %vm482, %v1598, 0
        %v1677 = vsel %vm482, %v1599, 0
        %v1680 = vsel %vm482, %v1600, 0
        %1682 = vmatpush.msra.mxu0 0.0
        %1683 = vmatpush.msra.mxu0 0.0
        %1684 = vmatpush.msra.mxu0 0.0
        %1685 = vmatpush.msra.mxu0 0.0
        %1686 = vmatpush.msra.mxu0 0.0
        %1687 = vmatpush.msra.mxu0 0.0
        %1688 = vmatpush.msra.mxu0 0.0
        %1689 = vmatpush.msra.mxu0 0.0
        %1690 = vmatpush.msra.mxu0 0.0
        %1691 = vmatpush.msra.mxu0 0.0
        %1692 = vmatpush.msra.mxu0 0.0
        %1693 = vmatpush.msra.mxu0 0.0
        %1694 = vmatpush.msra.mxu0 %v1674
        %1695 = vmatpush.msra.mxu0 %v1595
        %1696 = vmatpush.msra.mxu0 %v1592
        %1697 = vmatpush.msra.mxu0 %v1589
        %1698 = vmatmul.f32.gmra.mxu0 %v1602
        %v1699 = vpop.f32.mrf.mxu0
        %v1700 = vadd.f32 0.0, %v1699
        %1701 = vmatmul.f32.gmra.mxu0 %v1605
        %v1702 = vpop.f32.mrf.mxu0
        %v1703 = vadd.f32 0.0, %v1702
        %1704 = vmatmul.f32.gmra.mxu0 %v1608
        %v1705 = vpop.f32.mrf.mxu0
        %v1706 = vadd.f32 0.0, %v1705
        %1707 = vmatmul.f32.gmra.mxu0 %v1611
        %v1708 = vpop.f32.mrf.mxu0
        %v1709 = vadd.f32 0.0, %v1708
        %1710 = vmatmul.f32.gmra.mxu0 %v1614
        %v1711 = vpop.f32.mrf.mxu0
        %v1712 = vadd.f32 0.0, %v1711
        %1713 = vmatmul.f32.gmra.mxu0 %v1617
        %v1714 = vpop.f32.mrf.mxu0
        %v1715 = vadd.f32 0.0, %v1714
        %1716 = vmatmul.f32.gmra.mxu0 %v1620
        %v1717 = vpop.f32.mrf.mxu0
        %v1718 = vadd.f32 0.0, %v1717
        %1719 = vmatmul.f32.gmra.mxu0 %v1623
        %v1720 = vpop.f32.mrf.mxu0
        %v1721 = vadd.f32 0.0, %v1720
        %1722 = vmatmul.f32.gmra.mxu0 %v1626
        %v1723 = vpop.f32.mrf.mxu0
        %v1724 = vadd.f32 0.0, %v1723
        %1725 = vmatmul.f32.gmra.mxu0 %v1629
        %v1726 = vpop.f32.mrf.mxu0
        %v1727 = vadd.f32 0.0, %v1726
        %1728 = vmatmul.f32.gmra.mxu0 %v1632
        %v1729 = vpop.f32.mrf.mxu0
        %v1730 = vadd.f32 0.0, %v1729
        %1731 = vmatmul.f32.gmra.mxu0 %v1635
        %v1732 = vpop.f32.mrf.mxu0
        %v1733 = vadd.f32 0.0, %v1732
        %1734 = vmatmul.f32.gmra.mxu0 %v1638
        %v1735 = vpop.f32.mrf.mxu0
        %v1736 = vadd.f32 0.0, %v1735
        %1737 = vmatmul.f32.gmra.mxu0 %v1641
        %v1738 = vpop.f32.mrf.mxu0
        %v1739 = vadd.f32 0.0, %v1738
        %1740 = vmatmul.f32.gmra.mxu0 %v1644
        %v1741 = vpop.f32.mrf.mxu0
        %v1742 = vadd.f32 0.0, %v1741
        %1743 = vmatmul.f32.gmra.mxu0 %v1647
        %v1744 = vpop.f32.mrf.mxu0
        %v1745 = vadd.f32 0.0, %v1744
        %1746 = vmatmul.f32.gmra.mxu0 %v1650
        %v1747 = vpop.f32.mrf.mxu0
        %v1748 = vadd.f32 0.0, %v1747
        %1749 = vmatmul.f32.gmra.mxu0 %v1653
        %v1750 = vpop.f32.mrf.mxu0
        %v1751 = vadd.f32 0.0, %v1750
        %1752 = vmatmul.f32.gmra.mxu0 %v1656
        %v1753 = vpop.f32.mrf.mxu0
        %v1754 = vadd.f32 0.0, %v1753
        %1755 = vmatmul.f32.gmra.mxu0 %v1659
        %v1756 = vpop.f32.mrf.mxu0
        %v1757 = vadd.f32 0.0, %v1756
        %1758 = vmatmul.f32.gmra.mxu0 %v1662
        %v1759 = vpop.f32.mrf.mxu0
        %v1760 = vadd.f32 0.0, %v1759
        %1761 = vmatmul.f32.gmra.mxu0 %v1665
        %v1762 = vpop.f32.mrf.mxu0
        %v1763 = vadd.f32 0.0, %v1762
        %1764 = vmatmul.f32.gmra.mxu0 %v1668
        %v1765 = vpop.f32.mrf.mxu0
        %v1766 = vadd.f32 0.0, %v1765
        %1767 = vmatmul.f32.gmra.mxu0 %v1671
        %v1768 = vpop.f32.mrf.mxu0
        %v1769 = vadd.f32 0.0, %v1768
        %1770 = vdwg.mxu0
        %1771 = vmatpush.msra.mxu0 0.0
        %1772 = vmatpush.msra.mxu0 0.0
        %1773 = vmatpush.msra.mxu0 0.0
        %1774 = vmatpush.msra.mxu0 0.0
        %1775 = vmatpush.msra.mxu0 0.0
        %1776 = vmatpush.msra.mxu0 0.0
        %1777 = vmatpush.msra.mxu0 0.0
        %1778 = vmatpush.msra.mxu0 0.0
        %1779 = vmatpush.msra.mxu0 0.0
        %1780 = vmatpush.msra.mxu0 0.0
        %1781 = vmatpush.msra.mxu0 0.0
        %1782 = vmatpush.msra.mxu0 0.0
        %1783 = vmatpush.msra.mxu0 %v1677
        %1784 = vmatpush.msra.mxu0 %v1596
        %1785 = vmatpush.msra.mxu0 %v1593
        %1786 = vmatpush.msra.mxu0 %v1590
        %1787 = vmatmul.f32.gmra.mxu0 %v1602
        %v1788 = vpop.f32.mrf.mxu0
        %v1789 = vadd.f32 0.0, %v1788
        %1790 = vmatmul.f32.gmra.mxu0 %v1605
        %v1791 = vpop.f32.mrf.mxu0
        %v1792 = vadd.f32 0.0, %v1791
        %1793 = vmatmul.f32.gmra.mxu0 %v1608
        %v1794 = vpop.f32.mrf.mxu0
        %v1795 = vadd.f32 0.0, %v1794
        %1796 = vmatmul.f32.gmra.mxu0 %v1611
        %v1797 = vpop.f32.mrf.mxu0
        %v1798 = vadd.f32 0.0, %v1797
        %1799 = vmatmul.f32.gmra.mxu0 %v1614
        %v1800 = vpop.f32.mrf.mxu0
        %v1801 = vadd.f32 0.0, %v1800
        %1802 = vmatmul.f32.gmra.mxu0 %v1617
        %v1803 = vpop.f32.mrf.mxu0
        %v1804 = vadd.f32 0.0, %v1803
        %1805 = vmatmul.f32.gmra.mxu0 %v1620
        %v1806 = vpop.f32.mrf.mxu0
        %v1807 = vadd.f32 0.0, %v1806
        %1808 = vmatmul.f32.gmra.mxu0 %v1623
        %v1809 = vpop.f32.mrf.mxu0
        %v1810 = vadd.f32 0.0, %v1809
        %1811 = vmatmul.f32.gmra.mxu0 %v1626
        %v1812 = vpop.f32.mrf.mxu0
        %v1813 = vadd.f32 0.0, %v1812
        %1814 = vmatmul.f32.gmra.mxu0 %v1629
        %v1815 = vpop.f32.mrf.mxu0
        %v1816 = vadd.f32 0.0, %v1815
        %1817 = vmatmul.f32.gmra.mxu0 %v1632
        %v1818 = vpop.f32.mrf.mxu0
        %v1819 = vadd.f32 0.0, %v1818
        %1820 = vmatmul.f32.gmra.mxu0 %v1635
        %v1821 = vpop.f32.mrf.mxu0
        %v1822 = vadd.f32 0.0, %v1821
        %1823 = vmatmul.f32.gmra.mxu0 %v1638
        %v1824 = vpop.f32.mrf.mxu0
        %v1825 = vadd.f32 0.0, %v1824
        %1826 = vmatmul.f32.gmra.mxu0 %v1641
        %v1827 = vpop.f32.mrf.mxu0
        %v1828 = vadd.f32 0.0, %v1827
        %1829 = vmatmul.f32.gmra.mxu0 %v1644
        %v1830 = vpop.f32.mrf.mxu0
        %v1831 = vadd.f32 0.0, %v1830
        %1832 = vmatmul.f32.gmra.mxu0 %v1647
        %v1833 = vpop.f32.mrf.mxu0
        %v1834 = vadd.f32 0.0, %v1833
        %1835 = vmatmul.f32.gmra.mxu0 %v1650
        %v1836 = vpop.f32.mrf.mxu0
        %v1837 = vadd.f32 0.0, %v1836
        %1838 = vmatmul.f32.gmra.mxu0 %v1653
        %v1839 = vpop.f32.mrf.mxu0
        %v1840 = vadd.f32 0.0, %v1839
        %1841 = vmatmul.f32.gmra.mxu0 %v1656
        %v1842 = vpop.f32.mrf.mxu0
        %v1843 = vadd.f32 0.0, %v1842
        %1844 = vmatmul.f32.gmra.mxu0 %v1659
        %v1845 = vpop.f32.mrf.mxu0
        %v1846 = vadd.f32 0.0, %v1845
        %1847 = vmatmul.f32.gmra.mxu0 %v1662
        %v1848 = vpop.f32.mrf.mxu0
        %v1849 = vadd.f32 0.0, %v1848
        %1850 = vmatmul.f32.gmra.mxu0 %v1665
        %v1851 = vpop.f32.mrf.mxu0
        %v1852 = vadd.f32 0.0, %v1851
        %1853 = vmatmul.f32.gmra.mxu0 %v1668
        %v1854 = vpop.f32.mrf.mxu0
        %v1855 = vadd.f32 0.0, %v1854
        %1856 = vmatmul.f32.gmra.mxu0 %v1671
        %v1857 = vpop.f32.mrf.mxu0
        %v1858 = vadd.f32 0.0, %v1857
        %1859 = vdwg.mxu0
        %1860 = vmatpush.msra.mxu0 0.0
        %1861 = vmatpush.msra.mxu0 0.0
        %1862 = vmatpush.msra.mxu0 0.0
        %1863 = vmatpush.msra.mxu0 0.0
        %1864 = vmatpush.msra.mxu0 0.0
        %1865 = vmatpush.msra.mxu0 0.0
        %1866 = vmatpush.msra.mxu0 0.0
        %1867 = vmatpush.msra.mxu0 0.0
        %1868 = vmatpush.msra.mxu0 0.0
        %1869 = vmatpush.msra.mxu0 0.0
        %1870 = vmatpush.msra.mxu0 0.0
        %1871 = vmatpush.msra.mxu0 0.0
        %1872 = vmatpush.msra.mxu0 %v1680
        %1873 = vmatpush.msra.mxu0 %v1597
        %1874 = vmatpush.msra.mxu0 %v1594
        %1875 = vmatpush.msra.mxu0 %v1591
        %1876 = vmatmul.f32.gmra.mxu0 %v1602
        %v1877 = vpop.f32.mrf.mxu0
        %v1878 = vadd.f32 0.0, %v1877
        %1879 = vmatmul.f32.gmra.mxu0 %v1605
        %v1880 = vpop.f32.mrf.mxu0
        %v1881 = vadd.f32 0.0, %v1880
        %1882 = vmatmul.f32.gmra.mxu0 %v1608
        %v1883 = vpop.f32.mrf.mxu0
        %v1884 = vadd.f32 0.0, %v1883
        %1885 = vmatmul.f32.gmra.mxu0 %v1611
        %v1886 = vpop.f32.mrf.mxu0
        %v1887 = vadd.f32 0.0, %v1886
        %1888 = vmatmul.f32.gmra.mxu0 %v1614
        %v1889 = vpop.f32.mrf.mxu0
        %v1890 = vadd.f32 0.0, %v1889
        %1891 = vmatmul.f32.gmra.mxu0 %v1617
        %v1892 = vpop.f32.mrf.mxu0
        %v1893 = vadd.f32 0.0, %v1892
        %1894 = vmatmul.f32.gmra.mxu0 %v1620
        %v1895 = vpop.f32.mrf.mxu0
        %v1896 = vadd.f32 0.0, %v1895
        %1897 = vmatmul.f32.gmra.mxu0 %v1623
        %v1898 = vpop.f32.mrf.mxu0
        %v1899 = vadd.f32 0.0, %v1898
        %1900 = vmatmul.f32.gmra.mxu0 %v1626
        %v1901 = vpop.f32.mrf.mxu0
        %v1902 = vadd.f32 0.0, %v1901
        %1903 = vmatmul.f32.gmra.mxu0 %v1629
        %v1904 = vpop.f32.mrf.mxu0
        %v1905 = vadd.f32 0.0, %v1904
        %1906 = vmatmul.f32.gmra.mxu0 %v1632
        %v1907 = vpop.f32.mrf.mxu0
        %v1908 = vadd.f32 0.0, %v1907
        %1909 = vmatmul.f32.gmra.mxu0 %v1635
        %v1910 = vpop.f32.mrf.mxu0
        %v1911 = vadd.f32 0.0, %v1910
        %1912 = vmatmul.f32.gmra.mxu0 %v1638
        %v1913 = vpop.f32.mrf.mxu0
        %v1914 = vadd.f32 0.0, %v1913
        %1915 = vmatmul.f32.gmra.mxu0 %v1641
        %v1916 = vpop.f32.mrf.mxu0
        %v1917 = vadd.f32 0.0, %v1916
        %1918 = vmatmul.f32.gmra.mxu0 %v1644
        %v1919 = vpop.f32.mrf.mxu0
        %v1920 = vadd.f32 0.0, %v1919
        %1921 = vmatmul.f32.gmra.mxu0 %v1647
        %v1922 = vpop.f32.mrf.mxu0
        %v1923 = vadd.f32 0.0, %v1922
        %1924 = vmatmul.f32.gmra.mxu0 %v1650
        %v1925 = vpop.f32.mrf.mxu0
        %v1926 = vadd.f32 0.0, %v1925
        %1927 = vmatmul.f32.gmra.mxu0 %v1653
        %v1928 = vpop.f32.mrf.mxu0
        %v1929 = vadd.f32 0.0, %v1928
        %1930 = vmatmul.f32.gmra.mxu0 %v1656
        %v1931 = vpop.f32.mrf.mxu0
        %v1932 = vadd.f32 0.0, %v1931
        %1933 = vmatmul.f32.gmra.mxu0 %v1659
        %v1934 = vpop.f32.mrf.mxu0
        %v1935 = vadd.f32 0.0, %v1934
        %1936 = vmatmul.f32.gmra.mxu0 %v1662
        %v1937 = vpop.f32.mrf.mxu0
        %v1938 = vadd.f32 0.0, %v1937
        %1939 = vmatmul.f32.gmra.mxu0 %v1665
        %v1940 = vpop.f32.mrf.mxu0
        %v1941 = vadd.f32 0.0, %v1940
        %1942 = vmatmul.f32.gmra.mxu0 %v1668
        %v1943 = vpop.f32.mrf.mxu0
        %v1944 = vadd.f32 0.0, %v1943
        %1945 = vmatmul.f32.gmra.mxu0 %v1671
        %v1946 = vpop.f32.mrf.mxu0
        %v1947 = vadd.f32 0.0, %v1946
        %1948 = vdwg.mxu0
        %v1949 = vadd.f32 %v1492, %v1700
        %v1950 = vadd.f32 %v1493, %v1789
        %v1951 = vadd.f32 %v1494, %v1878
        %v1952 = vadd.f32 %v1495, %v1703
        %v1953 = vadd.f32 %v1496, %v1792
        %v1954 = vadd.f32 %v1497, %v1881
        %v1955 = vadd.f32 %v1498, %v1706
        %v1956 = vadd.f32 %v1499, %v1795
        %v1957 = vadd.f32 %v1500, %v1884
        %v1958 = vadd.f32 %v1501, %v1709
        %v1959 = vadd.f32 %v1502, %v1798
        %v1960 = vadd.f32 %v1503, %v1887
        %v1961 = vadd.f32 %v1504, %v1712
        %v1962 = vadd.f32 %v1505, %v1801
        %v1963 = vadd.f32 %v1506, %v1890
        %v1964 = vadd.f32 %v1507, %v1715
        %v1965 = vadd.f32 %v1508, %v1804
        %v1966 = vadd.f32 %v1509, %v1893
        %v1967 = vadd.f32 %v1510, %v1718
        %v1968 = vadd.f32 %v1511, %v1807
        %v1969 = vadd.f32 %v1512, %v1896
        %v1970 = vadd.f32 %v1513, %v1721
        %v1971 = vadd.f32 %v1514, %v1810
        %v1972 = vadd.f32 %v1515, %v1899
        %v1973 = vadd.f32 %v1516, %v1724
        %v1974 = vadd.f32 %v1517, %v1813
        %v1975 = vadd.f32 %v1518, %v1902
        %v1976 = vadd.f32 %v1519, %v1727
        %v1977 = vadd.f32 %v1520, %v1816
        %v1978 = vadd.f32 %v1521, %v1905
        %v1979 = vadd.f32 %v1522, %v1730
        %v1980 = vadd.f32 %v1523, %v1819
        %v1981 = vadd.f32 %v1524, %v1908
        %v1982 = vadd.f32 %v1525, %v1733
        %v1983 = vadd.f32 %v1526, %v1822
        %v1984 = vadd.f32 %v1527, %v1911
        %v1985 = vadd.f32 %v1528, %v1736
        %v1986 = vadd.f32 %v1529, %v1825
        %v1987 = vadd.f32 %v1530, %v1914
        %v1988 = vadd.f32 %v1531, %v1739
        %v1989 = vadd.f32 %v1532, %v1828
        %v1990 = vadd.f32 %v1533, %v1917
        %v1991 = vadd.f32 %v1534, %v1742
        %v1992 = vadd.f32 %v1535, %v1831
        %v1993 = vadd.f32 %v1536, %v1920
        %v1994 = vadd.f32 %v1537, %v1745
        %v1995 = vadd.f32 %v1538, %v1834
        %v1996 = vadd.f32 %v1539, %v1923
        %v1997 = vadd.f32 %v1540, %v1748
        %v1998 = vadd.f32 %v1541, %v1837
        %v1999 = vadd.f32 %v1542, %v1926
        %v2000 = vadd.f32 %v1543, %v1751
        %v2001 = vadd.f32 %v1544, %v1840
        %v2002 = vadd.f32 %v1545, %v1929
        %v2003 = vadd.f32 %v1546, %v1754
        %v2004 = vadd.f32 %v1547, %v1843
        %v2005 = vadd.f32 %v1548, %v1932
        %v2006 = vadd.f32 %v1549, %v1757
        %v2007 = vadd.f32 %v1550, %v1846
        %v2008 = vadd.f32 %v1551, %v1935
        %v2009 = vadd.f32 %v1552, %v1760
        %v2010 = vadd.f32 %v1553, %v1849
        %v2011 = vadd.f32 %v1554, %v1938
        %v2012 = vadd.f32 %v1555, %v1763
        %v2013 = vadd.f32 %v1556, %v1852
        %v2014 = vadd.f32 %v1557, %v1941
        %v2015 = vadd.f32 %v1558, %v1766
        %v2016 = vadd.f32 %v1559, %v1855
        %v2017 = vadd.f32 %v1560, %v1944
        %v2018 = vadd.f32 %v1561, %v1769
        %v2019 = vadd.f32 %v1562, %v1858
        %v2020 = vadd.f32 %v1563, %v1947
        %v2021 = vld [vmem:[%s334 + $0x4] sm:$0xff]
        %v2022 = vld [vmem:[%s334 + $0xc] sm:$0xff]
        %v2023 = vld [vmem:[%s334 + $0x14] sm:$0xff]
        %v2024 = vld [vmem:[%s334 + $0x24] sm:$0xff]
        %v2025 = vld [vmem:[%s334 + $0x2c] sm:$0xff]
        %v2026 = vld [vmem:[%s334 + $0x34] sm:$0xff]
        %v2027 = vld [vmem:[%s334 + $0x44] sm:$0xff]
        %v2028 = vld [vmem:[%s334 + $0x4c] sm:$0xff]
        %v2029 = vld [vmem:[%s334 + $0x54] sm:$0xff]
        %v2030 = vld [vmem:[%s334 + $0x64] sm:$0xff]
        %v2031 = vld [vmem:[%s334 + $0x6c] sm:$0xff]
        %v2032 = vld [vmem:[%s334 + $0x74] sm:$0xff]
        %v2033 = vld [vmem:[%s334 + $0x84] sm:$0xff]
        %v2034 = vld [vmem:[%s334 + $0x8c] sm:$0xff]
        %v2035 = vld [vmem:[%s334 + $0x94] sm:$0xff]
        %v2036 = vld [vmem:[%s334 + $0xa4] sm:$0xff]
        %v2037 = vld [vmem:[%s334 + $0xac] sm:$0xff]
        %v2038 = vld [vmem:[%s334 + $0xb4] sm:$0xff]
        %v2039 = vld [vmem:[%s334 + $0xc4] sm:$0xff]
        %v2040 = vld [vmem:[%s334 + $0xcc] sm:$0xff]
        %v2041 = vld [vmem:[%s334 + $0xd4] sm:$0xff]
        %v2042 = vld [vmem:[%s334 + $0xe4] sm:$0xff]
        %v2043 = vld [vmem:[%s334 + $0xec] sm:$0xff]
        %v2044 = vld [vmem:[%s334 + $0xf4] sm:$0xff]
        %s2045 = scalar_lea.vmem %s1, 384
        %v2046 = vld [vmem:[%s2045] sm:$0xff]
        %v2047 = vld [vmem:[%s2045 + $0x8] sm:$0xff]
        %v2048 = vld [vmem:[%s2045 + $0x10] sm:$0xff]
        %v2049 = vld [vmem:[%s2045 + $0x18] sm:$0xff]
        %v2050 = vld [vmem:[%s2045 + $0x20] sm:$0xff]
        %v2051 = vld [vmem:[%s2045 + $0x28] sm:$0xff]
        %v2052 = vld [vmem:[%s2045 + $0x30] sm:$0xff]
        %v2053 = vld [vmem:[%s2045 + $0x38] sm:$0xff]
        %v2054 = vld [vmem:[%s2045 + $0x40] sm:$0xff]
        %v2055 = vld [vmem:[%s2045 + $0x48] sm:$0xf]
        %v2056 = vld [vmem:[%s2045 + $0x50] sm:$0xf]
        %v2057 = vld [vmem:[%s2045 + $0x58] sm:$0xf]
        %v2059 = vsel %vm409, %v2021, 0
        %v2062 = vsel %vm409, %v2022, 0
        %v2065 = vsel %vm409, %v2023, 0
        %v2068 = vsel %vm409, %v2024, 0
        %v2071 = vsel %vm409, %v2025, 0
        %v2074 = vsel %vm409, %v2026, 0
        %v2077 = vsel %vm409, %v2027, 0
        %v2080 = vsel %vm409, %v2028, 0
        %v2083 = vsel %vm409, %v2029, 0
        %v2086 = vsel %vm409, %v2030, 0
        %v2089 = vsel %vm409, %v2031, 0
        %v2092 = vsel %vm409, %v2032, 0
        %v2095 = vsel %vm409, %v2033, 0
        %v2098 = vsel %vm409, %v2034, 0
        %v2101 = vsel %vm409, %v2035, 0
        %v2104 = vsel %vm409, %v2036, 0
        %v2107 = vsel %vm409, %v2037, 0
        %v2110 = vsel %vm409, %v2038, 0
        %v2113 = vsel %vm409, %v2039, 0
        %v2116 = vsel %vm409, %v2040, 0
        %v2119 = vsel %vm409, %v2041, 0
        %v2122 = vsel %vm409, %v2042, 0
        %v2125 = vsel %vm409, %v2043, 0
        %v2128 = vsel %vm409, %v2044, 0
        %v2131 = vsel %vm482, %v2055, 0
        %v2134 = vsel %vm482, %v2056, 0
        %v2137 = vsel %vm482, %v2057, 0
        %2139 = vmatpush.msra.mxu0 0.0
        %2140 = vmatpush.msra.mxu0 0.0
        %2141 = vmatpush.msra.mxu0 0.0
        %2142 = vmatpush.msra.mxu0 0.0
        %2143 = vmatpush.msra.mxu0 0.0
        %2144 = vmatpush.msra.mxu0 0.0
        %2145 = vmatpush.msra.mxu0 0.0
        %2146 = vmatpush.msra.mxu0 0.0
        %2147 = vmatpush.msra.mxu0 0.0
        %2148 = vmatpush.msra.mxu0 0.0
        %2149 = vmatpush.msra.mxu0 0.0
        %2150 = vmatpush.msra.mxu0 0.0
        %2151 = vmatpush.msra.mxu0 %v2131
        %2152 = vmatpush.msra.mxu0 %v2052
        %2153 = vmatpush.msra.mxu0 %v2049
        %2154 = vmatpush.msra.mxu0 %v2046
        %2155 = vmatmul.f32.gmra.mxu0 %v2059
        %v2156 = vpop.f32.mrf.mxu0
        %v2157 = vadd.f32 0.0, %v2156
        %2158 = vmatmul.f32.gmra.mxu0 %v2062
        %v2159 = vpop.f32.mrf.mxu0
        %v2160 = vadd.f32 0.0, %v2159
        %2161 = vmatmul.f32.gmra.mxu0 %v2065
        %v2162 = vpop.f32.mrf.mxu0
        %v2163 = vadd.f32 0.0, %v2162
        %2164 = vmatmul.f32.gmra.mxu0 %v2068
        %v2165 = vpop.f32.mrf.mxu0
        %v2166 = vadd.f32 0.0, %v2165
        %2167 = vmatmul.f32.gmra.mxu0 %v2071
        %v2168 = vpop.f32.mrf.mxu0
        %v2169 = vadd.f32 0.0, %v2168
        %2170 = vmatmul.f32.gmra.mxu0 %v2074
        %v2171 = vpop.f32.mrf.mxu0
        %v2172 = vadd.f32 0.0, %v2171
        %2173 = vmatmul.f32.gmra.mxu0 %v2077
        %v2174 = vpop.f32.mrf.mxu0
        %v2175 = vadd.f32 0.0, %v2174
        %2176 = vmatmul.f32.gmra.mxu0 %v2080
        %v2177 = vpop.f32.mrf.mxu0
        %v2178 = vadd.f32 0.0, %v2177
        %2179 = vmatmul.f32.gmra.mxu0 %v2083
        %v2180 = vpop.f32.mrf.mxu0
        %v2181 = vadd.f32 0.0, %v2180
        %2182 = vmatmul.f32.gmra.mxu0 %v2086
        %v2183 = vpop.f32.mrf.mxu0
        %v2184 = vadd.f32 0.0, %v2183
        %2185 = vmatmul.f32.gmra.mxu0 %v2089
        %v2186 = vpop.f32.mrf.mxu0
        %v2187 = vadd.f32 0.0, %v2186
        %2188 = vmatmul.f32.gmra.mxu0 %v2092
        %v2189 = vpop.f32.mrf.mxu0
        %v2190 = vadd.f32 0.0, %v2189
        %2191 = vmatmul.f32.gmra.mxu0 %v2095
        %v2192 = vpop.f32.mrf.mxu0
        %v2193 = vadd.f32 0.0, %v2192
        %2194 = vmatmul.f32.gmra.mxu0 %v2098
        %v2195 = vpop.f32.mrf.mxu0
        %v2196 = vadd.f32 0.0, %v2195
        %2197 = vmatmul.f32.gmra.mxu0 %v2101
        %v2198 = vpop.f32.mrf.mxu0
        %v2199 = vadd.f32 0.0, %v2198
        %2200 = vmatmul.f32.gmra.mxu0 %v2104
        %v2201 = vpop.f32.mrf.mxu0
        %v2202 = vadd.f32 0.0, %v2201
        %2203 = vmatmul.f32.gmra.mxu0 %v2107
        %v2204 = vpop.f32.mrf.mxu0
        %v2205 = vadd.f32 0.0, %v2204
        %2206 = vmatmul.f32.gmra.mxu0 %v2110
        %v2207 = vpop.f32.mrf.mxu0
        %v2208 = vadd.f32 0.0, %v2207
        %2209 = vmatmul.f32.gmra.mxu0 %v2113
        %v2210 = vpop.f32.mrf.mxu0
        %v2211 = vadd.f32 0.0, %v2210
        %2212 = vmatmul.f32.gmra.mxu0 %v2116
        %v2213 = vpop.f32.mrf.mxu0
        %v2214 = vadd.f32 0.0, %v2213
        %2215 = vmatmul.f32.gmra.mxu0 %v2119
        %v2216 = vpop.f32.mrf.mxu0
        %v2217 = vadd.f32 0.0, %v2216
        %2218 = vmatmul.f32.gmra.mxu0 %v2122
        %v2219 = vpop.f32.mrf.mxu0
        %v2220 = vadd.f32 0.0, %v2219
        %2221 = vmatmul.f32.gmra.mxu0 %v2125
        %v2222 = vpop.f32.mrf.mxu0
        %v2223 = vadd.f32 0.0, %v2222
        %2224 = vmatmul.f32.gmra.mxu0 %v2128
        %v2225 = vpop.f32.mrf.mxu0
        %v2226 = vadd.f32 0.0, %v2225
        %2227 = vdwg.mxu0
        %2228 = vmatpush.msra.mxu0 0.0
        %2229 = vmatpush.msra.mxu0 0.0
        %2230 = vmatpush.msra.mxu0 0.0
        %2231 = vmatpush.msra.mxu0 0.0
        %2232 = vmatpush.msra.mxu0 0.0
        %2233 = vmatpush.msra.mxu0 0.0
        %2234 = vmatpush.msra.mxu0 0.0
        %2235 = vmatpush.msra.mxu0 0.0
        %2236 = vmatpush.msra.mxu0 0.0
        %2237 = vmatpush.msra.mxu0 0.0
        %2238 = vmatpush.msra.mxu0 0.0
        %2239 = vmatpush.msra.mxu0 0.0
        %2240 = vmatpush.msra.mxu0 %v2134
        %2241 = vmatpush.msra.mxu0 %v2053
        %2242 = vmatpush.msra.mxu0 %v2050
        %2243 = vmatpush.msra.mxu0 %v2047
        %2244 = vmatmul.f32.gmra.mxu0 %v2059
        %v2245 = vpop.f32.mrf.mxu0
        %v2246 = vadd.f32 0.0, %v2245
        %2247 = vmatmul.f32.gmra.mxu0 %v2062
        %v2248 = vpop.f32.mrf.mxu0
        %v2249 = vadd.f32 0.0, %v2248
        %2250 = vmatmul.f32.gmra.mxu0 %v2065
        %v2251 = vpop.f32.mrf.mxu0
        %v2252 = vadd.f32 0.0, %v2251
        %2253 = vmatmul.f32.gmra.mxu0 %v2068
        %v2254 = vpop.f32.mrf.mxu0
        %v2255 = vadd.f32 0.0, %v2254
        %2256 = vmatmul.f32.gmra.mxu0 %v2071
        %v2257 = vpop.f32.mrf.mxu0
        %v2258 = vadd.f32 0.0, %v2257
        %2259 = vmatmul.f32.gmra.mxu0 %v2074
        %v2260 = vpop.f32.mrf.mxu0
        %v2261 = vadd.f32 0.0, %v2260
        %2262 = vmatmul.f32.gmra.mxu0 %v2077
        %v2263 = vpop.f32.mrf.mxu0
        %v2264 = vadd.f32 0.0, %v2263
        %2265 = vmatmul.f32.gmra.mxu0 %v2080
        %v2266 = vpop.f32.mrf.mxu0
        %v2267 = vadd.f32 0.0, %v2266
        %2268 = vmatmul.f32.gmra.mxu0 %v2083
        %v2269 = vpop.f32.mrf.mxu0
        %v2270 = vadd.f32 0.0, %v2269
        %2271 = vmatmul.f32.gmra.mxu0 %v2086
        %v2272 = vpop.f32.mrf.mxu0
        %v2273 = vadd.f32 0.0, %v2272
        %2274 = vmatmul.f32.gmra.mxu0 %v2089
        %v2275 = vpop.f32.mrf.mxu0
        %v2276 = vadd.f32 0.0, %v2275
        %2277 = vmatmul.f32.gmra.mxu0 %v2092
        %v2278 = vpop.f32.mrf.mxu0
        %v2279 = vadd.f32 0.0, %v2278
        %2280 = vmatmul.f32.gmra.mxu0 %v2095
        %v2281 = vpop.f32.mrf.mxu0
        %v2282 = vadd.f32 0.0, %v2281
        %2283 = vmatmul.f32.gmra.mxu0 %v2098
        %v2284 = vpop.f32.mrf.mxu0
        %v2285 = vadd.f32 0.0, %v2284
        %2286 = vmatmul.f32.gmra.mxu0 %v2101
        %v2287 = vpop.f32.mrf.mxu0
        %v2288 = vadd.f32 0.0, %v2287
        %2289 = vmatmul.f32.gmra.mxu0 %v2104
        %v2290 = vpop.f32.mrf.mxu0
        %v2291 = vadd.f32 0.0, %v2290
        %2292 = vmatmul.f32.gmra.mxu0 %v2107
        %v2293 = vpop.f32.mrf.mxu0
        %v2294 = vadd.f32 0.0, %v2293
        %2295 = vmatmul.f32.gmra.mxu0 %v2110
        %v2296 = vpop.f32.mrf.mxu0
        %v2297 = vadd.f32 0.0, %v2296
        %2298 = vmatmul.f32.gmra.mxu0 %v2113
        %v2299 = vpop.f32.mrf.mxu0
        %v2300 = vadd.f32 0.0, %v2299
        %2301 = vmatmul.f32.gmra.mxu0 %v2116
        %v2302 = vpop.f32.mrf.mxu0
        %v2303 = vadd.f32 0.0, %v2302
        %2304 = vmatmul.f32.gmra.mxu0 %v2119
        %v2305 = vpop.f32.mrf.mxu0
        %v2306 = vadd.f32 0.0, %v2305
        %2307 = vmatmul.f32.gmra.mxu0 %v2122
        %v2308 = vpop.f32.mrf.mxu0
        %v2309 = vadd.f32 0.0, %v2308
        %2310 = vmatmul.f32.gmra.mxu0 %v2125
        %v2311 = vpop.f32.mrf.mxu0
        %v2312 = vadd.f32 0.0, %v2311
        %2313 = vmatmul.f32.gmra.mxu0 %v2128
        %v2314 = vpop.f32.mrf.mxu0
        %v2315 = vadd.f32 0.0, %v2314
        %2316 = vdwg.mxu0
        %2317 = vmatpush.msra.mxu0 0.0
        %2318 = vmatpush.msra.mxu0 0.0
        %2319 = vmatpush.msra.mxu0 0.0
        %2320 = vmatpush.msra.mxu0 0.0
        %2321 = vmatpush.msra.mxu0 0.0
        %2322 = vmatpush.msra.mxu0 0.0
        %2323 = vmatpush.msra.mxu0 0.0
        %2324 = vmatpush.msra.mxu0 0.0
        %2325 = vmatpush.msra.mxu0 0.0
        %2326 = vmatpush.msra.mxu0 0.0
        %2327 = vmatpush.msra.mxu0 0.0
        %2328 = vmatpush.msra.mxu0 0.0
        %2329 = vmatpush.msra.mxu0 %v2137
        %2330 = vmatpush.msra.mxu0 %v2054
        %2331 = vmatpush.msra.mxu0 %v2051
        %2332 = vmatpush.msra.mxu0 %v2048
        %2333 = vmatmul.f32.gmra.mxu0 %v2059
        %v2334 = vpop.f32.mrf.mxu0
        %v2335 = vadd.f32 0.0, %v2334
        %2336 = vmatmul.f32.gmra.mxu0 %v2062
        %v2337 = vpop.f32.mrf.mxu0
        %v2338 = vadd.f32 0.0, %v2337
        %2339 = vmatmul.f32.gmra.mxu0 %v2065
        %v2340 = vpop.f32.mrf.mxu0
        %v2341 = vadd.f32 0.0, %v2340
        %2342 = vmatmul.f32.gmra.mxu0 %v2068
        %v2343 = vpop.f32.mrf.mxu0
        %v2344 = vadd.f32 0.0, %v2343
        %2345 = vmatmul.f32.gmra.mxu0 %v2071
        %v2346 = vpop.f32.mrf.mxu0
        %v2347 = vadd.f32 0.0, %v2346
        %2348 = vmatmul.f32.gmra.mxu0 %v2074
        %v2349 = vpop.f32.mrf.mxu0
        %v2350 = vadd.f32 0.0, %v2349
        %2351 = vmatmul.f32.gmra.mxu0 %v2077
        %v2352 = vpop.f32.mrf.mxu0
        %v2353 = vadd.f32 0.0, %v2352
        %2354 = vmatmul.f32.gmra.mxu0 %v2080
        %v2355 = vpop.f32.mrf.mxu0
        %v2356 = vadd.f32 0.0, %v2355
        %2357 = vmatmul.f32.gmra.mxu0 %v2083
        %v2358 = vpop.f32.mrf.mxu0
        %v2359 = vadd.f32 0.0, %v2358
        %2360 = vmatmul.f32.gmra.mxu0 %v2086
        %v2361 = vpop.f32.mrf.mxu0
        %v2362 = vadd.f32 0.0, %v2361
        %2363 = vmatmul.f32.gmra.mxu0 %v2089
        %v2364 = vpop.f32.mrf.mxu0
        %v2365 = vadd.f32 0.0, %v2364
        %2366 = vmatmul.f32.gmra.mxu0 %v2092
        %v2367 = vpop.f32.mrf.mxu0
        %v2368 = vadd.f32 0.0, %v2367
        %2369 = vmatmul.f32.gmra.mxu0 %v2095
        %v2370 = vpop.f32.mrf.mxu0
        %v2371 = vadd.f32 0.0, %v2370
        %2372 = vmatmul.f32.gmra.mxu0 %v2098
        %v2373 = vpop.f32.mrf.mxu0
        %v2374 = vadd.f32 0.0, %v2373
        %2375 = vmatmul.f32.gmra.mxu0 %v2101
        %v2376 = vpop.f32.mrf.mxu0
        %v2377 = vadd.f32 0.0, %v2376
        %2378 = vmatmul.f32.gmra.mxu0 %v2104
        %v2379 = vpop.f32.mrf.mxu0
        %v2380 = vadd.f32 0.0, %v2379
        %2381 = vmatmul.f32.gmra.mxu0 %v2107
        %v2382 = vpop.f32.mrf.mxu0
        %v2383 = vadd.f32 0.0, %v2382
        %2384 = vmatmul.f32.gmra.mxu0 %v2110
        %v2385 = vpop.f32.mrf.mxu0
        %v2386 = vadd.f32 0.0, %v2385
        %2387 = vmatmul.f32.gmra.mxu0 %v2113
        %v2388 = vpop.f32.mrf.mxu0
        %v2389 = vadd.f32 0.0, %v2388
        %2390 = vmatmul.f32.gmra.mxu0 %v2116
        %v2391 = vpop.f32.mrf.mxu0
        %v2392 = vadd.f32 0.0, %v2391
        %2393 = vmatmul.f32.gmra.mxu0 %v2119
        %v2394 = vpop.f32.mrf.mxu0
        %v2395 = vadd.f32 0.0, %v2394
        %2396 = vmatmul.f32.gmra.mxu0 %v2122
        %v2397 = vpop.f32.mrf.mxu0
        %v2398 = vadd.f32 0.0, %v2397
        %2399 = vmatmul.f32.gmra.mxu0 %v2125
        %v2400 = vpop.f32.mrf.mxu0
        %v2401 = vadd.f32 0.0, %v2400
        %2402 = vmatmul.f32.gmra.mxu0 %v2128
        %v2403 = vpop.f32.mrf.mxu0
        %v2404 = vadd.f32 0.0, %v2403
        %2405 = vdwg.mxu0
        %v2406 = vadd.f32 %v1949, %v2157
        %v2407 = vadd.f32 %v1950, %v2246
        %v2408 = vadd.f32 %v1951, %v2335
        %v2409 = vadd.f32 %v1952, %v2160
        %v2410 = vadd.f32 %v1953, %v2249
        %v2411 = vadd.f32 %v1954, %v2338
        %v2412 = vadd.f32 %v1955, %v2163
        %v2413 = vadd.f32 %v1956, %v2252
        %v2414 = vadd.f32 %v1957, %v2341
        %v2415 = vadd.f32 %v1958, %v2166
        %v2416 = vadd.f32 %v1959, %v2255
        %v2417 = vadd.f32 %v1960, %v2344
        %v2418 = vadd.f32 %v1961, %v2169
        %v2419 = vadd.f32 %v1962, %v2258
        %v2420 = vadd.f32 %v1963, %v2347
        %v2421 = vadd.f32 %v1964, %v2172
        %v2422 = vadd.f32 %v1965, %v2261
        %v2423 = vadd.f32 %v1966, %v2350
        %v2424 = vadd.f32 %v1967, %v2175
        %v2425 = vadd.f32 %v1968, %v2264
        %v2426 = vadd.f32 %v1969, %v2353
        %v2427 = vadd.f32 %v1970, %v2178
        %v2428 = vadd.f32 %v1971, %v2267
        %v2429 = vadd.f32 %v1972, %v2356
        %v2430 = vadd.f32 %v1973, %v2181
        %v2431 = vadd.f32 %v1974, %v2270
        %v2432 = vadd.f32 %v1975, %v2359
        %v2433 = vadd.f32 %v1976, %v2184
        %v2434 = vadd.f32 %v1977, %v2273
        %v2435 = vadd.f32 %v1978, %v2362
        %v2436 = vadd.f32 %v1979, %v2187
        %v2437 = vadd.f32 %v1980, %v2276
        %v2438 = vadd.f32 %v1981, %v2365
        %v2439 = vadd.f32 %v1982, %v2190
        %v2440 = vadd.f32 %v1983, %v2279
        %v2441 = vadd.f32 %v1984, %v2368
        %v2442 = vadd.f32 %v1985, %v2193
        %v2443 = vadd.f32 %v1986, %v2282
        %v2444 = vadd.f32 %v1987, %v2371
        %v2445 = vadd.f32 %v1988, %v2196
        %v2446 = vadd.f32 %v1989, %v2285
        %v2447 = vadd.f32 %v1990, %v2374
        %v2448 = vadd.f32 %v1991, %v2199
        %v2449 = vadd.f32 %v1992, %v2288
        %v2450 = vadd.f32 %v1993, %v2377
        %v2451 = vadd.f32 %v1994, %v2202
        %v2452 = vadd.f32 %v1995, %v2291
        %v2453 = vadd.f32 %v1996, %v2380
        %v2454 = vadd.f32 %v1997, %v2205
        %v2455 = vadd.f32 %v1998, %v2294
        %v2456 = vadd.f32 %v1999, %v2383
        %v2457 = vadd.f32 %v2000, %v2208
        %v2458 = vadd.f32 %v2001, %v2297
        %v2459 = vadd.f32 %v2002, %v2386
        %v2460 = vadd.f32 %v2003, %v2211
        %v2461 = vadd.f32 %v2004, %v2300
        %v2462 = vadd.f32 %v2005, %v2389
        %v2463 = vadd.f32 %v2006, %v2214
        %v2464 = vadd.f32 %v2007, %v2303
        %v2465 = vadd.f32 %v2008, %v2392
        %v2466 = vadd.f32 %v2009, %v2217
        %v2467 = vadd.f32 %v2010, %v2306
        %v2468 = vadd.f32 %v2011, %v2395
        %v2469 = vadd.f32 %v2012, %v2220
        %v2470 = vadd.f32 %v2013, %v2309
        %v2471 = vadd.f32 %v2014, %v2398
        %v2472 = vadd.f32 %v2015, %v2223
        %v2473 = vadd.f32 %v2016, %v2312
        %v2474 = vadd.f32 %v2017, %v2401
        %v2475 = vadd.f32 %v2018, %v2226
        %v2476 = vadd.f32 %v2019, %v2315
        %v2477 = vadd.f32 %v2020, %v2404
        %v2478 = vld [vmem:[%s2] sm:$0x7]
        %v2480 = vperm.slane %v2478, 0
        %v2481 = vperm.slane %v2478, 1
        %v2482 = vperm.slane %v2478, 2
        %v2486 = vmul.f32 %v2406, %v2480
        %v2487 = vmul.f32 %v2407, %v2481
        %v2488 = vmul.f32 %v2408, %v2482
        %v2489 = vmul.f32 %v2409, %v2480
        %v2490 = vmul.f32 %v2410, %v2481
        %v2491 = vmul.f32 %v2411, %v2482
        %v2492 = vmul.f32 %v2412, %v2480
        %v2493 = vmul.f32 %v2413, %v2481
        %v2494 = vmul.f32 %v2414, %v2482
        %v2495 = vmul.f32 %v2415, %v2480
        %v2496 = vmul.f32 %v2416, %v2481
        %v2497 = vmul.f32 %v2417, %v2482
        %v2498 = vmul.f32 %v2418, %v2480
        %v2499 = vmul.f32 %v2419, %v2481
        %v2500 = vmul.f32 %v2420, %v2482
        %v2501 = vmul.f32 %v2421, %v2480
        %v2502 = vmul.f32 %v2422, %v2481
        %v2503 = vmul.f32 %v2423, %v2482
        %v2504 = vmul.f32 %v2424, %v2480
        %v2505 = vmul.f32 %v2425, %v2481
        %v2506 = vmul.f32 %v2426, %v2482
        %v2507 = vmul.f32 %v2427, %v2480
        %v2508 = vmul.f32 %v2428, %v2481
        %v2509 = vmul.f32 %v2429, %v2482
        %v2510 = vmul.f32 %v2430, %v2480
        %v2511 = vmul.f32 %v2431, %v2481
        %v2512 = vmul.f32 %v2432, %v2482
        %v2513 = vmul.f32 %v2433, %v2480
        %v2514 = vmul.f32 %v2434, %v2481
        %v2515 = vmul.f32 %v2435, %v2482
        %v2516 = vmul.f32 %v2436, %v2480
        %v2517 = vmul.f32 %v2437, %v2481
        %v2518 = vmul.f32 %v2438, %v2482
        %v2519 = vmul.f32 %v2439, %v2480
        %v2520 = vmul.f32 %v2440, %v2481
        %v2521 = vmul.f32 %v2441, %v2482
        %v2522 = vmul.f32 %v2442, %v2480
        %v2523 = vmul.f32 %v2443, %v2481
        %v2524 = vmul.f32 %v2444, %v2482
        %v2525 = vmul.f32 %v2445, %v2480
        %v2526 = vmul.f32 %v2446, %v2481
        %v2527 = vmul.f32 %v2447, %v2482
        %v2528 = vmul.f32 %v2448, %v2480
        %v2529 = vmul.f32 %v2449, %v2481
        %v2530 = vmul.f32 %v2450, %v2482
        %v2531 = vmul.f32 %v2451, %v2480
        %v2532 = vmul.f32 %v2452, %v2481
        %v2533 = vmul.f32 %v2453, %v2482
        %v2534 = vmul.f32 %v2454, %v2480
        %v2535 = vmul.f32 %v2455, %v2481
        %v2536 = vmul.f32 %v2456, %v2482
        %v2537 = vmul.f32 %v2457, %v2480
        %v2538 = vmul.f32 %v2458, %v2481
        %v2539 = vmul.f32 %v2459, %v2482
        %v2540 = vmul.f32 %v2460, %v2480
        %v2541 = vmul.f32 %v2461, %v2481
        %v2542 = vmul.f32 %v2462, %v2482
        %v2543 = vmul.f32 %v2463, %v2480
        %v2544 = vmul.f32 %v2464, %v2481
        %v2545 = vmul.f32 %v2465, %v2482
        %v2546 = vmul.f32 %v2466, %v2480
        %v2547 = vmul.f32 %v2467, %v2481
        %v2548 = vmul.f32 %v2468, %v2482
        %v2549 = vmul.f32 %v2469, %v2480
        %v2550 = vmul.f32 %v2470, %v2481
        %v2551 = vmul.f32 %v2471, %v2482
        %v2552 = vmul.f32 %v2472, %v2480
        %v2553 = vmul.f32 %v2473, %v2481
        %v2554 = vmul.f32 %v2474, %v2482
        %v2555 = vmul.f32 %v2475, %v2480
        %v2556 = vmul.f32 %v2476, %v2481
        %v2557 = vmul.f32 %v2477, %v2482
        %v2558 = vld [vmem:[%s3] sm:$0x7]
        %v2560 = vperm.slane %v2558, 0
        %v2561 = vperm.slane %v2558, 1
        %v2562 = vperm.slane %v2558, 2
        %v2566 = vadd.f32 %v2486, %v2560
        %v2567 = vadd.f32 %v2487, %v2561
        %v2568 = vadd.f32 %v2488, %v2562
        %v2569 = vadd.f32 %v2489, %v2560
        %v2570 = vadd.f32 %v2490, %v2561
        %v2571 = vadd.f32 %v2491, %v2562
        %v2572 = vadd.f32 %v2492, %v2560
        %v2573 = vadd.f32 %v2493, %v2561
        %v2574 = vadd.f32 %v2494, %v2562
        %v2575 = vadd.f32 %v2495, %v2560
        %v2576 = vadd.f32 %v2496, %v2561
        %v2577 = vadd.f32 %v2497, %v2562
        %v2578 = vadd.f32 %v2498, %v2560
        %v2579 = vadd.f32 %v2499, %v2561
        %v2580 = vadd.f32 %v2500, %v2562
        %v2581 = vadd.f32 %v2501, %v2560
        %v2582 = vadd.f32 %v2502, %v2561
        %v2583 = vadd.f32 %v2503, %v2562
        %v2584 = vadd.f32 %v2504, %v2560
        %v2585 = vadd.f32 %v2505, %v2561
        %v2586 = vadd.f32 %v2506, %v2562
        %v2587 = vadd.f32 %v2507, %v2560
        %v2588 = vadd.f32 %v2508, %v2561
        %v2589 = vadd.f32 %v2509, %v2562
        %v2590 = vadd.f32 %v2510, %v2560
        %v2591 = vadd.f32 %v2511, %v2561
        %v2592 = vadd.f32 %v2512, %v2562
        %v2593 = vadd.f32 %v2513, %v2560
        %v2594 = vadd.f32 %v2514, %v2561
        %v2595 = vadd.f32 %v2515, %v2562
        %v2596 = vadd.f32 %v2516, %v2560
        %v2597 = vadd.f32 %v2517, %v2561
        %v2598 = vadd.f32 %v2518, %v2562
        %v2599 = vadd.f32 %v2519, %v2560
        %v2600 = vadd.f32 %v2520, %v2561
        %v2601 = vadd.f32 %v2521, %v2562
        %v2602 = vadd.f32 %v2522, %v2560
        %v2603 = vadd.f32 %v2523, %v2561
        %v2604 = vadd.f32 %v2524, %v2562
        %v2605 = vadd.f32 %v2525, %v2560
        %v2606 = vadd.f32 %v2526, %v2561
        %v2607 = vadd.f32 %v2527, %v2562
        %v2608 = vadd.f32 %v2528, %v2560
        %v2609 = vadd.f32 %v2529, %v2561
        %v2610 = vadd.f32 %v2530, %v2562
        %v2611 = vadd.f32 %v2531, %v2560
        %v2612 = vadd.f32 %v2532, %v2561
        %v2613 = vadd.f32 %v2533, %v2562
        %v2614 = vadd.f32 %v2534, %v2560
        %v2615 = vadd.f32 %v2535, %v2561
        %v2616 = vadd.f32 %v2536, %v2562
        %v2617 = vadd.f32 %v2537, %v2560
        %v2618 = vadd.f32 %v2538, %v2561
        %v2619 = vadd.f32 %v2539, %v2562
        %v2620 = vadd.f32 %v2540, %v2560
        %v2621 = vadd.f32 %v2541, %v2561
        %v2622 = vadd.f32 %v2542, %v2562
        %v2623 = vadd.f32 %v2543, %v2560
        %v2624 = vadd.f32 %v2544, %v2561
        %v2625 = vadd.f32 %v2545, %v2562
        %v2626 = vadd.f32 %v2546, %v2560
        %v2627 = vadd.f32 %v2547, %v2561
        %v2628 = vadd.f32 %v2548, %v2562
        %v2629 = vadd.f32 %v2549, %v2560
        %v2630 = vadd.f32 %v2550, %v2561
        %v2631 = vadd.f32 %v2551, %v2562
        %v2632 = vadd.f32 %v2552, %v2560
        %v2633 = vadd.f32 %v2553, %v2561
        %v2634 = vadd.f32 %v2554, %v2562
        %v2635 = vadd.f32 %v2555, %v2560
        %v2636 = vadd.f32 %v2556, %v2561
        %v2637 = vadd.f32 %v2557, %v2562
        %v2638 = vmax.f32 %v2566, 0.0
        %v2639 = vmax.f32 %v2567, 0.0
        %v2640 = vmax.f32 %v2568, 0.0
        %v2641 = vmax.f32 %v2569, 0.0
        %v2642 = vmax.f32 %v2570, 0.0
        %v2643 = vmax.f32 %v2571, 0.0
        %v2644 = vmax.f32 %v2572, 0.0
        %v2645 = vmax.f32 %v2573, 0.0
        %v2646 = vmax.f32 %v2574, 0.0
        %v2647 = vmax.f32 %v2575, 0.0
        %v2648 = vmax.f32 %v2576, 0.0
        %v2649 = vmax.f32 %v2577, 0.0
        %v2650 = vmax.f32 %v2578, 0.0
        %v2651 = vmax.f32 %v2579, 0.0
        %v2652 = vmax.f32 %v2580, 0.0
        %v2653 = vmax.f32 %v2581, 0.0
        %v2654 = vmax.f32 %v2582, 0.0
        %v2655 = vmax.f32 %v2583, 0.0
        %v2656 = vmax.f32 %v2584, 0.0
        %v2657 = vmax.f32 %v2585, 0.0
        %v2658 = vmax.f32 %v2586, 0.0
        %v2659 = vmax.f32 %v2587, 0.0
        %v2660 = vmax.f32 %v2588, 0.0
        %v2661 = vmax.f32 %v2589, 0.0
        %v2662 = vmax.f32 %v2590, 0.0
        %v2663 = vmax.f32 %v2591, 0.0
        %v2664 = vmax.f32 %v2592, 0.0
        %v2665 = vmax.f32 %v2593, 0.0
        %v2666 = vmax.f32 %v2594, 0.0
        %v2667 = vmax.f32 %v2595, 0.0
        %v2668 = vmax.f32 %v2596, 0.0
        %v2669 = vmax.f32 %v2597, 0.0
        %v2670 = vmax.f32 %v2598, 0.0
        %v2671 = vmax.f32 %v2599, 0.0
        %v2672 = vmax.f32 %v2600, 0.0
        %v2673 = vmax.f32 %v2601, 0.0
        %v2674 = vmax.f32 %v2602, 0.0
        %v2675 = vmax.f32 %v2603, 0.0
        %v2676 = vmax.f32 %v2604, 0.0
        %v2677 = vmax.f32 %v2605, 0.0
        %v2678 = vmax.f32 %v2606, 0.0
        %v2679 = vmax.f32 %v2607, 0.0
        %v2680 = vmax.f32 %v2608, 0.0
        %v2681 = vmax.f32 %v2609, 0.0
        %v2682 = vmax.f32 %v2610, 0.0
        %v2683 = vmax.f32 %v2611, 0.0
        %v2684 = vmax.f32 %v2612, 0.0
        %v2685 = vmax.f32 %v2613, 0.0
        %v2686 = vmax.f32 %v2614, 0.0
        %v2687 = vmax.f32 %v2615, 0.0
        %v2688 = vmax.f32 %v2616, 0.0
        %v2689 = vmax.f32 %v2617, 0.0
        %v2690 = vmax.f32 %v2618, 0.0
        %v2691 = vmax.f32 %v2619, 0.0
        %v2692 = vmax.f32 %v2620, 0.0
        %v2693 = vmax.f32 %v2621, 0.0
        %v2694 = vmax.f32 %v2622, 0.0
        %v2695 = vmax.f32 %v2623, 0.0
        %v2696 = vmax.f32 %v2624, 0.0
        %v2697 = vmax.f32 %v2625, 0.0
        %v2698 = vmax.f32 %v2626, 0.0
        %v2699 = vmax.f32 %v2627, 0.0
        %v2700 = vmax.f32 %v2628, 0.0
        %v2701 = vmax.f32 %v2629, 0.0
        %v2702 = vmax.f32 %v2630, 0.0
        %v2703 = vmax.f32 %v2631, 0.0
        %v2704 = vmax.f32 %v2632, 0.0
        %v2705 = vmax.f32 %v2633, 0.0
        %v2706 = vmax.f32 %v2634, 0.0
        %v2707 = vmax.f32 %v2635, 0.0
        %v2708 = vmax.f32 %v2636, 0.0
        %v2709 = vmax.f32 %v2637, 0.0
        %2710 = vst [vmem:[#allocation2] sm:$0xff] %v2638
        %2711 = vst [vmem:[#allocation2 + $0x8] sm:$0xff] %v2639
        %2712 = vst [vmem:[#allocation2 + $0x10] sm:$0xff] %v2640
        %2713 = vst [vmem:[#allocation2 + $0x18] sm:$0xff] %v2641
        %2714 = vst [vmem:[#allocation2 + $0x20] sm:$0xff] %v2642
        %2715 = vst [vmem:[#allocation2 + $0x28] sm:$0xff] %v2643
        %2716 = vst [vmem:[#allocation2 + $0x30] sm:$0xff] %v2644
        %2717 = vst [vmem:[#allocation2 + $0x38] sm:$0xff] %v2645
        %2718 = vst [vmem:[#allocation2 + $0x40] sm:$0xff] %v2646
        %2719 = vst [vmem:[#allocation2 + $0x60] sm:$0xff] %v2647
        %2720 = vst [vmem:[#allocation2 + $0x68] sm:$0xff] %v2648
        %2721 = vst [vmem:[#allocation2 + $0x70] sm:$0xff] %v2649
        %2722 = vst [vmem:[#allocation2 + $0x78] sm:$0xff] %v2650
        %2723 = vst [vmem:[#allocation2 + $0x80] sm:$0xff] %v2651
        %2724 = vst [vmem:[#allocation2 + $0x88] sm:$0xff] %v2652
        %2725 = vst [vmem:[#allocation2 + $0x90] sm:$0xff] %v2653
        %2726 = vst [vmem:[#allocation2 + $0x98] sm:$0xff] %v2654
        %2727 = vst [vmem:[#allocation2 + $0xa0] sm:$0xff] %v2655
        %2728 = vst [vmem:[#allocation2 + $0xc0] sm:$0xff] %v2656
        %2729 = vst [vmem:[#allocation2 + $0xc8] sm:$0xff] %v2657
        %2730 = vst [vmem:[#allocation2 + $0xd0] sm:$0xff] %v2658
        %2731 = vst [vmem:[#allocation2 + $0xd8] sm:$0xff] %v2659
        %2732 = vst [vmem:[#allocation2 + $0xe0] sm:$0xff] %v2660
        %2733 = vst [vmem:[#allocation2 + $0xe8] sm:$0xff] %v2661
        %2734 = vst [vmem:[#allocation2 + $0xf0] sm:$0xff] %v2662
        %2735 = vst [vmem:[#allocation2 + $0xf8] sm:$0xff] %v2663
        %2736 = vst [vmem:[#allocation2 + $0x100] sm:$0xff] %v2664
        %2737 = vst [vmem:[#allocation2 + $0x120] sm:$0xff] %v2665
        %2738 = vst [vmem:[#allocation2 + $0x128] sm:$0xff] %v2666
        %2739 = vst [vmem:[#allocation2 + $0x130] sm:$0xff] %v2667
        %2740 = vst [vmem:[#allocation2 + $0x138] sm:$0xff] %v2668
        %2741 = vst [vmem:[#allocation2 + $0x140] sm:$0xff] %v2669
        %2742 = vst [vmem:[#allocation2 + $0x148] sm:$0xff] %v2670
        %2743 = vst [vmem:[#allocation2 + $0x150] sm:$0xff] %v2671
        %2744 = vst [vmem:[#allocation2 + $0x158] sm:$0xff] %v2672
        %2745 = vst [vmem:[#allocation2 + $0x160] sm:$0xff] %v2673
        %2746 = vst [vmem:[#allocation2 + $0x180] sm:$0xff] %v2674
        %2747 = vst [vmem:[#allocation2 + $0x188] sm:$0xff] %v2675
        %2748 = vst [vmem:[#allocation2 + $0x190] sm:$0xff] %v2676
        %2749 = vst [vmem:[#allocation2 + $0x198] sm:$0xff] %v2677
        %2750 = vst [vmem:[#allocation2 + $0x1a0] sm:$0xff] %v2678
        %2751 = vst [vmem:[#allocation2 + $0x1a8] sm:$0xff] %v2679
        %2752 = vst [vmem:[#allocation2 + $0x1b0] sm:$0xff] %v2680
        %2753 = vst [vmem:[#allocation2 + $0x1b8] sm:$0xff] %v2681
        %2754 = vst [vmem:[#allocation2 + $0x1c0] sm:$0xff] %v2682
        %2755 = vst [vmem:[#allocation2 + $0x1e0] sm:$0xff] %v2683
        %2756 = vst [vmem:[#allocation2 + $0x1e8] sm:$0xff] %v2684
        %2757 = vst [vmem:[#allocation2 + $0x1f0] sm:$0xff] %v2685
        %2758 = vst [vmem:[#allocation2 + $0x1f8] sm:$0xff] %v2686
        %2759 = vst [vmem:[#allocation2 + $0x200] sm:$0xff] %v2687
        %2760 = vst [vmem:[#allocation2 + $0x208] sm:$0xff] %v2688
        %2761 = vst [vmem:[#allocation2 + $0x210] sm:$0xff] %v2689
        %2762 = vst [vmem:[#allocation2 + $0x218] sm:$0xff] %v2690
        %2763 = vst [vmem:[#allocation2 + $0x220] sm:$0xff] %v2691
        %2764 = vst [vmem:[#allocation2 + $0x240] sm:$0xff] %v2692
        %2765 = vst [vmem:[#allocation2 + $0x248] sm:$0xff] %v2693
        %2766 = vst [vmem:[#allocation2 + $0x250] sm:$0xff] %v2694
        %2767 = vst [vmem:[#allocation2 + $0x258] sm:$0xff] %v2695
        %2768 = vst [vmem:[#allocation2 + $0x260] sm:$0xff] %v2696
        %2769 = vst [vmem:[#allocation2 + $0x268] sm:$0xff] %v2697
        %2770 = vst [vmem:[#allocation2 + $0x270] sm:$0xff] %v2698
        %2771 = vst [vmem:[#allocation2 + $0x278] sm:$0xff] %v2699
        %2772 = vst [vmem:[#allocation2 + $0x280] sm:$0xff] %v2700
        %2773 = vst [vmem:[#allocation2 + $0x2a0] sm:$0xff] %v2701
        %2774 = vst [vmem:[#allocation2 + $0x2a8] sm:$0xff] %v2702
        %2775 = vst [vmem:[#allocation2 + $0x2b0] sm:$0xff] %v2703
        %2776 = vst [vmem:[#allocation2 + $0x2b8] sm:$0xff] %v2704
        %2777 = vst [vmem:[#allocation2 + $0x2c0] sm:$0xff] %v2705
        %2778 = vst [vmem:[#allocation2 + $0x2c8] sm:$0xff] %v2706
        %2779 = vst [vmem:[#allocation2 + $0x2d0] sm:$0xff] %v2707
        %2780 = vst [vmem:[#allocation2 + $0x2d8] sm:$0xff] %v2708
        %2781 = vst [vmem:[#allocation2 + $0x2e0] sm:$0xff] %v2709
        %2782 = vst [vmem:[#allocation2 + $0x48] sm:$0x3] 0.0
        %2783 = vst [vmem:[#allocation2 + $0x50] sm:$0x3] 0.0
        %2784 = vst [vmem:[#allocation2 + $0x58] sm:$0x3] 0.0
        %2785 = vst [vmem:[#allocation2 + $0xa8] sm:$0x3] 0.0
        %2786 = vst [vmem:[#allocation2 + $0xb0] sm:$0x3] 0.0
        %2787 = vst [vmem:[#allocation2 + $0xb8] sm:$0x3] 0.0
        %2788 = vst [vmem:[#allocation2 + $0x108] sm:$0x3] 0.0
        %2789 = vst [vmem:[#allocation2 + $0x110] sm:$0x3] 0.0
        %2790 = vst [vmem:[#allocation2 + $0x118] sm:$0x3] 0.0
        %2791 = vst [vmem:[#allocation2 + $0x168] sm:$0x3] 0.0
        %2792 = vst [vmem:[#allocation2 + $0x170] sm:$0x3] 0.0
        %2793 = vst [vmem:[#allocation2 + $0x178] sm:$0x3] 0.0
        %2794 = vst [vmem:[#allocation2 + $0x1c8] sm:$0x3] 0.0
        %2795 = vst [vmem:[#allocation2 + $0x1d0] sm:$0x3] 0.0
        %2796 = vst [vmem:[#allocation2 + $0x1d8] sm:$0x3] 0.0
        %2797 = vst [vmem:[#allocation2 + $0x228] sm:$0x3] 0.0
        %2798 = vst [vmem:[#allocation2 + $0x230] sm:$0x3] 0.0
        %2799 = vst [vmem:[#allocation2 + $0x238] sm:$0x3] 0.0
        %2800 = vst [vmem:[#allocation2 + $0x288] sm:$0x3] 0.0
        %2801 = vst [vmem:[#allocation2 + $0x290] sm:$0x3] 0.0
        %2802 = vst [vmem:[#allocation2 + $0x298] sm:$0x3] 0.0
        %2803 = vst [vmem:[#allocation2 + $0x2e8] sm:$0x3] 0.0
        %2804 = vst [vmem:[#allocation2 + $0x2f0] sm:$0x3] 0.0
        %2805 = vst [vmem:[#allocation2 + $0x2f8] sm:$0x3] 0.0
        %v2806 = vld [vmem:[#allocation2] sm:$0xff]
        %v2807 = vld [vmem:[#allocation2 + $0x8] sm:$0xff]
        %v2808 = vld [vmem:[#allocation2 + $0x10] sm:$0xff]
        %v2809 = vld [vmem:[#allocation2 + $0x18] sm:$0xff]
        %v2810 = vld [vmem:[#allocation2 + $0x20] sm:$0xff]
        %v2811 = vld [vmem:[#allocation2 + $0x28] sm:$0xff]
        %v2812 = vld [vmem:[#allocation2 + $0x30] sm:$0xff]
        %v2813 = vld [vmem:[#allocation2 + $0x38] sm:$0xff]
        %v2814 = vld [vmem:[#allocation2 + $0x40] sm:$0xff]
        %v2815 = vld [vmem:[#allocation2 + $0x60] sm:$0xff]
        %v2816 = vld [vmem:[#allocation2 + $0x68] sm:$0xff]
        %v2817 = vld [vmem:[#allocation2 + $0x70] sm:$0xff]
        %v2818 = vld [vmem:[#allocation2 + $0x78] sm:$0xff]
        %v2819 = vld [vmem:[#allocation2 + $0x80] sm:$0xff]
        %v2820 = vld [vmem:[#allocation2 + $0x88] sm:$0xff]
        %v2821 = vld [vmem:[#allocation2 + $0x90] sm:$0xff]
        %v2822 = vld [vmem:[#allocation2 + $0x98] sm:$0xff]
        %v2823 = vld [vmem:[#allocation2 + $0xa0] sm:$0xff]
        %v2824 = vld [vmem:[#allocation2 + $0xc0] sm:$0xff]
        %v2825 = vld [vmem:[#allocation2 + $0xc8] sm:$0xff]
        %v2826 = vld [vmem:[#allocation2 + $0xd0] sm:$0xff]
        %v2827 = vld [vmem:[#allocation2 + $0xd8] sm:$0xff]
        %v2828 = vld [vmem:[#allocation2 + $0xe0] sm:$0xff]
        %v2829 = vld [vmem:[#allocation2 + $0xe8] sm:$0xff]
        %v2830 = vld [vmem:[#allocation2 + $0xf0] sm:$0xff]
        %v2831 = vld [vmem:[#allocation2 + $0xf8] sm:$0xff]
        %v2832 = vld [vmem:[#allocation2 + $0x100] sm:$0xff]
        %v2833 = vld [vmem:[#allocation2 + $0x120] sm:$0xff]
        %v2834 = vld [vmem:[#allocation2 + $0x128] sm:$0xff]
        %v2835 = vld [vmem:[#allocation2 + $0x130] sm:$0xff]
        %v2836 = vld [vmem:[#allocation2 + $0x138] sm:$0xff]
        %v2837 = vld [vmem:[#allocation2 + $0x140] sm:$0xff]
        %v2838 = vld [vmem:[#allocation2 + $0x148] sm:$0xff]
        %v2839 = vld [vmem:[#allocation2 + $0x150] sm:$0xff]
        %v2840 = vld [vmem:[#allocation2 + $0x158] sm:$0xff]
        %v2841 = vld [vmem:[#allocation2 + $0x160] sm:$0xff]
        %v2842 = vld [vmem:[#allocation2 + $0x180] sm:$0xff]
        %v2843 = vld [vmem:[#allocation2 + $0x188] sm:$0xff]
        %v2844 = vld [vmem:[#allocation2 + $0x190] sm:$0xff]
        %v2845 = vld [vmem:[#allocation2 + $0x198] sm:$0xff]
        %v2846 = vld [vmem:[#allocation2 + $0x1a0] sm:$0xff]
        %v2847 = vld [vmem:[#allocation2 + $0x1a8] sm:$0xff]
        %v2848 = vld [vmem:[#allocation2 + $0x1b0] sm:$0xff]
        %v2849 = vld [vmem:[#allocation2 + $0x1b8] sm:$0xff]
        %v2850 = vld [vmem:[#allocation2 + $0x1c0] sm:$0xff]
        %v2851 = vld [vmem:[#allocation2 + $0x1e0] sm:$0xff]
        %v2852 = vld [vmem:[#allocation2 + $0x1e8] sm:$0xff]
        %v2853 = vld [vmem:[#allocation2 + $0x1f0] sm:$0xff]
        %v2854 = vld [vmem:[#allocation2 + $0x1f8] sm:$0xff]
        %v2855 = vld [vmem:[#allocation2 + $0x200] sm:$0xff]
        %v2856 = vld [vmem:[#allocation2 + $0x208] sm:$0xff]
        %v2857 = vld [vmem:[#allocation2 + $0x210] sm:$0xff]
        %v2858 = vld [vmem:[#allocation2 + $0x218] sm:$0xff]
        %v2859 = vld [vmem:[#allocation2 + $0x220] sm:$0xff]
        %v2860 = vld [vmem:[#allocation2 + $0x240] sm:$0xff]
        %v2861 = vld [vmem:[#allocation2 + $0x248] sm:$0xff]
        %v2862 = vld [vmem:[#allocation2 + $0x250] sm:$0xff]
        %v2863 = vld [vmem:[#allocation2 + $0x258] sm:$0xff]
        %v2864 = vld [vmem:[#allocation2 + $0x260] sm:$0xff]
        %v2865 = vld [vmem:[#allocation2 + $0x268] sm:$0xff]
        %v2866 = vld [vmem:[#allocation2 + $0x270] sm:$0xff]
        %v2867 = vld [vmem:[#allocation2 + $0x278] sm:$0xff]
        %v2868 = vld [vmem:[#allocation2 + $0x280] sm:$0xff]
        %v2869 = vld [vmem:[#allocation2 + $0x2a0] sm:$0xff]
        %v2870 = vld [vmem:[#allocation2 + $0x2a8] sm:$0xff]
        %v2871 = vld [vmem:[#allocation2 + $0x2b0] sm:$0xff]
        %v2872 = vld [vmem:[#allocation2 + $0x2b8] sm:$0xff]
        %v2873 = vld [vmem:[#allocation2 + $0x2c0] sm:$0xff]
        %v2874 = vld [vmem:[#allocation2 + $0x2c8] sm:$0xff]
        %v2875 = vld [vmem:[#allocation2 + $0x2d0] sm:$0xff]
        %v2876 = vld [vmem:[#allocation2 + $0x2d8] sm:$0xff]
        %v2877 = vld [vmem:[#allocation2 + $0x2e0] sm:$0xff]
        %v2878 = vld [vmem:[%s4] sm:$0xff]
        %v2879 = vld [vmem:[%s4 + $0x8] sm:$0xff]
        %v2880 = vld [vmem:[%s4 + $0x10] sm:$0xff]
        %v2881 = vld [vmem:[%s4 + $0x18] sm:$0xff]
        %v2882 = vld [vmem:[%s4 + $0x20] sm:$0xff]
        %v2883 = vld [vmem:[%s4 + $0x28] sm:$0xff]
        %v2884 = vld [vmem:[%s4 + $0x30] sm:$0xff]
        %v2885 = vld [vmem:[%s4 + $0x38] sm:$0xff]
        %v2886 = vld [vmem:[%s4 + $0x40] sm:$0xff]
        %v2887 = vld [vmem:[%s4 + $0x48] sm:$0xff]
        %v2888 = vld [vmem:[%s4 + $0x50] sm:$0xff]
        %v2889 = vld [vmem:[%s4 + $0x58] sm:$0xff]
        %v2890 = vld [vmem:[%s4 + $0x60] sm:$0xff]
        %v2891 = vld [vmem:[%s4 + $0x68] sm:$0xff]
        %v2892 = vld [vmem:[%s4 + $0x70] sm:$0xff]
        %v2893 = vld [vmem:[%s4 + $0x78] sm:$0xff]
        %v2894 = vld [vmem:[%s4 + $0x80] sm:$0xff]
        %v2895 = vld [vmem:[%s4 + $0x88] sm:$0xff]
        %v2896 = vld [vmem:[%s4 + $0x90] sm:$0xff]
        %v2897 = vld [vmem:[%s4 + $0x98] sm:$0xff]
        %v2898 = vld [vmem:[%s4 + $0xa0] sm:$0xff]
        %v2899 = vld [vmem:[%s4 + $0xa8] sm:$0xff]
        %v2900 = vld [vmem:[%s4 + $0xb0] sm:$0xff]
        %v2901 = vld [vmem:[%s4 + $0xb8] sm:$0xff]
        %v2902 = vld [vmem:[%s4 + $0xc0] sm:$0xff]
        %v2903 = vld [vmem:[%s4 + $0xc8] sm:$0xff]
        %v2904 = vld [vmem:[%s4 + $0xd0] sm:$0xff]
        %v2905 = vld [vmem:[%s4 + $0xd8] sm:$0xff]
        %v2906 = vld [vmem:[%s4 + $0xe0] sm:$0xff]
        %v2907 = vld [vmem:[%s4 + $0xe8] sm:$0xff]
        %v2908 = vld [vmem:[%s4 + $0xf0] sm:$0xff]
        %v2909 = vld [vmem:[%s4 + $0xf8] sm:$0xff]
        %v2910 = vld [vmem:[%s4 + $0x100] sm:$0xff]
        %v2911 = vld [vmem:[%s4 + $0x108] sm:$0xff]
        %v2912 = vld [vmem:[%s4 + $0x110] sm:$0xff]
        %v2913 = vld [vmem:[%s4 + $0x118] sm:$0xff]
        %v2914 = vld [vmem:[%s4 + $0x120] sm:$0xff]
        %v2915 = vld [vmem:[%s4 + $0x128] sm:$0xff]
        %v2916 = vld [vmem:[%s4 + $0x130] sm:$0xff]
        %v2917 = vld [vmem:[%s4 + $0x138] sm:$0xff]
        %v2918 = vld [vmem:[%s4 + $0x140] sm:$0xff]
        %v2919 = vld [vmem:[%s4 + $0x148] sm:$0xff]
        %v2920 = vld [vmem:[%s4 + $0x150] sm:$0xff]
        %v2921 = vld [vmem:[%s4 + $0x158] sm:$0xff]
        %v2922 = vld [vmem:[%s4 + $0x160] sm:$0xff]
        %v2923 = vld [vmem:[%s4 + $0x168] sm:$0xff]
        %v2924 = vld [vmem:[%s4 + $0x170] sm:$0xff]
        %v2925 = vld [vmem:[%s4 + $0x178] sm:$0xff]
        %v2926 = vld [vmem:[%s4 + $0x180] sm:$0xff]
        %v2927 = vld [vmem:[%s4 + $0x188] sm:$0xff]
        %v2928 = vld [vmem:[%s4 + $0x190] sm:$0xff]
        %v2929 = vld [vmem:[%s4 + $0x198] sm:$0xff]
        %v2930 = vld [vmem:[%s4 + $0x1a0] sm:$0xff]
        %v2931 = vld [vmem:[%s4 + $0x1a8] sm:$0xff]
        %v2932 = vld [vmem:[%s4 + $0x1b0] sm:$0xff]
        %v2933 = vld [vmem:[%s4 + $0x1b8] sm:$0xff]
        %v2934 = vld [vmem:[%s4 + $0x1c0] sm:$0xff]
        %v2935 = vld [vmem:[%s4 + $0x1c8] sm:$0xff]
        %v2936 = vld [vmem:[%s4 + $0x1d0] sm:$0xff]
        %v2937 = vld [vmem:[%s4 + $0x1d8] sm:$0xff]
        %v2938 = vld [vmem:[%s4 + $0x1e0] sm:$0xff]
        %v2939 = vld [vmem:[%s4 + $0x1e8] sm:$0xff]
        %v2940 = vld [vmem:[%s4 + $0x1f0] sm:$0xff]
        %v2941 = vld [vmem:[%s4 + $0x1f8] sm:$0xff]
        %v2942 = vld [vmem:[%s4 + $0x200] sm:$0xff]
        %v2943 = vld [vmem:[%s4 + $0x208] sm:$0xff]
        %v2944 = vld [vmem:[%s4 + $0x210] sm:$0xff]
        %v2945 = vld [vmem:[%s4 + $0x218] sm:$0xff]
        %v2946 = vld [vmem:[%s4 + $0x220] sm:$0xff]
        %v2947 = vld [vmem:[%s4 + $0x228] sm:$0xff]
        %v2948 = vld [vmem:[%s4 + $0x230] sm:$0xff]
        %v2949 = vld [vmem:[%s4 + $0x238] sm:$0xff]
        %v2950 = vld [vmem:[%s4 + $0x240] sm:$0xff]
        %v2951 = vld [vmem:[%s4 + $0x248] sm:$0xff]
        %v2952 = vld [vmem:[%s4 + $0x250] sm:$0xff]
        %v2953 = vld [vmem:[%s4 + $0x258] sm:$0xff]
        %v2954 = vld [vmem:[%s4 + $0x260] sm:$0xff]
        %v2955 = vld [vmem:[%s4 + $0x268] sm:$0xff]
        %v2956 = vld [vmem:[%s4 + $0x270] sm:$0xff]
        %v2957 = vld [vmem:[%s4 + $0x278] sm:$0xff]
        %v2958 = vld [vmem:[%s4 + $0x280] sm:$0xff]
        %v2959 = vld [vmem:[%s4 + $0x288] sm:$0xff]
        %v2960 = vld [vmem:[%s4 + $0x290] sm:$0xff]
        %v2961 = vld [vmem:[%s4 + $0x298] sm:$0xff]
        %v2962 = vld [vmem:[%s4 + $0x2a0] sm:$0xff]
        %v2963 = vld [vmem:[%s4 + $0x2a8] sm:$0xff]
        %v2964 = vld [vmem:[%s4 + $0x2b0] sm:$0xff]
        %v2965 = vld [vmem:[%s4 + $0x2b8] sm:$0xff]
        %v2966 = vld [vmem:[%s4 + $0x2c0] sm:$0xff]
        %v2967 = vld [vmem:[%s4 + $0x2c8] sm:$0xff]
        %v2968 = vld [vmem:[%s4 + $0x2d0] sm:$0xff]
        %v2969 = vld [vmem:[%s4 + $0x2d8] sm:$0xff]
        %v2970 = vld [vmem:[%s4 + $0x2e0] sm:$0xff]
        %v2971 = vld [vmem:[%s4 + $0x2e8] sm:$0xff]
        %v2972 = vld [vmem:[%s4 + $0x2f0] sm:$0xff]
        %v2973 = vld [vmem:[%s4 + $0x2f8] sm:$0xff]
        %v2974 = vld [vmem:[#allocation2] sm:$0xfe]
        %v2975 = vld [vmem:[#allocation2 + $0x8] sm:$0xfe]
        %v2976 = vld [vmem:[#allocation2 + $0x10] sm:$0xfe]
        %v2977 = vld [vmem:[#allocation2 + $0x48] sm:$0x1]
        %v2978 = vld [vmem:[#allocation2 + $0x50] sm:$0x1]
        %v2979 = vld [vmem:[#allocation2 + $0x58] sm:$0x1]
        %v2980 = vld [vmem:[#allocation2 + $0x60] sm:$0xfe]
        %v2981 = vld [vmem:[#allocation2 + $0x68] sm:$0xfe]
        %v2982 = vld [vmem:[#allocation2 + $0x70] sm:$0xfe]
        %v2983 = vld [vmem:[#allocation2 + $0xa8] sm:$0x1]
        %v2984 = vld [vmem:[#allocation2 + $0xb0] sm:$0x1]
        %v2985 = vld [vmem:[#allocation2 + $0xb8] sm:$0x1]
        %v2986 = vld [vmem:[#allocation2 + $0xc0] sm:$0xfe]
        %v2987 = vld [vmem:[#allocation2 + $0xc8] sm:$0xfe]
        %v2988 = vld [vmem:[#allocation2 + $0xd0] sm:$0xfe]
        %v2989 = vld [vmem:[#allocation2 + $0x108] sm:$0x1]
        %v2990 = vld [vmem:[#allocation2 + $0x110] sm:$0x1]
        %v2991 = vld [vmem:[#allocation2 + $0x118] sm:$0x1]
        %v2992 = vld [vmem:[#allocation2 + $0x120] sm:$0xfe]
        %v2993 = vld [vmem:[#allocation2 + $0x128] sm:$0xfe]
        %v2994 = vld [vmem:[#allocation2 + $0x130] sm:$0xfe]
        %v2995 = vld [vmem:[#allocation2 + $0x168] sm:$0x1]
        %v2996 = vld [vmem:[#allocation2 + $0x170] sm:$0x1]
        %v2997 = vld [vmem:[#allocation2 + $0x178] sm:$0x1]
        %v2998 = vld [vmem:[#allocation2 + $0x180] sm:$0xfe]
        %v2999 = vld [vmem:[#allocation2 + $0x188] sm:$0xfe]
        %v3000 = vld [vmem:[#allocation2 + $0x190] sm:$0xfe]
        %v3001 = vld [vmem:[#allocation2 + $0x1c8] sm:$0x1]
        %v3002 = vld [vmem:[#allocation2 + $0x1d0] sm:$0x1]
        %v3003 = vld [vmem:[#allocation2 + $0x1d8] sm:$0x1]
        %v3004 = vld [vmem:[#allocation2 + $0x1e0] sm:$0xfe]
        %v3005 = vld [vmem:[#allocation2 + $0x1e8] sm:$0xfe]
        %v3006 = vld [vmem:[#allocation2 + $0x1f0] sm:$0xfe]
        %v3007 = vld [vmem:[#allocation2 + $0x228] sm:$0x1]
        %v3008 = vld [vmem:[#allocation2 + $0x230] sm:$0x1]
        %v3009 = vld [vmem:[#allocation2 + $0x238] sm:$0x1]
        %v3010 = vld [vmem:[#allocation2 + $0x240] sm:$0xfe]
        %v3011 = vld [vmem:[#allocation2 + $0x248] sm:$0xfe]
        %v3012 = vld [vmem:[#allocation2 + $0x250] sm:$0xfe]
        %v3013 = vld [vmem:[#allocation2 + $0x288] sm:$0x1]
        %v3014 = vld [vmem:[#allocation2 + $0x290] sm:$0x1]
        %v3015 = vld [vmem:[#allocation2 + $0x298] sm:$0x1]
        %v3016 = vld [vmem:[#allocation2 + $0x2a0] sm:$0xfe]
        %v3017 = vld [vmem:[#allocation2 + $0x2a8] sm:$0xfe]
        %v3018 = vld [vmem:[#allocation2 + $0x2b0] sm:$0xfe]
        %v3019 = vld [vmem:[#allocation2 + $0x2e8] sm:$0x1]
        %v3020 = vld [vmem:[#allocation2 + $0x2f0] sm:$0x1]
        %v3021 = vld [vmem:[#allocation2 + $0x2f8] sm:$0x1]
        %vm3118 = vcmask 1046528
        %v3119 = vrot.slane %v2974, 1
        %v3120 = vrot.slane %v2809, 1
        %v3121 = vsel %vm3118, %v3119, %v3120
        %v3122 = vrot.slane %v2975, 1
        %v3123 = vrot.slane %v2810, 1
        %v3124 = vsel %vm3118, %v3122, %v3123
        %v3125 = vrot.slane %v2976, 1
        %v3126 = vrot.slane %v2811, 1
        %v3127 = vsel %vm3118, %v3125, %v3126
        %v3128 = vrot.slane %v2812, 1
        %v3129 = vsel %vm3118, %v3120, %v3128
        %v3130 = vrot.slane %v2813, 1
        %v3131 = vsel %vm3118, %v3123, %v3130
        %v3132 = vrot.slane %v2814, 1
        %v3133 = vsel %vm3118, %v3126, %v3132
        %v3134 = vrot.slane %v2977, 1
        %v3135 = vsel %vm3118, %v3128, %v3134
        %v3136 = vrot.slane %v2978, 1
        %v3137 = vsel %vm3118, %v3130, %v3136
        %v3138 = vrot.slane %v2979, 1
        %v3139 = vsel %vm3118, %v3132, %v3138
        %v3140 = vrot.slane %v2980, 1
        %v3141 = vrot.slane %v2818, 1
        %v3142 = vsel %vm3118, %v3140, %v3141
        %v3143 = vrot.slane %v2981, 1
        %v3144 = vrot.slane %v2819, 1
        %v3145 = vsel %vm3118, %v3143, %v3144
        %v3146 = vrot.slane %v2982, 1
        %v3147 = vrot.slane %v2820, 1
        %v3148 = vsel %vm3118, %v3146, %v3147
        %v3149 = vrot.slane %v2821, 1
        %v3150 = vsel %vm3118, %v3141, %v3149
        %v3151 = vrot.slane %v2822, 1
        %v3152 = vsel %vm3118, %v3144, %v3151
        %v3153 = vrot.slane %v2823, 1
        %v3154 = vsel %vm3118, %v3147, %v3153
        %v3155 = vrot.slane %v2983, 1
        %v3156 = vsel %vm3118, %v3149, %v3155
        %v3157 = vrot.slane %v2984, 1
        %v3158 = vsel %vm3118, %v3151, %v3157
        %v3159 = vrot.slane %v2985, 1
        %v3160 = vsel %vm3118, %v3153, %v3159
        %v3161 = vrot.slane %v2986, 1
        %v3162 = vrot.slane %v2827, 1
        %v3163 = vsel %vm3118, %v3161, %v3162
        %v3164 = vrot.slane %v2987, 1
        %v3165 = vrot.slane %v2828, 1
        %v3166 = vsel %vm3118, %v3164, %v3165
        %v3167 = vrot.slane %v2988, 1
        %v3168 = vrot.slane %v2829, 1
        %v3169 = vsel %vm3118, %v3167, %v3168
        %v3170 = vrot.slane %v2830, 1
        %v3171 = vsel %vm3118, %v3162, %v3170
        %v3172 = vrot.slane %v2831, 1
        %v3173 = vsel %vm3118, %v3165, %v3172
        %v3174 = vrot.slane %v2832, 1
        %v3175 = vsel %vm3118, %v3168, %v3174
        %v3176 = vrot.slane %v2989, 1
        %v3177 = vsel %vm3118, %v3170, %v3176
        %v3178 = vrot.slane %v2990, 1
        %v3179 = vsel %vm3118, %v3172, %v3178
        %v3180 = vrot.slane %v2991, 1
        %v3181 = vsel %vm3118, %v3174, %v3180
        %v3182 = vrot.slane %v2992, 1
        %v3183 = vrot.slane %v2836, 1
        %v3184 = vsel %vm3118, %v3182, %v3183
        %v3185 = vrot.slane %v2993, 1
        %v3186 = vrot.slane %v2837, 1
        %v3187 = vsel %vm3118, %v3185, %v3186
        %v3188 = vrot.slane %v2994, 1
        %v3189 = vrot.slane %v2838, 1
        %v3190 = vsel %vm3118, %v3188, %v3189
        %v3191 = vrot.slane %v2839, 1
        %v3192 = vsel %vm3118, %v3183, %v3191
        %v3193 = vrot.slane %v2840, 1
        %v3194 = vsel %vm3118, %v3186, %v3193
        %v3195 = vrot.slane %v2841, 1
        %v3196 = vsel %vm3118, %v3189, %v3195
        %v3197 = vrot.slane %v2995, 1
        %v3198 = vsel %vm3118, %v3191, %v3197
        %v3199 = vrot.slane %v2996, 1
        %v3200 = vsel %vm3118, %v3193, %v3199
        %v3201 = vrot.slane %v2997, 1
        %v3202 = vsel %vm3118, %v3195, %v3201
        %v3203 = vrot.slane %v2998, 1
        %v3204 = vrot.slane %v2845, 1
        %v3205 = vsel %vm3118, %v3203, %v3204
        %v3206 = vrot.slane %v2999, 1
        %v3207 = vrot.slane %v2846, 1
        %v3208 = vsel %vm3118, %v3206, %v3207
        %v3209 = vrot.slane %v3000, 1
        %v3210 = vrot.slane %v2847, 1
        %v3211 = vsel %vm3118, %v3209, %v3210
        %v3212 = vrot.slane %v2848, 1
        %v3213 = vsel %vm3118, %v3204, %v3212
        %v3214 = vrot.slane %v2849, 1
        %v3215 = vsel %vm3118, %v3207, %v3214
        %v3216 = vrot.slane %v2850, 1
        %v3217 = vsel %vm3118, %v3210, %v3216
        %v3218 = vrot.slane %v3001, 1
        %v3219 = vsel %vm3118, %v3212, %v3218
        %v3220 = vrot.slane %v3002, 1
        %v3221 = vsel %vm3118, %v3214, %v3220
        %v3222 = vrot.slane %v3003, 1
        %v3223 = vsel %vm3118, %v3216, %v3222
        %v3224 = vrot.slane %v3004, 1
        %v3225 = vrot.slane %v2854, 1
        %v3226 = vsel %vm3118, %v3224, %v3225
        %v3227 = vrot.slane %v3005, 1
        %v3228 = vrot.slane %v2855, 1
        %v3229 = vsel %vm3118, %v3227, %v3228
        %v3230 = vrot.slane %v3006, 1
        %v3231 = vrot.slane %v2856, 1
        %v3232 = vsel %vm3118, %v3230, %v3231
        %v3233 = vrot.slane %v2857, 1
        %v3234 = vsel %vm3118, %v3225, %v3233
        %v3235 = vrot.slane %v2858, 1
        %v3236 = vsel %vm3118, %v3228, %v3235
        %v3237 = vrot.slane %v2859, 1
        %v3238 = vsel %vm3118, %v3231, %v3237
        %v3239 = vrot.slane %v3007, 1
        %v3240 = vsel %vm3118, %v3233, %v3239
        %v3241 = vrot.slane %v3008, 1
        %v3242 = vsel %vm3118, %v3235, %v3241
        %v3243 = vrot.slane %v3009, 1
        %v3244 = vsel %vm3118, %v3237, %v3243
        %v3245 = vrot.slane %v3010, 1
        %v3246 = vrot.slane %v2863, 1
        %v3247 = vsel %vm3118, %v3245, %v3246
        %v3248 = vrot.slane %v3011, 1
        %v3249 = vrot.slane %v2864, 1
        %v3250 = vsel %vm3118, %v3248, %v3249
        %v3251 = vrot.slane %v3012, 1
        %v3252 = vrot.slane %v2865, 1
        %v3253 = vsel %vm3118, %v3251, %v3252
        %v3254 = vrot.slane %v2866, 1
        %v3255 = vsel %vm3118, %v3246, %v3254
        %v3256 = vrot.slane %v2867, 1
        %v3257 = vsel %vm3118, %v3249, %v3256
        %v3258 = vrot.slane %v2868, 1
        %v3259 = vsel %vm3118, %v3252, %v3258
        %v3260 = vrot.slane %v3013, 1
        %v3261 = vsel %vm3118, %v3254, %v3260
        %v3262 = vrot.slane %v3014, 1
        %v3263 = vsel %vm3118, %v3256, %v3262
        %v3264 = vrot.slane %v3015, 1
        %v3265 = vsel %vm3118, %v3258, %v3264
        %v3266 = vrot.slane %v3016, 1
        %v3267 = vrot.slane %v2872, 1
        %v3268 = vsel %vm3118, %v3266, %v3267
        %v3269 = vrot.slane %v3017, 1
        %v3270 = vrot.slane %v2873, 1
        %v3271 = vsel %vm3118, %v3269, %v3270
        %v3272 = vrot.slane %v3018, 1
        %v3273 = vrot.slane %v2874, 1
        %v3274 = vsel %vm3118, %v3272, %v3273
        %v3275 = vrot.slane %v2875, 1
        %v3276 = vsel %vm3118, %v3267, %v3275
        %v3277 = vrot.slane %v2876, 1
        %v3278 = vsel %vm3118, %v3270, %v3277
        %v3279 = vrot.slane %v2877, 1
        %v3280 = vsel %vm3118, %v3273, %v3279
        %v3281 = vrot.slane %v3019, 1
        %v3282 = vsel %vm3118, %v3275, %v3281
        %v3283 = vrot.slane %v3020, 1
        %v3284 = vsel %vm3118, %v3277, %v3283
        %v3285 = vrot.slane %v3021, 1
        %v3286 = vsel %vm3118, %v3279, %v3285
        %s3359 = scalar_lea.vmem %s4, 768
        %v3360 = vld [vmem:[%s3359] sm:$0xff]
        %v3361 = vld [vmem:[%s3359 + $0x8] sm:$0xff]
        %v3362 = vld [vmem:[%s3359 + $0x10] sm:$0xff]
        %v3363 = vld [vmem:[%s3359 + $0x18] sm:$0xff]
        %v3364 = vld [vmem:[%s3359 + $0x20] sm:$0xff]
        %v3365 = vld [vmem:[%s3359 + $0x28] sm:$0xff]
        %v3366 = vld [vmem:[%s3359 + $0x30] sm:$0xff]
        %v3367 = vld [vmem:[%s3359 + $0x38] sm:$0xff]
        %v3368 = vld [vmem:[%s3359 + $0x40] sm:$0xff]
        %v3369 = vld [vmem:[%s3359 + $0x48] sm:$0xff]
        %v3370 = vld [vmem:[%s3359 + $0x50] sm:$0xff]
        %v3371 = vld [vmem:[%s3359 + $0x58] sm:$0xff]
        %v3372 = vld [vmem:[%s3359 + $0x60] sm:$0xff]
        %v3373 = vld [vmem:[%s3359 + $0x68] sm:$0xff]
        %v3374 = vld [vmem:[%s3359 + $0x70] sm:$0xff]
        %v3375 = vld [vmem:[%s3359 + $0x78] sm:$0xff]
        %v3376 = vld [vmem:[%s3359 + $0x80] sm:$0xff]
        %v3377 = vld [vmem:[%s3359 + $0x88] sm:$0xff]
        %v3378 = vld [vmem:[%s3359 + $0x90] sm:$0xff]
        %v3379 = vld [vmem:[%s3359 + $0x98] sm:$0xff]
        %v3380 = vld [vmem:[%s3359 + $0xa0] sm:$0xff]
        %v3381 = vld [vmem:[%s3359 + $0xa8] sm:$0xff]
        %v3382 = vld [vmem:[%s3359 + $0xb0] sm:$0xff]
        %v3383 = vld [vmem:[%s3359 + $0xb8] sm:$0xff]
        %v3384 = vld [vmem:[%s3359 + $0xc0] sm:$0xff]
        %v3385 = vld [vmem:[%s3359 + $0xc8] sm:$0xff]
        %v3386 = vld [vmem:[%s3359 + $0xd0] sm:$0xff]
        %v3387 = vld [vmem:[%s3359 + $0xd8] sm:$0xff]
        %v3388 = vld [vmem:[%s3359 + $0xe0] sm:$0xff]
        %v3389 = vld [vmem:[%s3359 + $0xe8] sm:$0xff]
        %v3390 = vld [vmem:[%s3359 + $0xf0] sm:$0xff]
        %v3391 = vld [vmem:[%s3359 + $0xf8] sm:$0xff]
        %v3392 = vld [vmem:[%s3359 + $0x100] sm:$0xff]
        %v3393 = vld [vmem:[%s3359 + $0x108] sm:$0xff]
        %v3394 = vld [vmem:[%s3359 + $0x110] sm:$0xff]
        %v3395 = vld [vmem:[%s3359 + $0x118] sm:$0xff]
        %v3396 = vld [vmem:[%s3359 + $0x120] sm:$0xff]
        %v3397 = vld [vmem:[%s3359 + $0x128] sm:$0xff]
        %v3398 = vld [vmem:[%s3359 + $0x130] sm:$0xff]
        %v3399 = vld [vmem:[%s3359 + $0x138] sm:$0xff]
        %v3400 = vld [vmem:[%s3359 + $0x140] sm:$0xff]
        %v3401 = vld [vmem:[%s3359 + $0x148] sm:$0xff]
        %v3402 = vld [vmem:[%s3359 + $0x150] sm:$0xff]
        %v3403 = vld [vmem:[%s3359 + $0x158] sm:$0xff]
        %v3404 = vld [vmem:[%s3359 + $0x160] sm:$0xff]
        %v3405 = vld [vmem:[%s3359 + $0x168] sm:$0xff]
        %v3406 = vld [vmem:[%s3359 + $0x170] sm:$0xff]
        %v3407 = vld [vmem:[%s3359 + $0x178] sm:$0xff]
        %v3408 = vld [vmem:[%s3359 + $0x180] sm:$0xff]
        %v3409 = vld [vmem:[%s3359 + $0x188] sm:$0xff]
        %v3410 = vld [vmem:[%s3359 + $0x190] sm:$0xff]
        %v3411 = vld [vmem:[%s3359 + $0x198] sm:$0xff]
        %v3412 = vld [vmem:[%s3359 + $0x1a0] sm:$0xff]
        %v3413 = vld [vmem:[%s3359 + $0x1a8] sm:$0xff]
        %v3414 = vld [vmem:[%s3359 + $0x1b0] sm:$0xff]
        %v3415 = vld [vmem:[%s3359 + $0x1b8] sm:$0xff]
        %v3416 = vld [vmem:[%s3359 + $0x1c0] sm:$0xff]
        %v3417 = vld [vmem:[%s3359 + $0x1c8] sm:$0xff]
        %v3418 = vld [vmem:[%s3359 + $0x1d0] sm:$0xff]
        %v3419 = vld [vmem:[%s3359 + $0x1d8] sm:$0xff]
        %v3420 = vld [vmem:[%s3359 + $0x1e0] sm:$0xff]
        %v3421 = vld [vmem:[%s3359 + $0x1e8] sm:$0xff]
        %v3422 = vld [vmem:[%s3359 + $0x1f0] sm:$0xff]
        %v3423 = vld [vmem:[%s3359 + $0x1f8] sm:$0xff]
        %v3424 = vld [vmem:[%s3359 + $0x200] sm:$0xff]
        %v3425 = vld [vmem:[%s3359 + $0x208] sm:$0xff]
        %v3426 = vld [vmem:[%s3359 + $0x210] sm:$0xff]
        %v3427 = vld [vmem:[%s3359 + $0x218] sm:$0xff]
        %v3428 = vld [vmem:[%s3359 + $0x220] sm:$0xff]
        %v3429 = vld [vmem:[%s3359 + $0x228] sm:$0xff]
        %v3430 = vld [vmem:[%s3359 + $0x230] sm:$0xff]
        %v3431 = vld [vmem:[%s3359 + $0x238] sm:$0xff]
        %v3432 = vld [vmem:[%s3359 + $0x240] sm:$0xff]
        %v3433 = vld [vmem:[%s3359 + $0x248] sm:$0xff]
        %v3434 = vld [vmem:[%s3359 + $0x250] sm:$0xff]
        %v3435 = vld [vmem:[%s3359 + $0x258] sm:$0xff]
        %v3436 = vld [vmem:[%s3359 + $0x260] sm:$0xff]
        %v3437 = vld [vmem:[%s3359 + $0x268] sm:$0xff]
        %v3438 = vld [vmem:[%s3359 + $0x270] sm:$0xff]
        %v3439 = vld [vmem:[%s3359 + $0x278] sm:$0xff]
        %v3440 = vld [vmem:[%s3359 + $0x280] sm:$0xff]
        %v3441 = vld [vmem:[%s3359 + $0x288] sm:$0xff]
        %v3442 = vld [vmem:[%s3359 + $0x290] sm:$0xff]
        %v3443 = vld [vmem:[%s3359 + $0x298] sm:$0xff]
        %v3444 = vld [vmem:[%s3359 + $0x2a0] sm:$0xff]
        %v3445 = vld [vmem:[%s3359 + $0x2a8] sm:$0xff]
        %v3446 = vld [vmem:[%s3359 + $0x2b0] sm:$0xff]
        %v3447 = vld [vmem:[%s3359 + $0x2b8] sm:$0xff]
        %v3448 = vld [vmem:[%s3359 + $0x2c0] sm:$0xff]
        %v3449 = vld [vmem:[%s3359 + $0x2c8] sm:$0xff]
        %v3450 = vld [vmem:[%s3359 + $0x2d0] sm:$0xff]
        %v3451 = vld [vmem:[%s3359 + $0x2d8] sm:$0xff]
        %v3452 = vld [vmem:[%s3359 + $0x2e0] sm:$0xff]
        %v3453 = vld [vmem:[%s3359 + $0x2e8] sm:$0xff]
        %v3454 = vld [vmem:[%s3359 + $0x2f0] sm:$0xff]
        %v3455 = vld [vmem:[%s3359 + $0x2f8] sm:$0xff]
        %3456 = vmatpush.msra.mxu0 %v3390
        %3457 = vmatpush.msra.mxu0 %v3388
        %3458 = vmatpush.msra.mxu0 %v3386
        %3459 = vmatpush.msra.mxu0 %v3384
        %3460 = vmatpush.msra.mxu0 %v3382
        %3461 = vmatpush.msra.mxu0 %v3380
        %3462 = vmatpush.msra.mxu0 %v3378
        %3463 = vmatpush.msra.mxu0 %v3376
        %3464 = vmatpush.msra.mxu0 %v3374
        %3465 = vmatpush.msra.mxu0 %v3372
        %3466 = vmatpush.msra.mxu0 %v3370
        %3467 = vmatpush.msra.mxu0 %v3368
        %3468 = vmatpush.msra.mxu0 %v3366
        %3469 = vmatpush.msra.mxu0 %v3364
        %3470 = vmatpush.msra.mxu0 %v3362
        %3471 = vmatpush.msra.mxu0 %v3360
        %3472 = vmatmul.f32.gmra.mxu0 %v3121
        %v3473 = vpop.f32.mrf.mxu0
        %v3474 = vadd.f32 0.0, %v3473
        %3475 = vmatmul.f32.gmra.mxu0 %v3129
        %v3476 = vpop.f32.mrf.mxu0
        %v3477 = vadd.f32 0.0, %v3476
        %3478 = vmatmul.f32.gmra.mxu0 %v3135
        %v3479 = vpop.f32.mrf.mxu0
        %v3480 = vadd.f32 0.0, %v3479
        %3481 = vmatmul.f32.gmra.mxu0 %v3142
        %v3482 = vpop.f32.mrf.mxu0
        %v3483 = vadd.f32 0.0, %v3482
        %3484 = vmatmul.f32.gmra.mxu0 %v3150
        %v3485 = vpop.f32.mrf.mxu0
        %v3486 = vadd.f32 0.0, %v3485
        %3487 = vmatmul.f32.gmra.mxu0 %v3156
        %v3488 = vpop.f32.mrf.mxu0
        %v3489 = vadd.f32 0.0, %v3488
        %3490 = vmatmul.f32.gmra.mxu0 %v3163
        %v3491 = vpop.f32.mrf.mxu0
        %v3492 = vadd.f32 0.0, %v3491
        %3493 = vmatmul.f32.gmra.mxu0 %v3171
        %v3494 = vpop.f32.mrf.mxu0
        %v3495 = vadd.f32 0.0, %v3494
        %3496 = vmatmul.f32.gmra.mxu0 %v3177
        %v3497 = vpop.f32.mrf.mxu0
        %v3498 = vadd.f32 0.0, %v3497
        %3499 = vmatmul.f32.gmra.mxu0 %v3184
        %v3500 = vpop.f32.mrf.mxu0
        %v3501 = vadd.f32 0.0, %v3500
        %3502 = vmatmul.f32.gmra.mxu0 %v3192
        %v3503 = vpop.f32.mrf.mxu0
        %v3504 = vadd.f32 0.0, %v3503
        %3505 = vmatmul.f32.gmra.mxu0 %v3198
        %v3506 = vpop.f32.mrf.mxu0
        %v3507 = vadd.f32 0.0, %v3506
        %3508 = vmatmul.f32.gmra.mxu0 %v3205
        %v3509 = vpop.f32.mrf.mxu0
        %v3510 = vadd.f32 0.0, %v3509
        %3511 = vmatmul.f32.gmra.mxu0 %v3213
        %v3512 = vpop.f32.mrf.mxu0
        %v3513 = vadd.f32 0.0, %v3512
        %3514 = vmatmul.f32.gmra.mxu0 %v3219
        %v3515 = vpop.f32.mrf.mxu0
        %v3516 = vadd.f32 0.0, %v3515
        %3517 = vmatmul.f32.gmra.mxu0 %v3226
        %v3518 = vpop.f32.mrf.mxu0
        %v3519 = vadd.f32 0.0, %v3518
        %3520 = vmatmul.f32.gmra.mxu0 %v3234
        %v3521 = vpop.f32.mrf.mxu0
        %v3522 = vadd.f32 0.0, %v3521
        %3523 = vmatmul.f32.gmra.mxu0 %v3240
        %v3524 = vpop.f32.mrf.mxu0
        %v3525 = vadd.f32 0.0, %v3524
        %3526 = vmatmul.f32.gmra.mxu0 %v3247
        %v3527 = vpop.f32.mrf.mxu0
        %v3528 = vadd.f32 0.0, %v3527
        %3529 = vmatmul.f32.gmra.mxu0 %v3255
        %v3530 = vpop.f32.mrf.mxu0
        %v3531 = vadd.f32 0.0, %v3530
        %3532 = vmatmul.f32.gmra.mxu0 %v3261
        %v3533 = vpop.f32.mrf.mxu0
        %v3534 = vadd.f32 0.0, %v3533
        %3535 = vmatmul.f32.gmra.mxu0 %v3268
        %v3536 = vpop.f32.mrf.mxu0
        %v3537 = vadd.f32 0.0, %v3536
        %3538 = vmatmul.f32.gmra.mxu0 %v3276
        %v3539 = vpop.f32.mrf.mxu0
        %v3540 = vadd.f32 0.0, %v3539
        %3541 = vmatmul.f32.gmra.mxu0 %v3282
        %v3542 = vpop.f32.mrf.mxu0
        %v3543 = vadd.f32 0.0, %v3542
        %3544 = vdwg.mxu0
        %3545 = vmatpush.msra.mxu0 %v3422
        %3546 = vmatpush.msra.mxu0 %v3420
        %3547 = vmatpush.msra.mxu0 %v3418
        %3548 = vmatpush.msra.mxu0 %v3416
        %3549 = vmatpush.msra.mxu0 %v3414
        %3550 = vmatpush.msra.mxu0 %v3412
        %3551 = vmatpush.msra.mxu0 %v3410
        %3552 = vmatpush.msra.mxu0 %v3408
        %3553 = vmatpush.msra.mxu0 %v3406
        %3554 = vmatpush.msra.mxu0 %v3404
        %3555 = vmatpush.msra.mxu0 %v3402
        %3556 = vmatpush.msra.mxu0 %v3400
        %3557 = vmatpush.msra.mxu0 %v3398
        %3558 = vmatpush.msra.mxu0 %v3396
        %3559 = vmatpush.msra.mxu0 %v3394
        %3560 = vmatpush.msra.mxu0 %v3392
        %3561 = vmatmul.f32.gmra.mxu0 %v3124
        %v3562 = vpop.f32.mrf.mxu0
        %v3563 = vadd.f32 %v3474, %v3562
        %3564 = vmatmul.f32.gmra.mxu0 %v3131
        %v3565 = vpop.f32.mrf.mxu0
        %v3566 = vadd.f32 %v3477, %v3565
        %3567 = vmatmul.f32.gmra.mxu0 %v3137
        %v3568 = vpop.f32.mrf.mxu0
        %v3569 = vadd.f32 %v3480, %v3568
        %3570 = vmatmul.f32.gmra.mxu0 %v3145
        %v3571 = vpop.f32.mrf.mxu0
        %v3572 = vadd.f32 %v3483, %v3571
        %3573 = vmatmul.f32.gmra.mxu0 %v3152
        %v3574 = vpop.f32.mrf.mxu0
        %v3575 = vadd.f32 %v3486, %v3574
        %3576 = vmatmul.f32.gmra.mxu0 %v3158
        %v3577 = vpop.f32.mrf.mxu0
        %v3578 = vadd.f32 %v3489, %v3577
        %3579 = vmatmul.f32.gmra.mxu0 %v3166
        %v3580 = vpop.f32.mrf.mxu0
        %v3581 = vadd.f32 %v3492, %v3580
        %3582 = vmatmul.f32.gmra.mxu0 %v3173
        %v3583 = vpop.f32.mrf.mxu0
        %v3584 = vadd.f32 %v3495, %v3583
        %3585 = vmatmul.f32.gmra.mxu0 %v3179
        %v3586 = vpop.f32.mrf.mxu0
        %v3587 = vadd.f32 %v3498, %v3586
        %3588 = vmatmul.f32.gmra.mxu0 %v3187
        %v3589 = vpop.f32.mrf.mxu0
        %v3590 = vadd.f32 %v3501, %v3589
        %3591 = vmatmul.f32.gmra.mxu0 %v3194
        %v3592 = vpop.f32.mrf.mxu0
        %v3593 = vadd.f32 %v3504, %v3592
        %3594 = vmatmul.f32.gmra.mxu0 %v3200
        %v3595 = vpop.f32.mrf.mxu0
        %v3596 = vadd.f32 %v3507, %v3595
        %3597 = vmatmul.f32.gmra.mxu0 %v3208
        %v3598 = vpop.f32.mrf.mxu0
        %v3599 = vadd.f32 %v3510, %v3598
        %3600 = vmatmul.f32.gmra.mxu0 %v3215
        %v3601 = vpop.f32.mrf.mxu0
        %v3602 = vadd.f32 %v3513, %v3601
        %3603 = vmatmul.f32.gmra.mxu0 %v3221
        %v3604 = vpop.f32.mrf.mxu0
        %v3605 = vadd.f32 %v3516, %v3604
        %3606 = vmatmul.f32.gmra.mxu0 %v3229
        %v3607 = vpop.f32.mrf.mxu0
        %v3608 = vadd.f32 %v3519, %v3607
        %3609 = vmatmul.f32.gmra.mxu0 %v3236
        %v3610 = vpop.f32.mrf.mxu0
        %v3611 = vadd.f32 %v3522, %v3610
        %3612 = vmatmul.f32.gmra.mxu0 %v3242
        %v3613 = vpop.f32.mrf.mxu0
        %v3614 = vadd.f32 %v3525, %v3613
        %3615 = vmatmul.f32.gmra.mxu0 %v3250
        %v3616 = vpop.f32.mrf.mxu0
        %v3617 = vadd.f32 %v3528, %v3616
        %3618 = vmatmul.f32.gmra.mxu0 %v3257
        %v3619 = vpop.f32.mrf.mxu0
        %v3620 = vadd.f32 %v3531, %v3619
        %3621 = vmatmul.f32.gmra.mxu0 %v3263
        %v3622 = vpop.f32.mrf.mxu0
        %v3623 = vadd.f32 %v3534, %v3622
        %3624 = vmatmul.f32.gmra.mxu0 %v3271
        %v3625 = vpop.f32.mrf.mxu0
        %v3626 = vadd.f32 %v3537, %v3625
        %3627 = vmatmul.f32.gmra.mxu0 %v3278
        %v3628 = vpop.f32.mrf.mxu0
        %v3629 = vadd.f32 %v3540, %v3628
        %3630 = vmatmul.f32.gmra.mxu0 %v3284
        %v3631 = vpop.f32.mrf.mxu0
        %v3632 = vadd.f32 %v3543, %v3631
        %3633 = vdwg.mxu0
        %3634 = vmatpush.msra.mxu0 %v3454
        %3635 = vmatpush.msra.mxu0 %v3452
        %3636 = vmatpush.msra.mxu0 %v3450
        %3637 = vmatpush.msra.mxu0 %v3448
        %3638 = vmatpush.msra.mxu0 %v3446
        %3639 = vmatpush.msra.mxu0 %v3444
        %3640 = vmatpush.msra.mxu0 %v3442
        %3641 = vmatpush.msra.mxu0 %v3440
        %3642 = vmatpush.msra.mxu0 %v3438
        %3643 = vmatpush.msra.mxu0 %v3436
        %3644 = vmatpush.msra.mxu0 %v3434
        %3645 = vmatpush.msra.mxu0 %v3432
        %3646 = vmatpush.msra.mxu0 %v3430
        %3647 = vmatpush.msra.mxu0 %v3428
        %3648 = vmatpush.msra.mxu0 %v3426
        %3649 = vmatpush.msra.mxu0 %v3424
        %3650 = vmatmul.f32.gmra.mxu0 %v3127
        %v3651 = vpop.f32.mrf.mxu0
        %v3652 = vadd.f32 %v3563, %v3651
        %3653 = vmatmul.f32.gmra.mxu0 %v3133
        %v3654 = vpop.f32.mrf.mxu0
        %v3655 = vadd.f32 %v3566, %v3654
        %3656 = vmatmul.f32.gmra.mxu0 %v3139
        %v3657 = vpop.f32.mrf.mxu0
        %v3658 = vadd.f32 %v3569, %v3657
        %3659 = vmatmul.f32.gmra.mxu0 %v3148
        %v3660 = vpop.f32.mrf.mxu0
        %v3661 = vadd.f32 %v3572, %v3660
        %3662 = vmatmul.f32.gmra.mxu0 %v3154
        %v3663 = vpop.f32.mrf.mxu0
        %v3664 = vadd.f32 %v3575, %v3663
        %3665 = vmatmul.f32.gmra.mxu0 %v3160
        %v3666 = vpop.f32.mrf.mxu0
        %v3667 = vadd.f32 %v3578, %v3666
        %3668 = vmatmul.f32.gmra.mxu0 %v3169
        %v3669 = vpop.f32.mrf.mxu0
        %v3670 = vadd.f32 %v3581, %v3669
        %3671 = vmatmul.f32.gmra.mxu0 %v3175
        %v3672 = vpop.f32.mrf.mxu0
        %v3673 = vadd.f32 %v3584, %v3672
        %3674 = vmatmul.f32.gmra.mxu0 %v3181
        %v3675 = vpop.f32.mrf.mxu0
        %v3676 = vadd.f32 %v3587, %v3675
        %3677 = vmatmul.f32.gmra.mxu0 %v3190
        %v3678 = vpop.f32.mrf.mxu0
        %v3679 = vadd.f32 %v3590, %v3678
        %3680 = vmatmul.f32.gmra.mxu0 %v3196
        %v3681 = vpop.f32.mrf.mxu0
        %v3682 = vadd.f32 %v3593, %v3681
        %3683 = vmatmul.f32.gmra.mxu0 %v3202
        %v3684 = vpop.f32.mrf.mxu0
        %v3685 = vadd.f32 %v3596, %v3684
        %3686 = vmatmul.f32.gmra.mxu0 %v3211
        %v3687 = vpop.f32.mrf.mxu0
        %v3688 = vadd.f32 %v3599, %v3687
        %3689 = vmatmul.f32.gmra.mxu0 %v3217
        %v3690 = vpop.f32.mrf.mxu0
        %v3691 = vadd.f32 %v3602, %v3690
        %3692 = vmatmul.f32.gmra.mxu0 %v3223
        %v3693 = vpop.f32.mrf.mxu0
        %v3694 = vadd.f32 %v3605, %v3693
        %3695 = vmatmul.f32.gmra.mxu0 %v3232
        %v3696 = vpop.f32.mrf.mxu0
        %v3697 = vadd.f32 %v3608, %v3696
        %3698 = vmatmul.f32.gmra.mxu0 %v3238
        %v3699 = vpop.f32.mrf.mxu0
        %v3700 = vadd.f32 %v3611, %v3699
        %3701 = vmatmul.f32.gmra.mxu0 %v3244
        %v3702 = vpop.f32.mrf.mxu0
        %v3703 = vadd.f32 %v3614, %v3702
        %3704 = vmatmul.f32.gmra.mxu0 %v3253
        %v3705 = vpop.f32.mrf.mxu0
        %v3706 = vadd.f32 %v3617, %v3705
        %3707 = vmatmul.f32.gmra.mxu0 %v3259
        %v3708 = vpop.f32.mrf.mxu0
        %v3709 = vadd.f32 %v3620, %v3708
        %3710 = vmatmul.f32.gmra.mxu0 %v3265
        %v3711 = vpop.f32.mrf.mxu0
        %v3712 = vadd.f32 %v3623, %v3711
        %3713 = vmatmul.f32.gmra.mxu0 %v3274
        %v3714 = vpop.f32.mrf.mxu0
        %v3715 = vadd.f32 %v3626, %v3714
        %3716 = vmatmul.f32.gmra.mxu0 %v3280
        %v3717 = vpop.f32.mrf.mxu0
        %v3718 = vadd.f32 %v3629, %v3717
        %3719 = vmatmul.f32.gmra.mxu0 %v3286
        %v3720 = vpop.f32.mrf.mxu0
        %v3721 = vadd.f32 %v3632, %v3720
        %3722 = vdwg.mxu0
        %3723 = vmatpush.msra.mxu0 %v3391
        %3724 = vmatpush.msra.mxu0 %v3389
        %3725 = vmatpush.msra.mxu0 %v3387
        %3726 = vmatpush.msra.mxu0 %v3385
        %3727 = vmatpush.msra.mxu0 %v3383
        %3728 = vmatpush.msra.mxu0 %v3381
        %3729 = vmatpush.msra.mxu0 %v3379
        %3730 = vmatpush.msra.mxu0 %v3377
        %3731 = vmatpush.msra.mxu0 %v3375
        %3732 = vmatpush.msra.mxu0 %v3373
        %3733 = vmatpush.msra.mxu0 %v3371
        %3734 = vmatpush.msra.mxu0 %v3369
        %3735 = vmatpush.msra.mxu0 %v3367
        %3736 = vmatpush.msra.mxu0 %v3365
        %3737 = vmatpush.msra.mxu0 %v3363
        %3738 = vmatpush.msra.mxu0 %v3361
        %3739 = vmatmul.f32.gmra.mxu0 %v3121
        %v3740 = vpop.f32.mrf.mxu0
        %v3741 = vadd.f32 0.0, %v3740
        %3742 = vmatmul.f32.gmra.mxu0 %v3129
        %v3743 = vpop.f32.mrf.mxu0
        %v3744 = vadd.f32 0.0, %v3743
        %3745 = vmatmul.f32.gmra.mxu0 %v3135
        %v3746 = vpop.f32.mrf.mxu0
        %v3747 = vadd.f32 0.0, %v3746
        %3748 = vmatmul.f32.gmra.mxu0 %v3142
        %v3749 = vpop.f32.mrf.mxu0
        %v3750 = vadd.f32 0.0, %v3749
        %3751 = vmatmul.f32.gmra.mxu0 %v3150
        %v3752 = vpop.f32.mrf.mxu0
        %v3753 = vadd.f32 0.0, %v3752
        %3754 = vmatmul.f32.gmra.mxu0 %v3156
        %v3755 = vpop.f32.mrf.mxu0
        %v3756 = vadd.f32 0.0, %v3755
        %3757 = vmatmul.f32.gmra.mxu0 %v3163
        %v3758 = vpop.f32.mrf.mxu0
        %v3759 = vadd.f32 0.0, %v3758
        %3760 = vmatmul.f32.gmra.mxu0 %v3171
        %v3761 = vpop.f32.mrf.mxu0
        %v3762 = vadd.f32 0.0, %v3761
        %3763 = vmatmul.f32.gmra.mxu0 %v3177
        %v3764 = vpop.f32.mrf.mxu0
        %v3765 = vadd.f32 0.0, %v3764
        %3766 = vmatmul.f32.gmra.mxu0 %v3184
        %v3767 = vpop.f32.mrf.mxu0
        %v3768 = vadd.f32 0.0, %v3767
        %3769 = vmatmul.f32.gmra.mxu0 %v3192
        %v3770 = vpop.f32.mrf.mxu0
        %v3771 = vadd.f32 0.0, %v3770
        %3772 = vmatmul.f32.gmra.mxu0 %v3198
        %v3773 = vpop.f32.mrf.mxu0
        %v3774 = vadd.f32 0.0, %v3773
        %3775 = vmatmul.f32.gmra.mxu0 %v3205
        %v3776 = vpop.f32.mrf.mxu0
        %v3777 = vadd.f32 0.0, %v3776
        %3778 = vmatmul.f32.gmra.mxu0 %v3213
        %v3779 = vpop.f32.mrf.mxu0
        %v3780 = vadd.f32 0.0, %v3779
        %3781 = vmatmul.f32.gmra.mxu0 %v3219
        %v3782 = vpop.f32.mrf.mxu0
        %v3783 = vadd.f32 0.0, %v3782
        %3784 = vmatmul.f32.gmra.mxu0 %v3226
        %v3785 = vpop.f32.mrf.mxu0
        %v3786 = vadd.f32 0.0, %v3785
        %3787 = vmatmul.f32.gmra.mxu0 %v3234
        %v3788 = vpop.f32.mrf.mxu0
        %v3789 = vadd.f32 0.0, %v3788
        %3790 = vmatmul.f32.gmra.mxu0 %v3240
        %v3791 = vpop.f32.mrf.mxu0
        %v3792 = vadd.f32 0.0, %v3791
        %3793 = vmatmul.f32.gmra.mxu0 %v3247
        %v3794 = vpop.f32.mrf.mxu0
        %v3795 = vadd.f32 0.0, %v3794
        %3796 = vmatmul.f32.gmra.mxu0 %v3255
        %v3797 = vpop.f32.mrf.mxu0
        %v3798 = vadd.f32 0.0, %v3797
        %3799 = vmatmul.f32.gmra.mxu0 %v3261
        %v3800 = vpop.f32.mrf.mxu0
        %v3801 = vadd.f32 0.0, %v3800
        %3802 = vmatmul.f32.gmra.mxu0 %v3268
        %v3803 = vpop.f32.mrf.mxu0
        %v3804 = vadd.f32 0.0, %v3803
        %3805 = vmatmul.f32.gmra.mxu0 %v3276
        %v3806 = vpop.f32.mrf.mxu0
        %v3807 = vadd.f32 0.0, %v3806
        %3808 = vmatmul.f32.gmra.mxu0 %v3282
        %v3809 = vpop.f32.mrf.mxu0
        %v3810 = vadd.f32 0.0, %v3809
        %3811 = vdwg.mxu0
        %3812 = vmatpush.msra.mxu0 %v3423
        %3813 = vmatpush.msra.mxu0 %v3421
        %3814 = vmatpush.msra.mxu0 %v3419
        %3815 = vmatpush.msra.mxu0 %v3417
        %3816 = vmatpush.msra.mxu0 %v3415
        %3817 = vmatpush.msra.mxu0 %v3413
        %3818 = vmatpush.msra.mxu0 %v3411
        %3819 = vmatpush.msra.mxu0 %v3409
        %3820 = vmatpush.msra.mxu0 %v3407
        %3821 = vmatpush.msra.mxu0 %v3405
        %3822 = vmatpush.msra.mxu0 %v3403
        %3823 = vmatpush.msra.mxu0 %v3401
        %3824 = vmatpush.msra.mxu0 %v3399
        %3825 = vmatpush.msra.mxu0 %v3397
        %3826 = vmatpush.msra.mxu0 %v3395
        %3827 = vmatpush.msra.mxu0 %v3393
        %3828 = vmatmul.f32.gmra.mxu0 %v3124
        %v3829 = vpop.f32.mrf.mxu0
        %v3830 = vadd.f32 %v3741, %v3829
        %3831 = vmatmul.f32.gmra.mxu0 %v3131
        %v3832 = vpop.f32.mrf.mxu0
        %v3833 = vadd.f32 %v3744, %v3832
        %3834 = vmatmul.f32.gmra.mxu0 %v3137
        %v3835 = vpop.f32.mrf.mxu0
        %v3836 = vadd.f32 %v3747, %v3835
        %3837 = vmatmul.f32.gmra.mxu0 %v3145
        %v3838 = vpop.f32.mrf.mxu0
        %v3839 = vadd.f32 %v3750, %v3838
        %3840 = vmatmul.f32.gmra.mxu0 %v3152
        %v3841 = vpop.f32.mrf.mxu0
        %v3842 = vadd.f32 %v3753, %v3841
        %3843 = vmatmul.f32.gmra.mxu0 %v3158
        %v3844 = vpop.f32.mrf.mxu0
        %v3845 = vadd.f32 %v3756, %v3844
        %3846 = vmatmul.f32.gmra.mxu0 %v3166
        %v3847 = vpop.f32.mrf.mxu0
        %v3848 = vadd.f32 %v3759, %v3847
        %3849 = vmatmul.f32.gmra.mxu0 %v3173
        %v3850 = vpop.f32.mrf.mxu0
        %v3851 = vadd.f32 %v3762, %v3850
        %3852 = vmatmul.f32.gmra.mxu0 %v3179
        %v3853 = vpop.f32.mrf.mxu0
        %v3854 = vadd.f32 %v3765, %v3853
        %3855 = vmatmul.f32.gmra.mxu0 %v3187
        %v3856 = vpop.f32.mrf.mxu0
        %v3857 = vadd.f32 %v3768, %v3856
        %3858 = vmatmul.f32.gmra.mxu0 %v3194
        %v3859 = vpop.f32.mrf.mxu0
        %v3860 = vadd.f32 %v3771, %v3859
        %3861 = vmatmul.f32.gmra.mxu0 %v3200
        %v3862 = vpop.f32.mrf.mxu0
        %v3863 = vadd.f32 %v3774, %v3862
        %3864 = vmatmul.f32.gmra.mxu0 %v3208
        %v3865 = vpop.f32.mrf.mxu0
        %v3866 = vadd.f32 %v3777, %v3865
        %3867 = vmatmul.f32.gmra.mxu0 %v3215
        %v3868 = vpop.f32.mrf.mxu0
        %v3869 = vadd.f32 %v3780, %v3868
        %3870 = vmatmul.f32.gmra.mxu0 %v3221
        %v3871 = vpop.f32.mrf.mxu0
        %v3872 = vadd.f32 %v3783, %v3871
        %3873 = vmatmul.f32.gmra.mxu0 %v3229
        %v3874 = vpop.f32.mrf.mxu0
        %v3875 = vadd.f32 %v3786, %v3874
        %3876 = vmatmul.f32.gmra.mxu0 %v3236
        %v3877 = vpop.f32.mrf.mxu0
        %v3878 = vadd.f32 %v3789, %v3877
        %3879 = vmatmul.f32.gmra.mxu0 %v3242
        %v3880 = vpop.f32.mrf.mxu0
        %v3881 = vadd.f32 %v3792, %v3880
        %3882 = vmatmul.f32.gmra.mxu0 %v3250
        %v3883 = vpop.f32.mrf.mxu0
        %v3884 = vadd.f32 %v3795, %v3883
        %3885 = vmatmul.f32.gmra.mxu0 %v3257
        %v3886 = vpop.f32.mrf.mxu0
        %v3887 = vadd.f32 %v3798, %v3886
        %3888 = vmatmul.f32.gmra.mxu0 %v3263
        %v3889 = vpop.f32.mrf.mxu0
        %v3890 = vadd.f32 %v3801, %v3889
        %3891 = vmatmul.f32.gmra.mxu0 %v3271
        %v3892 = vpop.f32.mrf.mxu0
        %v3893 = vadd.f32 %v3804, %v3892
        %3894 = vmatmul.f32.gmra.mxu0 %v3278
        %v3895 = vpop.f32.mrf.mxu0
        %v3896 = vadd.f32 %v3807, %v3895
        %3897 = vmatmul.f32.gmra.mxu0 %v3284
        %v3898 = vpop.f32.mrf.mxu0
        %v3899 = vadd.f32 %v3810, %v3898
        %3900 = vdwg.mxu0
        %3901 = vmatpush.msra.mxu0 %v3455
        %3902 = vmatpush.msra.mxu0 %v3453
        %3903 = vmatpush.msra.mxu0 %v3451
        %3904 = vmatpush.msra.mxu0 %v3449
        %3905 = vmatpush.msra.mxu0 %v3447
        %3906 = vmatpush.msra.mxu0 %v3445
        %3907 = vmatpush.msra.mxu0 %v3443
        %3908 = vmatpush.msra.mxu0 %v3441
        %3909 = vmatpush.msra.mxu0 %v3439
        %3910 = vmatpush.msra.mxu0 %v3437
        %3911 = vmatpush.msra.mxu0 %v3435
        %3912 = vmatpush.msra.mxu0 %v3433
        %3913 = vmatpush.msra.mxu0 %v3431
        %3914 = vmatpush.msra.mxu0 %v3429
        %3915 = vmatpush.msra.mxu0 %v3427
        %3916 = vmatpush.msra.mxu0 %v3425
        %3917 = vmatmul.f32.gmra.mxu0 %v3127
        %v3918 = vpop.f32.mrf.mxu0
        %v3919 = vadd.f32 %v3830, %v3918
        %3920 = vmatmul.f32.gmra.mxu0 %v3133
        %v3921 = vpop.f32.mrf.mxu0
        %v3922 = vadd.f32 %v3833, %v3921
        %3923 = vmatmul.f32.gmra.mxu0 %v3139
        %v3924 = vpop.f32.mrf.mxu0
        %v3925 = vadd.f32 %v3836, %v3924
        %3926 = vmatmul.f32.gmra.mxu0 %v3148
        %v3927 = vpop.f32.mrf.mxu0
        %v3928 = vadd.f32 %v3839, %v3927
        %3929 = vmatmul.f32.gmra.mxu0 %v3154
        %v3930 = vpop.f32.mrf.mxu0
        %v3931 = vadd.f32 %v3842, %v3930
        %3932 = vmatmul.f32.gmra.mxu0 %v3160
        %v3933 = vpop.f32.mrf.mxu0
        %v3934 = vadd.f32 %v3845, %v3933
        %3935 = vmatmul.f32.gmra.mxu0 %v3169
        %v3936 = vpop.f32.mrf.mxu0
        %v3937 = vadd.f32 %v3848, %v3936
        %3938 = vmatmul.f32.gmra.mxu0 %v3175
        %v3939 = vpop.f32.mrf.mxu0
        %v3940 = vadd.f32 %v3851, %v3939
        %3941 = vmatmul.f32.gmra.mxu0 %v3181
        %v3942 = vpop.f32.mrf.mxu0
        %v3943 = vadd.f32 %v3854, %v3942
        %3944 = vmatmul.f32.gmra.mxu0 %v3190
        %v3945 = vpop.f32.mrf.mxu0
        %v3946 = vadd.f32 %v3857, %v3945
        %3947 = vmatmul.f32.gmra.mxu0 %v3196
        %v3948 = vpop.f32.mrf.mxu0
        %v3949 = vadd.f32 %v3860, %v3948
        %3950 = vmatmul.f32.gmra.mxu0 %v3202
        %v3951 = vpop.f32.mrf.mxu0
        %v3952 = vadd.f32 %v3863, %v3951
        %3953 = vmatmul.f32.gmra.mxu0 %v3211
        %v3954 = vpop.f32.mrf.mxu0
        %v3955 = vadd.f32 %v3866, %v3954
        %3956 = vmatmul.f32.gmra.mxu0 %v3217
        %v3957 = vpop.f32.mrf.mxu0
        %v3958 = vadd.f32 %v3869, %v3957
        %3959 = vmatmul.f32.gmra.mxu0 %v3223
        %v3960 = vpop.f32.mrf.mxu0
        %v3961 = vadd.f32 %v3872, %v3960
        %3962 = vmatmul.f32.gmra.mxu0 %v3232
        %v3963 = vpop.f32.mrf.mxu0
        %v3964 = vadd.f32 %v3875, %v3963
        %3965 = vmatmul.f32.gmra.mxu0 %v3238
        %v3966 = vpop.f32.mrf.mxu0
        %v3967 = vadd.f32 %v3878, %v3966
        %3968 = vmatmul.f32.gmra.mxu0 %v3244
        %v3969 = vpop.f32.mrf.mxu0
        %v3970 = vadd.f32 %v3881, %v3969
        %3971 = vmatmul.f32.gmra.mxu0 %v3253
        %v3972 = vpop.f32.mrf.mxu0
        %v3973 = vadd.f32 %v3884, %v3972
        %3974 = vmatmul.f32.gmra.mxu0 %v3259
        %v3975 = vpop.f32.mrf.mxu0
        %v3976 = vadd.f32 %v3887, %v3975
        %3977 = vmatmul.f32.gmra.mxu0 %v3265
        %v3978 = vpop.f32.mrf.mxu0
        %v3979 = vadd.f32 %v3890, %v3978
        %3980 = vmatmul.f32.gmra.mxu0 %v3274
        %v3981 = vpop.f32.mrf.mxu0
        %v3982 = vadd.f32 %v3893, %v3981
        %3983 = vmatmul.f32.gmra.mxu0 %v3280
        %v3984 = vpop.f32.mrf.mxu0
        %v3985 = vadd.f32 %v3896, %v3984
        %3986 = vmatmul.f32.gmra.mxu0 %v3286
        %v3987 = vpop.f32.mrf.mxu0
        %v3988 = vadd.f32 %v3899, %v3987
        %3989 = vdwg.mxu0
        %3990 = vmatpush.msra.mxu0 %v2908
        %3991 = vmatpush.msra.mxu0 %v2906
        %3992 = vmatpush.msra.mxu0 %v2904
        %3993 = vmatpush.msra.mxu0 %v2902
        %3994 = vmatpush.msra.mxu0 %v2900
        %3995 = vmatpush.msra.mxu0 %v2898
        %3996 = vmatpush.msra.mxu0 %v2896
        %3997 = vmatpush.msra.mxu0 %v2894
        %3998 = vmatpush.msra.mxu0 %v2892
        %3999 = vmatpush.msra.mxu0 %v2890
        %4000 = vmatpush.msra.mxu0 %v2888
        %4001 = vmatpush.msra.mxu0 %v2886
        %4002 = vmatpush.msra.mxu0 %v2884
        %4003 = vmatpush.msra.mxu0 %v2882
        %4004 = vmatpush.msra.mxu0 %v2880
        %4005 = vmatpush.msra.mxu0 %v2878
        %4006 = vmatmul.f32.gmra.mxu0 %v2806
        %v4007 = vpop.f32.mrf.mxu0
        %v4008 = vadd.f32 %v3652, %v4007
        %4009 = vmatmul.f32.gmra.mxu0 %v2809
        %v4010 = vpop.f32.mrf.mxu0
        %v4011 = vadd.f32 %v3655, %v4010
        %4012 = vmatmul.f32.gmra.mxu0 %v2812
        %v4013 = vpop.f32.mrf.mxu0
        %v4014 = vadd.f32 %v3658, %v4013
        %4015 = vmatmul.f32.gmra.mxu0 %v2815
        %v4016 = vpop.f32.mrf.mxu0
        %v4017 = vadd.f32 %v3661, %v4016
        %4018 = vmatmul.f32.gmra.mxu0 %v2818
        %v4019 = vpop.f32.mrf.mxu0
        %v4020 = vadd.f32 %v3664, %v4019
        %4021 = vmatmul.f32.gmra.mxu0 %v2821
        %v4022 = vpop.f32.mrf.mxu0
        %v4023 = vadd.f32 %v3667, %v4022
        %4024 = vmatmul.f32.gmra.mxu0 %v2824
        %v4025 = vpop.f32.mrf.mxu0
        %v4026 = vadd.f32 %v3670, %v4025
        %4027 = vmatmul.f32.gmra.mxu0 %v2827
        %v4028 = vpop.f32.mrf.mxu0
        %v4029 = vadd.f32 %v3673, %v4028
        %4030 = vmatmul.f32.gmra.mxu0 %v2830
        %v4031 = vpop.f32.mrf.mxu0
        %v4032 = vadd.f32 %v3676, %v4031
        %4033 = vmatmul.f32.gmra.mxu0 %v2833
        %v4034 = vpop.f32.mrf.mxu0
        %v4035 = vadd.f32 %v3679, %v4034
        %4036 = vmatmul.f32.gmra.mxu0 %v2836
        %v4037 = vpop.f32.mrf.mxu0
        %v4038 = vadd.f32 %v3682, %v4037
        %4039 = vmatmul.f32.gmra.mxu0 %v2839
        %v4040 = vpop.f32.mrf.mxu0
        %v4041 = vadd.f32 %v3685, %v4040
        %4042 = vmatmul.f32.gmra.mxu0 %v2842
        %v4043 = vpop.f32.mrf.mxu0
        %v4044 = vadd.f32 %v3688, %v4043
        %4045 = vmatmul.f32.gmra.mxu0 %v2845
        %v4046 = vpop.f32.mrf.mxu0
        %v4047 = vadd.f32 %v3691, %v4046
        %4048 = vmatmul.f32.gmra.mxu0 %v2848
        %v4049 = vpop.f32.mrf.mxu0
        %v4050 = vadd.f32 %v3694, %v4049
        %4051 = vmatmul.f32.gmra.mxu0 %v2851
        %v4052 = vpop.f32.mrf.mxu0
        %v4053 = vadd.f32 %v3697, %v4052
        %4054 = vmatmul.f32.gmra.mxu0 %v2854
        %v4055 = vpop.f32.mrf.mxu0
        %v4056 = vadd.f32 %v3700, %v4055
        %4057 = vmatmul.f32.gmra.mxu0 %v2857
        %v4058 = vpop.f32.mrf.mxu0
        %v4059 = vadd.f32 %v3703, %v4058
        %4060 = vmatmul.f32.gmra.mxu0 %v2860
        %v4061 = vpop.f32.mrf.mxu0
        %v4062 = vadd.f32 %v3706, %v4061
        %4063 = vmatmul.f32.gmra.mxu0 %v2863
        %v4064 = vpop.f32.mrf.mxu0
        %v4065 = vadd.f32 %v3709, %v4064
        %4066 = vmatmul.f32.gmra.mxu0 %v2866
        %v4067 = vpop.f32.mrf.mxu0
        %v4068 = vadd.f32 %v3712, %v4067
        %4069 = vmatmul.f32.gmra.mxu0 %v2869
        %v4070 = vpop.f32.mrf.mxu0
        %v4071 = vadd.f32 %v3715, %v4070
        %4072 = vmatmul.f32.gmra.mxu0 %v2872
        %v4073 = vpop.f32.mrf.mxu0
        %v4074 = vadd.f32 %v3718, %v4073
        %4075 = vmatmul.f32.gmra.mxu0 %v2875
        %v4076 = vpop.f32.mrf.mxu0
        %v4077 = vadd.f32 %v3721, %v4076
        %4078 = vdwg.mxu0
        %4079 = vmatpush.msra.mxu0 %v2940
        %4080 = vmatpush.msra.mxu0 %v2938
        %4081 = vmatpush.msra.mxu0 %v2936
        %4082 = vmatpush.msra.mxu0 %v2934
        %4083 = vmatpush.msra.mxu0 %v2932
        %4084 = vmatpush.msra.mxu0 %v2930
        %4085 = vmatpush.msra.mxu0 %v2928
        %4086 = vmatpush.msra.mxu0 %v2926
        %4087 = vmatpush.msra.mxu0 %v2924
        %4088 = vmatpush.msra.mxu0 %v2922
        %4089 = vmatpush.msra.mxu0 %v2920
        %4090 = vmatpush.msra.mxu0 %v2918
        %4091 = vmatpush.msra.mxu0 %v2916
        %4092 = vmatpush.msra.mxu0 %v2914
        %4093 = vmatpush.msra.mxu0 %v2912
        %4094 = vmatpush.msra.mxu0 %v2910
        %4095 = vmatmul.f32.gmra.mxu0 %v2807
        %v4096 = vpop.f32.mrf.mxu0
        %v4097 = vadd.f32 %v4008, %v4096
        %4098 = vmatmul.f32.gmra.mxu0 %v2810
        %v4099 = vpop.f32.mrf.mxu0
        %v4100 = vadd.f32 %v4011, %v4099
        %4101 = vmatmul.f32.gmra.mxu0 %v2813
        %v4102 = vpop.f32.mrf.mxu0
        %v4103 = vadd.f32 %v4014, %v4102
        %4104 = vmatmul.f32.gmra.mxu0 %v2816
        %v4105 = vpop.f32.mrf.mxu0
        %v4106 = vadd.f32 %v4017, %v4105
        %4107 = vmatmul.f32.gmra.mxu0 %v2819
        %v4108 = vpop.f32.mrf.mxu0
        %v4109 = vadd.f32 %v4020, %v4108
        %4110 = vmatmul.f32.gmra.mxu0 %v2822
        %v4111 = vpop.f32.mrf.mxu0
        %v4112 = vadd.f32 %v4023, %v4111
        %4113 = vmatmul.f32.gmra.mxu0 %v2825
        %v4114 = vpop.f32.mrf.mxu0
        %v4115 = vadd.f32 %v4026, %v4114
        %4116 = vmatmul.f32.gmra.mxu0 %v2828
        %v4117 = vpop.f32.mrf.mxu0
        %v4118 = vadd.f32 %v4029, %v4117
        %4119 = vmatmul.f32.gmra.mxu0 %v2831
        %v4120 = vpop.f32.mrf.mxu0
        %v4121 = vadd.f32 %v4032, %v4120
        %4122 = vmatmul.f32.gmra.mxu0 %v2834
        %v4123 = vpop.f32.mrf.mxu0
        %v4124 = vadd.f32 %v4035, %v4123
        %4125 = vmatmul.f32.gmra.mxu0 %v2837
        %v4126 = vpop.f32.mrf.mxu0
        %v4127 = vadd.f32 %v4038, %v4126
        %4128 = vmatmul.f32.gmra.mxu0 %v2840
        %v4129 = vpop.f32.mrf.mxu0
        %v4130 = vadd.f32 %v4041, %v4129
        %4131 = vmatmul.f32.gmra.mxu0 %v2843
        %v4132 = vpop.f32.mrf.mxu0
        %v4133 = vadd.f32 %v4044, %v4132
        %4134 = vmatmul.f32.gmra.mxu0 %v2846
        %v4135 = vpop.f32.mrf.mxu0
        %v4136 = vadd.f32 %v4047, %v4135
        %4137 = vmatmul.f32.gmra.mxu0 %v2849
        %v4138 = vpop.f32.mrf.mxu0
        %v4139 = vadd.f32 %v4050, %v4138
        %4140 = vmatmul.f32.gmra.mxu0 %v2852
        %v4141 = vpop.f32.mrf.mxu0
        %v4142 = vadd.f32 %v4053, %v4141
        %4143 = vmatmul.f32.gmra.mxu0 %v2855
        %v4144 = vpop.f32.mrf.mxu0
        %v4145 = vadd.f32 %v4056, %v4144
        %4146 = vmatmul.f32.gmra.mxu0 %v2858
        %v4147 = vpop.f32.mrf.mxu0
        %v4148 = vadd.f32 %v4059, %v4147
        %4149 = vmatmul.f32.gmra.mxu0 %v2861
        %v4150 = vpop.f32.mrf.mxu0
        %v4151 = vadd.f32 %v4062, %v4150
        %4152 = vmatmul.f32.gmra.mxu0 %v2864
        %v4153 = vpop.f32.mrf.mxu0
        %v4154 = vadd.f32 %v4065, %v4153
        %4155 = vmatmul.f32.gmra.mxu0 %v2867
        %v4156 = vpop.f32.mrf.mxu0
        %v4157 = vadd.f32 %v4068, %v4156
        %4158 = vmatmul.f32.gmra.mxu0 %v2870
        %v4159 = vpop.f32.mrf.mxu0
        %v4160 = vadd.f32 %v4071, %v4159
        %4161 = vmatmul.f32.gmra.mxu0 %v2873
        %v4162 = vpop.f32.mrf.mxu0
        %v4163 = vadd.f32 %v4074, %v4162
        %4164 = vmatmul.f32.gmra.mxu0 %v2876
        %v4165 = vpop.f32.mrf.mxu0
        %v4166 = vadd.f32 %v4077, %v4165
        %4167 = vdwg.mxu0
        %4168 = vmatpush.msra.mxu0 %v2972
        %4169 = vmatpush.msra.mxu0 %v2970
        %4170 = vmatpush.msra.mxu0 %v2968
        %4171 = vmatpush.msra.mxu0 %v2966
        %4172 = vmatpush.msra.mxu0 %v2964
        %4173 = vmatpush.msra.mxu0 %v2962
        %4174 = vmatpush.msra.mxu0 %v2960
        %4175 = vmatpush.msra.mxu0 %v2958
        %4176 = vmatpush.msra.mxu0 %v2956
        %4177 = vmatpush.msra.mxu0 %v2954
        %4178 = vmatpush.msra.mxu0 %v2952
        %4179 = vmatpush.msra.mxu0 %v2950
        %4180 = vmatpush.msra.mxu0 %v2948
        %4181 = vmatpush.msra.mxu0 %v2946
        %4182 = vmatpush.msra.mxu0 %v2944
        %4183 = vmatpush.msra.mxu0 %v2942
        %4184 = vmatmul.f32.gmra.mxu0 %v2808
        %v4185 = vpop.f32.mrf.mxu0
        %v4186 = vadd.f32 %v4097, %v4185
        %4187 = vmatmul.f32.gmra.mxu0 %v2811
        %v4188 = vpop.f32.mrf.mxu0
        %v4189 = vadd.f32 %v4100, %v4188
        %4190 = vmatmul.f32.gmra.mxu0 %v2814
        %v4191 = vpop.f32.mrf.mxu0
        %v4192 = vadd.f32 %v4103, %v4191
        %4193 = vmatmul.f32.gmra.mxu0 %v2817
        %v4194 = vpop.f32.mrf.mxu0
        %v4195 = vadd.f32 %v4106, %v4194
        %4196 = vmatmul.f32.gmra.mxu0 %v2820
        %v4197 = vpop.f32.mrf.mxu0
        %v4198 = vadd.f32 %v4109, %v4197
        %4199 = vmatmul.f32.gmra.mxu0 %v2823
        %v4200 = vpop.f32.mrf.mxu0
        %v4201 = vadd.f32 %v4112, %v4200
        %4202 = vmatmul.f32.gmra.mxu0 %v2826
        %v4203 = vpop.f32.mrf.mxu0
        %v4204 = vadd.f32 %v4115, %v4203
        %4205 = vmatmul.f32.gmra.mxu0 %v2829
        %v4206 = vpop.f32.mrf.mxu0
        %v4207 = vadd.f32 %v4118, %v4206
        %4208 = vmatmul.f32.gmra.mxu0 %v2832
        %v4209 = vpop.f32.mrf.mxu0
        %v4210 = vadd.f32 %v4121, %v4209
        %4211 = vmatmul.f32.gmra.mxu0 %v2835
        %v4212 = vpop.f32.mrf.mxu0
        %v4213 = vadd.f32 %v4124, %v4212
        %4214 = vmatmul.f32.gmra.mxu0 %v2838
        %v4215 = vpop.f32.mrf.mxu0
        %v4216 = vadd.f32 %v4127, %v4215
        %4217 = vmatmul.f32.gmra.mxu0 %v2841
        %v4218 = vpop.f32.mrf.mxu0
        %v4219 = vadd.f32 %v4130, %v4218
        %4220 = vmatmul.f32.gmra.mxu0 %v2844
        %v4221 = vpop.f32.mrf.mxu0
        %v4222 = vadd.f32 %v4133, %v4221
        %4223 = vmatmul.f32.gmra.mxu0 %v2847
        %v4224 = vpop.f32.mrf.mxu0
        %v4225 = vadd.f32 %v4136, %v4224
        %4226 = vmatmul.f32.gmra.mxu0 %v2850
        %v4227 = vpop.f32.mrf.mxu0
        %v4228 = vadd.f32 %v4139, %v4227
        %4229 = vmatmul.f32.gmra.mxu0 %v2853
        %v4230 = vpop.f32.mrf.mxu0
        %v4231 = vadd.f32 %v4142, %v4230
        %4232 = vmatmul.f32.gmra.mxu0 %v2856
        %v4233 = vpop.f32.mrf.mxu0
        %v4234 = vadd.f32 %v4145, %v4233
        %4235 = vmatmul.f32.gmra.mxu0 %v2859
        %v4236 = vpop.f32.mrf.mxu0
        %v4237 = vadd.f32 %v4148, %v4236
        %4238 = vmatmul.f32.gmra.mxu0 %v2862
        %v4239 = vpop.f32.mrf.mxu0
        %v4240 = vadd.f32 %v4151, %v4239
        %4241 = vmatmul.f32.gmra.mxu0 %v2865
        %v4242 = vpop.f32.mrf.mxu0
        %v4243 = vadd.f32 %v4154, %v4242
        %4244 = vmatmul.f32.gmra.mxu0 %v2868
        %v4245 = vpop.f32.mrf.mxu0
        %v4246 = vadd.f32 %v4157, %v4245
        %4247 = vmatmul.f32.gmra.mxu0 %v2871
        %v4248 = vpop.f32.mrf.mxu0
        %v4249 = vadd.f32 %v4160, %v4248
        %4250 = vmatmul.f32.gmra.mxu0 %v2874
        %v4251 = vpop.f32.mrf.mxu0
        %v4252 = vadd.f32 %v4163, %v4251
        %4253 = vmatmul.f32.gmra.mxu0 %v2877
        %v4254 = vpop.f32.mrf.mxu0
        %v4255 = vadd.f32 %v4166, %v4254
        %4256 = vdwg.mxu0
        %4257 = vmatpush.msra.mxu0 %v2909
        %4258 = vmatpush.msra.mxu0 %v2907
        %4259 = vmatpush.msra.mxu0 %v2905
        %4260 = vmatpush.msra.mxu0 %v2903
        %4261 = vmatpush.msra.mxu0 %v2901
        %4262 = vmatpush.msra.mxu0 %v2899
        %4263 = vmatpush.msra.mxu0 %v2897
        %4264 = vmatpush.msra.mxu0 %v2895
        %4265 = vmatpush.msra.mxu0 %v2893
        %4266 = vmatpush.msra.mxu0 %v2891
        %4267 = vmatpush.msra.mxu0 %v2889
        %4268 = vmatpush.msra.mxu0 %v2887
        %4269 = vmatpush.msra.mxu0 %v2885
        %4270 = vmatpush.msra.mxu0 %v2883
        %4271 = vmatpush.msra.mxu0 %v2881
        %4272 = vmatpush.msra.mxu0 %v2879
        %4273 = vmatmul.f32.gmra.mxu0 %v2806
        %v4274 = vpop.f32.mrf.mxu0
        %v4275 = vadd.f32 %v3919, %v4274
        %4276 = vmatmul.f32.gmra.mxu0 %v2809
        %v4277 = vpop.f32.mrf.mxu0
        %v4278 = vadd.f32 %v3922, %v4277
        %4279 = vmatmul.f32.gmra.mxu0 %v2812
        %v4280 = vpop.f32.mrf.mxu0
        %v4281 = vadd.f32 %v3925, %v4280
        %4282 = vmatmul.f32.gmra.mxu0 %v2815
        %v4283 = vpop.f32.mrf.mxu0
        %v4284 = vadd.f32 %v3928, %v4283
        %4285 = vmatmul.f32.gmra.mxu0 %v2818
        %v4286 = vpop.f32.mrf.mxu0
        %v4287 = vadd.f32 %v3931, %v4286
        %4288 = vmatmul.f32.gmra.mxu0 %v2821
        %v4289 = vpop.f32.mrf.mxu0
        %v4290 = vadd.f32 %v3934, %v4289
        %4291 = vmatmul.f32.gmra.mxu0 %v2824
        %v4292 = vpop.f32.mrf.mxu0
        %v4293 = vadd.f32 %v3937, %v4292
        %4294 = vmatmul.f32.gmra.mxu0 %v2827
        %v4295 = vpop.f32.mrf.mxu0
        %v4296 = vadd.f32 %v3940, %v4295
        %4297 = vmatmul.f32.gmra.mxu0 %v2830
        %v4298 = vpop.f32.mrf.mxu0
        %v4299 = vadd.f32 %v3943, %v4298
        %4300 = vmatmul.f32.gmra.mxu0 %v2833
        %v4301 = vpop.f32.mrf.mxu0
        %v4302 = vadd.f32 %v3946, %v4301
        %4303 = vmatmul.f32.gmra.mxu0 %v2836
        %v4304 = vpop.f32.mrf.mxu0
        %v4305 = vadd.f32 %v3949, %v4304
        %4306 = vmatmul.f32.gmra.mxu0 %v2839
        %v4307 = vpop.f32.mrf.mxu0
        %v4308 = vadd.f32 %v3952, %v4307
        %4309 = vmatmul.f32.gmra.mxu0 %v2842
        %v4310 = vpop.f32.mrf.mxu0
        %v4311 = vadd.f32 %v3955, %v4310
        %4312 = vmatmul.f32.gmra.mxu0 %v2845
        %v4313 = vpop.f32.mrf.mxu0
        %v4314 = vadd.f32 %v3958, %v4313
        %4315 = vmatmul.f32.gmra.mxu0 %v2848
        %v4316 = vpop.f32.mrf.mxu0
        %v4317 = vadd.f32 %v3961, %v4316
        %4318 = vmatmul.f32.gmra.mxu0 %v2851
        %v4319 = vpop.f32.mrf.mxu0
        %v4320 = vadd.f32 %v3964, %v4319
        %4321 = vmatmul.f32.gmra.mxu0 %v2854
        %v4322 = vpop.f32.mrf.mxu0
        %v4323 = vadd.f32 %v3967, %v4322
        %4324 = vmatmul.f32.gmra.mxu0 %v2857
        %v4325 = vpop.f32.mrf.mxu0
        %v4326 = vadd.f32 %v3970, %v4325
        %4327 = vmatmul.f32.gmra.mxu0 %v2860
        %v4328 = vpop.f32.mrf.mxu0
        %v4329 = vadd.f32 %v3973, %v4328
        %4330 = vmatmul.f32.gmra.mxu0 %v2863
        %v4331 = vpop.f32.mrf.mxu0
        %v4332 = vadd.f32 %v3976, %v4331
        %4333 = vmatmul.f32.gmra.mxu0 %v2866
        %v4334 = vpop.f32.mrf.mxu0
        %v4335 = vadd.f32 %v3979, %v4334
        %4336 = vmatmul.f32.gmra.mxu0 %v2869
        %v4337 = vpop.f32.mrf.mxu0
        %v4338 = vadd.f32 %v3982, %v4337
        %4339 = vmatmul.f32.gmra.mxu0 %v2872
        %v4340 = vpop.f32.mrf.mxu0
        %v4341 = vadd.f32 %v3985, %v4340
        %4342 = vmatmul.f32.gmra.mxu0 %v2875
        %v4343 = vpop.f32.mrf.mxu0
        %v4344 = vadd.f32 %v3988, %v4343
        %4345 = vdwg.mxu0
        %4346 = vmatpush.msra.mxu0 %v2941
        %4347 = vmatpush.msra.mxu0 %v2939
        %4348 = vmatpush.msra.mxu0 %v2937
        %4349 = vmatpush.msra.mxu0 %v2935
        %4350 = vmatpush.msra.mxu0 %v2933
        %4351 = vmatpush.msra.mxu0 %v2931
        %4352 = vmatpush.msra.mxu0 %v2929
        %4353 = vmatpush.msra.mxu0 %v2927
        %4354 = vmatpush.msra.mxu0 %v2925
        %4355 = vmatpush.msra.mxu0 %v2923
        %4356 = vmatpush.msra.mxu0 %v2921
        %4357 = vmatpush.msra.mxu0 %v2919
        %4358 = vmatpush.msra.mxu0 %v2917
        %4359 = vmatpush.msra.mxu0 %v2915
        %4360 = vmatpush.msra.mxu0 %v2913
        %4361 = vmatpush.msra.mxu0 %v2911
        %4362 = vmatmul.f32.gmra.mxu0 %v2807
        %v4363 = vpop.f32.mrf.mxu0
        %v4364 = vadd.f32 %v4275, %v4363
        %4365 = vmatmul.f32.gmra.mxu0 %v2810
        %v4366 = vpop.f32.mrf.mxu0
        %v4367 = vadd.f32 %v4278, %v4366
        %4368 = vmatmul.f32.gmra.mxu0 %v2813
        %v4369 = vpop.f32.mrf.mxu0
        %v4370 = vadd.f32 %v4281, %v4369
        %4371 = vmatmul.f32.gmra.mxu0 %v2816
        %v4372 = vpop.f32.mrf.mxu0
        %v4373 = vadd.f32 %v4284, %v4372
        %4374 = vmatmul.f32.gmra.mxu0 %v2819
        %v4375 = vpop.f32.mrf.mxu0
        %v4376 = vadd.f32 %v4287, %v4375
        %4377 = vmatmul.f32.gmra.mxu0 %v2822
        %v4378 = vpop.f32.mrf.mxu0
        %v4379 = vadd.f32 %v4290, %v4378
        %4380 = vmatmul.f32.gmra.mxu0 %v2825
        %v4381 = vpop.f32.mrf.mxu0
        %v4382 = vadd.f32 %v4293, %v4381
        %4383 = vmatmul.f32.gmra.mxu0 %v2828
        %v4384 = vpop.f32.mrf.mxu0
        %v4385 = vadd.f32 %v4296, %v4384
        %4386 = vmatmul.f32.gmra.mxu0 %v2831
        %v4387 = vpop.f32.mrf.mxu0
        %v4388 = vadd.f32 %v4299, %v4387
        %4389 = vmatmul.f32.gmra.mxu0 %v2834
        %v4390 = vpop.f32.mrf.mxu0
        %v4391 = vadd.f32 %v4302, %v4390
        %4392 = vmatmul.f32.gmra.mxu0 %v2837
        %v4393 = vpop.f32.mrf.mxu0
        %v4394 = vadd.f32 %v4305, %v4393
        %4395 = vmatmul.f32.gmra.mxu0 %v2840
        %v4396 = vpop.f32.mrf.mxu0
        %v4397 = vadd.f32 %v4308, %v4396
        %4398 = vmatmul.f32.gmra.mxu0 %v2843
        %v4399 = vpop.f32.mrf.mxu0
        %v4400 = vadd.f32 %v4311, %v4399
        %4401 = vmatmul.f32.gmra.mxu0 %v2846
        %v4402 = vpop.f32.mrf.mxu0
        %v4403 = vadd.f32 %v4314, %v4402
        %4404 = vmatmul.f32.gmra.mxu0 %v2849
        %v4405 = vpop.f32.mrf.mxu0
        %v4406 = vadd.f32 %v4317, %v4405
        %4407 = vmatmul.f32.gmra.mxu0 %v2852
        %v4408 = vpop.f32.mrf.mxu0
        %v4409 = vadd.f32 %v4320, %v4408
        %4410 = vmatmul.f32.gmra.mxu0 %v2855
        %v4411 = vpop.f32.mrf.mxu0
        %v4412 = vadd.f32 %v4323, %v4411
        %4413 = vmatmul.f32.gmra.mxu0 %v2858
        %v4414 = vpop.f32.mrf.mxu0
        %v4415 = vadd.f32 %v4326, %v4414
        %4416 = vmatmul.f32.gmra.mxu0 %v2861
        %v4417 = vpop.f32.mrf.mxu0
        %v4418 = vadd.f32 %v4329, %v4417
        %4419 = vmatmul.f32.gmra.mxu0 %v2864
        %v4420 = vpop.f32.mrf.mxu0
        %v4421 = vadd.f32 %v4332, %v4420
        %4422 = vmatmul.f32.gmra.mxu0 %v2867
        %v4423 = vpop.f32.mrf.mxu0
        %v4424 = vadd.f32 %v4335, %v4423
        %4425 = vmatmul.f32.gmra.mxu0 %v2870
        %v4426 = vpop.f32.mrf.mxu0
        %v4427 = vadd.f32 %v4338, %v4426
        %4428 = vmatmul.f32.gmra.mxu0 %v2873
        %v4429 = vpop.f32.mrf.mxu0
        %v4430 = vadd.f32 %v4341, %v4429
        %4431 = vmatmul.f32.gmra.mxu0 %v2876
        %v4432 = vpop.f32.mrf.mxu0
        %v4433 = vadd.f32 %v4344, %v4432
        %4434 = vdwg.mxu0
        %4435 = vmatpush.msra.mxu0 %v2973
        %4436 = vmatpush.msra.mxu0 %v2971
        %4437 = vmatpush.msra.mxu0 %v2969
        %4438 = vmatpush.msra.mxu0 %v2967
        %4439 = vmatpush.msra.mxu0 %v2965
        %4440 = vmatpush.msra.mxu0 %v2963
        %4441 = vmatpush.msra.mxu0 %v2961
        %4442 = vmatpush.msra.mxu0 %v2959
        %4443 = vmatpush.msra.mxu0 %v2957
        %4444 = vmatpush.msra.mxu0 %v2955
        %4445 = vmatpush.msra.mxu0 %v2953
        %4446 = vmatpush.msra.mxu0 %v2951
        %4447 = vmatpush.msra.mxu0 %v2949
        %4448 = vmatpush.msra.mxu0 %v2947
        %4449 = vmatpush.msra.mxu0 %v2945
        %4450 = vmatpush.msra.mxu0 %v2943
        %4451 = vmatmul.f32.gmra.mxu0 %v2808
        %v4452 = vpop.f32.mrf.mxu0
        %v4453 = vadd.f32 %v4364, %v4452
        %4454 = vmatmul.f32.gmra.mxu0 %v2811
        %v4455 = vpop.f32.mrf.mxu0
        %v4456 = vadd.f32 %v4367, %v4455
        %4457 = vmatmul.f32.gmra.mxu0 %v2814
        %v4458 = vpop.f32.mrf.mxu0
        %v4459 = vadd.f32 %v4370, %v4458
        %4460 = vmatmul.f32.gmra.mxu0 %v2817
        %v4461 = vpop.f32.mrf.mxu0
        %v4462 = vadd.f32 %v4373, %v4461
        %4463 = vmatmul.f32.gmra.mxu0 %v2820
        %v4464 = vpop.f32.mrf.mxu0
        %v4465 = vadd.f32 %v4376, %v4464
        %4466 = vmatmul.f32.gmra.mxu0 %v2823
        %v4467 = vpop.f32.mrf.mxu0
        %v4468 = vadd.f32 %v4379, %v4467
        %4469 = vmatmul.f32.gmra.mxu0 %v2826
        %v4470 = vpop.f32.mrf.mxu0
        %v4471 = vadd.f32 %v4382, %v4470
        %4472 = vmatmul.f32.gmra.mxu0 %v2829
        %v4473 = vpop.f32.mrf.mxu0
        %v4474 = vadd.f32 %v4385, %v4473
        %4475 = vmatmul.f32.gmra.mxu0 %v2832
        %v4476 = vpop.f32.mrf.mxu0
        %v4477 = vadd.f32 %v4388, %v4476
        %4478 = vmatmul.f32.gmra.mxu0 %v2835
        %v4479 = vpop.f32.mrf.mxu0
        %v4480 = vadd.f32 %v4391, %v4479
        %4481 = vmatmul.f32.gmra.mxu0 %v2838
        %v4482 = vpop.f32.mrf.mxu0
        %v4483 = vadd.f32 %v4394, %v4482
        %4484 = vmatmul.f32.gmra.mxu0 %v2841
        %v4485 = vpop.f32.mrf.mxu0
        %v4486 = vadd.f32 %v4397, %v4485
        %4487 = vmatmul.f32.gmra.mxu0 %v2844
        %v4488 = vpop.f32.mrf.mxu0
        %v4489 = vadd.f32 %v4400, %v4488
        %4490 = vmatmul.f32.gmra.mxu0 %v2847
        %v4491 = vpop.f32.mrf.mxu0
        %v4492 = vadd.f32 %v4403, %v4491
        %4493 = vmatmul.f32.gmra.mxu0 %v2850
        %v4494 = vpop.f32.mrf.mxu0
        %v4495 = vadd.f32 %v4406, %v4494
        %4496 = vmatmul.f32.gmra.mxu0 %v2853
        %v4497 = vpop.f32.mrf.mxu0
        %v4498 = vadd.f32 %v4409, %v4497
        %4499 = vmatmul.f32.gmra.mxu0 %v2856
        %v4500 = vpop.f32.mrf.mxu0
        %v4501 = vadd.f32 %v4412, %v4500
        %4502 = vmatmul.f32.gmra.mxu0 %v2859
        %v4503 = vpop.f32.mrf.mxu0
        %v4504 = vadd.f32 %v4415, %v4503
        %4505 = vmatmul.f32.gmra.mxu0 %v2862
        %v4506 = vpop.f32.mrf.mxu0
        %v4507 = vadd.f32 %v4418, %v4506
        %4508 = vmatmul.f32.gmra.mxu0 %v2865
        %v4509 = vpop.f32.mrf.mxu0
        %v4510 = vadd.f32 %v4421, %v4509
        %4511 = vmatmul.f32.gmra.mxu0 %v2868
        %v4512 = vpop.f32.mrf.mxu0
        %v4513 = vadd.f32 %v4424, %v4512
        %4514 = vmatmul.f32.gmra.mxu0 %v2871
        %v4515 = vpop.f32.mrf.mxu0
        %v4516 = vadd.f32 %v4427, %v4515
        %4517 = vmatmul.f32.gmra.mxu0 %v2874
        %v4518 = vpop.f32.mrf.mxu0
        %v4519 = vadd.f32 %v4430, %v4518
        %4520 = vmatmul.f32.gmra.mxu0 %v2877
        %v4521 = vpop.f32.mrf.mxu0
        %v4522 = vadd.f32 %v4433, %v4521
        %4523 = vdwg.mxu0
        %v4524 = vld [vmem:[#allocation2] sm:$0xfc]
        %v4525 = vld [vmem:[#allocation2 + $0x8] sm:$0xfc]
        %v4526 = vld [vmem:[#allocation2 + $0x10] sm:$0xfc]
        %v4527 = vld [vmem:[#allocation2 + $0x48] sm:$0x3]
        %v4528 = vld [vmem:[#allocation2 + $0x50] sm:$0x3]
        %v4529 = vld [vmem:[#allocation2 + $0x58] sm:$0x3]
        %v4530 = vld [vmem:[#allocation2 + $0x60] sm:$0xfc]
        %v4531 = vld [vmem:[#allocation2 + $0x68] sm:$0xfc]
        %v4532 = vld [vmem:[#allocation2 + $0x70] sm:$0xfc]
        %v4533 = vld [vmem:[#allocation2 + $0xa8] sm:$0x3]
        %v4534 = vld [vmem:[#allocation2 + $0xb0] sm:$0x3]
        %v4535 = vld [vmem:[#allocation2 + $0xb8] sm:$0x3]
        %v4536 = vld [vmem:[#allocation2 + $0xc0] sm:$0xfc]
        %v4537 = vld [vmem:[#allocation2 + $0xc8] sm:$0xfc]
        %v4538 = vld [vmem:[#allocation2 + $0xd0] sm:$0xfc]
        %v4539 = vld [vmem:[#allocation2 + $0x108] sm:$0x3]
        %v4540 = vld [vmem:[#allocation2 + $0x110] sm:$0x3]
        %v4541 = vld [vmem:[#allocation2 + $0x118] sm:$0x3]
        %v4542 = vld [vmem:[#allocation2 + $0x120] sm:$0xfc]
        %v4543 = vld [vmem:[#allocation2 + $0x128] sm:$0xfc]
        %v4544 = vld [vmem:[#allocation2 + $0x130] sm:$0xfc]
        %v4545 = vld [vmem:[#allocation2 + $0x168] sm:$0x3]
        %v4546 = vld [vmem:[#allocation2 + $0x170] sm:$0x3]
        %v4547 = vld [vmem:[#allocation2 + $0x178] sm:$0x3]
        %v4548 = vld [vmem:[#allocation2 + $0x180] sm:$0xfc]
        %v4549 = vld [vmem:[#allocation2 + $0x188] sm:$0xfc]
        %v4550 = vld [vmem:[#allocation2 + $0x190] sm:$0xfc]
        %v4551 = vld [vmem:[#allocation2 + $0x1c8] sm:$0x3]
        %v4552 = vld [vmem:[#allocation2 + $0x1d0] sm:$0x3]
        %v4553 = vld [vmem:[#allocation2 + $0x1d8] sm:$0x3]
        %v4554 = vld [vmem:[#allocation2 + $0x1e0] sm:$0xfc]
        %v4555 = vld [vmem:[#allocation2 + $0x1e8] sm:$0xfc]
        %v4556 = vld [vmem:[#allocation2 + $0x1f0] sm:$0xfc]
        %v4557 = vld [vmem:[#allocation2 + $0x228] sm:$0x3]
        %v4558 = vld [vmem:[#allocation2 + $0x230] sm:$0x3]
        %v4559 = vld [vmem:[#allocation2 + $0x238] sm:$0x3]
        %v4560 = vld [vmem:[#allocation2 + $0x240] sm:$0xfc]
        %v4561 = vld [vmem:[#allocation2 + $0x248] sm:$0xfc]
        %v4562 = vld [vmem:[#allocation2 + $0x250] sm:$0xfc]
        %v4563 = vld [vmem:[#allocation2 + $0x288] sm:$0x3]
        %v4564 = vld [vmem:[#allocation2 + $0x290] sm:$0x3]
        %v4565 = vld [vmem:[#allocation2 + $0x298] sm:$0x3]
        %v4566 = vld [vmem:[#allocation2 + $0x2a0] sm:$0xfc]
        %v4567 = vld [vmem:[#allocation2 + $0x2a8] sm:$0xfc]
        %v4568 = vld [vmem:[#allocation2 + $0x2b0] sm:$0xfc]
        %v4569 = vld [vmem:[#allocation2 + $0x2e8] sm:$0x3]
        %v4570 = vld [vmem:[#allocation2 + $0x2f0] sm:$0x3]
        %v4571 = vld [vmem:[#allocation2 + $0x2f8] sm:$0x3]
        %vm4620 = vcmask 1045504
        %v4621 = vrot.slane %v4524, 2
        %v4622 = vrot.slane %v2809, 2
        %v4623 = vsel %vm4620, %v4621, %v4622
        %v4624 = vrot.slane %v4525, 2
        %v4625 = vrot.slane %v2810, 2
        %v4626 = vsel %vm4620, %v4624, %v4625
        %v4627 = vrot.slane %v4526, 2
        %v4628 = vrot.slane %v2811, 2
        %v4629 = vsel %vm4620, %v4627, %v4628
        %v4630 = vrot.slane %v2812, 2
        %v4631 = vsel %vm4620, %v4622, %v4630
        %v4632 = vrot.slane %v2813, 2
        %v4633 = vsel %vm4620, %v4625, %v4632
        %v4634 = vrot.slane %v2814, 2
        %v4635 = vsel %vm4620, %v4628, %v4634
        %v4636 = vrot.slane %v4527, 2
        %v4637 = vsel %vm4620, %v4630, %v4636
        %v4638 = vrot.slane %v4528, 2
        %v4639 = vsel %vm4620, %v4632, %v4638
        %v4640 = vrot.slane %v4529, 2
        %v4641 = vsel %vm4620, %v4634, %v4640
        %v4642 = vrot.slane %v4530, 2
        %v4643 = vrot.slane %v2818, 2
        %v4644 = vsel %vm4620, %v4642, %v4643
        %v4645 = vrot.slane %v4531, 2
        %v4646 = vrot.slane %v2819, 2
        %v4647 = vsel %vm4620, %v4645, %v4646
        %v4648 = vrot.slane %v4532, 2
        %v4649 = vrot.slane %v2820, 2
        %v4650 = vsel %vm4620, %v4648, %v4649
        %v4651 = vrot.slane %v2821, 2
        %v4652 = vsel %vm4620, %v4643, %v4651
        %v4653 = vrot.slane %v2822, 2
        %v4654 = vsel %vm4620, %v4646, %v4653
        %v4655 = vrot.slane %v2823, 2
        %v4656 = vsel %vm4620, %v4649, %v4655
        %v4657 = vrot.slane %v4533, 2
        %v4658 = vsel %vm4620, %v4651, %v4657
        %v4659 = vrot.slane %v4534, 2
        %v4660 = vsel %vm4620, %v4653, %v4659
        %v4661 = vrot.slane %v4535, 2
        %v4662 = vsel %vm4620, %v4655, %v4661
        %v4663 = vrot.slane %v4536, 2
        %v4664 = vrot.slane %v2827, 2
        %v4665 = vsel %vm4620, %v4663, %v4664
        %v4666 = vrot.slane %v4537, 2
        %v4667 = vrot.slane %v2828, 2
        %v4668 = vsel %vm4620, %v4666, %v4667
        %v4669 = vrot.slane %v4538, 2
        %v4670 = vrot.slane %v2829, 2
        %v4671 = vsel %vm4620, %v4669, %v4670
        %v4672 = vrot.slane %v2830, 2
        %v4673 = vsel %vm4620, %v4664, %v4672
        %v4674 = vrot.slane %v2831, 2
        %v4675 = vsel %vm4620, %v4667, %v4674
        %v4676 = vrot.slane %v2832, 2
        %v4677 = vsel %vm4620, %v4670, %v4676
        %v4678 = vrot.slane %v4539, 2
        %v4679 = vsel %vm4620, %v4672, %v4678
        %v4680 = vrot.slane %v4540, 2
        %v4681 = vsel %vm4620, %v4674, %v4680
        %v4682 = vrot.slane %v4541, 2
        %v4683 = vsel %vm4620, %v4676, %v4682
        %v4684 = vrot.slane %v4542, 2
        %v4685 = vrot.slane %v2836, 2
        %v4686 = vsel %vm4620, %v4684, %v4685
        %v4687 = vrot.slane %v4543, 2
        %v4688 = vrot.slane %v2837, 2
        %v4689 = vsel %vm4620, %v4687, %v4688
        %v4690 = vrot.slane %v4544, 2
        %v4691 = vrot.slane %v2838, 2
        %v4692 = vsel %vm4620, %v4690, %v4691
        %v4693 = vrot.slane %v2839, 2
        %v4694 = vsel %vm4620, %v4685, %v4693
        %v4695 = vrot.slane %v2840, 2
        %v4696 = vsel %vm4620, %v4688, %v4695
        %v4697 = vrot.slane %v2841, 2
        %v4698 = vsel %vm4620, %v4691, %v4697
        %v4699 = vrot.slane %v4545, 2
        %v4700 = vsel %vm4620, %v4693, %v4699
        %v4701 = vrot.slane %v4546, 2
        %v4702 = vsel %vm4620, %v4695, %v4701
        %v4703 = vrot.slane %v4547, 2
        %v4704 = vsel %vm4620, %v4697, %v4703
        %v4705 = vrot.slane %v4548, 2
        %v4706 = vrot.slane %v2845, 2
        %v4707 = vsel %vm4620, %v4705, %v4706
        %v4708 = vrot.slane %v4549, 2
        %v4709 = vrot.slane %v2846, 2
        %v4710 = vsel %vm4620, %v4708, %v4709
        %v4711 = vrot.slane %v4550, 2
        %v4712 = vrot.slane %v2847, 2
        %v4713 = vsel %vm4620, %v4711, %v4712
        %v4714 = vrot.slane %v2848, 2
        %v4715 = vsel %vm4620, %v4706, %v4714
        %v4716 = vrot.slane %v2849, 2
        %v4717 = vsel %vm4620, %v4709, %v4716
        %v4718 = vrot.slane %v2850, 2
        %v4719 = vsel %vm4620, %v4712, %v4718
        %v4720 = vrot.slane %v4551, 2
        %v4721 = vsel %vm4620, %v4714, %v4720
        %v4722 = vrot.slane %v4552, 2
        %v4723 = vsel %vm4620, %v4716, %v4722
        %v4724 = vrot.slane %v4553, 2
        %v4725 = vsel %vm4620, %v4718, %v4724
        %v4726 = vrot.slane %v4554, 2
        %v4727 = vrot.slane %v2854, 2
        %v4728 = vsel %vm4620, %v4726, %v4727
        %v4729 = vrot.slane %v4555, 2
        %v4730 = vrot.slane %v2855, 2
        %v4731 = vsel %vm4620, %v4729, %v4730
        %v4732 = vrot.slane %v4556, 2
        %v4733 = vrot.slane %v2856, 2
        %v4734 = vsel %vm4620, %v4732, %v4733
        %v4735 = vrot.slane %v2857, 2
        %v4736 = vsel %vm4620, %v4727, %v4735
        %v4737 = vrot.slane %v2858, 2
        %v4738 = vsel %vm4620, %v4730, %v4737
        %v4739 = vrot.slane %v2859, 2
        %v4740 = vsel %vm4620, %v4733, %v4739
        %v4741 = vrot.slane %v4557, 2
        %v4742 = vsel %vm4620, %v4735, %v4741
        %v4743 = vrot.slane %v4558, 2
        %v4744 = vsel %vm4620, %v4737, %v4743
        %v4745 = vrot.slane %v4559, 2
        %v4746 = vsel %vm4620, %v4739, %v4745
        %v4747 = vrot.slane %v4560, 2
        %v4748 = vrot.slane %v2863, 2
        %v4749 = vsel %vm4620, %v4747, %v4748
        %v4750 = vrot.slane %v4561, 2
        %v4751 = vrot.slane %v2864, 2
        %v4752 = vsel %vm4620, %v4750, %v4751
        %v4753 = vrot.slane %v4562, 2
        %v4754 = vrot.slane %v2865, 2
        %v4755 = vsel %vm4620, %v4753, %v4754
        %v4756 = vrot.slane %v2866, 2
        %v4757 = vsel %vm4620, %v4748, %v4756
        %v4758 = vrot.slane %v2867, 2
        %v4759 = vsel %vm4620, %v4751, %v4758
        %v4760 = vrot.slane %v2868, 2
        %v4761 = vsel %vm4620, %v4754, %v4760
        %v4762 = vrot.slane %v4563, 2
        %v4763 = vsel %vm4620, %v4756, %v4762
        %v4764 = vrot.slane %v4564, 2
        %v4765 = vsel %vm4620, %v4758, %v4764
        %v4766 = vrot.slane %v4565, 2
        %v4767 = vsel %vm4620, %v4760, %v4766
        %v4768 = vrot.slane %v4566, 2
        %v4769 = vrot.slane %v2872, 2
        %v4770 = vsel %vm4620, %v4768, %v4769
        %v4771 = vrot.slane %v4567, 2
        %v4772 = vrot.slane %v2873, 2
        %v4773 = vsel %vm4620, %v4771, %v4772
        %v4774 = vrot.slane %v4568, 2
        %v4775 = vrot.slane %v2874, 2
        %v4776 = vsel %vm4620, %v4774, %v4775
        %v4777 = vrot.slane %v2875, 2
        %v4778 = vsel %vm4620, %v4769, %v4777
        %v4779 = vrot.slane %v2876, 2
        %v4780 = vsel %vm4620, %v4772, %v4779
        %v4781 = vrot.slane %v2877, 2
        %v4782 = vsel %vm4620, %v4775, %v4781
        %v4783 = vrot.slane %v4569, 2
        %v4784 = vsel %vm4620, %v4777, %v4783
        %v4785 = vrot.slane %v4570, 2
        %v4786 = vsel %vm4620, %v4779, %v4785
        %v4787 = vrot.slane %v4571, 2
        %v4788 = vsel %vm4620, %v4781, %v4787
        %s4861 = scalar_lea.vmem %s4, 1536
        %v4862 = vld [vmem:[%s4861] sm:$0xff]
        %v4863 = vld [vmem:[%s4861 + $0x8] sm:$0xff]
        %v4864 = vld [vmem:[%s4861 + $0x10] sm:$0xff]
        %v4865 = vld [vmem:[%s4861 + $0x18] sm:$0xff]
        %v4866 = vld [vmem:[%s4861 + $0x20] sm:$0xff]
        %v4867 = vld [vmem:[%s4861 + $0x28] sm:$0xff]
        %v4868 = vld [vmem:[%s4861 + $0x30] sm:$0xff]
        %v4869 = vld [vmem:[%s4861 + $0x38] sm:$0xff]
        %v4870 = vld [vmem:[%s4861 + $0x40] sm:$0xff]
        %v4871 = vld [vmem:[%s4861 + $0x48] sm:$0xff]
        %v4872 = vld [vmem:[%s4861 + $0x50] sm:$0xff]
        %v4873 = vld [vmem:[%s4861 + $0x58] sm:$0xff]
        %v4874 = vld [vmem:[%s4861 + $0x60] sm:$0xff]
        %v4875 = vld [vmem:[%s4861 + $0x68] sm:$0xff]
        %v4876 = vld [vmem:[%s4861 + $0x70] sm:$0xff]
        %v4877 = vld [vmem:[%s4861 + $0x78] sm:$0xff]
        %v4878 = vld [vmem:[%s4861 + $0x80] sm:$0xff]
        %v4879 = vld [vmem:[%s4861 + $0x88] sm:$0xff]
        %v4880 = vld [vmem:[%s4861 + $0x90] sm:$0xff]
        %v4881 = vld [vmem:[%s4861 + $0x98] sm:$0xff]
        %v4882 = vld [vmem:[%s4861 + $0xa0] sm:$0xff]
        %v4883 = vld [vmem:[%s4861 + $0xa8] sm:$0xff]
        %v4884 = vld [vmem:[%s4861 + $0xb0] sm:$0xff]
        %v4885 = vld [vmem:[%s4861 + $0xb8] sm:$0xff]
        %v4886 = vld [vmem:[%s4861 + $0xc0] sm:$0xff]
        %v4887 = vld [vmem:[%s4861 + $0xc8] sm:$0xff]
        %v4888 = vld [vmem:[%s4861 + $0xd0] sm:$0xff]
        %v4889 = vld [vmem:[%s4861 + $0xd8] sm:$0xff]
        %v4890 = vld [vmem:[%s4861 + $0xe0] sm:$0xff]
        %v4891 = vld [vmem:[%s4861 + $0xe8] sm:$0xff]
        %v4892 = vld [vmem:[%s4861 + $0xf0] sm:$0xff]
        %v4893 = vld [vmem:[%s4861 + $0xf8] sm:$0xff]
        %v4894 = vld [vmem:[%s4861 + $0x100] sm:$0xff]
        %v4895 = vld [vmem:[%s4861 + $0x108] sm:$0xff]
        %v4896 = vld [vmem:[%s4861 + $0x110] sm:$0xff]
        %v4897 = vld [vmem:[%s4861 + $0x118] sm:$0xff]
        %v4898 = vld [vmem:[%s4861 + $0x120] sm:$0xff]
        %v4899 = vld [vmem:[%s4861 + $0x128] sm:$0xff]
        %v4900 = vld [vmem:[%s4861 + $0x130] sm:$0xff]
        %v4901 = vld [vmem:[%s4861 + $0x138] sm:$0xff]
        %v4902 = vld [vmem:[%s4861 + $0x140] sm:$0xff]
        %v4903 = vld [vmem:[%s4861 + $0x148] sm:$0xff]
        %v4904 = vld [vmem:[%s4861 + $0x150] sm:$0xff]
        %v4905 = vld [vmem:[%s4861 + $0x158] sm:$0xff]
        %v4906 = vld [vmem:[%s4861 + $0x160] sm:$0xff]
        %v4907 = vld [vmem:[%s4861 + $0x168] sm:$0xff]
        %v4908 = vld [vmem:[%s4861 + $0x170] sm:$0xff]
        %v4909 = vld [vmem:[%s4861 + $0x178] sm:$0xff]
        %v4910 = vld [vmem:[%s4861 + $0x180] sm:$0xff]
        %v4911 = vld [vmem:[%s4861 + $0x188] sm:$0xff]
        %v4912 = vld [vmem:[%s4861 + $0x190] sm:$0xff]
        %v4913 = vld [vmem:[%s4861 + $0x198] sm:$0xff]
        %v4914 = vld [vmem:[%s4861 + $0x1a0] sm:$0xff]
        %v4915 = vld [vmem:[%s4861 + $0x1a8] sm:$0xff]
        %v4916 = vld [vmem:[%s4861 + $0x1b0] sm:$0xff]
        %v4917 = vld [vmem:[%s4861 + $0x1b8] sm:$0xff]
        %v4918 = vld [vmem:[%s4861 + $0x1c0] sm:$0xff]
        %v4919 = vld [vmem:[%s4861 + $0x1c8] sm:$0xff]
        %v4920 = vld [vmem:[%s4861 + $0x1d0] sm:$0xff]
        %v4921 = vld [vmem:[%s4861 + $0x1d8] sm:$0xff]
        %v4922 = vld [vmem:[%s4861 + $0x1e0] sm:$0xff]
        %v4923 = vld [vmem:[%s4861 + $0x1e8] sm:$0xff]
        %v4924 = vld [vmem:[%s4861 + $0x1f0] sm:$0xff]
        %v4925 = vld [vmem:[%s4861 + $0x1f8] sm:$0xff]
        %v4926 = vld [vmem:[%s4861 + $0x200] sm:$0xff]
        %v4927 = vld [vmem:[%s4861 + $0x208] sm:$0xff]
        %v4928 = vld [vmem:[%s4861 + $0x210] sm:$0xff]
        %v4929 = vld [vmem:[%s4861 + $0x218] sm:$0xff]
        %v4930 = vld [vmem:[%s4861 + $0x220] sm:$0xff]
        %v4931 = vld [vmem:[%s4861 + $0x228] sm:$0xff]
        %v4932 = vld [vmem:[%s4861 + $0x230] sm:$0xff]
        %v4933 = vld [vmem:[%s4861 + $0x238] sm:$0xff]
        %v4934 = vld [vmem:[%s4861 + $0x240] sm:$0xff]
        %v4935 = vld [vmem:[%s4861 + $0x248] sm:$0xff]
        %v4936 = vld [vmem:[%s4861 + $0x250] sm:$0xff]
        %v4937 = vld [vmem:[%s4861 + $0x258] sm:$0xff]
        %v4938 = vld [vmem:[%s4861 + $0x260] sm:$0xff]
        %v4939 = vld [vmem:[%s4861 + $0x268] sm:$0xff]
        %v4940 = vld [vmem:[%s4861 + $0x270] sm:$0xff]
        %v4941 = vld [vmem:[%s4861 + $0x278] sm:$0xff]
        %v4942 = vld [vmem:[%s4861 + $0x280] sm:$0xff]
        %v4943 = vld [vmem:[%s4861 + $0x288] sm:$0xff]
        %v4944 = vld [vmem:[%s4861 + $0x290] sm:$0xff]
        %v4945 = vld [vmem:[%s4861 + $0x298] sm:$0xff]
        %v4946 = vld [vmem:[%s4861 + $0x2a0] sm:$0xff]
        %v4947 = vld [vmem:[%s4861 + $0x2a8] sm:$0xff]
        %v4948 = vld [vmem:[%s4861 + $0x2b0] sm:$0xff]
        %v4949 = vld [vmem:[%s4861 + $0x2b8] sm:$0xff]
        %v4950 = vld [vmem:[%s4861 + $0x2c0] sm:$0xff]
        %v4951 = vld [vmem:[%s4861 + $0x2c8] sm:$0xff]
        %v4952 = vld [vmem:[%s4861 + $0x2d0] sm:$0xff]
        %v4953 = vld [vmem:[%s4861 + $0x2d8] sm:$0xff]
        %v4954 = vld [vmem:[%s4861 + $0x2e0] sm:$0xff]
        %v4955 = vld [vmem:[%s4861 + $0x2e8] sm:$0xff]
        %v4956 = vld [vmem:[%s4861 + $0x2f0] sm:$0xff]
        %v4957 = vld [vmem:[%s4861 + $0x2f8] sm:$0xff]
        %4958 = vmatpush.msra.mxu0 %v4892
        %4959 = vmatpush.msra.mxu0 %v4890
        %4960 = vmatpush.msra.mxu0 %v4888
        %4961 = vmatpush.msra.mxu0 %v4886
        %4962 = vmatpush.msra.mxu0 %v4884
        %4963 = vmatpush.msra.mxu0 %v4882
        %4964 = vmatpush.msra.mxu0 %v4880
        %4965 = vmatpush.msra.mxu0 %v4878
        %4966 = vmatpush.msra.mxu0 %v4876
        %4967 = vmatpush.msra.mxu0 %v4874
        %4968 = vmatpush.msra.mxu0 %v4872
        %4969 = vmatpush.msra.mxu0 %v4870
        %4970 = vmatpush.msra.mxu0 %v4868
        %4971 = vmatpush.msra.mxu0 %v4866
        %4972 = vmatpush.msra.mxu0 %v4864
        %4973 = vmatpush.msra.mxu0 %v4862
        %4974 = vmatmul.f32.gmra.mxu0 %v4623
        %v4975 = vpop.f32.mrf.mxu0
        %v4976 = vadd.f32 0.0, %v4975
        %4977 = vmatmul.f32.gmra.mxu0 %v4631
        %v4978 = vpop.f32.mrf.mxu0
        %v4979 = vadd.f32 0.0, %v4978
        %4980 = vmatmul.f32.gmra.mxu0 %v4637
        %v4981 = vpop.f32.mrf.mxu0
        %v4982 = vadd.f32 0.0, %v4981
        %4983 = vmatmul.f32.gmra.mxu0 %v4644
        %v4984 = vpop.f32.mrf.mxu0
        %v4985 = vadd.f32 0.0, %v4984
        %4986 = vmatmul.f32.gmra.mxu0 %v4652
        %v4987 = vpop.f32.mrf.mxu0
        %v4988 = vadd.f32 0.0, %v4987
        %4989 = vmatmul.f32.gmra.mxu0 %v4658
        %v4990 = vpop.f32.mrf.mxu0
        %v4991 = vadd.f32 0.0, %v4990
        %4992 = vmatmul.f32.gmra.mxu0 %v4665
        %v4993 = vpop.f32.mrf.mxu0
        %v4994 = vadd.f32 0.0, %v4993
        %4995 = vmatmul.f32.gmra.mxu0 %v4673
        %v4996 = vpop.f32.mrf.mxu0
        %v4997 = vadd.f32 0.0, %v4996
        %4998 = vmatmul.f32.gmra.mxu0 %v4679
        %v4999 = vpop.f32.mrf.mxu0
        %v5000 = vadd.f32 0.0, %v4999
        %5001 = vmatmul.f32.gmra.mxu0 %v4686
        %v5002 = vpop.f32.mrf.mxu0
        %v5003 = vadd.f32 0.0, %v5002
        %5004 = vmatmul.f32.gmra.mxu0 %v4694
        %v5005 = vpop.f32.mrf.mxu0
        %v5006 = vadd.f32 0.0, %v5005
        %5007 = vmatmul.f32.gmra.mxu0 %v4700
        %v5008 = vpop.f32.mrf.mxu0
        %v5009 = vadd.f32 0.0, %v5008
        %5010 = vmatmul.f32.gmra.mxu0 %v4707
        %v5011 = vpop.f32.mrf.mxu0
        %v5012 = vadd.f32 0.0, %v5011
        %5013 = vmatmul.f32.gmra.mxu0 %v4715
        %v5014 = vpop.f32.mrf.mxu0
        %v5015 = vadd.f32 0.0, %v5014
        %5016 = vmatmul.f32.gmra.mxu0 %v4721
        %v5017 = vpop.f32.mrf.mxu0
        %v5018 = vadd.f32 0.0, %v5017
        %5019 = vmatmul.f32.gmra.mxu0 %v4728
        %v5020 = vpop.f32.mrf.mxu0
        %v5021 = vadd.f32 0.0, %v5020
        %5022 = vmatmul.f32.gmra.mxu0 %v4736
        %v5023 = vpop.f32.mrf.mxu0
        %v5024 = vadd.f32 0.0, %v5023
        %5025 = vmatmul.f32.gmra.mxu0 %v4742
        %v5026 = vpop.f32.mrf.mxu0
        %v5027 = vadd.f32 0.0, %v5026
        %5028 = vmatmul.f32.gmra.mxu0 %v4749
        %v5029 = vpop.f32.mrf.mxu0
        %v5030 = vadd.f32 0.0, %v5029
        %5031 = vmatmul.f32.gmra.mxu0 %v4757
        %v5032 = vpop.f32.mrf.mxu0
        %v5033 = vadd.f32 0.0, %v5032
        %5034 = vmatmul.f32.gmra.mxu0 %v4763
        %v5035 = vpop.f32.mrf.mxu0
        %v5036 = vadd.f32 0.0, %v5035
        %5037 = vmatmul.f32.gmra.mxu0 %v4770
        %v5038 = vpop.f32.mrf.mxu0
        %v5039 = vadd.f32 0.0, %v5038
        %5040 = vmatmul.f32.gmra.mxu0 %v4778
        %v5041 = vpop.f32.mrf.mxu0
        %v5042 = vadd.f32 0.0, %v5041
        %5043 = vmatmul.f32.gmra.mxu0 %v4784
        %v5044 = vpop.f32.mrf.mxu0
        %v5045 = vadd.f32 0.0, %v5044
        %5046 = vdwg.mxu0
        %5047 = vmatpush.msra.mxu0 %v4924
        %5048 = vmatpush.msra.mxu0 %v4922
        %5049 = vmatpush.msra.mxu0 %v4920
        %5050 = vmatpush.msra.mxu0 %v4918
        %5051 = vmatpush.msra.mxu0 %v4916
        %5052 = vmatpush.msra.mxu0 %v4914
        %5053 = vmatpush.msra.mxu0 %v4912
        %5054 = vmatpush.msra.mxu0 %v4910
        %5055 = vmatpush.msra.mxu0 %v4908
        %5056 = vmatpush.msra.mxu0 %v4906
        %5057 = vmatpush.msra.mxu0 %v4904
        %5058 = vmatpush.msra.mxu0 %v4902
        %5059 = vmatpush.msra.mxu0 %v4900
        %5060 = vmatpush.msra.mxu0 %v4898
        %5061 = vmatpush.msra.mxu0 %v4896
        %5062 = vmatpush.msra.mxu0 %v4894
        %5063 = vmatmul.f32.gmra.mxu0 %v4626
        %v5064 = vpop.f32.mrf.mxu0
        %v5065 = vadd.f32 %v4976, %v5064
        %5066 = vmatmul.f32.gmra.mxu0 %v4633
        %v5067 = vpop.f32.mrf.mxu0
        %v5068 = vadd.f32 %v4979, %v5067
        %5069 = vmatmul.f32.gmra.mxu0 %v4639
        %v5070 = vpop.f32.mrf.mxu0
        %v5071 = vadd.f32 %v4982, %v5070
        %5072 = vmatmul.f32.gmra.mxu0 %v4647
        %v5073 = vpop.f32.mrf.mxu0
        %v5074 = vadd.f32 %v4985, %v5073
        %5075 = vmatmul.f32.gmra.mxu0 %v4654
        %v5076 = vpop.f32.mrf.mxu0
        %v5077 = vadd.f32 %v4988, %v5076
        %5078 = vmatmul.f32.gmra.mxu0 %v4660
        %v5079 = vpop.f32.mrf.mxu0
        %v5080 = vadd.f32 %v4991, %v5079
        %5081 = vmatmul.f32.gmra.mxu0 %v4668
        %v5082 = vpop.f32.mrf.mxu0
        %v5083 = vadd.f32 %v4994, %v5082
        %5084 = vmatmul.f32.gmra.mxu0 %v4675
        %v5085 = vpop.f32.mrf.mxu0
        %v5086 = vadd.f32 %v4997, %v5085
        %5087 = vmatmul.f32.gmra.mxu0 %v4681
        %v5088 = vpop.f32.mrf.mxu0
        %v5089 = vadd.f32 %v5000, %v5088
        %5090 = vmatmul.f32.gmra.mxu0 %v4689
        %v5091 = vpop.f32.mrf.mxu0
        %v5092 = vadd.f32 %v5003, %v5091
        %5093 = vmatmul.f32.gmra.mxu0 %v4696
        %v5094 = vpop.f32.mrf.mxu0
        %v5095 = vadd.f32 %v5006, %v5094
        %5096 = vmatmul.f32.gmra.mxu0 %v4702
        %v5097 = vpop.f32.mrf.mxu0
        %v5098 = vadd.f32 %v5009, %v5097
        %5099 = vmatmul.f32.gmra.mxu0 %v4710
        %v5100 = vpop.f32.mrf.mxu0
        %v5101 = vadd.f32 %v5012, %v5100
        %5102 = vmatmul.f32.gmra.mxu0 %v4717
        %v5103 = vpop.f32.mrf.mxu0
        %v5104 = vadd.f32 %v5015, %v5103
        %5105 = vmatmul.f32.gmra.mxu0 %v4723
        %v5106 = vpop.f32.mrf.mxu0
        %v5107 = vadd.f32 %v5018, %v5106
        %5108 = vmatmul.f32.gmra.mxu0 %v4731
        %v5109 = vpop.f32.mrf.mxu0
        %v5110 = vadd.f32 %v5021, %v5109
        %5111 = vmatmul.f32.gmra.mxu0 %v4738
        %v5112 = vpop.f32.mrf.mxu0
        %v5113 = vadd.f32 %v5024, %v5112
        %5114 = vmatmul.f32.gmra.mxu0 %v4744
        %v5115 = vpop.f32.mrf.mxu0
        %v5116 = vadd.f32 %v5027, %v5115
        %5117 = vmatmul.f32.gmra.mxu0 %v4752
        %v5118 = vpop.f32.mrf.mxu0
        %v5119 = vadd.f32 %v5030, %v5118
        %5120 = vmatmul.f32.gmra.mxu0 %v4759
        %v5121 = vpop.f32.mrf.mxu0
        %v5122 = vadd.f32 %v5033, %v5121
        %5123 = vmatmul.f32.gmra.mxu0 %v4765
        %v5124 = vpop.f32.mrf.mxu0
        %v5125 = vadd.f32 %v5036, %v5124
        %5126 = vmatmul.f32.gmra.mxu0 %v4773
        %v5127 = vpop.f32.mrf.mxu0
        %v5128 = vadd.f32 %v5039, %v5127
        %5129 = vmatmul.f32.gmra.mxu0 %v4780
        %v5130 = vpop.f32.mrf.mxu0
        %v5131 = vadd.f32 %v5042, %v5130
        %5132 = vmatmul.f32.gmra.mxu0 %v4786
        %v5133 = vpop.f32.mrf.mxu0
        %v5134 = vadd.f32 %v5045, %v5133
        %5135 = vdwg.mxu0
        %5136 = vmatpush.msra.mxu0 %v4956
        %5137 = vmatpush.msra.mxu0 %v4954
        %5138 = vmatpush.msra.mxu0 %v4952
        %5139 = vmatpush.msra.mxu0 %v4950
        %5140 = vmatpush.msra.mxu0 %v4948
        %5141 = vmatpush.msra.mxu0 %v4946
        %5142 = vmatpush.msra.mxu0 %v4944
        %5143 = vmatpush.msra.mxu0 %v4942
        %5144 = vmatpush.msra.mxu0 %v4940
        %5145 = vmatpush.msra.mxu0 %v4938
        %5146 = vmatpush.msra.mxu0 %v4936
        %5147 = vmatpush.msra.mxu0 %v4934
        %5148 = vmatpush.msra.mxu0 %v4932
        %5149 = vmatpush.msra.mxu0 %v4930
        %5150 = vmatpush.msra.mxu0 %v4928
        %5151 = vmatpush.msra.mxu0 %v4926
        %5152 = vmatmul.f32.gmra.mxu0 %v4629
        %v5153 = vpop.f32.mrf.mxu0
        %v5154 = vadd.f32 %v5065, %v5153
        %5155 = vmatmul.f32.gmra.mxu0 %v4635
        %v5156 = vpop.f32.mrf.mxu0
        %v5157 = vadd.f32 %v5068, %v5156
        %5158 = vmatmul.f32.gmra.mxu0 %v4641
        %v5159 = vpop.f32.mrf.mxu0
        %v5160 = vadd.f32 %v5071, %v5159
        %5161 = vmatmul.f32.gmra.mxu0 %v4650
        %v5162 = vpop.f32.mrf.mxu0
        %v5163 = vadd.f32 %v5074, %v5162
        %5164 = vmatmul.f32.gmra.mxu0 %v4656
        %v5165 = vpop.f32.mrf.mxu0
        %v5166 = vadd.f32 %v5077, %v5165
        %5167 = vmatmul.f32.gmra.mxu0 %v4662
        %v5168 = vpop.f32.mrf.mxu0
        %v5169 = vadd.f32 %v5080, %v5168
        %5170 = vmatmul.f32.gmra.mxu0 %v4671
        %v5171 = vpop.f32.mrf.mxu0
        %v5172 = vadd.f32 %v5083, %v5171
        %5173 = vmatmul.f32.gmra.mxu0 %v4677
        %v5174 = vpop.f32.mrf.mxu0
        %v5175 = vadd.f32 %v5086, %v5174
        %5176 = vmatmul.f32.gmra.mxu0 %v4683
        %v5177 = vpop.f32.mrf.mxu0
        %v5178 = vadd.f32 %v5089, %v5177
        %5179 = vmatmul.f32.gmra.mxu0 %v4692
        %v5180 = vpop.f32.mrf.mxu0
        %v5181 = vadd.f32 %v5092, %v5180
        %5182 = vmatmul.f32.gmra.mxu0 %v4698
        %v5183 = vpop.f32.mrf.mxu0
        %v5184 = vadd.f32 %v5095, %v5183
        %5185 = vmatmul.f32.gmra.mxu0 %v4704
        %v5186 = vpop.f32.mrf.mxu0
        %v5187 = vadd.f32 %v5098, %v5186
        %5188 = vmatmul.f32.gmra.mxu0 %v4713
        %v5189 = vpop.f32.mrf.mxu0
        %v5190 = vadd.f32 %v5101, %v5189
        %5191 = vmatmul.f32.gmra.mxu0 %v4719
        %v5192 = vpop.f32.mrf.mxu0
        %v5193 = vadd.f32 %v5104, %v5192
        %5194 = vmatmul.f32.gmra.mxu0 %v4725
        %v5195 = vpop.f32.mrf.mxu0
        %v5196 = vadd.f32 %v5107, %v5195
        %5197 = vmatmul.f32.gmra.mxu0 %v4734
        %v5198 = vpop.f32.mrf.mxu0
        %v5199 = vadd.f32 %v5110, %v5198
        %5200 = vmatmul.f32.gmra.mxu0 %v4740
        %v5201 = vpop.f32.mrf.mxu0
        %v5202 = vadd.f32 %v5113, %v5201
        %5203 = vmatmul.f32.gmra.mxu0 %v4746
        %v5204 = vpop.f32.mrf.mxu0
        %v5205 = vadd.f32 %v5116, %v5204
        %5206 = vmatmul.f32.gmra.mxu0 %v4755
        %v5207 = vpop.f32.mrf.mxu0
        %v5208 = vadd.f32 %v5119, %v5207
        %5209 = vmatmul.f32.gmra.mxu0 %v4761
        %v5210 = vpop.f32.mrf.mxu0
        %v5211 = vadd.f32 %v5122, %v5210
        %5212 = vmatmul.f32.gmra.mxu0 %v4767
        %v5213 = vpop.f32.mrf.mxu0
        %v5214 = vadd.f32 %v5125, %v5213
        %5215 = vmatmul.f32.gmra.mxu0 %v4776
        %v5216 = vpop.f32.mrf.mxu0
        %v5217 = vadd.f32 %v5128, %v5216
        %5218 = vmatmul.f32.gmra.mxu0 %v4782
        %v5219 = vpop.f32.mrf.mxu0
        %v5220 = vadd.f32 %v5131, %v5219
        %5221 = vmatmul.f32.gmra.mxu0 %v4788
        %v5222 = vpop.f32.mrf.mxu0
        %v5223 = vadd.f32 %v5134, %v5222
        %5224 = vdwg.mxu0
        %5225 = vmatpush.msra.mxu0 %v4893
        %5226 = vmatpush.msra.mxu0 %v4891
        %5227 = vmatpush.msra.mxu0 %v4889
        %5228 = vmatpush.msra.mxu0 %v4887
        %5229 = vmatpush.msra.mxu0 %v4885
        %5230 = vmatpush.msra.mxu0 %v4883
        %5231 = vmatpush.msra.mxu0 %v4881
        %5232 = vmatpush.msra.mxu0 %v4879
        %5233 = vmatpush.msra.mxu0 %v4877
        %5234 = vmatpush.msra.mxu0 %v4875
        %5235 = vmatpush.msra.mxu0 %v4873
        %5236 = vmatpush.msra.mxu0 %v4871
        %5237 = vmatpush.msra.mxu0 %v4869
        %5238 = vmatpush.msra.mxu0 %v4867
        %5239 = vmatpush.msra.mxu0 %v4865
        %5240 = vmatpush.msra.mxu0 %v4863
        %5241 = vmatmul.f32.gmra.mxu0 %v4623
        %v5242 = vpop.f32.mrf.mxu0
        %v5243 = vadd.f32 0.0, %v5242
        %5244 = vmatmul.f32.gmra.mxu0 %v4631
        %v5245 = vpop.f32.mrf.mxu0
        %v5246 = vadd.f32 0.0, %v5245
        %5247 = vmatmul.f32.gmra.mxu0 %v4637
        %v5248 = vpop.f32.mrf.mxu0
        %v5249 = vadd.f32 0.0, %v5248
        %5250 = vmatmul.f32.gmra.mxu0 %v4644
        %v5251 = vpop.f32.mrf.mxu0
        %v5252 = vadd.f32 0.0, %v5251
        %5253 = vmatmul.f32.gmra.mxu0 %v4652
        %v5254 = vpop.f32.mrf.mxu0
        %v5255 = vadd.f32 0.0, %v5254
        %5256 = vmatmul.f32.gmra.mxu0 %v4658
        %v5257 = vpop.f32.mrf.mxu0
        %v5258 = vadd.f32 0.0, %v5257
        %5259 = vmatmul.f32.gmra.mxu0 %v4665
        %v5260 = vpop.f32.mrf.mxu0
        %v5261 = vadd.f32 0.0, %v5260
        %5262 = vmatmul.f32.gmra.mxu0 %v4673
        %v5263 = vpop.f32.mrf.mxu0
        %v5264 = vadd.f32 0.0, %v5263
        %5265 = vmatmul.f32.gmra.mxu0 %v4679
        %v5266 = vpop.f32.mrf.mxu0
        %v5267 = vadd.f32 0.0, %v5266
        %5268 = vmatmul.f32.gmra.mxu0 %v4686
        %v5269 = vpop.f32.mrf.mxu0
        %v5270 = vadd.f32 0.0, %v5269
        %5271 = vmatmul.f32.gmra.mxu0 %v4694
        %v5272 = vpop.f32.mrf.mxu0
        %v5273 = vadd.f32 0.0, %v5272
        %5274 = vmatmul.f32.gmra.mxu0 %v4700
        %v5275 = vpop.f32.mrf.mxu0
        %v5276 = vadd.f32 0.0, %v5275
        %5277 = vmatmul.f32.gmra.mxu0 %v4707
        %v5278 = vpop.f32.mrf.mxu0
        %v5279 = vadd.f32 0.0, %v5278
        %5280 = vmatmul.f32.gmra.mxu0 %v4715
        %v5281 = vpop.f32.mrf.mxu0
        %v5282 = vadd.f32 0.0, %v5281
        %5283 = vmatmul.f32.gmra.mxu0 %v4721
        %v5284 = vpop.f32.mrf.mxu0
        %v5285 = vadd.f32 0.0, %v5284
        %5286 = vmatmul.f32.gmra.mxu0 %v4728
        %v5287 = vpop.f32.mrf.mxu0
        %v5288 = vadd.f32 0.0, %v5287
        %5289 = vmatmul.f32.gmra.mxu0 %v4736
        %v5290 = vpop.f32.mrf.mxu0
        %v5291 = vadd.f32 0.0, %v5290
        %5292 = vmatmul.f32.gmra.mxu0 %v4742
        %v5293 = vpop.f32.mrf.mxu0
        %v5294 = vadd.f32 0.0, %v5293
        %5295 = vmatmul.f32.gmra.mxu0 %v4749
        %v5296 = vpop.f32.mrf.mxu0
        %v5297 = vadd.f32 0.0, %v5296
        %5298 = vmatmul.f32.gmra.mxu0 %v4757
        %v5299 = vpop.f32.mrf.mxu0
        %v5300 = vadd.f32 0.0, %v5299
        %5301 = vmatmul.f32.gmra.mxu0 %v4763
        %v5302 = vpop.f32.mrf.mxu0
        %v5303 = vadd.f32 0.0, %v5302
        %5304 = vmatmul.f32.gmra.mxu0 %v4770
        %v5305 = vpop.f32.mrf.mxu0
        %v5306 = vadd.f32 0.0, %v5305
        %5307 = vmatmul.f32.gmra.mxu0 %v4778
        %v5308 = vpop.f32.mrf.mxu0
        %v5309 = vadd.f32 0.0, %v5308
        %5310 = vmatmul.f32.gmra.mxu0 %v4784
        %v5311 = vpop.f32.mrf.mxu0
        %v5312 = vadd.f32 0.0, %v5311
        %5313 = vdwg.mxu0
        %5314 = vmatpush.msra.mxu0 %v4925
        %5315 = vmatpush.msra.mxu0 %v4923
        %5316 = vmatpush.msra.mxu0 %v4921
        %5317 = vmatpush.msra.mxu0 %v4919
        %5318 = vmatpush.msra.mxu0 %v4917
        %5319 = vmatpush.msra.mxu0 %v4915
        %5320 = vmatpush.msra.mxu0 %v4913
        %5321 = vmatpush.msra.mxu0 %v4911
        %5322 = vmatpush.msra.mxu0 %v4909
        %5323 = vmatpush.msra.mxu0 %v4907
        %5324 = vmatpush.msra.mxu0 %v4905
        %5325 = vmatpush.msra.mxu0 %v4903
        %5326 = vmatpush.msra.mxu0 %v4901
        %5327 = vmatpush.msra.mxu0 %v4899
        %5328 = vmatpush.msra.mxu0 %v4897
        %5329 = vmatpush.msra.mxu0 %v4895
        %5330 = vmatmul.f32.gmra.mxu0 %v4626
        %v5331 = vpop.f32.mrf.mxu0
        %v5332 = vadd.f32 %v5243, %v5331
        %5333 = vmatmul.f32.gmra.mxu0 %v4633
        %v5334 = vpop.f32.mrf.mxu0
        %v5335 = vadd.f32 %v5246, %v5334
        %5336 = vmatmul.f32.gmra.mxu0 %v4639
        %v5337 = vpop.f32.mrf.mxu0
        %v5338 = vadd.f32 %v5249, %v5337
        %5339 = vmatmul.f32.gmra.mxu0 %v4647
        %v5340 = vpop.f32.mrf.mxu0
        %v5341 = vadd.f32 %v5252, %v5340
        %5342 = vmatmul.f32.gmra.mxu0 %v4654
        %v5343 = vpop.f32.mrf.mxu0
        %v5344 = vadd.f32 %v5255, %v5343
        %5345 = vmatmul.f32.gmra.mxu0 %v4660
        %v5346 = vpop.f32.mrf.mxu0
        %v5347 = vadd.f32 %v5258, %v5346
        %5348 = vmatmul.f32.gmra.mxu0 %v4668
        %v5349 = vpop.f32.mrf.mxu0
        %v5350 = vadd.f32 %v5261, %v5349
        %5351 = vmatmul.f32.gmra.mxu0 %v4675
        %v5352 = vpop.f32.mrf.mxu0
        %v5353 = vadd.f32 %v5264, %v5352
        %5354 = vmatmul.f32.gmra.mxu0 %v4681
        %v5355 = vpop.f32.mrf.mxu0
        %v5356 = vadd.f32 %v5267, %v5355
        %5357 = vmatmul.f32.gmra.mxu0 %v4689
        %v5358 = vpop.f32.mrf.mxu0
        %v5359 = vadd.f32 %v5270, %v5358
        %5360 = vmatmul.f32.gmra.mxu0 %v4696
        %v5361 = vpop.f32.mrf.mxu0
        %v5362 = vadd.f32 %v5273, %v5361
        %5363 = vmatmul.f32.gmra.mxu0 %v4702
        %v5364 = vpop.f32.mrf.mxu0
        %v5365 = vadd.f32 %v5276, %v5364
        %5366 = vmatmul.f32.gmra.mxu0 %v4710
        %v5367 = vpop.f32.mrf.mxu0
        %v5368 = vadd.f32 %v5279, %v5367
        %5369 = vmatmul.f32.gmra.mxu0 %v4717
        %v5370 = vpop.f32.mrf.mxu0
        %v5371 = vadd.f32 %v5282, %v5370
        %5372 = vmatmul.f32.gmra.mxu0 %v4723
        %v5373 = vpop.f32.mrf.mxu0
        %v5374 = vadd.f32 %v5285, %v5373
        %5375 = vmatmul.f32.gmra.mxu0 %v4731
        %v5376 = vpop.f32.mrf.mxu0
        %v5377 = vadd.f32 %v5288, %v5376
        %5378 = vmatmul.f32.gmra.mxu0 %v4738
        %v5379 = vpop.f32.mrf.mxu0
        %v5380 = vadd.f32 %v5291, %v5379
        %5381 = vmatmul.f32.gmra.mxu0 %v4744
        %v5382 = vpop.f32.mrf.mxu0
        %v5383 = vadd.f32 %v5294, %v5382
        %5384 = vmatmul.f32.gmra.mxu0 %v4752
        %v5385 = vpop.f32.mrf.mxu0
        %v5386 = vadd.f32 %v5297, %v5385
        %5387 = vmatmul.f32.gmra.mxu0 %v4759
        %v5388 = vpop.f32.mrf.mxu0
        %v5389 = vadd.f32 %v5300, %v5388
        %5390 = vmatmul.f32.gmra.mxu0 %v4765
        %v5391 = vpop.f32.mrf.mxu0
        %v5392 = vadd.f32 %v5303, %v5391
        %5393 = vmatmul.f32.gmra.mxu0 %v4773
        %v5394 = vpop.f32.mrf.mxu0
        %v5395 = vadd.f32 %v5306, %v5394
        %5396 = vmatmul.f32.gmra.mxu0 %v4780
        %v5397 = vpop.f32.mrf.mxu0
        %v5398 = vadd.f32 %v5309, %v5397
        %5399 = vmatmul.f32.gmra.mxu0 %v4786
        %v5400 = vpop.f32.mrf.mxu0
        %v5401 = vadd.f32 %v5312, %v5400
        %5402 = vdwg.mxu0
        %5403 = vmatpush.msra.mxu0 %v4957
        %5404 = vmatpush.msra.mxu0 %v4955
        %5405 = vmatpush.msra.mxu0 %v4953
        %5406 = vmatpush.msra.mxu0 %v4951
        %5407 = vmatpush.msra.mxu0 %v4949
        %5408 = vmatpush.msra.mxu0 %v4947
        %5409 = vmatpush.msra.mxu0 %v4945
        %5410 = vmatpush.msra.mxu0 %v4943
        %5411 = vmatpush.msra.mxu0 %v4941
        %5412 = vmatpush.msra.mxu0 %v4939
        %5413 = vmatpush.msra.mxu0 %v4937
        %5414 = vmatpush.msra.mxu0 %v4935
        %5415 = vmatpush.msra.mxu0 %v4933
        %5416 = vmatpush.msra.mxu0 %v4931
        %5417 = vmatpush.msra.mxu0 %v4929
        %5418 = vmatpush.msra.mxu0 %v4927
        %5419 = vmatmul.f32.gmra.mxu0 %v4629
        %v5420 = vpop.f32.mrf.mxu0
        %v5421 = vadd.f32 %v5332, %v5420
        %5422 = vmatmul.f32.gmra.mxu0 %v4635
        %v5423 = vpop.f32.mrf.mxu0
        %v5424 = vadd.f32 %v5335, %v5423
        %5425 = vmatmul.f32.gmra.mxu0 %v4641
        %v5426 = vpop.f32.mrf.mxu0
        %v5427 = vadd.f32 %v5338, %v5426
        %5428 = vmatmul.f32.gmra.mxu0 %v4650
        %v5429 = vpop.f32.mrf.mxu0
        %v5430 = vadd.f32 %v5341, %v5429
        %5431 = vmatmul.f32.gmra.mxu0 %v4656
        %v5432 = vpop.f32.mrf.mxu0
        %v5433 = vadd.f32 %v5344, %v5432
        %5434 = vmatmul.f32.gmra.mxu0 %v4662
        %v5435 = vpop.f32.mrf.mxu0
        %v5436 = vadd.f32 %v5347, %v5435
        %5437 = vmatmul.f32.gmra.mxu0 %v4671
        %v5438 = vpop.f32.mrf.mxu0
        %v5439 = vadd.f32 %v5350, %v5438
        %5440 = vmatmul.f32.gmra.mxu0 %v4677
        %v5441 = vpop.f32.mrf.mxu0
        %v5442 = vadd.f32 %v5353, %v5441
        %5443 = vmatmul.f32.gmra.mxu0 %v4683
        %v5444 = vpop.f32.mrf.mxu0
        %v5445 = vadd.f32 %v5356, %v5444
        %5446 = vmatmul.f32.gmra.mxu0 %v4692
        %v5447 = vpop.f32.mrf.mxu0
        %v5448 = vadd.f32 %v5359, %v5447
        %5449 = vmatmul.f32.gmra.mxu0 %v4698
        %v5450 = vpop.f32.mrf.mxu0
        %v5451 = vadd.f32 %v5362, %v5450
        %5452 = vmatmul.f32.gmra.mxu0 %v4704
        %v5453 = vpop.f32.mrf.mxu0
        %v5454 = vadd.f32 %v5365, %v5453
        %5455 = vmatmul.f32.gmra.mxu0 %v4713
        %v5456 = vpop.f32.mrf.mxu0
        %v5457 = vadd.f32 %v5368, %v5456
        %5458 = vmatmul.f32.gmra.mxu0 %v4719
        %v5459 = vpop.f32.mrf.mxu0
        %v5460 = vadd.f32 %v5371, %v5459
        %5461 = vmatmul.f32.gmra.mxu0 %v4725
        %v5462 = vpop.f32.mrf.mxu0
        %v5463 = vadd.f32 %v5374, %v5462
        %5464 = vmatmul.f32.gmra.mxu0 %v4734
        %v5465 = vpop.f32.mrf.mxu0
        %v5466 = vadd.f32 %v5377, %v5465
        %5467 = vmatmul.f32.gmra.mxu0 %v4740
        %v5468 = vpop.f32.mrf.mxu0
        %v5469 = vadd.f32 %v5380, %v5468
        %5470 = vmatmul.f32.gmra.mxu0 %v4746
        %v5471 = vpop.f32.mrf.mxu0
        %v5472 = vadd.f32 %v5383, %v5471
        %5473 = vmatmul.f32.gmra.mxu0 %v4755
        %v5474 = vpop.f32.mrf.mxu0
        %v5475 = vadd.f32 %v5386, %v5474
        %5476 = vmatmul.f32.gmra.mxu0 %v4761
        %v5477 = vpop.f32.mrf.mxu0
        %v5478 = vadd.f32 %v5389, %v5477
        %5479 = vmatmul.f32.gmra.mxu0 %v4767
        %v5480 = vpop.f32.mrf.mxu0
        %v5481 = vadd.f32 %v5392, %v5480
        %5482 = vmatmul.f32.gmra.mxu0 %v4776
        %v5483 = vpop.f32.mrf.mxu0
        %v5484 = vadd.f32 %v5395, %v5483
        %5485 = vmatmul.f32.gmra.mxu0 %v4782
        %v5486 = vpop.f32.mrf.mxu0
        %v5487 = vadd.f32 %v5398, %v5486
        %5488 = vmatmul.f32.gmra.mxu0 %v4788
        %v5489 = vpop.f32.mrf.mxu0
        %v5490 = vadd.f32 %v5401, %v5489
        %5491 = vdwg.mxu0
        %v5492 = vadd.f32 %v4186, %v5154
        %v5493 = vadd.f32 %v4453, %v5421
        %v5494 = vadd.f32 %v4189, %v5157
        %v5495 = vadd.f32 %v4456, %v5424
        %v5496 = vadd.f32 %v4192, %v5160
        %v5497 = vadd.f32 %v4459, %v5427
        %v5498 = vadd.f32 %v4195, %v5163
        %v5499 = vadd.f32 %v4462, %v5430
        %v5500 = vadd.f32 %v4198, %v5166
        %v5501 = vadd.f32 %v4465, %v5433
        %v5502 = vadd.f32 %v4201, %v5169
        %v5503 = vadd.f32 %v4468, %v5436
        %v5504 = vadd.f32 %v4204, %v5172
        %v5505 = vadd.f32 %v4471, %v5439
        %v5506 = vadd.f32 %v4207, %v5175
        %v5507 = vadd.f32 %v4474, %v5442
        %v5508 = vadd.f32 %v4210, %v5178
        %v5509 = vadd.f32 %v4477, %v5445
        %v5510 = vadd.f32 %v4213, %v5181
        %v5511 = vadd.f32 %v4480, %v5448
        %v5512 = vadd.f32 %v4216, %v5184
        %v5513 = vadd.f32 %v4483, %v5451
        %v5514 = vadd.f32 %v4219, %v5187
        %v5515 = vadd.f32 %v4486, %v5454
        %v5516 = vadd.f32 %v4222, %v5190
        %v5517 = vadd.f32 %v4489, %v5457
        %v5518 = vadd.f32 %v4225, %v5193
        %v5519 = vadd.f32 %v4492, %v5460
        %v5520 = vadd.f32 %v4228, %v5196
        %v5521 = vadd.f32 %v4495, %v5463
        %v5522 = vadd.f32 %v4231, %v5199
        %v5523 = vadd.f32 %v4498, %v5466
        %v5524 = vadd.f32 %v4234, %v5202
        %v5525 = vadd.f32 %v4501, %v5469
        %v5526 = vadd.f32 %v4237, %v5205
        %v5527 = vadd.f32 %v4504, %v5472
        %v5528 = vadd.f32 %v4240, %v5208
        %v5529 = vadd.f32 %v4507, %v5475
        %v5530 = vadd.f32 %v4243, %v5211
        %v5531 = vadd.f32 %v4510, %v5478
        %v5532 = vadd.f32 %v4246, %v5214
        %v5533 = vadd.f32 %v4513, %v5481
        %v5534 = vadd.f32 %v4249, %v5217
        %v5535 = vadd.f32 %v4516, %v5484
        %v5536 = vadd.f32 %v4252, %v5220
        %v5537 = vadd.f32 %v4519, %v5487
        %v5538 = vadd.f32 %v4255, %v5223
        %v5539 = vadd.f32 %v4522, %v5490
        %v5540 = vld [vmem:[%s5] sm:$0x3]
        %v5542 = vperm.slane %v5540, 0
        %v5543 = vperm.slane %v5540, 1
        %v5546 = vmul.f32 %v5492, %v5542
        %v5547 = vmul.f32 %v5493, %v5543
        %v5548 = vmul.f32 %v5494, %v5542
        %v5549 = vmul.f32 %v5495, %v5543
        %v5550 = vmul.f32 %v5496, %v5542
        %v5551 = vmul.f32 %v5497, %v5543
        %v5552 = vmul.f32 %v5498, %v5542
        %v5553 = vmul.f32 %v5499, %v5543
        %v5554 = vmul.f32 %v5500, %v5542
        %v5555 = vmul.f32 %v5501, %v5543
        %v5556 = vmul.f32 %v5502, %v5542
        %v5557 = vmul.f32 %v5503, %v5543
        %v5558 = vmul.f32 %v5504, %v5542
        %v5559 = vmul.f32 %v5505, %v5543
        %v5560 = vmul.f32 %v5506, %v5542
        %v5561 = vmul.f32 %v5507, %v5543
        %v5562 = vmul.f32 %v5508, %v5542
        %v5563 = vmul.f32 %v5509, %v5543
        %v5564 = vmul.f32 %v5510, %v5542
        %v5565 = vmul.f32 %v5511, %v5543
        %v5566 = vmul.f32 %v5512, %v5542
        %v5567 = vmul.f32 %v5513, %v5543
        %v5568 = vmul.f32 %v5514, %v5542
        %v5569 = vmul.f32 %v5515, %v5543
        %v5570 = vmul.f32 %v5516, %v5542
        %v5571 = vmul.f32 %v5517, %v5543
        %v5572 = vmul.f32 %v5518, %v5542
        %v5573 = vmul.f32 %v5519, %v5543
        %v5574 = vmul.f32 %v5520, %v5542
        %v5575 = vmul.f32 %v5521, %v5543
        %v5576 = vmul.f32 %v5522, %v5542
        %v5577 = vmul.f32 %v5523, %v5543
        %v5578 = vmul.f32 %v5524, %v5542
        %v5579 = vmul.f32 %v5525, %v5543
        %v5580 = vmul.f32 %v5526, %v5542
        %v5581 = vmul.f32 %v5527, %v5543
        %v5582 = vmul.f32 %v5528, %v5542
        %v5583 = vmul.f32 %v5529, %v5543
        %v5584 = vmul.f32 %v5530, %v5542
        %v5585 = vmul.f32 %v5531, %v5543
        %v5586 = vmul.f32 %v5532, %v5542
        %v5587 = vmul.f32 %v5533, %v5543
        %v5588 = vmul.f32 %v5534, %v5542
        %v5589 = vmul.f32 %v5535, %v5543
        %v5590 = vmul.f32 %v5536, %v5542
        %v5591 = vmul.f32 %v5537, %v5543
        %v5592 = vmul.f32 %v5538, %v5542
        %v5593 = vmul.f32 %v5539, %v5543
        %v5594 = vld [vmem:[%s6] sm:$0x3]
        %v5596 = vperm.slane %v5594, 0
        %v5597 = vperm.slane %v5594, 1
        %v5600 = vadd.f32 %v5546, %v5596
        %v5601 = vadd.f32 %v5547, %v5597
        %v5602 = vadd.f32 %v5548, %v5596
        %v5603 = vadd.f32 %v5549, %v5597
        %v5604 = vadd.f32 %v5550, %v5596
        %v5605 = vadd.f32 %v5551, %v5597
        %v5606 = vadd.f32 %v5552, %v5596
        %v5607 = vadd.f32 %v5553, %v5597
        %v5608 = vadd.f32 %v5554, %v5596
        %v5609 = vadd.f32 %v5555, %v5597
        %v5610 = vadd.f32 %v5556, %v5596
        %v5611 = vadd.f32 %v5557, %v5597
        %v5612 = vadd.f32 %v5558, %v5596
        %v5613 = vadd.f32 %v5559, %v5597
        %v5614 = vadd.f32 %v5560, %v5596
        %v5615 = vadd.f32 %v5561, %v5597
        %v5616 = vadd.f32 %v5562, %v5596
        %v5617 = vadd.f32 %v5563, %v5597
        %v5618 = vadd.f32 %v5564, %v5596
        %v5619 = vadd.f32 %v5565, %v5597
        %v5620 = vadd.f32 %v5566, %v5596
        %v5621 = vadd.f32 %v5567, %v5597
        %v5622 = vadd.f32 %v5568, %v5596
        %v5623 = vadd.f32 %v5569, %v5597
        %v5624 = vadd.f32 %v5570, %v5596
        %v5625 = vadd.f32 %v5571, %v5597
        %v5626 = vadd.f32 %v5572, %v5596
        %v5627 = vadd.f32 %v5573, %v5597
        %v5628 = vadd.f32 %v5574, %v5596
        %v5629 = vadd.f32 %v5575, %v5597
        %v5630 = vadd.f32 %v5576, %v5596
        %v5631 = vadd.f32 %v5577, %v5597
        %v5632 = vadd.f32 %v5578, %v5596
        %v5633 = vadd.f32 %v5579, %v5597
        %v5634 = vadd.f32 %v5580, %v5596
        %v5635 = vadd.f32 %v5581, %v5597
        %v5636 = vadd.f32 %v5582, %v5596
        %v5637 = vadd.f32 %v5583, %v5597
        %v5638 = vadd.f32 %v5584, %v5596
        %v5639 = vadd.f32 %v5585, %v5597
        %v5640 = vadd.f32 %v5586, %v5596
        %v5641 = vadd.f32 %v5587, %v5597
        %v5642 = vadd.f32 %v5588, %v5596
        %v5643 = vadd.f32 %v5589, %v5597
        %v5644 = vadd.f32 %v5590, %v5596
        %v5645 = vadd.f32 %v5591, %v5597
        %v5646 = vadd.f32 %v5592, %v5596
        %v5647 = vadd.f32 %v5593, %v5597
        %v5648 = vmax.f32 %v5600, 0.0
        %v5649 = vmax.f32 %v5601, 0.0
        %v5650 = vmax.f32 %v5602, 0.0
        %v5651 = vmax.f32 %v5603, 0.0
        %v5652 = vmax.f32 %v5604, 0.0
        %v5653 = vmax.f32 %v5605, 0.0
        %v5654 = vmax.f32 %v5606, 0.0
        %v5655 = vmax.f32 %v5607, 0.0
        %v5656 = vmax.f32 %v5608, 0.0
        %v5657 = vmax.f32 %v5609, 0.0
        %v5658 = vmax.f32 %v5610, 0.0
        %v5659 = vmax.f32 %v5611, 0.0
        %v5660 = vmax.f32 %v5612, 0.0
        %v5661 = vmax.f32 %v5613, 0.0
        %v5662 = vmax.f32 %v5614, 0.0
        %v5663 = vmax.f32 %v5615, 0.0
        %v5664 = vmax.f32 %v5616, 0.0
        %v5665 = vmax.f32 %v5617, 0.0
        %v5666 = vmax.f32 %v5618, 0.0
        %v5667 = vmax.f32 %v5619, 0.0
        %v5668 = vmax.f32 %v5620, 0.0
        %v5669 = vmax.f32 %v5621, 0.0
        %v5670 = vmax.f32 %v5622, 0.0
        %v5671 = vmax.f32 %v5623, 0.0
        %v5672 = vmax.f32 %v5624, 0.0
        %v5673 = vmax.f32 %v5625, 0.0
        %v5674 = vmax.f32 %v5626, 0.0
        %v5675 = vmax.f32 %v5627, 0.0
        %v5676 = vmax.f32 %v5628, 0.0
        %v5677 = vmax.f32 %v5629, 0.0
        %v5678 = vmax.f32 %v5630, 0.0
        %v5679 = vmax.f32 %v5631, 0.0
        %v5680 = vmax.f32 %v5632, 0.0
        %v5681 = vmax.f32 %v5633, 0.0
        %v5682 = vmax.f32 %v5634, 0.0
        %v5683 = vmax.f32 %v5635, 0.0
        %v5684 = vmax.f32 %v5636, 0.0
        %v5685 = vmax.f32 %v5637, 0.0
        %v5686 = vmax.f32 %v5638, 0.0
        %v5687 = vmax.f32 %v5639, 0.0
        %v5688 = vmax.f32 %v5640, 0.0
        %v5689 = vmax.f32 %v5641, 0.0
        %v5690 = vmax.f32 %v5642, 0.0
        %v5691 = vmax.f32 %v5643, 0.0
        %v5692 = vmax.f32 %v5644, 0.0
        %v5693 = vmax.f32 %v5645, 0.0
        %v5694 = vmax.f32 %v5646, 0.0
        %v5695 = vmax.f32 %v5647, 0.0
        %5696 = vst [vmem:[#allocation3] sm:$0xff] %v5648
        %vm5697 = vcmask 392192
        %5698 = vst.msk [vmem:[#allocation3 + $0x8] sm:$0xff] %vm5697, %v5649
        %5699 = vst [vmem:[#allocation3 + $0x10] sm:$0xff] %v5650
        %5700 = vst.msk [vmem:[#allocation3 + $0x18] sm:$0xff] %vm5697, %v5651
        %5701 = vst [vmem:[#allocation3 + $0x20] sm:$0xff] %v5652
        %5702 = vst.msk [vmem:[#allocation3 + $0x28] sm:$0xff] %vm5697, %v5653
        %5703 = vst [vmem:[#allocation3 + $0x30] sm:$0xff] %v5654
        %5704 = vst.msk [vmem:[#allocation3 + $0x38] sm:$0xff] %vm5697, %v5655
        %5705 = vst [vmem:[#allocation3 + $0x40] sm:$0xff] %v5656
        %5706 = vst.msk [vmem:[#allocation3 + $0x48] sm:$0xff] %vm5697, %v5657
        %5707 = vst [vmem:[#allocation3 + $0x50] sm:$0xff] %v5658
        %5708 = vst.msk [vmem:[#allocation3 + $0x58] sm:$0xff] %vm5697, %v5659
        %5709 = vst [vmem:[#allocation3 + $0x60] sm:$0xff] %v5660
        %5710 = vst.msk [vmem:[#allocation3 + $0x68] sm:$0xff] %vm5697, %v5661
        %5711 = vst [vmem:[#allocation3 + $0x70] sm:$0xff] %v5662
        %5712 = vst.msk [vmem:[#allocation3 + $0x78] sm:$0xff] %vm5697, %v5663
        %5713 = vst [vmem:[#allocation3 + $0x80] sm:$0xff] %v5664
        %5714 = vst.msk [vmem:[#allocation3 + $0x88] sm:$0xff] %vm5697, %v5665
        %5715 = vst [vmem:[#allocation3 + $0x90] sm:$0xff] %v5666
        %5716 = vst.msk [vmem:[#allocation3 + $0x98] sm:$0xff] %vm5697, %v5667
        %5717 = vst [vmem:[#allocation3 + $0xa0] sm:$0xff] %v5668
        %5718 = vst.msk [vmem:[#allocation3 + $0xa8] sm:$0xff] %vm5697, %v5669
        %5719 = vst [vmem:[#allocation3 + $0xb0] sm:$0xff] %v5670
        %5720 = vst.msk [vmem:[#allocation3 + $0xb8] sm:$0xff] %vm5697, %v5671
        %5721 = vst [vmem:[#allocation3 + $0xc0] sm:$0xff] %v5672
        %5722 = vst.msk [vmem:[#allocation3 + $0xc8] sm:$0xff] %vm5697, %v5673
        %5723 = vst [vmem:[#allocation3 + $0xd0] sm:$0xff] %v5674
        %5724 = vst.msk [vmem:[#allocation3 + $0xd8] sm:$0xff] %vm5697, %v5675
        %5725 = vst [vmem:[#allocation3 + $0xe0] sm:$0xff] %v5676
        %5726 = vst.msk [vmem:[#allocation3 + $0xe8] sm:$0xff] %vm5697, %v5677
        %5727 = vst [vmem:[#allocation3 + $0xf0] sm:$0xff] %v5678
        %5728 = vst.msk [vmem:[#allocation3 + $0xf8] sm:$0xff] %vm5697, %v5679
        %5729 = vst [vmem:[#allocation3 + $0x100] sm:$0xff] %v5680
        %5730 = vst.msk [vmem:[#allocation3 + $0x108] sm:$0xff] %vm5697, %v5681
        %5731 = vst [vmem:[#allocation3 + $0x110] sm:$0xff] %v5682
        %5732 = vst.msk [vmem:[#allocation3 + $0x118] sm:$0xff] %vm5697, %v5683
        %5733 = vst [vmem:[#allocation3 + $0x120] sm:$0xff] %v5684
        %5734 = vst.msk [vmem:[#allocation3 + $0x128] sm:$0xff] %vm5697, %v5685
        %5735 = vst [vmem:[#allocation3 + $0x130] sm:$0xff] %v5686
        %5736 = vst.msk [vmem:[#allocation3 + $0x138] sm:$0xff] %vm5697, %v5687
        %5737 = vst [vmem:[#allocation3 + $0x140] sm:$0xff] %v5688
        %5738 = vst.msk [vmem:[#allocation3 + $0x148] sm:$0xff] %vm5697, %v5689
        %5739 = vst [vmem:[#allocation3 + $0x150] sm:$0xff] %v5690
        %5740 = vst.msk [vmem:[#allocation3 + $0x158] sm:$0xff] %vm5697, %v5691
        %5741 = vst [vmem:[#allocation3 + $0x160] sm:$0xff] %v5692
        %5742 = vst.msk [vmem:[#allocation3 + $0x168] sm:$0xff] %vm5697, %v5693
        %5743 = vst [vmem:[#allocation3 + $0x170] sm:$0xff] %v5694
        %5744 = vst.msk [vmem:[#allocation3 + $0x178] sm:$0xff] %vm5697, %v5695
        %v5745 = vld [vmem:[#allocation3] ss:$8 sm:$0x3]
        %s5746 = scalar_lea.vmem [#allocation3], 48
        %v5747 = vld [vmem:[%s5746] ss:$8 sm:$0x3]
        %s5748 = scalar_lea.vmem [#allocation3], 96
        %v5749 = vld [vmem:[%s5748] ss:$8 sm:$0x3]
        %s5750 = scalar_lea.vmem [#allocation3], 144
        %v5751 = vld [vmem:[%s5750] ss:$8 sm:$0x3]
        %s5752 = scalar_lea.vmem [#allocation3], 192
        %v5753 = vld [vmem:[%s5752] ss:$8 sm:$0x3]
        %s5754 = scalar_lea.vmem [#allocation3], 240
        %v5755 = vld [vmem:[%s5754] ss:$8 sm:$0x3]
        %s5756 = scalar_lea.vmem [#allocation3], 288
        %v5757 = vld [vmem:[%s5756] ss:$8 sm:$0x3]
        %s5758 = scalar_lea.vmem [#allocation3], 336
        %v5759 = vld [vmem:[%s5758] ss:$8 sm:$0x3]
        %5768 = vst [vmem:[#allocation1] ss:$9 sm:$0xff] %v5745
        %s5769 = scalar_lea.vmem [#allocation1], 1
        %5770 = vst [vmem:[%s5769] ss:$9 sm:$0xff] %v5747
        %s5771 = scalar_lea.vmem [#allocation1], 2
        %5772 = vst [vmem:[%s5771] ss:$9 sm:$0xff] %v5749
        %s5773 = scalar_lea.vmem [#allocation1], 3
        %5774 = vst [vmem:[%s5773] ss:$9 sm:$0xff] %v5751
        %s5775 = scalar_lea.vmem [#allocation1], 4
        %5776 = vst [vmem:[%s5775] ss:$9 sm:$0xff] %v5753
        %s5777 = scalar_lea.vmem [#allocation1], 5
        %5778 = vst [vmem:[%s5777] ss:$9 sm:$0xff] %v5755
        %s5779 = scalar_lea.vmem [#allocation1], 6
        %5780 = vst [vmem:[%s5779] ss:$9 sm:$0xff] %v5757
        %s5781 = scalar_lea.vmem [#allocation1], 7
        %5782 = vst [vmem:[%s5781] ss:$9 sm:$0xff] %v5759
        %v5783 = vld [vmem:[#allocation1] sm:$0xff]
        %v5784 = vld [vmem:[#allocation1 + $0x9] sm:$0xff]
        %5787 = vst [vmem:[#allocation4] sm:$0xff] %v5783
        %5788 = vst.msk [vmem:[#allocation4 + $0x8] sm:$0xff] %vm5697, %v5784
        %s5789 = scalar_lea.vmem [#allocation3], 1
        %v5790 = vld [vmem:[%s5789] ss:$8 sm:$0x3]
        %s5791 = scalar_lea.vmem [#allocation3], 49
        %v5792 = vld [vmem:[%s5791] ss:$8 sm:$0x3]
        %s5793 = scalar_lea.vmem [#allocation3], 97
        %v5794 = vld [vmem:[%s5793] ss:$8 sm:$0x3]
        %s5795 = scalar_lea.vmem [#allocation3], 145
        %v5796 = vld [vmem:[%s5795] ss:$8 sm:$0x3]
        %s5797 = scalar_lea.vmem [#allocation3], 193
        %v5798 = vld [vmem:[%s5797] ss:$8 sm:$0x3]
        %s5799 = scalar_lea.vmem [#allocation3], 241
        %v5800 = vld [vmem:[%s5799] ss:$8 sm:$0x3]
        %s5801 = scalar_lea.vmem [#allocation3], 289
        %v5802 = vld [vmem:[%s5801] ss:$8 sm:$0x3]
        %s5803 = scalar_lea.vmem [#allocation3], 337
        %v5804 = vld [vmem:[%s5803] ss:$8 sm:$0x3]
        %5813 = vst [vmem:[#allocation1] ss:$9 sm:$0xff] %v5790
        %s5814 = scalar_lea.vmem [#allocation1], 1
        %5815 = vst [vmem:[%s5814] ss:$9 sm:$0xff] %v5792
        %s5816 = scalar_lea.vmem [#allocation1], 2
        %5817 = vst [vmem:[%s5816] ss:$9 sm:$0xff] %v5794
        %s5818 = scalar_lea.vmem [#allocation1], 3
        %5819 = vst [vmem:[%s5818] ss:$9 sm:$0xff] %v5796
        %s5820 = scalar_lea.vmem [#allocation1], 4
        %5821 = vst [vmem:[%s5820] ss:$9 sm:$0xff] %v5798
        %s5822 = scalar_lea.vmem [#allocation1], 5
        %5823 = vst [vmem:[%s5822] ss:$9 sm:$0xff] %v5800
        %s5824 = scalar_lea.vmem [#allocation1], 6
        %5825 = vst [vmem:[%s5824] ss:$9 sm:$0xff] %v5802
        %s5826 = scalar_lea.vmem [#allocation1], 7
        %5827 = vst [vmem:[%s5826] ss:$9 sm:$0xff] %v5804
        %v5828 = vld [vmem:[#allocation1] sm:$0xff]
        %v5829 = vld [vmem:[#allocation1 + $0x9] sm:$0xff]
        %5830 = vrot.lane.b32.xlu0 %v5828, 48
        %v5831 = vpop.permute.xlu0 %5830
        %5832 = vrot.lane.b32.xlu0 %v5829, 48
        %v5833 = vpop.permute.xlu0 %5832
        %v5834 = vsel %vm5697, %v5831, %v5833
        %vm5837 = vcmask 1047936
        %5838 = vst.msk [vmem:[#allocation4 + $0x8] sm:$0xff] %vm5837, %v5831
        %vm5839 = vcmask 785408
        %5840 = vst.msk [vmem:[#allocation4 + $0x10] sm:$0xff] %vm5839, %v5834
        %s5841 = scalar_lea.vmem [#allocation3], 2
        %v5842 = vld [vmem:[%s5841] ss:$8 sm:$0x3]
        %s5843 = scalar_lea.vmem [#allocation3], 50
        %v5844 = vld [vmem:[%s5843] ss:$8 sm:$0x3]
        %s5845 = scalar_lea.vmem [#allocation3], 98
        %v5846 = vld [vmem:[%s5845] ss:$8 sm:$0x3]
        %s5847 = scalar_lea.vmem [#allocation3], 146
        %v5848 = vld [vmem:[%s5847] ss:$8 sm:$0x3]
        %s5849 = scalar_lea.vmem [#allocation3], 194
        %v5850 = vld [vmem:[%s5849] ss:$8 sm:$0x3]
        %s5851 = scalar_lea.vmem [#allocation3], 242
        %v5852 = vld [vmem:[%s5851] ss:$8 sm:$0x3]
        %s5853 = scalar_lea.vmem [#allocation3], 290
        %v5854 = vld [vmem:[%s5853] ss:$8 sm:$0x3]
        %s5855 = scalar_lea.vmem [#allocation3], 338
        %v5856 = vld [vmem:[%s5855] ss:$8 sm:$0x3]
        %5865 = vst [vmem:[#allocation1] ss:$9 sm:$0xff] %v5842
        %s5866 = scalar_lea.vmem [#allocation1], 1
        %5867 = vst [vmem:[%s5866] ss:$9 sm:$0xff] %v5844
        %s5868 = scalar_lea.vmem [#allocation1], 2
        %5869 = vst [vmem:[%s5868] ss:$9 sm:$0xff] %v5846
        %s5870 = scalar_lea.vmem [#allocation1], 3
        %5871 = vst [vmem:[%s5870] ss:$9 sm:$0xff] %v5848
        %s5872 = scalar_lea.vmem [#allocation1], 4
        %5873 = vst [vmem:[%s5872] ss:$9 sm:$0xff] %v5850
        %s5874 = scalar_lea.vmem [#allocation1], 5
        %5875 = vst [vmem:[%s5874] ss:$9 sm:$0xff] %v5852
        %s5876 = scalar_lea.vmem [#allocation1], 6
        %5877 = vst [vmem:[%s5876] ss:$9 sm:$0xff] %v5854
        %s5878 = scalar_lea.vmem [#allocation1], 7
        %5879 = vst [vmem:[%s5878] ss:$9 sm:$0xff] %v5856
        %v5880 = vld [vmem:[#allocation1] sm:$0xff]
        %v5881 = vld [vmem:[#allocation1 + $0x9] sm:$0xff]
        %5882 = vrot.lane.b32.xlu0 %v5880, 96
        %v5883 = vpop.permute.xlu0 %5882
        %5884 = vrot.lane.b32.xlu0 %v5881, 96
        %v5885 = vpop.permute.xlu0 %5884
        %v5886 = vsel %vm5839, %v5883, %v5885
        %vm5890 = vcmask 1048320
        %5891 = vst.msk [vmem:[#allocation4 + $0x10] sm:$0xff] %vm5890, %v5883
        %5892 = vst [vmem:[#allocation4 + $0x18] sm:$0xff] %v5886
        %vm5893 = vcmask 130048
        %5894 = vst.msk [vmem:[#allocation4 + $0x20] sm:$0xff] %vm5893, %v5885
        %s5895 = scalar_lea.vmem [#allocation3], 3
        %v5896 = vld [vmem:[%s5895] ss:$8 sm:$0x3]
        %s5897 = scalar_lea.vmem [#allocation3], 51
        %v5898 = vld [vmem:[%s5897] ss:$8 sm:$0x3]
        %s5899 = scalar_lea.vmem [#allocation3], 99
        %v5900 = vld [vmem:[%s5899] ss:$8 sm:$0x3]
        %s5901 = scalar_lea.vmem [#allocation3], 147
        %v5902 = vld [vmem:[%s5901] ss:$8 sm:$0x3]
        %s5903 = scalar_lea.vmem [#allocation3], 195
        %v5904 = vld [vmem:[%s5903] ss:$8 sm:$0x3]
        %s5905 = scalar_lea.vmem [#allocation3], 243
        %v5906 = vld [vmem:[%s5905] ss:$8 sm:$0x3]
        %s5907 = scalar_lea.vmem [#allocation3], 291
        %v5908 = vld [vmem:[%s5907] ss:$8 sm:$0x3]
        %s5909 = scalar_lea.vmem [#allocation3], 339
        %v5910 = vld [vmem:[%s5909] ss:$8 sm:$0x3]
        %5919 = vst [vmem:[#allocation1] ss:$9 sm:$0xff] %v5896
        %s5920 = scalar_lea.vmem [#allocation1], 1
        %5921 = vst [vmem:[%s5920] ss:$9 sm:$0xff] %v5898
        %s5922 = scalar_lea.vmem [#allocation1], 2
        %5923 = vst [vmem:[%s5922] ss:$9 sm:$0xff] %v5900
        %s5924 = scalar_lea.vmem [#allocation1], 3
        %5925 = vst [vmem:[%s5924] ss:$9 sm:$0xff] %v5902
        %s5926 = scalar_lea.vmem [#allocation1], 4
        %5927 = vst [vmem:[%s5926] ss:$9 sm:$0xff] %v5904
        %s5928 = scalar_lea.vmem [#allocation1], 5
        %5929 = vst [vmem:[%s5928] ss:$9 sm:$0xff] %v5906
        %s5930 = scalar_lea.vmem [#allocation1], 6
        %5931 = vst [vmem:[%s5930] ss:$9 sm:$0xff] %v5908
        %s5932 = scalar_lea.vmem [#allocation1], 7
        %5933 = vst [vmem:[%s5932] ss:$9 sm:$0xff] %v5910
        %v5934 = vld [vmem:[#allocation1] sm:$0xff]
        %v5935 = vld [vmem:[#allocation1 + $0x9] sm:$0xff]
        %5936 = vrot.lane.b32.xlu0 %v5934, 16
        %v5937 = vpop.permute.xlu0 %5936
        %5938 = vrot.lane.b32.xlu0 %v5935, 16
        %v5939 = vpop.permute.xlu0 %5938
        %v5940 = vsel %vm5893, %v5937, %v5939
        %vm5943 = vcmask 1047680
        %5944 = vst.msk [vmem:[#allocation4 + $0x20] sm:$0xff] %vm5943, %v5937
        %vm5945 = vcmask 523264
        %5946 = vst.msk [vmem:[#allocation4 + $0x28] sm:$0xff] %vm5945, %v5940
        %s5947 = scalar_lea.vmem [#allocation3], 4
        %v5948 = vld [vmem:[%s5947] ss:$8 sm:$0x3]
        %s5949 = scalar_lea.vmem [#allocation3], 52
        %v5950 = vld [vmem:[%s5949] ss:$8 sm:$0x3]
        %s5951 = scalar_lea.vmem [#allocation3], 100
        %v5952 = vld [vmem:[%s5951] ss:$8 sm:$0x3]
        %s5953 = scalar_lea.vmem [#allocation3], 148
        %v5954 = vld [vmem:[%s5953] ss:$8 sm:$0x3]
        %s5955 = scalar_lea.vmem [#allocation3], 196
        %v5956 = vld [vmem:[%s5955] ss:$8 sm:$0x3]
        %s5957 = scalar_lea.vmem [#allocation3], 244
        %v5958 = vld [vmem:[%s5957] ss:$8 sm:$0x3]
        %s5959 = scalar_lea.vmem [#allocation3], 292
        %v5960 = vld [vmem:[%s5959] ss:$8 sm:$0x3]
        %s5961 = scalar_lea.vmem [#allocation3], 340
        %v5962 = vld [vmem:[%s5961] ss:$8 sm:$0x3]
        %5971 = vst [vmem:[#allocation1] ss:$9 sm:$0xff] %v5948
        %s5972 = scalar_lea.vmem [#allocation1], 1
        %5973 = vst [vmem:[%s5972] ss:$9 sm:$0xff] %v5950
        %s5974 = scalar_lea.vmem [#allocation1], 2
        %5975 = vst [vmem:[%s5974] ss:$9 sm:$0xff] %v5952
        %s5976 = scalar_lea.vmem [#allocation1], 3
        %5977 = vst [vmem:[%s5976] ss:$9 sm:$0xff] %v5954
        %s5978 = scalar_lea.vmem [#allocation1], 4
        %5979 = vst [vmem:[%s5978] ss:$9 sm:$0xff] %v5956
        %s5980 = scalar_lea.vmem [#allocation1], 5
        %5981 = vst [vmem:[%s5980] ss:$9 sm:$0xff] %v5958
        %s5982 = scalar_lea.vmem [#allocation1], 6
        %5983 = vst [vmem:[%s5982] ss:$9 sm:$0xff] %v5960
        %s5984 = scalar_lea.vmem [#allocation1], 7
        %5985 = vst [vmem:[%s5984] ss:$9 sm:$0xff] %v5962
        %v5986 = vld [vmem:[#allocation1] sm:$0xff]
        %v5987 = vld [vmem:[#allocation1 + $0x9] sm:$0xff]
        %5988 = vrot.lane.b32.xlu0 %v5986, 64
        %v5989 = vpop.permute.xlu0 %5988
        %5990 = vrot.lane.b32.xlu0 %v5987, 64
        %v5991 = vpop.permute.xlu0 %5990
        %v5992 = vsel %vm5945, %v5989, %v5991
        %vm5995 = vcmask 1048064
        %5996 = vst.msk [vmem:[#allocation4 + $0x28] sm:$0xff] %vm5995, %v5989
        %vm5997 = vcmask 916480
        %5998 = vst.msk [vmem:[#allocation4 + $0x30] sm:$0xff] %vm5997, %v5992
        %s5999 = scalar_lea.vmem [#allocation3], 5
        %v6000 = vld [vmem:[%s5999] ss:$8 sm:$0x3]
        %s6001 = scalar_lea.vmem [#allocation3], 53
        %v6002 = vld [vmem:[%s6001] ss:$8 sm:$0x3]
        %s6003 = scalar_lea.vmem [#allocation3], 101
        %v6004 = vld [vmem:[%s6003] ss:$8 sm:$0x3]
        %s6005 = scalar_lea.vmem [#allocation3], 149
        %v6006 = vld [vmem:[%s6005] ss:$8 sm:$0x3]
        %s6007 = scalar_lea.vmem [#allocation3], 197
        %v6008 = vld [vmem:[%s6007] ss:$8 sm:$0x3]
        %s6009 = scalar_lea.vmem [#allocation3], 245
        %v6010 = vld [vmem:[%s6009] ss:$8 sm:$0x3]
        %s6011 = scalar_lea.vmem [#allocation3], 293
        %v6012 = vld [vmem:[%s6011] ss:$8 sm:$0x3]
        %s6013 = scalar_lea.vmem [#allocation3], 341
        %v6014 = vld [vmem:[%s6013] ss:$8 sm:$0x3]
        %6023 = vst [vmem:[#allocation1] ss:$9 sm:$0xff] %v6000
        %s6024 = scalar_lea.vmem [#allocation1], 1
        %6025 = vst [vmem:[%s6024] ss:$9 sm:$0xff] %v6002
        %s6026 = scalar_lea.vmem [#allocation1], 2
        %6027 = vst [vmem:[%s6026] ss:$9 sm:$0xff] %v6004
        %s6028 = scalar_lea.vmem [#allocation1], 3
        %6029 = vst [vmem:[%s6028] ss:$9 sm:$0xff] %v6006
        %s6030 = scalar_lea.vmem [#allocation1], 4
        %6031 = vst [vmem:[%s6030] ss:$9 sm:$0xff] %v6008
        %s6032 = scalar_lea.vmem [#allocation1], 5
        %6033 = vst [vmem:[%s6032] ss:$9 sm:$0xff] %v6010
        %s6034 = scalar_lea.vmem [#allocation1], 6
        %6035 = vst [vmem:[%s6034] ss:$9 sm:$0xff] %v6012
        %s6036 = scalar_lea.vmem [#allocation1], 7
        %6037 = vst [vmem:[%s6036] ss:$9 sm:$0xff] %v6014
        %v6038 = vld [vmem:[#allocation1] sm:$0xff]
        %v6039 = vld [vmem:[#allocation1 + $0x9] sm:$0xff]
        %6040 = vrot.lane.b32.xlu0 %v6038, 112
        %v6041 = vpop.permute.xlu0 %6040
        %6042 = vrot.lane.b32.xlu0 %v6039, 112
        %v6043 = vpop.permute.xlu0 %6042
        %v6044 = vsel %vm5997, %v6041, %v6043
        %vm6048 = vcmask 1048448
        %6049 = vst.msk [vmem:[#allocation4 + $0x30] sm:$0xff] %vm6048, %v6041
        %6050 = vst [vmem:[#allocation4 + $0x38] sm:$0xff] %v6044
        %vm6051 = vcmask 261120
        %6052 = vst.msk [vmem:[#allocation4 + $0x40] sm:$0xff] %vm6051, %v6043
        %s6053 = scalar_lea.vmem [#allocation3], 6
        %v6054 = vld [vmem:[%s6053] ss:$8 sm:$0x3]
        %s6055 = scalar_lea.vmem [#allocation3], 54
        %v6056 = vld [vmem:[%s6055] ss:$8 sm:$0x3]
        %s6057 = scalar_lea.vmem [#allocation3], 102
        %v6058 = vld [vmem:[%s6057] ss:$8 sm:$0x3]
        %s6059 = scalar_lea.vmem [#allocation3], 150
        %v6060 = vld [vmem:[%s6059] ss:$8 sm:$0x3]
        %s6061 = scalar_lea.vmem [#allocation3], 198
        %v6062 = vld [vmem:[%s6061] ss:$8 sm:$0x3]
        %s6063 = scalar_lea.vmem [#allocation3], 246
        %v6064 = vld [vmem:[%s6063] ss:$8 sm:$0x3]
        %s6065 = scalar_lea.vmem [#allocation3], 294
        %v6066 = vld [vmem:[%s6065] ss:$8 sm:$0x3]
        %s6067 = scalar_lea.vmem [#allocation3], 342
        %v6068 = vld [vmem:[%s6067] ss:$8 sm:$0x3]
        %6077 = vst [vmem:[#allocation1] ss:$9 sm:$0xff] %v6054
        %s6078 = scalar_lea.vmem [#allocation1], 1
        %6079 = vst [vmem:[%s6078] ss:$9 sm:$0xff] %v6056
        %s6080 = scalar_lea.vmem [#allocation1], 2
        %6081 = vst [vmem:[%s6080] ss:$9 sm:$0xff] %v6058
        %s6082 = scalar_lea.vmem [#allocation1], 3
        %6083 = vst [vmem:[%s6082] ss:$9 sm:$0xff] %v6060
        %s6084 = scalar_lea.vmem [#allocation1], 4
        %6085 = vst [vmem:[%s6084] ss:$9 sm:$0xff] %v6062
        %s6086 = scalar_lea.vmem [#allocation1], 5
        %6087 = vst [vmem:[%s6086] ss:$9 sm:$0xff] %v6064
        %s6088 = scalar_lea.vmem [#allocation1], 6
        %6089 = vst [vmem:[%s6088] ss:$9 sm:$0xff] %v6066
        %s6090 = scalar_lea.vmem [#allocation1], 7
        %6091 = vst [vmem:[%s6090] ss:$9 sm:$0xff] %v6068
        %v6092 = vld [vmem:[#allocation1] sm:$0xff]
        %v6093 = vld [vmem:[#allocation1 + $0x9] sm:$0xff]
        %6094 = vrot.lane.b32.xlu0 %v6092, 32
        %v6095 = vpop.permute.xlu0 %6094
        %6096 = vrot.lane.b32.xlu0 %v6093, 32
        %v6097 = vpop.permute.xlu0 %6096
        %v6098 = vsel %vm6051, %v6095, %v6097
        %vm6101 = vcmask 1047808
        %6102 = vst.msk [vmem:[#allocation4 + $0x40] sm:$0xff] %vm6101, %v6095
        %vm6103 = vcmask 654336
        %6104 = vst.msk [vmem:[#allocation4 + $0x48] sm:$0xff] %vm6103, %v6098
        %s6105 = scalar_lea.vmem [#allocation3], 7
        %v6106 = vld [vmem:[%s6105] ss:$8 sm:$0x3]
        %s6107 = scalar_lea.vmem [#allocation3], 55
        %v6108 = vld [vmem:[%s6107] ss:$8 sm:$0x3]
        %s6109 = scalar_lea.vmem [#allocation3], 103
        %v6110 = vld [vmem:[%s6109] ss:$8 sm:$0x3]
        %s6111 = scalar_lea.vmem [#allocation3], 151
        %v6112 = vld [vmem:[%s6111] ss:$8 sm:$0x3]
        %s6113 = scalar_lea.vmem [#allocation3], 199
        %v6114 = vld [vmem:[%s6113] ss:$8 sm:$0x3]
        %s6115 = scalar_lea.vmem [#allocation3], 247
        %v6116 = vld [vmem:[%s6115] ss:$8 sm:$0x3]
        %s6117 = scalar_lea.vmem [#allocation3], 295
        %v6118 = vld [vmem:[%s6117] ss:$8 sm:$0x3]
        %s6119 = scalar_lea.vmem [#allocation3], 343
        %v6120 = vld [vmem:[%s6119] ss:$8 sm:$0x3]
        %6129 = vst [vmem:[#allocation1] ss:$9 sm:$0xff] %v6106
        %s6130 = scalar_lea.vmem [#allocation1], 1
        %6131 = vst [vmem:[%s6130] ss:$9 sm:$0xff] %v6108
        %s6132 = scalar_lea.vmem [#allocation1], 2
        %6133 = vst [vmem:[%s6132] ss:$9 sm:$0xff] %v6110
        %s6134 = scalar_lea.vmem [#allocation1], 3
        %6135 = vst [vmem:[%s6134] ss:$9 sm:$0xff] %v6112
        %s6136 = scalar_lea.vmem [#allocation1], 4
        %6137 = vst [vmem:[%s6136] ss:$9 sm:$0xff] %v6114
        %s6138 = scalar_lea.vmem [#allocation1], 5
        %6139 = vst [vmem:[%s6138] ss:$9 sm:$0xff] %v6116
        %s6140 = scalar_lea.vmem [#allocation1], 6
        %6141 = vst [vmem:[%s6140] ss:$9 sm:$0xff] %v6118
        %s6142 = scalar_lea.vmem [#allocation1], 7
        %6143 = vst [vmem:[%s6142] ss:$9 sm:$0xff] %v6120
        %v6144 = vld [vmem:[#allocation1] sm:$0xff]
        %v6145 = vld [vmem:[#allocation1 + $0x9] sm:$0xff]
        %6146 = vrot.lane.b32.xlu0 %v6144, 80
        %v6147 = vpop.permute.xlu0 %6146
        %6148 = vrot.lane.b32.xlu0 %v6145, 80
        %v6149 = vpop.permute.xlu0 %6148
        %v6150 = vsel %vm6103, %v6147, %v6149
        %vm6153 = vcmask 1048192
        %6154 = vst.msk [vmem:[#allocation4 + $0x48] sm:$0xff] %vm6153, %v6147
        %6155 = vst [vmem:[#allocation4 + $0x50] sm:$0xff] %v6150
        %s6156 = scalar_lea.vmem [#allocation3], 16
        %v6157 = vld [vmem:[%s6156] ss:$8 sm:$0x3]
        %s6158 = scalar_lea.vmem [#allocation3], 64
        %v6159 = vld [vmem:[%s6158] ss:$8 sm:$0x3]
        %s6160 = scalar_lea.vmem [#allocation3], 112
        %v6161 = vld [vmem:[%s6160] ss:$8 sm:$0x3]
        %s6162 = scalar_lea.vmem [#allocation3], 160
        %v6163 = vld [vmem:[%s6162] ss:$8 sm:$0x3]
        %s6164 = scalar_lea.vmem [#allocation3], 208
        %v6165 = vld [vmem:[%s6164] ss:$8 sm:$0x3]
        %s6166 = scalar_lea.vmem [#allocation3], 256
        %v6167 = vld [vmem:[%s6166] ss:$8 sm:$0x3]
        %s6168 = scalar_lea.vmem [#allocation3], 304
        %v6169 = vld [vmem:[%s6168] ss:$8 sm:$0x3]
        %s6170 = scalar_lea.vmem [#allocation3], 352
        %v6171 = vld [vmem:[%s6170] ss:$8 sm:$0x3]
        %6180 = vst [vmem:[#allocation1] ss:$9 sm:$0xff] %v6157
        %s6181 = scalar_lea.vmem [#allocation1], 1
        %6182 = vst [vmem:[%s6181] ss:$9 sm:$0xff] %v6159
        %s6183 = scalar_lea.vmem [#allocation1], 2
        %6184 = vst [vmem:[%s6183] ss:$9 sm:$0xff] %v6161
        %s6185 = scalar_lea.vmem [#allocation1], 3
        %6186 = vst [vmem:[%s6185] ss:$9 sm:$0xff] %v6163
        %s6187 = scalar_lea.vmem [#allocation1], 4
        %6188 = vst [vmem:[%s6187] ss:$9 sm:$0xff] %v6165
        %s6189 = scalar_lea.vmem [#allocation1], 5
        %6190 = vst [vmem:[%s6189] ss:$9 sm:$0xff] %v6167
        %s6191 = scalar_lea.vmem [#allocation1], 6
        %6192 = vst [vmem:[%s6191] ss:$9 sm:$0xff] %v6169
        %s6193 = scalar_lea.vmem [#allocation1], 7
        %6194 = vst [vmem:[%s6193] ss:$9 sm:$0xff] %v6171
        %v6195 = vld [vmem:[#allocation1] sm:$0xff]
        %v6196 = vld [vmem:[#allocation1 + $0x9] sm:$0xff]
        %6199 = vst [vmem:[#allocation4 + $0x58] sm:$0xff] %v6195
        %6200 = vst.msk [vmem:[#allocation4 + $0x60] sm:$0xff] %vm5697, %v6196
        %s6201 = scalar_lea.vmem [#allocation3], 17
        %v6202 = vld [vmem:[%s6201] ss:$8 sm:$0x3]
        %s6203 = scalar_lea.vmem [#allocation3], 65
        %v6204 = vld [vmem:[%s6203] ss:$8 sm:$0x3]
        %s6205 = scalar_lea.vmem [#allocation3], 113
        %v6206 = vld [vmem:[%s6205] ss:$8 sm:$0x3]
        %s6207 = scalar_lea.vmem [#allocation3], 161
        %v6208 = vld [vmem:[%s6207] ss:$8 sm:$0x3]
        %s6209 = scalar_lea.vmem [#allocation3], 209
        %v6210 = vld [vmem:[%s6209] ss:$8 sm:$0x3]
        %s6211 = scalar_lea.vmem [#allocation3], 257
        %v6212 = vld [vmem:[%s6211] ss:$8 sm:$0x3]
        %s6213 = scalar_lea.vmem [#allocation3], 305
        %v6214 = vld [vmem:[%s6213] ss:$8 sm:$0x3]
        %s6215 = scalar_lea.vmem [#allocation3], 353
        %v6216 = vld [vmem:[%s6215] ss:$8 sm:$0x3]
        %6225 = vst [vmem:[#allocation1] ss:$9 sm:$0xff] %v6202
        %s6226 = scalar_lea.vmem [#allocation1], 1
        %6227 = vst [vmem:[%s6226] ss:$9 sm:$0xff] %v6204
        %s6228 = scalar_lea.vmem [#allocation1], 2
        %6229 = vst [vmem:[%s6228] ss:$9 sm:$0xff] %v6206
        %s6230 = scalar_lea.vmem [#allocation1], 3
        %6231 = vst [vmem:[%s6230] ss:$9 sm:$0xff] %v6208
        %s6232 = scalar_lea.vmem [#allocation1], 4
        %6233 = vst [vmem:[%s6232] ss:$9 sm:$0xff] %v6210
        %s6234 = scalar_lea.vmem [#allocation1], 5
        %6235 = vst [vmem:[%s6234] ss:$9 sm:$0xff] %v6212
        %s6236 = scalar_lea.vmem [#allocation1], 6
        %6237 = vst [vmem:[%s6236] ss:$9 sm:$0xff] %v6214
        %s6238 = scalar_lea.vmem [#allocation1], 7
        %6239 = vst [vmem:[%s6238] ss:$9 sm:$0xff] %v6216
        %v6240 = vld [vmem:[#allocation1] sm:$0xff]
        %v6241 = vld [vmem:[#allocation1 + $0x9] sm:$0xff]
        %6242 = vrot.lane.b32.xlu0 %v6240, 48
        %v6243 = vpop.permute.xlu0 %6242
        %6244 = vrot.lane.b32.xlu0 %v6241, 48
        %v6245 = vpop.permute.xlu0 %6244
        %v6246 = vsel %vm5697, %v6243, %v6245
        %6249 = vst.msk [vmem:[#allocation4 + $0x60] sm:$0xff] %vm5837, %v6243
        %6250 = vst.msk [vmem:[#allocation4 + $0x68] sm:$0xff] %vm5839, %v6246
        %s6251 = scalar_lea.vmem [#allocation3], 18
        %v6252 = vld [vmem:[%s6251] ss:$8 sm:$0x3]
        %s6253 = scalar_lea.vmem [#allocation3], 66
        %v6254 = vld [vmem:[%s6253] ss:$8 sm:$0x3]
        %s6255 = scalar_lea.vmem [#allocation3], 114
        %v6256 = vld [vmem:[%s6255] ss:$8 sm:$0x3]
        %s6257 = scalar_lea.vmem [#allocation3], 162
        %v6258 = vld [vmem:[%s6257] ss:$8 sm:$0x3]
        %s6259 = scalar_lea.vmem [#allocation3], 210
        %v6260 = vld [vmem:[%s6259] ss:$8 sm:$0x3]
        %s6261 = scalar_lea.vmem [#allocation3], 258
        %v6262 = vld [vmem:[%s6261] ss:$8 sm:$0x3]
        %s6263 = scalar_lea.vmem [#allocation3], 306
        %v6264 = vld [vmem:[%s6263] ss:$8 sm:$0x3]
        %s6265 = scalar_lea.vmem [#allocation3], 354
        %v6266 = vld [vmem:[%s6265] ss:$8 sm:$0x3]
        %6275 = vst [vmem:[#allocation1] ss:$9 sm:$0xff] %v6252
        %s6276 = scalar_lea.vmem [#allocation1], 1
        %6277 = vst [vmem:[%s6276] ss:$9 sm:$0xff] %v6254
        %s6278 = scalar_lea.vmem [#allocation1], 2
        %6279 = vst [vmem:[%s6278] ss:$9 sm:$0xff] %v6256
        %s6280 = scalar_lea.vmem [#allocation1], 3
        %6281 = vst [vmem:[%s6280] ss:$9 sm:$0xff] %v6258
        %s6282 = scalar_lea.vmem [#allocation1], 4
        %6283 = vst [vmem:[%s6282] ss:$9 sm:$0xff] %v6260
        %s6284 = scalar_lea.vmem [#allocation1], 5
        %6285 = vst [vmem:[%s6284] ss:$9 sm:$0xff] %v6262
        %s6286 = scalar_lea.vmem [#allocation1], 6
        %6287 = vst [vmem:[%s6286] ss:$9 sm:$0xff] %v6264
        %s6288 = scalar_lea.vmem [#allocation1], 7
        %6289 = vst [vmem:[%s6288] ss:$9 sm:$0xff] %v6266
        %v6290 = vld [vmem:[#allocation1] sm:$0xff]
        %v6291 = vld [vmem:[#allocation1 + $0x9] sm:$0xff]
        %6292 = vrot.lane.b32.xlu0 %v6290, 96
        %v6293 = vpop.permute.xlu0 %6292
        %6294 = vrot.lane.b32.xlu0 %v6291, 96
        %v6295 = vpop.permute.xlu0 %6294
        %v6296 = vsel %vm5839, %v6293, %v6295
        %6300 = vst.msk [vmem:[#allocation4 + $0x68] sm:$0xff] %vm5890, %v6293
        %6301 = vst [vmem:[#allocation4 + $0x70] sm:$0xff] %v6296
        %6302 = vst.msk [vmem:[#allocation4 + $0x78] sm:$0xff] %vm5893, %v6295
        %s6303 = scalar_lea.vmem [#allocation3], 19
        %v6304 = vld [vmem:[%s6303] ss:$8 sm:$0x3]
        %s6305 = scalar_lea.vmem [#allocation3], 67
        %v6306 = vld [vmem:[%s6305] ss:$8 sm:$0x3]
        %s6307 = scalar_lea.vmem [#allocation3], 115
        %v6308 = vld [vmem:[%s6307] ss:$8 sm:$0x3]
        %s6309 = scalar_lea.vmem [#allocation3], 163
        %v6310 = vld [vmem:[%s6309] ss:$8 sm:$0x3]
        %s6311 = scalar_lea.vmem [#allocation3], 211
        %v6312 = vld [vmem:[%s6311] ss:$8 sm:$0x3]
        %s6313 = scalar_lea.vmem [#allocation3], 259
        %v6314 = vld [vmem:[%s6313] ss:$8 sm:$0x3]
        %s6315 = scalar_lea.vmem [#allocation3], 307
        %v6316 = vld [vmem:[%s6315] ss:$8 sm:$0x3]
        %s6317 = scalar_lea.vmem [#allocation3], 355
        %v6318 = vld [vmem:[%s6317] ss:$8 sm:$0x3]
        %6327 = vst [vmem:[#allocation1] ss:$9 sm:$0xff] %v6304
        %s6328 = scalar_lea.vmem [#allocation1], 1
        %6329 = vst [vmem:[%s6328] ss:$9 sm:$0xff] %v6306
        %s6330 = scalar_lea.vmem [#allocation1], 2
        %6331 = vst [vmem:[%s6330] ss:$9 sm:$0xff] %v6308
        %s6332 = scalar_lea.vmem [#allocation1], 3
        %6333 = vst [vmem:[%s6332] ss:$9 sm:$0xff] %v6310
        %s6334 = scalar_lea.vmem [#allocation1], 4
        %6335 = vst [vmem:[%s6334] ss:$9 sm:$0xff] %v6312
        %s6336 = scalar_lea.vmem [#allocation1], 5
        %6337 = vst [vmem:[%s6336] ss:$9 sm:$0xff] %v6314
        %s6338 = scalar_lea.vmem [#allocation1], 6
        %6339 = vst [vmem:[%s6338] ss:$9 sm:$0xff] %v6316
        %s6340 = scalar_lea.vmem [#allocation1], 7
        %6341 = vst [vmem:[%s6340] ss:$9 sm:$0xff] %v6318
        %v6342 = vld [vmem:[#allocation1] sm:$0xff]
        %v6343 = vld [vmem:[#allocation1 + $0x9] sm:$0xff]
        %6344 = vrot.lane.b32.xlu0 %v6342, 16
        %v6345 = vpop.permute.xlu0 %6344
        %6346 = vrot.lane.b32.xlu0 %v6343, 16
        %v6347 = vpop.permute.xlu0 %6346
        %v6348 = vsel %vm5893, %v6345, %v6347
        %6351 = vst.msk [vmem:[#allocation4 + $0x78] sm:$0xff] %vm5943, %v6345
        %6352 = vst.msk [vmem:[#allocation4 + $0x80] sm:$0xff] %vm5945, %v6348
        %s6353 = scalar_lea.vmem [#allocation3], 20
        %v6354 = vld [vmem:[%s6353] ss:$8 sm:$0x3]
        %s6355 = scalar_lea.vmem [#allocation3], 68
        %v6356 = vld [vmem:[%s6355] ss:$8 sm:$0x3]
        %s6357 = scalar_lea.vmem [#allocation3], 116
        %v6358 = vld [vmem:[%s6357] ss:$8 sm:$0x3]
        %s6359 = scalar_lea.vmem [#allocation3], 164
        %v6360 = vld [vmem:[%s6359] ss:$8 sm:$0x3]
        %s6361 = scalar_lea.vmem [#allocation3], 212
        %v6362 = vld [vmem:[%s6361] ss:$8 sm:$0x3]
        %s6363 = scalar_lea.vmem [#allocation3], 260
        %v6364 = vld [vmem:[%s6363] ss:$8 sm:$0x3]
        %s6365 = scalar_lea.vmem [#allocation3], 308
        %v6366 = vld [vmem:[%s6365] ss:$8 sm:$0x3]
        %s6367 = scalar_lea.vmem [#allocation3], 356
        %v6368 = vld [vmem:[%s6367] ss:$8 sm:$0x3]
        %6377 = vst [vmem:[#allocation1] ss:$9 sm:$0xff] %v6354
        %s6378 = scalar_lea.vmem [#allocation1], 1
        %6379 = vst [vmem:[%s6378] ss:$9 sm:$0xff] %v6356
        %s6380 = scalar_lea.vmem [#allocation1], 2
        %6381 = vst [vmem:[%s6380] ss:$9 sm:$0xff] %v6358
        %s6382 = scalar_lea.vmem [#allocation1], 3
        %6383 = vst [vmem:[%s6382] ss:$9 sm:$0xff] %v6360
        %s6384 = scalar_lea.vmem [#allocation1], 4
        %6385 = vst [vmem:[%s6384] ss:$9 sm:$0xff] %v6362
        %s6386 = scalar_lea.vmem [#allocation1], 5
        %6387 = vst [vmem:[%s6386] ss:$9 sm:$0xff] %v6364
        %s6388 = scalar_lea.vmem [#allocation1], 6
        %6389 = vst [vmem:[%s6388] ss:$9 sm:$0xff] %v6366
        %s6390 = scalar_lea.vmem [#allocation1], 7
        %6391 = vst [vmem:[%s6390] ss:$9 sm:$0xff] %v6368
        %v6392 = vld [vmem:[#allocation1] sm:$0xff]
        %v6393 = vld [vmem:[#allocation1 + $0x9] sm:$0xff]
        %6394 = vrot.lane.b32.xlu0 %v6392, 64
        %v6395 = vpop.permute.xlu0 %6394
        %6396 = vrot.lane.b32.xlu0 %v6393, 64
        %v6397 = vpop.permute.xlu0 %6396
        %v6398 = vsel %vm5945, %v6395, %v6397
        %6401 = vst.msk [vmem:[#allocation4 + $0x80] sm:$0xff] %vm5995, %v6395
        %6402 = vst.msk [vmem:[#allocation4 + $0x88] sm:$0xff] %vm5997, %v6398
        %s6403 = scalar_lea.vmem [#allocation3], 21
        %v6404 = vld [vmem:[%s6403] ss:$8 sm:$0x3]
        %s6405 = scalar_lea.vmem [#allocation3], 69
        %v6406 = vld [vmem:[%s6405] ss:$8 sm:$0x3]
        %s6407 = scalar_lea.vmem [#allocation3], 117
        %v6408 = vld [vmem:[%s6407] ss:$8 sm:$0x3]
        %s6409 = scalar_lea.vmem [#allocation3], 165
        %v6410 = vld [vmem:[%s6409] ss:$8 sm:$0x3]
        %s6411 = scalar_lea.vmem [#allocation3], 213
        %v6412 = vld [vmem:[%s6411] ss:$8 sm:$0x3]
        %s6413 = scalar_lea.vmem [#allocation3], 261
        %v6414 = vld [vmem:[%s6413] ss:$8 sm:$0x3]
        %s6415 = scalar_lea.vmem [#allocation3], 309
        %v6416 = vld [vmem:[%s6415] ss:$8 sm:$0x3]
        %s6417 = scalar_lea.vmem [#allocation3], 357
        %v6418 = vld [vmem:[%s6417] ss:$8 sm:$0x3]
        %6427 = vst [vmem:[#allocation1] ss:$9 sm:$0xff] %v6404
        %s6428 = scalar_lea.vmem [#allocation1], 1
        %6429 = vst [vmem:[%s6428] ss:$9 sm:$0xff] %v6406
        %s6430 = scalar_lea.vmem [#allocation1], 2
        %6431 = vst [vmem:[%s6430] ss:$9 sm:$0xff] %v6408
        %s6432 = scalar_lea.vmem [#allocation1], 3
        %6433 = vst [vmem:[%s6432] ss:$9 sm:$0xff] %v6410
        %s6434 = scalar_lea.vmem [#allocation1], 4
        %6435 = vst [vmem:[%s6434] ss:$9 sm:$0xff] %v6412
        %s6436 = scalar_lea.vmem [#allocation1], 5
        %6437 = vst [vmem:[%s6436] ss:$9 sm:$0xff] %v6414
        %s6438 = scalar_lea.vmem [#allocation1], 6
        %6439 = vst [vmem:[%s6438] ss:$9 sm:$0xff] %v6416
        %s6440 = scalar_lea.vmem [#allocation1], 7
        %6441 = vst [vmem:[%s6440] ss:$9 sm:$0xff] %v6418
        %v6442 = vld [vmem:[#allocation1] sm:$0xff]
        %v6443 = vld [vmem:[#allocation1 + $0x9] sm:$0xff]
        %6444 = vrot.lane.b32.xlu0 %v6442, 112
        %v6445 = vpop.permute.xlu0 %6444
        %6446 = vrot.lane.b32.xlu0 %v6443, 112
        %v6447 = vpop.permute.xlu0 %6446
        %v6448 = vsel %vm5997, %v6445, %v6447
        %6452 = vst.msk [vmem:[#allocation4 + $0x88] sm:$0xff] %vm6048, %v6445
        %6453 = vst [vmem:[#allocation4 + $0x90] sm:$0xff] %v6448
        %6454 = vst.msk [vmem:[#allocation4 + $0x98] sm:$0xff] %vm6051, %v6447
        %s6455 = scalar_lea.vmem [#allocation3], 22
        %v6456 = vld [vmem:[%s6455] ss:$8 sm:$0x3]
        %s6457 = scalar_lea.vmem [#allocation3], 70
        %v6458 = vld [vmem:[%s6457] ss:$8 sm:$0x3]
        %s6459 = scalar_lea.vmem [#allocation3], 118
        %v6460 = vld [vmem:[%s6459] ss:$8 sm:$0x3]
        %s6461 = scalar_lea.vmem [#allocation3], 166
        %v6462 = vld [vmem:[%s6461] ss:$8 sm:$0x3]
        %s6463 = scalar_lea.vmem [#allocation3], 214
        %v6464 = vld [vmem:[%s6463] ss:$8 sm:$0x3]
        %s6465 = scalar_lea.vmem [#allocation3], 262
        %v6466 = vld [vmem:[%s6465] ss:$8 sm:$0x3]
        %s6467 = scalar_lea.vmem [#allocation3], 310
        %v6468 = vld [vmem:[%s6467] ss:$8 sm:$0x3]
        %s6469 = scalar_lea.vmem [#allocation3], 358
        %v6470 = vld [vmem:[%s6469] ss:$8 sm:$0x3]
        %6479 = vst [vmem:[#allocation1] ss:$9 sm:$0xff] %v6456
        %s6480 = scalar_lea.vmem [#allocation1], 1
        %6481 = vst [vmem:[%s6480] ss:$9 sm:$0xff] %v6458
        %s6482 = scalar_lea.vmem [#allocation1], 2
        %6483 = vst [vmem:[%s6482] ss:$9 sm:$0xff] %v6460
        %s6484 = scalar_lea.vmem [#allocation1], 3
        %6485 = vst [vmem:[%s6484] ss:$9 sm:$0xff] %v6462
        %s6486 = scalar_lea.vmem [#allocation1], 4
        %6487 = vst [vmem:[%s6486] ss:$9 sm:$0xff] %v6464
        %s6488 = scalar_lea.vmem [#allocation1], 5
        %6489 = vst [vmem:[%s6488] ss:$9 sm:$0xff] %v6466
        %s6490 = scalar_lea.vmem [#allocation1], 6
        %6491 = vst [vmem:[%s6490] ss:$9 sm:$0xff] %v6468
        %s6492 = scalar_lea.vmem [#allocation1], 7
        %6493 = vst [vmem:[%s6492] ss:$9 sm:$0xff] %v6470
        %v6494 = vld [vmem:[#allocation1] sm:$0xff]
        %v6495 = vld [vmem:[#allocation1 + $0x9] sm:$0xff]
        %6496 = vrot.lane.b32.xlu0 %v6494, 32
        %v6497 = vpop.permute.xlu0 %6496
        %6498 = vrot.lane.b32.xlu0 %v6495, 32
        %v6499 = vpop.permute.xlu0 %6498
        %v6500 = vsel %vm6051, %v6497, %v6499
        %6503 = vst.msk [vmem:[#allocation4 + $0x98] sm:$0xff] %vm6101, %v6497
        %6504 = vst.msk [vmem:[#allocation4 + $0xa0] sm:$0xff] %vm6103, %v6500
        %s6505 = scalar_lea.vmem [#allocation3], 23
        %v6506 = vld [vmem:[%s6505] ss:$8 sm:$0x3]
        %s6507 = scalar_lea.vmem [#allocation3], 71
        %v6508 = vld [vmem:[%s6507] ss:$8 sm:$0x3]
        %s6509 = scalar_lea.vmem [#allocation3], 119
        %v6510 = vld [vmem:[%s6509] ss:$8 sm:$0x3]
        %s6511 = scalar_lea.vmem [#allocation3], 167
        %v6512 = vld [vmem:[%s6511] ss:$8 sm:$0x3]
        %s6513 = scalar_lea.vmem [#allocation3], 215
        %v6514 = vld [vmem:[%s6513] ss:$8 sm:$0x3]
        %s6515 = scalar_lea.vmem [#allocation3], 263
        %v6516 = vld [vmem:[%s6515] ss:$8 sm:$0x3]
        %s6517 = scalar_lea.vmem [#allocation3], 311
        %v6518 = vld [vmem:[%s6517] ss:$8 sm:$0x3]
        %s6519 = scalar_lea.vmem [#allocation3], 359
        %v6520 = vld [vmem:[%s6519] ss:$8 sm:$0x3]
        %6529 = vst [vmem:[#allocation1] ss:$9 sm:$0xff] %v6506
        %s6530 = scalar_lea.vmem [#allocation1], 1
        %6531 = vst [vmem:[%s6530] ss:$9 sm:$0xff] %v6508
        %s6532 = scalar_lea.vmem [#allocation1], 2
        %6533 = vst [vmem:[%s6532] ss:$9 sm:$0xff] %v6510
        %s6534 = scalar_lea.vmem [#allocation1], 3
        %6535 = vst [vmem:[%s6534] ss:$9 sm:$0xff] %v6512
        %s6536 = scalar_lea.vmem [#allocation1], 4
        %6537 = vst [vmem:[%s6536] ss:$9 sm:$0xff] %v6514
        %s6538 = scalar_lea.vmem [#allocation1], 5
        %6539 = vst [vmem:[%s6538] ss:$9 sm:$0xff] %v6516
        %s6540 = scalar_lea.vmem [#allocation1], 6
        %6541 = vst [vmem:[%s6540] ss:$9 sm:$0xff] %v6518
        %s6542 = scalar_lea.vmem [#allocation1], 7
        %6543 = vst [vmem:[%s6542] ss:$9 sm:$0xff] %v6520
        %v6544 = vld [vmem:[#allocation1] sm:$0xff]
        %v6545 = vld [vmem:[#allocation1 + $0x9] sm:$0xff]
        %6546 = vrot.lane.b32.xlu0 %v6544, 80
        %v6547 = vpop.permute.xlu0 %6546
        %6548 = vrot.lane.b32.xlu0 %v6545, 80
        %v6549 = vpop.permute.xlu0 %6548
        %v6550 = vsel %vm6103, %v6547, %v6549
        %6553 = vst.msk [vmem:[#allocation4 + $0xa0] sm:$0xff] %vm6153, %v6547
        %6554 = vst [vmem:[#allocation4 + $0xa8] sm:$0xff] %v6550
        %s6555 = scalar_lea.vmem [#allocation3], 32
        %v6556 = vld [vmem:[%s6555] ss:$8 sm:$0x3]
        %s6557 = scalar_lea.vmem [#allocation3], 80
        %v6558 = vld [vmem:[%s6557] ss:$8 sm:$0x3]
        %s6559 = scalar_lea.vmem [#allocation3], 128
        %v6560 = vld [vmem:[%s6559] ss:$8 sm:$0x3]
        %s6561 = scalar_lea.vmem [#allocation3], 176
        %v6562 = vld [vmem:[%s6561] ss:$8 sm:$0x3]
        %s6563 = scalar_lea.vmem [#allocation3], 224
        %v6564 = vld [vmem:[%s6563] ss:$8 sm:$0x3]
        %s6565 = scalar_lea.vmem [#allocation3], 272
        %v6566 = vld [vmem:[%s6565] ss:$8 sm:$0x3]
        %s6567 = scalar_lea.vmem [#allocation3], 320
        %v6568 = vld [vmem:[%s6567] ss:$8 sm:$0x3]
        %s6569 = scalar_lea.vmem [#allocation3], 368
        %v6570 = vld [vmem:[%s6569] ss:$8 sm:$0x3]
        %6579 = vst [vmem:[#allocation1] ss:$9 sm:$0xff] %v6556
        %s6580 = scalar_lea.vmem [#allocation1], 1
        %6581 = vst [vmem:[%s6580] ss:$9 sm:$0xff] %v6558
        %s6582 = scalar_lea.vmem [#allocation1], 2
        %6583 = vst [vmem:[%s6582] ss:$9 sm:$0xff] %v6560
        %s6584 = scalar_lea.vmem [#allocation1], 3
        %6585 = vst [vmem:[%s6584] ss:$9 sm:$0xff] %v6562
        %s6586 = scalar_lea.vmem [#allocation1], 4
        %6587 = vst [vmem:[%s6586] ss:$9 sm:$0xff] %v6564
        %s6588 = scalar_lea.vmem [#allocation1], 5
        %6589 = vst [vmem:[%s6588] ss:$9 sm:$0xff] %v6566
        %s6590 = scalar_lea.vmem [#allocation1], 6
        %6591 = vst [vmem:[%s6590] ss:$9 sm:$0xff] %v6568
        %s6592 = scalar_lea.vmem [#allocation1], 7
        %6593 = vst [vmem:[%s6592] ss:$9 sm:$0xff] %v6570
        %v6594 = vld [vmem:[#allocation1] sm:$0xff]
        %v6595 = vld [vmem:[#allocation1 + $0x9] sm:$0xff]
        %6598 = vst [vmem:[#allocation4 + $0xb0] sm:$0xff] %v6594
        %6599 = vst.msk [vmem:[#allocation4 + $0xb8] sm:$0xff] %vm5697, %v6595
        %s6600 = scalar_lea.vmem [#allocation3], 33
        %v6601 = vld [vmem:[%s6600] ss:$8 sm:$0x3]
        %s6602 = scalar_lea.vmem [#allocation3], 81
        %v6603 = vld [vmem:[%s6602] ss:$8 sm:$0x3]
        %s6604 = scalar_lea.vmem [#allocation3], 129
        %v6605 = vld [vmem:[%s6604] ss:$8 sm:$0x3]
        %s6606 = scalar_lea.vmem [#allocation3], 177
        %v6607 = vld [vmem:[%s6606] ss:$8 sm:$0x3]
        %s6608 = scalar_lea.vmem [#allocation3], 225
        %v6609 = vld [vmem:[%s6608] ss:$8 sm:$0x3]
        %s6610 = scalar_lea.vmem [#allocation3], 273
        %v6611 = vld [vmem:[%s6610] ss:$8 sm:$0x3]
        %s6612 = scalar_lea.vmem [#allocation3], 321
        %v6613 = vld [vmem:[%s6612] ss:$8 sm:$0x3]
        %s6614 = scalar_lea.vmem [#allocation3], 369
        %v6615 = vld [vmem:[%s6614] ss:$8 sm:$0x3]
        %6624 = vst [vmem:[#allocation1] ss:$9 sm:$0xff] %v6601
        %s6625 = scalar_lea.vmem [#allocation1], 1
        %6626 = vst [vmem:[%s6625] ss:$9 sm:$0xff] %v6603
        %s6627 = scalar_lea.vmem [#allocation1], 2
        %6628 = vst [vmem:[%s6627] ss:$9 sm:$0xff] %v6605
        %s6629 = scalar_lea.vmem [#allocation1], 3
        %6630 = vst [vmem:[%s6629] ss:$9 sm:$0xff] %v6607
        %s6631 = scalar_lea.vmem [#allocation1], 4
        %6632 = vst [vmem:[%s6631] ss:$9 sm:$0xff] %v6609
        %s6633 = scalar_lea.vmem [#allocation1], 5
        %6634 = vst [vmem:[%s6633] ss:$9 sm:$0xff] %v6611
        %s6635 = scalar_lea.vmem [#allocation1], 6
        %6636 = vst [vmem:[%s6635] ss:$9 sm:$0xff] %v6613
        %s6637 = scalar_lea.vmem [#allocation1], 7
        %6638 = vst [vmem:[%s6637] ss:$9 sm:$0xff] %v6615
        %v6639 = vld [vmem:[#allocation1] sm:$0xff]
        %v6640 = vld [vmem:[#allocation1 + $0x9] sm:$0xff]
        %6641 = vrot.lane.b32.xlu0 %v6639, 48
        %v6642 = vpop.permute.xlu0 %6641
        %6643 = vrot.lane.b32.xlu0 %v6640, 48
        %v6644 = vpop.permute.xlu0 %6643
        %v6645 = vsel %vm5697, %v6642, %v6644
        %6648 = vst.msk [vmem:[#allocation4 + $0xb8] sm:$0xff] %vm5837, %v6642
        %6649 = vst.msk [vmem:[#allocation4 + $0xc0] sm:$0xff] %vm5839, %v6645
        %s6650 = scalar_lea.vmem [#allocation3], 34
        %v6651 = vld [vmem:[%s6650] ss:$8 sm:$0x3]
        %s6652 = scalar_lea.vmem [#allocation3], 82
        %v6653 = vld [vmem:[%s6652] ss:$8 sm:$0x3]
        %s6654 = scalar_lea.vmem [#allocation3], 130
        %v6655 = vld [vmem:[%s6654] ss:$8 sm:$0x3]
        %s6656 = scalar_lea.vmem [#allocation3], 178
        %v6657 = vld [vmem:[%s6656] ss:$8 sm:$0x3]
        %s6658 = scalar_lea.vmem [#allocation3], 226
        %v6659 = vld [vmem:[%s6658] ss:$8 sm:$0x3]
        %s6660 = scalar_lea.vmem [#allocation3], 274
        %v6661 = vld [vmem:[%s6660] ss:$8 sm:$0x3]
        %s6662 = scalar_lea.vmem [#allocation3], 322
        %v6663 = vld [vmem:[%s6662] ss:$8 sm:$0x3]
        %s6664 = scalar_lea.vmem [#allocation3], 370
        %v6665 = vld [vmem:[%s6664] ss:$8 sm:$0x3]
        %6674 = vst [vmem:[#allocation1] ss:$9 sm:$0xff] %v6651
        %s6675 = scalar_lea.vmem [#allocation1], 1
        %6676 = vst [vmem:[%s6675] ss:$9 sm:$0xff] %v6653
        %s6677 = scalar_lea.vmem [#allocation1], 2
        %6678 = vst [vmem:[%s6677] ss:$9 sm:$0xff] %v6655
        %s6679 = scalar_lea.vmem [#allocation1], 3
        %6680 = vst [vmem:[%s6679] ss:$9 sm:$0xff] %v6657
        %s6681 = scalar_lea.vmem [#allocation1], 4
        %6682 = vst [vmem:[%s6681] ss:$9 sm:$0xff] %v6659
        %s6683 = scalar_lea.vmem [#allocation1], 5
        %6684 = vst [vmem:[%s6683] ss:$9 sm:$0xff] %v6661
        %s6685 = scalar_lea.vmem [#allocation1], 6
        %6686 = vst [vmem:[%s6685] ss:$9 sm:$0xff] %v6663
        %s6687 = scalar_lea.vmem [#allocation1], 7
        %6688 = vst [vmem:[%s6687] ss:$9 sm:$0xff] %v6665
        %v6689 = vld [vmem:[#allocation1] sm:$0xff]
        %v6690 = vld [vmem:[#allocation1 + $0x9] sm:$0xff]
        %6691 = vrot.lane.b32.xlu0 %v6689, 96
        %v6692 = vpop.permute.xlu0 %6691
        %6693 = vrot.lane.b32.xlu0 %v6690, 96
        %v6694 = vpop.permute.xlu0 %6693
        %v6695 = vsel %vm5839, %v6692, %v6694
        %6699 = vst.msk [vmem:[#allocation4 + $0xc0] sm:$0xff] %vm5890, %v6692
        %6700 = vst [vmem:[#allocation4 + $0xc8] sm:$0xff] %v6695
        %6701 = vst.msk [vmem:[#allocation4 + $0xd0] sm:$0xff] %vm5893, %v6694
        %s6702 = scalar_lea.vmem [#allocation3], 35
        %v6703 = vld [vmem:[%s6702] ss:$8 sm:$0x3]
        %s6704 = scalar_lea.vmem [#allocation3], 83
        %v6705 = vld [vmem:[%s6704] ss:$8 sm:$0x3]
        %s6706 = scalar_lea.vmem [#allocation3], 131
        %v6707 = vld [vmem:[%s6706] ss:$8 sm:$0x3]
        %s6708 = scalar_lea.vmem [#allocation3], 179
        %v6709 = vld [vmem:[%s6708] ss:$8 sm:$0x3]
        %s6710 = scalar_lea.vmem [#allocation3], 227
        %v6711 = vld [vmem:[%s6710] ss:$8 sm:$0x3]
        %s6712 = scalar_lea.vmem [#allocation3], 275
        %v6713 = vld [vmem:[%s6712] ss:$8 sm:$0x3]
        %s6714 = scalar_lea.vmem [#allocation3], 323
        %v6715 = vld [vmem:[%s6714] ss:$8 sm:$0x3]
        %s6716 = scalar_lea.vmem [#allocation3], 371
        %v6717 = vld [vmem:[%s6716] ss:$8 sm:$0x3]
        %6726 = vst [vmem:[#allocation1] ss:$9 sm:$0xff] %v6703
        %s6727 = scalar_lea.vmem [#allocation1], 1
        %6728 = vst [vmem:[%s6727] ss:$9 sm:$0xff] %v6705
        %s6729 = scalar_lea.vmem [#allocation1], 2
        %6730 = vst [vmem:[%s6729] ss:$9 sm:$0xff] %v6707
        %s6731 = scalar_lea.vmem [#allocation1], 3
        %6732 = vst [vmem:[%s6731] ss:$9 sm:$0xff] %v6709
        %s6733 = scalar_lea.vmem [#allocation1], 4
        %6734 = vst [vmem:[%s6733] ss:$9 sm:$0xff] %v6711
        %s6735 = scalar_lea.vmem [#allocation1], 5
        %6736 = vst [vmem:[%s6735] ss:$9 sm:$0xff] %v6713
        %s6737 = scalar_lea.vmem [#allocation1], 6
        %6738 = vst [vmem:[%s6737] ss:$9 sm:$0xff] %v6715
        %s6739 = scalar_lea.vmem [#allocation1], 7
        %6740 = vst [vmem:[%s6739] ss:$9 sm:$0xff] %v6717
        %v6741 = vld [vmem:[#allocation1] sm:$0xff]
        %v6742 = vld [vmem:[#allocation1 + $0x9] sm:$0xff]
        %6743 = vrot.lane.b32.xlu0 %v6741, 16
        %v6744 = vpop.permute.xlu0 %6743
        %6745 = vrot.lane.b32.xlu0 %v6742, 16
        %v6746 = vpop.permute.xlu0 %6745
        %v6747 = vsel %vm5893, %v6744, %v6746
        %6750 = vst.msk [vmem:[#allocation4 + $0xd0] sm:$0xff] %vm5943, %v6744
        %6751 = vst.msk [vmem:[#allocation4 + $0xd8] sm:$0xff] %vm5945, %v6747
        %s6752 = scalar_lea.vmem [#allocation3], 36
        %v6753 = vld [vmem:[%s6752] ss:$8 sm:$0x3]
        %s6754 = scalar_lea.vmem [#allocation3], 84
        %v6755 = vld [vmem:[%s6754] ss:$8 sm:$0x3]
        %s6756 = scalar_lea.vmem [#allocation3], 132
        %v6757 = vld [vmem:[%s6756] ss:$8 sm:$0x3]
        %s6758 = scalar_lea.vmem [#allocation3], 180
        %v6759 = vld [vmem:[%s6758] ss:$8 sm:$0x3]
        %s6760 = scalar_lea.vmem [#allocation3], 228
        %v6761 = vld [vmem:[%s6760] ss:$8 sm:$0x3]
        %s6762 = scalar_lea.vmem [#allocation3], 276
        %v6763 = vld [vmem:[%s6762] ss:$8 sm:$0x3]
        %s6764 = scalar_lea.vmem [#allocation3], 324
        %v6765 = vld [vmem:[%s6764] ss:$8 sm:$0x3]
        %s6766 = scalar_lea.vmem [#allocation3], 372
        %v6767 = vld [vmem:[%s6766] ss:$8 sm:$0x3]
        %6776 = vst [vmem:[#allocation1] ss:$9 sm:$0xff] %v6753
        %s6777 = scalar_lea.vmem [#allocation1], 1
        %6778 = vst [vmem:[%s6777] ss:$9 sm:$0xff] %v6755
        %s6779 = scalar_lea.vmem [#allocation1], 2
        %6780 = vst [vmem:[%s6779] ss:$9 sm:$0xff] %v6757
        %s6781 = scalar_lea.vmem [#allocation1], 3
        %6782 = vst [vmem:[%s6781] ss:$9 sm:$0xff] %v6759
        %s6783 = scalar_lea.vmem [#allocation1], 4
        %6784 = vst [vmem:[%s6783] ss:$9 sm:$0xff] %v6761
        %s6785 = scalar_lea.vmem [#allocation1], 5
        %6786 = vst [vmem:[%s6785] ss:$9 sm:$0xff] %v6763
        %s6787 = scalar_lea.vmem [#allocation1], 6
        %6788 = vst [vmem:[%s6787] ss:$9 sm:$0xff] %v6765
        %s6789 = scalar_lea.vmem [#allocation1], 7
        %6790 = vst [vmem:[%s6789] ss:$9 sm:$0xff] %v6767
        %v6791 = vld [vmem:[#allocation1] sm:$0xff]
        %v6792 = vld [vmem:[#allocation1 + $0x9] sm:$0xff]
        %6793 = vrot.lane.b32.xlu0 %v6791, 64
        %v6794 = vpop.permute.xlu0 %6793
        %6795 = vrot.lane.b32.xlu0 %v6792, 64
        %v6796 = vpop.permute.xlu0 %6795
        %v6797 = vsel %vm5945, %v6794, %v6796
        %6800 = vst.msk [vmem:[#allocation4 + $0xd8] sm:$0xff] %vm5995, %v6794
        %6801 = vst.msk [vmem:[#allocation4 + $0xe0] sm:$0xff] %vm5997, %v6797
        %s6802 = scalar_lea.vmem [#allocation3], 37
        %v6803 = vld [vmem:[%s6802] ss:$8 sm:$0x3]
        %s6804 = scalar_lea.vmem [#allocation3], 85
        %v6805 = vld [vmem:[%s6804] ss:$8 sm:$0x3]
        %s6806 = scalar_lea.vmem [#allocation3], 133
        %v6807 = vld [vmem:[%s6806] ss:$8 sm:$0x3]
        %s6808 = scalar_lea.vmem [#allocation3], 181
        %v6809 = vld [vmem:[%s6808] ss:$8 sm:$0x3]
        %s6810 = scalar_lea.vmem [#allocation3], 229
        %v6811 = vld [vmem:[%s6810] ss:$8 sm:$0x3]
        %s6812 = scalar_lea.vmem [#allocation3], 277
        %v6813 = vld [vmem:[%s6812] ss:$8 sm:$0x3]
        %s6814 = scalar_lea.vmem [#allocation3], 325
        %v6815 = vld [vmem:[%s6814] ss:$8 sm:$0x3]
        %s6816 = scalar_lea.vmem [#allocation3], 373
        %v6817 = vld [vmem:[%s6816] ss:$8 sm:$0x3]
        %6826 = vst [vmem:[#allocation1] ss:$9 sm:$0xff] %v6803
        %s6827 = scalar_lea.vmem [#allocation1], 1
        %6828 = vst [vmem:[%s6827] ss:$9 sm:$0xff] %v6805
        %s6829 = scalar_lea.vmem [#allocation1], 2
        %6830 = vst [vmem:[%s6829] ss:$9 sm:$0xff] %v6807
        %s6831 = scalar_lea.vmem [#allocation1], 3
        %6832 = vst [vmem:[%s6831] ss:$9 sm:$0xff] %v6809
        %s6833 = scalar_lea.vmem [#allocation1], 4
        %6834 = vst [vmem:[%s6833] ss:$9 sm:$0xff] %v6811
        %s6835 = scalar_lea.vmem [#allocation1], 5
        %6836 = vst [vmem:[%s6835] ss:$9 sm:$0xff] %v6813
        %s6837 = scalar_lea.vmem [#allocation1], 6
        %6838 = vst [vmem:[%s6837] ss:$9 sm:$0xff] %v6815
        %s6839 = scalar_lea.vmem [#allocation1], 7
        %6840 = vst [vmem:[%s6839] ss:$9 sm:$0xff] %v6817
        %v6841 = vld [vmem:[#allocation1] sm:$0xff]
        %v6842 = vld [vmem:[#allocation1 + $0x9] sm:$0xff]
        %6843 = vrot.lane.b32.xlu0 %v6841, 112
        %v6844 = vpop.permute.xlu0 %6843
        %6845 = vrot.lane.b32.xlu0 %v6842, 112
        %v6846 = vpop.permute.xlu0 %6845
        %v6847 = vsel %vm5997, %v6844, %v6846
        %6851 = vst.msk [vmem:[#allocation4 + $0xe0] sm:$0xff] %vm6048, %v6844
        %6852 = vst [vmem:[#allocation4 + $0xe8] sm:$0xff] %v6847
        %6853 = vst.msk [vmem:[#allocation4 + $0xf0] sm:$0xff] %vm6051, %v6846
        %v6854 = vld [vmem:[#allocation4] sm:$0xff]
        %v6855 = vld [vmem:[#allocation4 + $0x8] sm:$0xff]
        %v6856 = vld [vmem:[#allocation4 + $0x10] sm:$0xff]
        %v6857 = vld [vmem:[#allocation4 + $0x18] sm:$0xff]
        %v6858 = vld [vmem:[#allocation4 + $0x20] sm:$0xff]
        %v6859 = vld [vmem:[#allocation4 + $0x28] sm:$0xff]
        %v6860 = vld [vmem:[#allocation4 + $0x30] sm:$0xff]
        %v6861 = vld [vmem:[#allocation4 + $0x38] sm:$0xff]
        %v6862 = vld [vmem:[#allocation4 + $0x40] sm:$0xff]
        %v6863 = vld [vmem:[#allocation4 + $0x48] sm:$0xff]
        %v6864 = vld [vmem:[#allocation4 + $0x50] sm:$0xff]
        %v6865 = vld [vmem:[#allocation4 + $0x58] sm:$0xff]
        %v6866 = vld [vmem:[#allocation4 + $0x60] sm:$0xff]
        %v6867 = vld [vmem:[#allocation4 + $0x68] sm:$0xff]
        %v6868 = vld [vmem:[#allocation4 + $0x70] sm:$0xff]
        %v6869 = vld [vmem:[#allocation4 + $0x78] sm:$0xff]
        %v6870 = vld [vmem:[#allocation4 + $0x80] sm:$0xff]
        %v6871 = vld [vmem:[#allocation4 + $0x88] sm:$0xff]
        %v6872 = vld [vmem:[#allocation4 + $0x90] sm:$0xff]
        %v6873 = vld [vmem:[#allocation4 + $0x98] sm:$0xff]
        %v6874 = vld [vmem:[#allocation4 + $0xa0] sm:$0xff]
        %v6875 = vld [vmem:[#allocation4 + $0xa8] sm:$0xff]
        %v6876 = vld [vmem:[#allocation4 + $0xb0] sm:$0xff]
        %v6877 = vld [vmem:[#allocation4 + $0xb8] sm:$0xff]
        %v6878 = vld [vmem:[#allocation4 + $0xc0] sm:$0xff]
        %v6879 = vld [vmem:[#allocation4 + $0xc8] sm:$0xff]
        %v6880 = vld [vmem:[#allocation4 + $0xd0] sm:$0xff]
        %v6881 = vld [vmem:[#allocation4 + $0xd8] sm:$0xff]
        %v6882 = vld [vmem:[#allocation4 + $0xe0] sm:$0xff]
        %v6883 = vld [vmem:[#allocation4 + $0xe8] sm:$0xff]
        %v6884 = vld [vmem:[#allocation4 + $0xf0] sm:$0xff]
        %v6885 = vld [vmem:[%s7] sm:$0xff]
        %v6886 = vld [vmem:[%s7 + $0x8] sm:$0xff]
        %v6887 = vld [vmem:[%s7 + $0x10] sm:$0xff]
        %v6888 = vld [vmem:[%s7 + $0x18] sm:$0xff]
        %v6889 = vld [vmem:[%s7 + $0x20] sm:$0xff]
        %v6890 = vld [vmem:[%s7 + $0x28] sm:$0xff]
        %v6891 = vld [vmem:[%s7 + $0x30] sm:$0xff]
        %v6892 = vld [vmem:[%s7 + $0x38] sm:$0xff]
        %v6893 = vld [vmem:[%s7 + $0x40] sm:$0xff]
        %v6894 = vld [vmem:[%s7 + $0x48] sm:$0xff]
        %v6895 = vld [vmem:[%s7 + $0x50] sm:$0xff]
        %v6896 = vld [vmem:[%s7 + $0x58] sm:$0xff]
        %v6897 = vld [vmem:[%s7 + $0x60] sm:$0xff]
        %v6898 = vld [vmem:[%s7 + $0x68] sm:$0xff]
        %v6899 = vld [vmem:[%s7 + $0x70] sm:$0xff]
        %v6900 = vld [vmem:[%s7 + $0x78] sm:$0xff]
        %v6901 = vld [vmem:[%s7 + $0x80] sm:$0xff]
        %v6902 = vld [vmem:[%s7 + $0x88] sm:$0xff]
        %v6903 = vld [vmem:[%s7 + $0x90] sm:$0xff]
        %v6904 = vld [vmem:[%s7 + $0x98] sm:$0xff]
        %v6905 = vld [vmem:[%s7 + $0xa0] sm:$0xff]
        %v6906 = vld [vmem:[%s7 + $0xa8] sm:$0xff]
        %v6907 = vld [vmem:[%s7 + $0xb0] sm:$0xff]
        %v6908 = vld [vmem:[%s7 + $0xb8] sm:$0xff]
        %v6909 = vld [vmem:[%s7 + $0xc0] sm:$0xff]
        %v6910 = vld [vmem:[%s7 + $0xc8] sm:$0xff]
        %v6911 = vld [vmem:[%s7 + $0xd0] sm:$0xff]
        %v6912 = vld [vmem:[%s7 + $0xd8] sm:$0xff]
        %v6913 = vld [vmem:[%s7 + $0xe0] sm:$0xff]
        %v6914 = vld [vmem:[%s7 + $0xe8] sm:$0xff]
        %v6915 = vld [vmem:[%s7 + $0xf0] sm:$0xff]
        %v6916 = vld [vmem:[%s7 + $0xf8] sm:$0xff]
        %v6917 = vld [vmem:[%s7 + $0x100] sm:$0xff]
        %v6918 = vld [vmem:[%s7 + $0x108] sm:$0xff]
        %v6919 = vld [vmem:[%s7 + $0x110] sm:$0xff]
        %v6920 = vld [vmem:[%s7 + $0x118] sm:$0xff]
        %v6921 = vld [vmem:[%s7 + $0x120] sm:$0xff]
        %v6922 = vld [vmem:[%s7 + $0x128] sm:$0xff]
        %v6923 = vld [vmem:[%s7 + $0x130] sm:$0xff]
        %v6924 = vld [vmem:[%s7 + $0x138] sm:$0xff]
        %v6925 = vld [vmem:[%s7 + $0x140] sm:$0xff]
        %v6926 = vld [vmem:[%s7 + $0x148] sm:$0xff]
        %v6927 = vld [vmem:[%s7 + $0x150] sm:$0xff]
        %v6928 = vld [vmem:[%s7 + $0x158] sm:$0xff]
        %v6929 = vld [vmem:[%s7 + $0x160] sm:$0xff]
        %v6930 = vld [vmem:[%s7 + $0x168] sm:$0xff]
        %v6931 = vld [vmem:[%s7 + $0x170] sm:$0xff]
        %v6932 = vld [vmem:[%s7 + $0x178] sm:$0xff]
        %v6933 = vld [vmem:[%s7 + $0x180] sm:$0xff]
        %v6934 = vld [vmem:[%s7 + $0x188] sm:$0xff]
        %v6935 = vld [vmem:[%s7 + $0x190] sm:$0xff]
        %v6936 = vld [vmem:[%s7 + $0x198] sm:$0xff]
        %v6937 = vld [vmem:[%s7 + $0x1a0] sm:$0xff]
        %v6938 = vld [vmem:[%s7 + $0x1a8] sm:$0xff]
        %v6939 = vld [vmem:[%s7 + $0x1b0] sm:$0xff]
        %v6940 = vld [vmem:[%s7 + $0x1b8] sm:$0xff]
        %v6941 = vld [vmem:[%s7 + $0x1c0] sm:$0xff]
        %v6942 = vld [vmem:[%s7 + $0x1c8] sm:$0xff]
        %v6943 = vld [vmem:[%s7 + $0x1d0] sm:$0xff]
        %v6944 = vld [vmem:[%s7 + $0x1d8] sm:$0xff]
        %v6945 = vld [vmem:[%s7 + $0x1e0] sm:$0xff]
        %v6946 = vld [vmem:[%s7 + $0x1e8] sm:$0xff]
        %v6947 = vld [vmem:[%s7 + $0x1f0] sm:$0xff]
        %v6948 = vld [vmem:[%s7 + $0x1f8] sm:$0xff]
        %v6949 = vld [vmem:[%s7 + $0x200] sm:$0xff]
        %v6950 = vld [vmem:[%s7 + $0x208] sm:$0xff]
        %v6951 = vld [vmem:[%s7 + $0x210] sm:$0xff]
        %v6952 = vld [vmem:[%s7 + $0x218] sm:$0xff]
        %v6953 = vld [vmem:[%s7 + $0x220] sm:$0xff]
        %v6954 = vld [vmem:[%s7 + $0x228] sm:$0xff]
        %v6955 = vld [vmem:[%s7 + $0x230] sm:$0xff]
        %v6956 = vld [vmem:[%s7 + $0x238] sm:$0xff]
        %v6957 = vld [vmem:[%s7 + $0x240] sm:$0xff]
        %v6958 = vld [vmem:[%s7 + $0x248] sm:$0xff]
        %v6959 = vld [vmem:[%s7 + $0x250] sm:$0xff]
        %v6960 = vld [vmem:[%s7 + $0x258] sm:$0xff]
        %v6961 = vld [vmem:[%s7 + $0x260] sm:$0xff]
        %v6962 = vld [vmem:[%s7 + $0x268] sm:$0xff]
        %v6963 = vld [vmem:[%s7 + $0x270] sm:$0xff]
        %v6964 = vld [vmem:[%s7 + $0x278] sm:$0xff]
        %v6965 = vld [vmem:[%s7 + $0x280] sm:$0xff]
        %v6966 = vld [vmem:[%s7 + $0x288] sm:$0xff]
        %v6967 = vld [vmem:[%s7 + $0x290] sm:$0xff]
        %v6968 = vld [vmem:[%s7 + $0x298] sm:$0xff]
        %v6969 = vld [vmem:[%s7 + $0x2a0] sm:$0xff]
        %v6970 = vld [vmem:[%s7 + $0x2a8] sm:$0xff]
        %v6971 = vld [vmem:[%s7 + $0x2b0] sm:$0xff]
        %v6972 = vld [vmem:[%s7 + $0x2b8] sm:$0xff]
        %v6973 = vld [vmem:[%s7 + $0x2c0] sm:$0xff]
        %v6974 = vld [vmem:[%s7 + $0x2c8] sm:$0xff]
        %v6975 = vld [vmem:[%s7 + $0x2d0] sm:$0xff]
        %v6976 = vld [vmem:[%s7 + $0x2d8] sm:$0xff]
        %v6977 = vld [vmem:[%s7 + $0x2e0] sm:$0xff]
        %v6978 = vld [vmem:[%s7 + $0x2e8] sm:$0xff]
        %v6979 = vld [vmem:[%s7 + $0x2f0] sm:$0xff]
        %v6980 = vld [vmem:[%s7 + $0x2f8] sm:$0xff]
        %v6981 = vld [vmem:[%s7 + $0x300] sm:$0xff]
        %v6982 = vld [vmem:[%s7 + $0x308] sm:$0xff]
        %v6983 = vld [vmem:[%s7 + $0x310] sm:$0xff]
        %v6984 = vld [vmem:[%s7 + $0x318] sm:$0xff]
        %v6985 = vld [vmem:[%s7 + $0x320] sm:$0xff]
        %v6986 = vld [vmem:[%s7 + $0x328] sm:$0xff]
        %v6987 = vld [vmem:[%s7 + $0x330] sm:$0xff]
        %v6988 = vld [vmem:[%s7 + $0x338] sm:$0xff]
        %v6989 = vld [vmem:[%s7 + $0x340] sm:$0xff]
        %v6990 = vld [vmem:[%s7 + $0x348] sm:$0xff]
        %v6991 = vld [vmem:[%s7 + $0x350] sm:$0xff]
        %v6992 = vld [vmem:[%s7 + $0x358] sm:$0xff]
        %v6993 = vld [vmem:[%s7 + $0x360] sm:$0xff]
        %v6994 = vld [vmem:[%s7 + $0x368] sm:$0xff]
        %v6995 = vld [vmem:[%s7 + $0x370] sm:$0xff]
        %v6996 = vld [vmem:[%s7 + $0x378] sm:$0xff]
        %v6997 = vld [vmem:[%s7 + $0x380] sm:$0xff]
        %v6998 = vld [vmem:[%s7 + $0x388] sm:$0xff]
        %v6999 = vld [vmem:[%s7 + $0x390] sm:$0xff]
        %v7000 = vld [vmem:[%s7 + $0x398] sm:$0xff]
        %v7001 = vld [vmem:[%s7 + $0x3a0] sm:$0xff]
        %v7002 = vld [vmem:[%s7 + $0x3a8] sm:$0xff]
        %v7003 = vld [vmem:[%s7 + $0x3b0] sm:$0xff]
        %v7004 = vld [vmem:[%s7 + $0x3b8] sm:$0xff]
        %v7005 = vld [vmem:[%s7 + $0x3c0] sm:$0xff]
        %v7006 = vld [vmem:[%s7 + $0x3c8] sm:$0xff]
        %v7007 = vld [vmem:[%s7 + $0x3d0] sm:$0xff]
        %v7008 = vld [vmem:[%s7 + $0x3d8] sm:$0xff]
        %v7009 = vld [vmem:[%s7 + $0x3e0] sm:$0xff]
        %v7010 = vld [vmem:[%s7 + $0x3e8] sm:$0xff]
        %v7011 = vld [vmem:[%s7 + $0x3f0] sm:$0xff]
        %v7012 = vld [vmem:[%s7 + $0x3f8] sm:$0xff]
        %v7013 = vld [vmem:[%s7 + $0x400] sm:$0xff]
        %v7014 = vld [vmem:[%s7 + $0x408] sm:$0xff]
        %v7015 = vld [vmem:[%s7 + $0x410] sm:$0xff]
        %v7016 = vld [vmem:[%s7 + $0x418] sm:$0xff]
        %v7017 = vld [vmem:[%s7 + $0x420] sm:$0xff]
        %v7018 = vld [vmem:[%s7 + $0x428] sm:$0xff]
        %v7019 = vld [vmem:[%s7 + $0x430] sm:$0xff]
        %v7020 = vld [vmem:[%s7 + $0x438] sm:$0xff]
        %v7021 = vld [vmem:[%s7 + $0x440] sm:$0xff]
        %v7022 = vld [vmem:[%s7 + $0x448] sm:$0xff]
        %v7023 = vld [vmem:[%s7 + $0x450] sm:$0xff]
        %v7024 = vld [vmem:[%s7 + $0x458] sm:$0xff]
        %v7025 = vld [vmem:[%s7 + $0x460] sm:$0xff]
        %v7026 = vld [vmem:[%s7 + $0x468] sm:$0xff]
        %v7027 = vld [vmem:[%s7 + $0x470] sm:$0xff]
        %v7028 = vld [vmem:[%s7 + $0x478] sm:$0xff]
        %v7029 = vld [vmem:[%s7 + $0x480] sm:$0xff]
        %v7030 = vld [vmem:[%s7 + $0x488] sm:$0xff]
        %v7031 = vld [vmem:[%s7 + $0x490] sm:$0xff]
        %v7032 = vld [vmem:[%s7 + $0x498] sm:$0xff]
        %v7033 = vld [vmem:[%s7 + $0x4a0] sm:$0xff]
        %v7034 = vld [vmem:[%s7 + $0x4a8] sm:$0xff]
        %v7035 = vld [vmem:[%s7 + $0x4b0] sm:$0xff]
        %v7036 = vld [vmem:[%s7 + $0x4b8] sm:$0xff]
        %v7037 = vld [vmem:[%s7 + $0x4c0] sm:$0xff]
        %v7038 = vld [vmem:[%s7 + $0x4c8] sm:$0xff]
        %v7039 = vld [vmem:[%s7 + $0x4d0] sm:$0xff]
        %v7040 = vld [vmem:[%s7 + $0x4d8] sm:$0xff]
        %v7041 = vld [vmem:[%s7 + $0x4e0] sm:$0xff]
        %v7042 = vld [vmem:[%s7 + $0x4e8] sm:$0xff]
        %v7043 = vld [vmem:[%s7 + $0x4f0] sm:$0xff]
        %v7044 = vld [vmem:[%s7 + $0x4f8] sm:$0xff]
        %v7045 = vld [vmem:[%s7 + $0x500] sm:$0xff]
        %v7046 = vld [vmem:[%s7 + $0x508] sm:$0xff]
        %v7047 = vld [vmem:[%s7 + $0x510] sm:$0xff]
        %v7048 = vld [vmem:[%s7 + $0x518] sm:$0xff]
        %v7049 = vld [vmem:[%s7 + $0x520] sm:$0xff]
        %v7050 = vld [vmem:[%s7 + $0x528] sm:$0xff]
        %v7051 = vld [vmem:[%s7 + $0x530] sm:$0xff]
        %v7052 = vld [vmem:[%s7 + $0x538] sm:$0xff]
        %v7053 = vld [vmem:[%s7 + $0x540] sm:$0xff]
        %v7054 = vld [vmem:[%s7 + $0x548] sm:$0xff]
        %v7055 = vld [vmem:[%s7 + $0x550] sm:$0xff]
        %v7056 = vld [vmem:[%s7 + $0x558] sm:$0xff]
        %v7057 = vld [vmem:[%s7 + $0x560] sm:$0xff]
        %v7058 = vld [vmem:[%s7 + $0x568] sm:$0xff]
        %v7059 = vld [vmem:[%s7 + $0x570] sm:$0xff]
        %v7060 = vld [vmem:[%s7 + $0x578] sm:$0xff]
        %v7061 = vld [vmem:[%s7 + $0x580] sm:$0xff]
        %v7062 = vld [vmem:[%s7 + $0x588] sm:$0xff]
        %v7063 = vld [vmem:[%s7 + $0x590] sm:$0xff]
        %v7064 = vld [vmem:[%s7 + $0x598] sm:$0xff]
        %v7065 = vld [vmem:[%s7 + $0x5a0] sm:$0xff]
        %v7066 = vld [vmem:[%s7 + $0x5a8] sm:$0xff]
        %v7067 = vld [vmem:[%s7 + $0x5b0] sm:$0xff]
        %v7068 = vld [vmem:[%s7 + $0x5b8] sm:$0xff]
        %v7069 = vld [vmem:[%s7 + $0x5c0] sm:$0xff]
        %v7070 = vld [vmem:[%s7 + $0x5c8] sm:$0xff]
        %v7071 = vld [vmem:[%s7 + $0x5d0] sm:$0xff]
        %v7072 = vld [vmem:[%s7 + $0x5d8] sm:$0xff]
        %v7073 = vld [vmem:[%s7 + $0x5e0] sm:$0xff]
        %v7074 = vld [vmem:[%s7 + $0x5e8] sm:$0xff]
        %v7075 = vld [vmem:[%s7 + $0x5f0] sm:$0xff]
        %v7076 = vld [vmem:[%s7 + $0x5f8] sm:$0xff]
        %v7077 = vld [vmem:[%s7 + $0x600] sm:$0xff]
        %v7078 = vld [vmem:[%s7 + $0x608] sm:$0xff]
        %v7079 = vld [vmem:[%s7 + $0x610] sm:$0xff]
        %v7080 = vld [vmem:[%s7 + $0x618] sm:$0xff]
        %v7081 = vld [vmem:[%s7 + $0x620] sm:$0xff]
        %v7082 = vld [vmem:[%s7 + $0x628] sm:$0xff]
        %v7083 = vld [vmem:[%s7 + $0x630] sm:$0xff]
        %v7084 = vld [vmem:[%s7 + $0x638] sm:$0xff]
        %v7085 = vld [vmem:[%s7 + $0x640] sm:$0xff]
        %v7086 = vld [vmem:[%s7 + $0x648] sm:$0xff]
        %v7087 = vld [vmem:[%s7 + $0x650] sm:$0xff]
        %v7088 = vld [vmem:[%s7 + $0x658] sm:$0xff]
        %v7089 = vld [vmem:[%s7 + $0x660] sm:$0xff]
        %v7090 = vld [vmem:[%s7 + $0x668] sm:$0xff]
        %v7091 = vld [vmem:[%s7 + $0x670] sm:$0xff]
        %v7092 = vld [vmem:[%s7 + $0x678] sm:$0xff]
        %v7093 = vld [vmem:[%s7 + $0x680] sm:$0xff]
        %v7094 = vld [vmem:[%s7 + $0x688] sm:$0xff]
        %v7095 = vld [vmem:[%s7 + $0x690] sm:$0xff]
        %v7096 = vld [vmem:[%s7 + $0x698] sm:$0xff]
        %v7097 = vld [vmem:[%s7 + $0x6a0] sm:$0xff]
        %v7098 = vld [vmem:[%s7 + $0x6a8] sm:$0xff]
        %v7099 = vld [vmem:[%s7 + $0x6b0] sm:$0xff]
        %v7100 = vld [vmem:[%s7 + $0x6b8] sm:$0xff]
        %v7101 = vld [vmem:[%s7 + $0x6c0] sm:$0xff]
        %v7102 = vld [vmem:[%s7 + $0x6c8] sm:$0xff]
        %v7103 = vld [vmem:[%s7 + $0x6d0] sm:$0xff]
        %v7104 = vld [vmem:[%s7 + $0x6d8] sm:$0xff]
        %v7105 = vld [vmem:[%s7 + $0x6e0] sm:$0xff]
        %v7106 = vld [vmem:[%s7 + $0x6e8] sm:$0xff]
        %v7107 = vld [vmem:[%s7 + $0x6f0] sm:$0xff]
        %v7108 = vld [vmem:[%s7 + $0x6f8] sm:$0xff]
        %v7109 = vld [vmem:[%s7 + $0x700] sm:$0xff]
        %v7110 = vld [vmem:[%s7 + $0x708] sm:$0xff]
        %v7111 = vld [vmem:[%s7 + $0x710] sm:$0xff]
        %v7112 = vld [vmem:[%s7 + $0x718] sm:$0xff]
        %v7113 = vld [vmem:[%s7 + $0x720] sm:$0xff]
        %v7114 = vld [vmem:[%s7 + $0x728] sm:$0xff]
        %v7115 = vld [vmem:[%s7 + $0x730] sm:$0xff]
        %v7116 = vld [vmem:[%s7 + $0x738] sm:$0xff]
        %v7117 = vld [vmem:[%s7 + $0x740] sm:$0xff]
        %v7118 = vld [vmem:[%s7 + $0x748] sm:$0xff]
        %v7119 = vld [vmem:[%s7 + $0x750] sm:$0xff]
        %v7120 = vld [vmem:[%s7 + $0x758] sm:$0xff]
        %v7121 = vld [vmem:[%s7 + $0x760] sm:$0xff]
        %v7122 = vld [vmem:[%s7 + $0x768] sm:$0xff]
        %v7123 = vld [vmem:[%s7 + $0x770] sm:$0xff]
        %v7124 = vld [vmem:[%s7 + $0x778] sm:$0xff]
        %v7125 = vld [vmem:[%s7 + $0x780] sm:$0xff]
        %v7126 = vld [vmem:[%s7 + $0x788] sm:$0xff]
        %v7127 = vld [vmem:[%s7 + $0x790] sm:$0xff]
        %v7128 = vld [vmem:[%s7 + $0x798] sm:$0xff]
        %v7129 = vld [vmem:[%s7 + $0x7a0] sm:$0xff]
        %v7130 = vld [vmem:[%s7 + $0x7a8] sm:$0xff]
        %v7131 = vld [vmem:[%s7 + $0x7b0] sm:$0xff]
        %v7132 = vld [vmem:[%s7 + $0x7b8] sm:$0xff]
        %v7133 = vld [vmem:[%s7 + $0x7c0] sm:$0xff]
        %v7134 = vld [vmem:[%s7 + $0x7c8] sm:$0xff]
        %v7135 = vld [vmem:[%s7 + $0x7d0] sm:$0xff]
        %v7136 = vld [vmem:[%s7 + $0x7d8] sm:$0xff]
        %v7137 = vld [vmem:[%s7 + $0x7e0] sm:$0xff]
        %v7138 = vld [vmem:[%s7 + $0x7e8] sm:$0xff]
        %v7139 = vld [vmem:[%s7 + $0x7f0] sm:$0xff]
        %v7140 = vld [vmem:[%s7 + $0x7f8] sm:$0xff]
        %v7141 = vld [vmem:[%s7 + $0x800] sm:$0xff]
        %v7142 = vld [vmem:[%s7 + $0x808] sm:$0xff]
        %v7143 = vld [vmem:[%s7 + $0x810] sm:$0xff]
        %v7144 = vld [vmem:[%s7 + $0x818] sm:$0xff]
        %v7145 = vld [vmem:[%s7 + $0x820] sm:$0xff]
        %v7146 = vld [vmem:[%s7 + $0x828] sm:$0xff]
        %v7147 = vld [vmem:[%s7 + $0x830] sm:$0xff]
        %v7148 = vld [vmem:[%s7 + $0x838] sm:$0xff]
        %v7149 = vld [vmem:[%s7 + $0x840] sm:$0xff]
        %v7150 = vld [vmem:[%s7 + $0x848] sm:$0xff]
        %v7151 = vld [vmem:[%s7 + $0x850] sm:$0xff]
        %v7152 = vld [vmem:[%s7 + $0x858] sm:$0xff]
        %v7153 = vld [vmem:[%s7 + $0x860] sm:$0xff]
        %v7154 = vld [vmem:[%s7 + $0x868] sm:$0xff]
        %v7155 = vld [vmem:[%s7 + $0x870] sm:$0xff]
        %v7156 = vld [vmem:[%s7 + $0x878] sm:$0xff]
        %v7157 = vld [vmem:[%s7 + $0x880] sm:$0xff]
        %v7158 = vld [vmem:[%s7 + $0x888] sm:$0xff]
        %v7159 = vld [vmem:[%s7 + $0x890] sm:$0xff]
        %v7160 = vld [vmem:[%s7 + $0x898] sm:$0xff]
        %v7161 = vld [vmem:[%s7 + $0x8a0] sm:$0xff]
        %v7162 = vld [vmem:[%s7 + $0x8a8] sm:$0xff]
        %v7163 = vld [vmem:[%s7 + $0x8b0] sm:$0xff]
        %v7164 = vld [vmem:[%s7 + $0x8b8] sm:$0xff]
        %v7165 = vld [vmem:[%s7 + $0x8c0] sm:$0xff]
        %v7166 = vld [vmem:[%s7 + $0x8c8] sm:$0xff]
        %v7167 = vld [vmem:[%s7 + $0x8d0] sm:$0xff]
        %v7168 = vld [vmem:[%s7 + $0x8d8] sm:$0xff]
        %v7169 = vld [vmem:[%s7 + $0x8e0] sm:$0xff]
        %v7170 = vld [vmem:[%s7 + $0x8e8] sm:$0xff]
        %v7171 = vld [vmem:[%s7 + $0x8f0] sm:$0xff]
        %v7172 = vld [vmem:[%s7 + $0x8f8] sm:$0xff]
        %v7173 = vld [vmem:[%s7 + $0x900] sm:$0xff]
        %v7174 = vld [vmem:[%s7 + $0x908] sm:$0xff]
        %v7175 = vld [vmem:[%s7 + $0x910] sm:$0xff]
        %v7176 = vld [vmem:[%s7 + $0x918] sm:$0xff]
        %v7177 = vld [vmem:[%s7 + $0x920] sm:$0xff]
        %v7178 = vld [vmem:[%s7 + $0x928] sm:$0xff]
        %v7179 = vld [vmem:[%s7 + $0x930] sm:$0xff]
        %v7180 = vld [vmem:[%s7 + $0x938] sm:$0xff]
        %v7181 = vld [vmem:[%s7 + $0x940] sm:$0xff]
        %v7182 = vld [vmem:[%s7 + $0x948] sm:$0xff]
        %v7183 = vld [vmem:[%s7 + $0x950] sm:$0xff]
        %v7184 = vld [vmem:[%s7 + $0x958] sm:$0xff]
        %v7185 = vld [vmem:[%s7 + $0x960] sm:$0xff]
        %v7186 = vld [vmem:[%s7 + $0x968] sm:$0xff]
        %v7187 = vld [vmem:[%s7 + $0x970] sm:$0xff]
        %v7188 = vld [vmem:[%s7 + $0x978] sm:$0xff]
        %v7189 = vld [vmem:[%s7 + $0x980] sm:$0xff]
        %v7190 = vld [vmem:[%s7 + $0x988] sm:$0xff]
        %v7191 = vld [vmem:[%s7 + $0x990] sm:$0xff]
        %v7192 = vld [vmem:[%s7 + $0x998] sm:$0xff]
        %v7193 = vld [vmem:[%s7 + $0x9a0] sm:$0xff]
        %v7194 = vld [vmem:[%s7 + $0x9a8] sm:$0xff]
        %v7195 = vld [vmem:[%s7 + $0x9b0] sm:$0xff]
        %v7196 = vld [vmem:[%s7 + $0x9b8] sm:$0xff]
        %v7197 = vld [vmem:[%s7 + $0x9c0] sm:$0xff]
        %v7198 = vld [vmem:[%s7 + $0x9c8] sm:$0xff]
        %v7199 = vld [vmem:[%s7 + $0x9d0] sm:$0xff]
        %v7200 = vld [vmem:[%s7 + $0x9d8] sm:$0xff]
        %v7201 = vld [vmem:[%s7 + $0x9e0] sm:$0xff]
        %v7202 = vld [vmem:[%s7 + $0x9e8] sm:$0xff]
        %v7203 = vld [vmem:[%s7 + $0x9f0] sm:$0xff]
        %v7204 = vld [vmem:[%s7 + $0x9f8] sm:$0xff]
        %v7205 = vld [vmem:[%s7 + $0xa00] sm:$0xff]
        %v7206 = vld [vmem:[%s7 + $0xa08] sm:$0xff]
        %v7207 = vld [vmem:[%s7 + $0xa10] sm:$0xff]
        %v7208 = vld [vmem:[%s7 + $0xa18] sm:$0xff]
        %v7209 = vld [vmem:[%s7 + $0xa20] sm:$0xff]
        %v7210 = vld [vmem:[%s7 + $0xa28] sm:$0xff]
        %v7211 = vld [vmem:[%s7 + $0xa30] sm:$0xff]
        %v7212 = vld [vmem:[%s7 + $0xa38] sm:$0xff]
        %v7213 = vld [vmem:[%s7 + $0xa40] sm:$0xff]
        %v7214 = vld [vmem:[%s7 + $0xa48] sm:$0xff]
        %v7215 = vld [vmem:[%s7 + $0xa50] sm:$0xff]
        %v7216 = vld [vmem:[%s7 + $0xa58] sm:$0xff]
        %v7217 = vld [vmem:[%s7 + $0xa60] sm:$0xff]
        %v7218 = vld [vmem:[%s7 + $0xa68] sm:$0xff]
        %v7219 = vld [vmem:[%s7 + $0xa70] sm:$0xff]
        %v7220 = vld [vmem:[%s7 + $0xa78] sm:$0xff]
        %v7221 = vld [vmem:[%s7 + $0xa80] sm:$0xff]
        %v7222 = vld [vmem:[%s7 + $0xa88] sm:$0xff]
        %v7223 = vld [vmem:[%s7 + $0xa90] sm:$0xff]
        %v7224 = vld [vmem:[%s7 + $0xa98] sm:$0xff]
        %v7225 = vld [vmem:[%s7 + $0xaa0] sm:$0xff]
        %v7226 = vld [vmem:[%s7 + $0xaa8] sm:$0xff]
        %v7227 = vld [vmem:[%s7 + $0xab0] sm:$0xff]
        %v7228 = vld [vmem:[%s7 + $0xab8] sm:$0xff]
        %v7229 = vld [vmem:[%s7 + $0xac0] sm:$0xff]
        %v7230 = vld [vmem:[%s7 + $0xac8] sm:$0xff]
        %v7231 = vld [vmem:[%s7 + $0xad0] sm:$0xff]
        %v7232 = vld [vmem:[%s7 + $0xad8] sm:$0xff]
        %v7233 = vld [vmem:[%s7 + $0xae0] sm:$0xff]
        %v7234 = vld [vmem:[%s7 + $0xae8] sm:$0xff]
        %v7235 = vld [vmem:[%s7 + $0xaf0] sm:$0xff]
        %v7236 = vld [vmem:[%s7 + $0xaf8] sm:$0xff]
        %v7237 = vld [vmem:[%s7 + $0xb00] sm:$0xff]
        %v7238 = vld [vmem:[%s7 + $0xb08] sm:$0xff]
        %v7239 = vld [vmem:[%s7 + $0xb10] sm:$0xff]
        %v7240 = vld [vmem:[%s7 + $0xb18] sm:$0xff]
        %v7241 = vld [vmem:[%s7 + $0xb20] sm:$0xff]
        %v7242 = vld [vmem:[%s7 + $0xb28] sm:$0xff]
        %v7243 = vld [vmem:[%s7 + $0xb30] sm:$0xff]
        %v7244 = vld [vmem:[%s7 + $0xb38] sm:$0xff]
        %v7245 = vld [vmem:[%s7 + $0xb40] sm:$0xff]
        %v7246 = vld [vmem:[%s7 + $0xb48] sm:$0xff]
        %v7247 = vld [vmem:[%s7 + $0xb50] sm:$0xff]
        %v7248 = vld [vmem:[%s7 + $0xb58] sm:$0xff]
        %v7249 = vld [vmem:[%s7 + $0xb60] sm:$0xff]
        %v7250 = vld [vmem:[%s7 + $0xb68] sm:$0xff]
        %v7251 = vld [vmem:[%s7 + $0xb70] sm:$0xff]
        %v7252 = vld [vmem:[%s7 + $0xb78] sm:$0xff]
        %v7253 = vld [vmem:[%s7 + $0xb80] sm:$0xff]
        %v7254 = vld [vmem:[%s7 + $0xb88] sm:$0xff]
        %v7255 = vld [vmem:[%s7 + $0xb90] sm:$0xff]
        %v7256 = vld [vmem:[%s7 + $0xb98] sm:$0xff]
        %v7257 = vld [vmem:[%s7 + $0xba0] sm:$0xff]
        %v7258 = vld [vmem:[%s7 + $0xba8] sm:$0xff]
        %v7259 = vld [vmem:[%s7 + $0xbb0] sm:$0xff]
        %v7260 = vld [vmem:[%s7 + $0xbb8] sm:$0xff]
        %v7261 = vld [vmem:[%s7 + $0xbc0] sm:$0xff]
        %v7262 = vld [vmem:[%s7 + $0xbc8] sm:$0xff]
        %v7263 = vld [vmem:[%s7 + $0xbd0] sm:$0xff]
        %v7264 = vld [vmem:[%s7 + $0xbd8] sm:$0xff]
        %v7265 = vld [vmem:[%s7 + $0xbe0] sm:$0xff]
        %v7266 = vld [vmem:[%s7 + $0xbe8] sm:$0xff]
        %v7267 = vld [vmem:[%s7 + $0xbf0] sm:$0xff]
        %v7268 = vld [vmem:[%s7 + $0xbf8] sm:$0xff]
        %v7269 = vld [vmem:[%s7 + $0xc00] sm:$0xff]
        %v7270 = vld [vmem:[%s7 + $0xc08] sm:$0xff]
        %v7271 = vld [vmem:[%s7 + $0xc10] sm:$0xff]
        %v7272 = vld [vmem:[%s7 + $0xc18] sm:$0xff]
        %v7273 = vld [vmem:[%s7 + $0xc20] sm:$0xff]
        %v7274 = vld [vmem:[%s7 + $0xc28] sm:$0xff]
        %v7275 = vld [vmem:[%s7 + $0xc30] sm:$0xff]
        %v7276 = vld [vmem:[%s7 + $0xc38] sm:$0xff]
        %v7277 = vld [vmem:[%s7 + $0xc40] sm:$0xff]
        %v7278 = vld [vmem:[%s7 + $0xc48] sm:$0xff]
        %v7279 = vld [vmem:[%s7 + $0xc50] sm:$0xff]
        %v7280 = vld [vmem:[%s7 + $0xc58] sm:$0xff]
        %v7281 = vld [vmem:[%s7 + $0xc60] sm:$0xff]
        %v7282 = vld [vmem:[%s7 + $0xc68] sm:$0xff]
        %v7283 = vld [vmem:[%s7 + $0xc70] sm:$0xff]
        %v7284 = vld [vmem:[%s7 + $0xc78] sm:$0xff]
        %v7285 = vld [vmem:[%s7 + $0xc80] sm:$0xff]
        %v7286 = vld [vmem:[%s7 + $0xc88] sm:$0xff]
        %v7287 = vld [vmem:[%s7 + $0xc90] sm:$0xff]
        %v7288 = vld [vmem:[%s7 + $0xc98] sm:$0xff]
        %v7289 = vld [vmem:[%s7 + $0xca0] sm:$0xff]
        %v7290 = vld [vmem:[%s7 + $0xca8] sm:$0xff]
        %v7291 = vld [vmem:[%s7 + $0xcb0] sm:$0xff]
        %v7292 = vld [vmem:[%s7 + $0xcb8] sm:$0xff]
        %v7293 = vld [vmem:[%s7 + $0xcc0] sm:$0xff]
        %v7294 = vld [vmem:[%s7 + $0xcc8] sm:$0xff]
        %v7295 = vld [vmem:[%s7 + $0xcd0] sm:$0xff]
        %v7296 = vld [vmem:[%s7 + $0xcd8] sm:$0xff]
        %v7297 = vld [vmem:[%s7 + $0xce0] sm:$0xff]
        %v7298 = vld [vmem:[%s7 + $0xce8] sm:$0xff]
        %v7299 = vld [vmem:[%s7 + $0xcf0] sm:$0xff]
        %v7300 = vld [vmem:[%s7 + $0xcf8] sm:$0xff]
        %v7301 = vld [vmem:[%s7 + $0xd00] sm:$0xff]
        %v7302 = vld [vmem:[%s7 + $0xd08] sm:$0xff]
        %v7303 = vld [vmem:[%s7 + $0xd10] sm:$0xff]
        %v7304 = vld [vmem:[%s7 + $0xd18] sm:$0xff]
        %v7305 = vld [vmem:[%s7 + $0xd20] sm:$0xff]
        %v7306 = vld [vmem:[%s7 + $0xd28] sm:$0xff]
        %v7307 = vld [vmem:[%s7 + $0xd30] sm:$0xff]
        %v7308 = vld [vmem:[%s7 + $0xd38] sm:$0xff]
        %v7309 = vld [vmem:[%s7 + $0xd40] sm:$0xff]
        %v7310 = vld [vmem:[%s7 + $0xd48] sm:$0xff]
        %v7311 = vld [vmem:[%s7 + $0xd50] sm:$0xff]
        %v7312 = vld [vmem:[%s7 + $0xd58] sm:$0xff]
        %v7313 = vld [vmem:[%s7 + $0xd60] sm:$0xff]
        %v7314 = vld [vmem:[%s7 + $0xd68] sm:$0xff]
        %v7315 = vld [vmem:[%s7 + $0xd70] sm:$0xff]
        %v7316 = vld [vmem:[%s7 + $0xd78] sm:$0xff]
        %v7317 = vld [vmem:[%s7 + $0xd80] sm:$0xff]
        %v7318 = vld [vmem:[%s7 + $0xd88] sm:$0xff]
        %v7319 = vld [vmem:[%s7 + $0xd90] sm:$0xff]
        %v7320 = vld [vmem:[%s7 + $0xd98] sm:$0xff]
        %v7321 = vld [vmem:[%s7 + $0xda0] sm:$0xff]
        %v7322 = vld [vmem:[%s7 + $0xda8] sm:$0xff]
        %v7323 = vld [vmem:[%s7 + $0xdb0] sm:$0xff]
        %v7324 = vld [vmem:[%s7 + $0xdb8] sm:$0xff]
        %v7325 = vld [vmem:[%s7 + $0xdc0] sm:$0xff]
        %v7326 = vld [vmem:[%s7 + $0xdc8] sm:$0xff]
        %v7327 = vld [vmem:[%s7 + $0xdd0] sm:$0xff]
        %v7328 = vld [vmem:[%s7 + $0xdd8] sm:$0xff]
        %v7329 = vld [vmem:[%s7 + $0xde0] sm:$0xff]
        %v7330 = vld [vmem:[%s7 + $0xde8] sm:$0xff]
        %v7331 = vld [vmem:[%s7 + $0xdf0] sm:$0xff]
        %v7332 = vld [vmem:[%s7 + $0xdf8] sm:$0xff]
        %v7333 = vld [vmem:[%s7 + $0xe00] sm:$0xff]
        %v7334 = vld [vmem:[%s7 + $0xe08] sm:$0xff]
        %v7335 = vld [vmem:[%s7 + $0xe10] sm:$0xff]
        %v7336 = vld [vmem:[%s7 + $0xe18] sm:$0xff]
        %v7337 = vld [vmem:[%s7 + $0xe20] sm:$0xff]
        %v7338 = vld [vmem:[%s7 + $0xe28] sm:$0xff]
        %v7339 = vld [vmem:[%s7 + $0xe30] sm:$0xff]
        %v7340 = vld [vmem:[%s7 + $0xe38] sm:$0xff]
        %v7341 = vld [vmem:[%s7 + $0xe40] sm:$0xff]
        %v7342 = vld [vmem:[%s7 + $0xe48] sm:$0xff]
        %v7343 = vld [vmem:[%s7 + $0xe50] sm:$0xff]
        %v7344 = vld [vmem:[%s7 + $0xe58] sm:$0xff]
        %v7345 = vld [vmem:[%s7 + $0xe60] sm:$0xff]
        %v7346 = vld [vmem:[%s7 + $0xe68] sm:$0xff]
        %v7347 = vld [vmem:[%s7 + $0xe70] sm:$0xff]
        %v7348 = vld [vmem:[%s7 + $0xe78] sm:$0xff]
        %v7349 = vld [vmem:[%s7 + $0xe80] sm:$0xff]
        %v7350 = vld [vmem:[%s7 + $0xe88] sm:$0xff]
        %v7351 = vld [vmem:[%s7 + $0xe90] sm:$0xff]
        %v7352 = vld [vmem:[%s7 + $0xe98] sm:$0xff]
        %v7353 = vld [vmem:[%s7 + $0xea0] sm:$0xff]
        %v7354 = vld [vmem:[%s7 + $0xea8] sm:$0xff]
        %v7355 = vld [vmem:[%s7 + $0xeb0] sm:$0xff]
        %v7356 = vld [vmem:[%s7 + $0xeb8] sm:$0xff]
        %v7357 = vld [vmem:[%s7 + $0xec0] sm:$0xff]
        %v7358 = vld [vmem:[%s7 + $0xec8] sm:$0xff]
        %v7359 = vld [vmem:[%s7 + $0xed0] sm:$0xff]
        %v7360 = vld [vmem:[%s7 + $0xed8] sm:$0xff]
        %v7361 = vld [vmem:[%s7 + $0xee0] sm:$0xff]
        %v7362 = vld [vmem:[%s7 + $0xee8] sm:$0xff]
        %v7363 = vld [vmem:[%s7 + $0xef0] sm:$0xff]
        %v7364 = vld [vmem:[%s7 + $0xef8] sm:$0xff]
        %v7365 = vld [vmem:[%s7 + $0xf00] sm:$0xff]
        %v7366 = vld [vmem:[%s7 + $0xf08] sm:$0xff]
        %v7367 = vld [vmem:[%s7 + $0xf10] sm:$0xff]
        %v7368 = vld [vmem:[%s7 + $0xf18] sm:$0xff]
        %v7369 = vld [vmem:[%s8] sm:$0x1]
        %v7371 = vperm.slane %v7369, 0
        %v7374 = vsel %vm6051, %v6884, 0
        %7376 = vmatpush.msra.mxu0 %v6900
        %7377 = vmatpush.msra.mxu0 %v6899
        %7378 = vmatpush.msra.mxu0 %v6898
        %7379 = vmatpush.msra.mxu0 %v6897
        %7380 = vmatpush.msra.mxu0 %v6896
        %7381 = vmatpush.msra.mxu0 %v6895
        %7382 = vmatpush.msra.mxu0 %v6894
        %7383 = vmatpush.msra.mxu0 %v6893
        %7384 = vmatpush.msra.mxu0 %v6892
        %7385 = vmatpush.msra.mxu0 %v6891
        %7386 = vmatpush.msra.mxu0 %v6890
        %7387 = vmatpush.msra.mxu0 %v6889
        %7388 = vmatpush.msra.mxu0 %v6888
        %7389 = vmatpush.msra.mxu0 %v6887
        %7390 = vmatpush.msra.mxu0 %v6886
        %7391 = vmatpush.msra.mxu0 %v6885
        %7392 = vmatmul.f32.gmra.mxu0 %v6854
        %v7393 = vpop.f32.mrf.mxu0
        %v7394 = vadd.f32 %v7371, %v7393
        %7395 = vdwg.mxu0
        %7396 = vmatpush.msra.mxu0 %v6916
        %7397 = vmatpush.msra.mxu0 %v6915
        %7398 = vmatpush.msra.mxu0 %v6914
        %7399 = vmatpush.msra.mxu0 %v6913
        %7400 = vmatpush.msra.mxu0 %v6912
        %7401 = vmatpush.msra.mxu0 %v6911
        %7402 = vmatpush.msra.mxu0 %v6910
        %7403 = vmatpush.msra.mxu0 %v6909
        %7404 = vmatpush.msra.mxu0 %v6908
        %7405 = vmatpush.msra.mxu0 %v6907
        %7406 = vmatpush.msra.mxu0 %v6906
        %7407 = vmatpush.msra.mxu0 %v6905
        %7408 = vmatpush.msra.mxu0 %v6904
        %7409 = vmatpush.msra.mxu0 %v6903
        %7410 = vmatpush.msra.mxu0 %v6902
        %7411 = vmatpush.msra.mxu0 %v6901
        %7412 = vmatmul.f32.gmra.mxu0 %v6855
        %v7413 = vpop.f32.mrf.mxu0
        %v7414 = vadd.f32 %v7394, %v7413
        %7415 = vdwg.mxu0
        %7416 = vmatpush.msra.mxu0 %v6932
        %7417 = vmatpush.msra.mxu0 %v6931
        %7418 = vmatpush.msra.mxu0 %v6930
        %7419 = vmatpush.msra.mxu0 %v6929
        %7420 = vmatpush.msra.mxu0 %v6928
        %7421 = vmatpush.msra.mxu0 %v6927
        %7422 = vmatpush.msra.mxu0 %v6926
        %7423 = vmatpush.msra.mxu0 %v6925
        %7424 = vmatpush.msra.mxu0 %v6924
        %7425 = vmatpush.msra.mxu0 %v6923
        %7426 = vmatpush.msra.mxu0 %v6922
        %7427 = vmatpush.msra.mxu0 %v6921
        %7428 = vmatpush.msra.mxu0 %v6920
        %7429 = vmatpush.msra.mxu0 %v6919
        %7430 = vmatpush.msra.mxu0 %v6918
        %7431 = vmatpush.msra.mxu0 %v6917
        %7432 = vmatmul.f32.gmra.mxu0 %v6856
        %v7433 = vpop.f32.mrf.mxu0
        %v7434 = vadd.f32 %v7414, %v7433
        %7435 = vdwg.mxu0
        %7436 = vmatpush.msra.mxu0 %v6948
        %7437 = vmatpush.msra.mxu0 %v6947
        %7438 = vmatpush.msra.mxu0 %v6946
        %7439 = vmatpush.msra.mxu0 %v6945
        %7440 = vmatpush.msra.mxu0 %v6944
        %7441 = vmatpush.msra.mxu0 %v6943
        %7442 = vmatpush.msra.mxu0 %v6942
        %7443 = vmatpush.msra.mxu0 %v6941
        %7444 = vmatpush.msra.mxu0 %v6940
        %7445 = vmatpush.msra.mxu0 %v6939
        %7446 = vmatpush.msra.mxu0 %v6938
        %7447 = vmatpush.msra.mxu0 %v6937
        %7448 = vmatpush.msra.mxu0 %v6936
        %7449 = vmatpush.msra.mxu0 %v6935
        %7450 = vmatpush.msra.mxu0 %v6934
        %7451 = vmatpush.msra.mxu0 %v6933
        %7452 = vmatmul.f32.gmra.mxu0 %v6857
        %v7453 = vpop.f32.mrf.mxu0
        %v7454 = vadd.f32 %v7434, %v7453
        %7455 = vdwg.mxu0
        %7456 = vmatpush.msra.mxu0 %v6964
        %7457 = vmatpush.msra.mxu0 %v6963
        %7458 = vmatpush.msra.mxu0 %v6962
        %7459 = vmatpush.msra.mxu0 %v6961
        %7460 = vmatpush.msra.mxu0 %v6960
        %7461 = vmatpush.msra.mxu0 %v6959
        %7462 = vmatpush.msra.mxu0 %v6958
        %7463 = vmatpush.msra.mxu0 %v6957
        %7464 = vmatpush.msra.mxu0 %v6956
        %7465 = vmatpush.msra.mxu0 %v6955
        %7466 = vmatpush.msra.mxu0 %v6954
        %7467 = vmatpush.msra.mxu0 %v6953
        %7468 = vmatpush.msra.mxu0 %v6952
        %7469 = vmatpush.msra.mxu0 %v6951
        %7470 = vmatpush.msra.mxu0 %v6950
        %7471 = vmatpush.msra.mxu0 %v6949
        %7472 = vmatmul.f32.gmra.mxu0 %v6858
        %v7473 = vpop.f32.mrf.mxu0
        %v7474 = vadd.f32 %v7454, %v7473
        %7475 = vdwg.mxu0
        %7476 = vmatpush.msra.mxu0 %v6980
        %7477 = vmatpush.msra.mxu0 %v6979
        %7478 = vmatpush.msra.mxu0 %v6978
        %7479 = vmatpush.msra.mxu0 %v6977
        %7480 = vmatpush.msra.mxu0 %v6976
        %7481 = vmatpush.msra.mxu0 %v6975
        %7482 = vmatpush.msra.mxu0 %v6974
        %7483 = vmatpush.msra.mxu0 %v6973
        %7484 = vmatpush.msra.mxu0 %v6972
        %7485 = vmatpush.msra.mxu0 %v6971
        %7486 = vmatpush.msra.mxu0 %v6970
        %7487 = vmatpush.msra.mxu0 %v6969
        %7488 = vmatpush.msra.mxu0 %v6968
        %7489 = vmatpush.msra.mxu0 %v6967
        %7490 = vmatpush.msra.mxu0 %v6966
        %7491 = vmatpush.msra.mxu0 %v6965
        %7492 = vmatmul.f32.gmra.mxu0 %v6859
        %v7493 = vpop.f32.mrf.mxu0
        %v7494 = vadd.f32 %v7474, %v7493
        %7495 = vdwg.mxu0
        %7496 = vmatpush.msra.mxu0 %v6996
        %7497 = vmatpush.msra.mxu0 %v6995
        %7498 = vmatpush.msra.mxu0 %v6994
        %7499 = vmatpush.msra.mxu0 %v6993
        %7500 = vmatpush.msra.mxu0 %v6992
        %7501 = vmatpush.msra.mxu0 %v6991
        %7502 = vmatpush.msra.mxu0 %v6990
        %7503 = vmatpush.msra.mxu0 %v6989
        %7504 = vmatpush.msra.mxu0 %v6988
        %7505 = vmatpush.msra.mxu0 %v6987
        %7506 = vmatpush.msra.mxu0 %v6986
        %7507 = vmatpush.msra.mxu0 %v6985
        %7508 = vmatpush.msra.mxu0 %v6984
        %7509 = vmatpush.msra.mxu0 %v6983
        %7510 = vmatpush.msra.mxu0 %v6982
        %7511 = vmatpush.msra.mxu0 %v6981
        %7512 = vmatmul.f32.gmra.mxu0 %v6860
        %v7513 = vpop.f32.mrf.mxu0
        %v7514 = vadd.f32 %v7494, %v7513
        %7515 = vdwg.mxu0
        %7516 = vmatpush.msra.mxu0 %v7012
        %7517 = vmatpush.msra.mxu0 %v7011
        %7518 = vmatpush.msra.mxu0 %v7010
        %7519 = vmatpush.msra.mxu0 %v7009
        %7520 = vmatpush.msra.mxu0 %v7008
        %7521 = vmatpush.msra.mxu0 %v7007
        %7522 = vmatpush.msra.mxu0 %v7006
        %7523 = vmatpush.msra.mxu0 %v7005
        %7524 = vmatpush.msra.mxu0 %v7004
        %7525 = vmatpush.msra.mxu0 %v7003
        %7526 = vmatpush.msra.mxu0 %v7002
        %7527 = vmatpush.msra.mxu0 %v7001
        %7528 = vmatpush.msra.mxu0 %v7000
        %7529 = vmatpush.msra.mxu0 %v6999
        %7530 = vmatpush.msra.mxu0 %v6998
        %7531 = vmatpush.msra.mxu0 %v6997
        %7532 = vmatmul.f32.gmra.mxu0 %v6861
        %v7533 = vpop.f32.mrf.mxu0
        %v7534 = vadd.f32 %v7514, %v7533
        %7535 = vdwg.mxu0
        %7536 = vmatpush.msra.mxu0 %v7028
        %7537 = vmatpush.msra.mxu0 %v7027
        %7538 = vmatpush.msra.mxu0 %v7026
        %7539 = vmatpush.msra.mxu0 %v7025
        %7540 = vmatpush.msra.mxu0 %v7024
        %7541 = vmatpush.msra.mxu0 %v7023
        %7542 = vmatpush.msra.mxu0 %v7022
        %7543 = vmatpush.msra.mxu0 %v7021
        %7544 = vmatpush.msra.mxu0 %v7020
        %7545 = vmatpush.msra.mxu0 %v7019
        %7546 = vmatpush.msra.mxu0 %v7018
        %7547 = vmatpush.msra.mxu0 %v7017
        %7548 = vmatpush.msra.mxu0 %v7016
        %7549 = vmatpush.msra.mxu0 %v7015
        %7550 = vmatpush.msra.mxu0 %v7014
        %7551 = vmatpush.msra.mxu0 %v7013
        %7552 = vmatmul.f32.gmra.mxu0 %v6862
        %v7553 = vpop.f32.mrf.mxu0
        %v7554 = vadd.f32 %v7534, %v7553
        %7555 = vdwg.mxu0
        %7556 = vmatpush.msra.mxu0 %v7044
        %7557 = vmatpush.msra.mxu0 %v7043
        %7558 = vmatpush.msra.mxu0 %v7042
        %7559 = vmatpush.msra.mxu0 %v7041
        %7560 = vmatpush.msra.mxu0 %v7040
        %7561 = vmatpush.msra.mxu0 %v7039
        %7562 = vmatpush.msra.mxu0 %v7038
        %7563 = vmatpush.msra.mxu0 %v7037
        %7564 = vmatpush.msra.mxu0 %v7036
        %7565 = vmatpush.msra.mxu0 %v7035
        %7566 = vmatpush.msra.mxu0 %v7034
        %7567 = vmatpush.msra.mxu0 %v7033
        %7568 = vmatpush.msra.mxu0 %v7032
        %7569 = vmatpush.msra.mxu0 %v7031
        %7570 = vmatpush.msra.mxu0 %v7030
        %7571 = vmatpush.msra.mxu0 %v7029
        %7572 = vmatmul.f32.gmra.mxu0 %v6863
        %v7573 = vpop.f32.mrf.mxu0
        %v7574 = vadd.f32 %v7554, %v7573
        %7575 = vdwg.mxu0
        %7576 = vmatpush.msra.mxu0 %v7060
        %7577 = vmatpush.msra.mxu0 %v7059
        %7578 = vmatpush.msra.mxu0 %v7058
        %7579 = vmatpush.msra.mxu0 %v7057
        %7580 = vmatpush.msra.mxu0 %v7056
        %7581 = vmatpush.msra.mxu0 %v7055
        %7582 = vmatpush.msra.mxu0 %v7054
        %7583 = vmatpush.msra.mxu0 %v7053
        %7584 = vmatpush.msra.mxu0 %v7052
        %7585 = vmatpush.msra.mxu0 %v7051
        %7586 = vmatpush.msra.mxu0 %v7050
        %7587 = vmatpush.msra.mxu0 %v7049
        %7588 = vmatpush.msra.mxu0 %v7048
        %7589 = vmatpush.msra.mxu0 %v7047
        %7590 = vmatpush.msra.mxu0 %v7046
        %7591 = vmatpush.msra.mxu0 %v7045
        %7592 = vmatmul.f32.gmra.mxu0 %v6864
        %v7593 = vpop.f32.mrf.mxu0
        %v7594 = vadd.f32 %v7574, %v7593
        %7595 = vdwg.mxu0
        %7596 = vmatpush.msra.mxu0 %v7076
        %7597 = vmatpush.msra.mxu0 %v7075
        %7598 = vmatpush.msra.mxu0 %v7074
        %7599 = vmatpush.msra.mxu0 %v7073
        %7600 = vmatpush.msra.mxu0 %v7072
        %7601 = vmatpush.msra.mxu0 %v7071
        %7602 = vmatpush.msra.mxu0 %v7070
        %7603 = vmatpush.msra.mxu0 %v7069
        %7604 = vmatpush.msra.mxu0 %v7068
        %7605 = vmatpush.msra.mxu0 %v7067
        %7606 = vmatpush.msra.mxu0 %v7066
        %7607 = vmatpush.msra.mxu0 %v7065
        %7608 = vmatpush.msra.mxu0 %v7064
        %7609 = vmatpush.msra.mxu0 %v7063
        %7610 = vmatpush.msra.mxu0 %v7062
        %7611 = vmatpush.msra.mxu0 %v7061
        %7612 = vmatmul.f32.gmra.mxu0 %v6865
        %v7613 = vpop.f32.mrf.mxu0
        %v7614 = vadd.f32 %v7594, %v7613
        %7615 = vdwg.mxu0
        %7616 = vmatpush.msra.mxu0 %v7092
        %7617 = vmatpush.msra.mxu0 %v7091
        %7618 = vmatpush.msra.mxu0 %v7090
        %7619 = vmatpush.msra.mxu0 %v7089
        %7620 = vmatpush.msra.mxu0 %v7088
        %7621 = vmatpush.msra.mxu0 %v7087
        %7622 = vmatpush.msra.mxu0 %v7086
        %7623 = vmatpush.msra.mxu0 %v7085
        %7624 = vmatpush.msra.mxu0 %v7084
        %7625 = vmatpush.msra.mxu0 %v7083
        %7626 = vmatpush.msra.mxu0 %v7082
        %7627 = vmatpush.msra.mxu0 %v7081
        %7628 = vmatpush.msra.mxu0 %v7080
        %7629 = vmatpush.msra.mxu0 %v7079
        %7630 = vmatpush.msra.mxu0 %v7078
        %7631 = vmatpush.msra.mxu0 %v7077
        %7632 = vmatmul.f32.gmra.mxu0 %v6866
        %v7633 = vpop.f32.mrf.mxu0
        %v7634 = vadd.f32 %v7614, %v7633
        %7635 = vdwg.mxu0
        %7636 = vmatpush.msra.mxu0 %v7108
        %7637 = vmatpush.msra.mxu0 %v7107
        %7638 = vmatpush.msra.mxu0 %v7106
        %7639 = vmatpush.msra.mxu0 %v7105
        %7640 = vmatpush.msra.mxu0 %v7104
        %7641 = vmatpush.msra.mxu0 %v7103
        %7642 = vmatpush.msra.mxu0 %v7102
        %7643 = vmatpush.msra.mxu0 %v7101
        %7644 = vmatpush.msra.mxu0 %v7100
        %7645 = vmatpush.msra.mxu0 %v7099
        %7646 = vmatpush.msra.mxu0 %v7098
        %7647 = vmatpush.msra.mxu0 %v7097
        %7648 = vmatpush.msra.mxu0 %v7096
        %7649 = vmatpush.msra.mxu0 %v7095
        %7650 = vmatpush.msra.mxu0 %v7094
        %7651 = vmatpush.msra.mxu0 %v7093
        %7652 = vmatmul.f32.gmra.mxu0 %v6867
        %v7653 = vpop.f32.mrf.mxu0
        %v7654 = vadd.f32 %v7634, %v7653
        %7655 = vdwg.mxu0
        %7656 = vmatpush.msra.mxu0 %v7124
        %7657 = vmatpush.msra.mxu0 %v7123
        %7658 = vmatpush.msra.mxu0 %v7122
        %7659 = vmatpush.msra.mxu0 %v7121
        %7660 = vmatpush.msra.mxu0 %v7120
        %7661 = vmatpush.msra.mxu0 %v7119
        %7662 = vmatpush.msra.mxu0 %v7118
        %7663 = vmatpush.msra.mxu0 %v7117
        %7664 = vmatpush.msra.mxu0 %v7116
        %7665 = vmatpush.msra.mxu0 %v7115
        %7666 = vmatpush.msra.mxu0 %v7114
        %7667 = vmatpush.msra.mxu0 %v7113
        %7668 = vmatpush.msra.mxu0 %v7112
        %7669 = vmatpush.msra.mxu0 %v7111
        %7670 = vmatpush.msra.mxu0 %v7110
        %7671 = vmatpush.msra.mxu0 %v7109
        %7672 = vmatmul.f32.gmra.mxu0 %v6868
        %v7673 = vpop.f32.mrf.mxu0
        %v7674 = vadd.f32 %v7654, %v7673
        %7675 = vdwg.mxu0
        %7676 = vmatpush.msra.mxu0 %v7140
        %7677 = vmatpush.msra.mxu0 %v7139
        %7678 = vmatpush.msra.mxu0 %v7138
        %7679 = vmatpush.msra.mxu0 %v7137
        %7680 = vmatpush.msra.mxu0 %v7136
        %7681 = vmatpush.msra.mxu0 %v7135
        %7682 = vmatpush.msra.mxu0 %v7134
        %7683 = vmatpush.msra.mxu0 %v7133
        %7684 = vmatpush.msra.mxu0 %v7132
        %7685 = vmatpush.msra.mxu0 %v7131
        %7686 = vmatpush.msra.mxu0 %v7130
        %7687 = vmatpush.msra.mxu0 %v7129
        %7688 = vmatpush.msra.mxu0 %v7128
        %7689 = vmatpush.msra.mxu0 %v7127
        %7690 = vmatpush.msra.mxu0 %v7126
        %7691 = vmatpush.msra.mxu0 %v7125
        %7692 = vmatmul.f32.gmra.mxu0 %v6869
        %v7693 = vpop.f32.mrf.mxu0
        %v7694 = vadd.f32 %v7674, %v7693
        %7695 = vdwg.mxu0
        %7696 = vmatpush.msra.mxu0 %v7156
        %7697 = vmatpush.msra.mxu0 %v7155
        %7698 = vmatpush.msra.mxu0 %v7154
        %7699 = vmatpush.msra.mxu0 %v7153
        %7700 = vmatpush.msra.mxu0 %v7152
        %7701 = vmatpush.msra.mxu0 %v7151
        %7702 = vmatpush.msra.mxu0 %v7150
        %7703 = vmatpush.msra.mxu0 %v7149
        %7704 = vmatpush.msra.mxu0 %v7148
        %7705 = vmatpush.msra.mxu0 %v7147
        %7706 = vmatpush.msra.mxu0 %v7146
        %7707 = vmatpush.msra.mxu0 %v7145
        %7708 = vmatpush.msra.mxu0 %v7144
        %7709 = vmatpush.msra.mxu0 %v7143
        %7710 = vmatpush.msra.mxu0 %v7142
        %7711 = vmatpush.msra.mxu0 %v7141
        %7712 = vmatmul.f32.gmra.mxu0 %v6870
        %v7713 = vpop.f32.mrf.mxu0
        %v7714 = vadd.f32 %v7694, %v7713
        %7715 = vdwg.mxu0
        %7716 = vmatpush.msra.mxu0 %v7172
        %7717 = vmatpush.msra.mxu0 %v7171
        %7718 = vmatpush.msra.mxu0 %v7170
        %7719 = vmatpush.msra.mxu0 %v7169
        %7720 = vmatpush.msra.mxu0 %v7168
        %7721 = vmatpush.msra.mxu0 %v7167
        %7722 = vmatpush.msra.mxu0 %v7166
        %7723 = vmatpush.msra.mxu0 %v7165
        %7724 = vmatpush.msra.mxu0 %v7164
        %7725 = vmatpush.msra.mxu0 %v7163
        %7726 = vmatpush.msra.mxu0 %v7162
        %7727 = vmatpush.msra.mxu0 %v7161
        %7728 = vmatpush.msra.mxu0 %v7160
        %7729 = vmatpush.msra.mxu0 %v7159
        %7730 = vmatpush.msra.mxu0 %v7158
        %7731 = vmatpush.msra.mxu0 %v7157
        %7732 = vmatmul.f32.gmra.mxu0 %v6871
        %v7733 = vpop.f32.mrf.mxu0
        %v7734 = vadd.f32 %v7714, %v7733
        %7735 = vdwg.mxu0
        %7736 = vmatpush.msra.mxu0 %v7188
        %7737 = vmatpush.msra.mxu0 %v7187
        %7738 = vmatpush.msra.mxu0 %v7186
        %7739 = vmatpush.msra.mxu0 %v7185
        %7740 = vmatpush.msra.mxu0 %v7184
        %7741 = vmatpush.msra.mxu0 %v7183
        %7742 = vmatpush.msra.mxu0 %v7182
        %7743 = vmatpush.msra.mxu0 %v7181
        %7744 = vmatpush.msra.mxu0 %v7180
        %7745 = vmatpush.msra.mxu0 %v7179
        %7746 = vmatpush.msra.mxu0 %v7178
        %7747 = vmatpush.msra.mxu0 %v7177
        %7748 = vmatpush.msra.mxu0 %v7176
        %7749 = vmatpush.msra.mxu0 %v7175
        %7750 = vmatpush.msra.mxu0 %v7174
        %7751 = vmatpush.msra.mxu0 %v7173
        %7752 = vmatmul.f32.gmra.mxu0 %v6872
        %v7753 = vpop.f32.mrf.mxu0
        %v7754 = vadd.f32 %v7734, %v7753
        %7755 = vdwg.mxu0
        %7756 = vmatpush.msra.mxu0 %v7204
        %7757 = vmatpush.msra.mxu0 %v7203
        %7758 = vmatpush.msra.mxu0 %v7202
        %7759 = vmatpush.msra.mxu0 %v7201
        %7760 = vmatpush.msra.mxu0 %v7200
        %7761 = vmatpush.msra.mxu0 %v7199
        %7762 = vmatpush.msra.mxu0 %v7198
        %7763 = vmatpush.msra.mxu0 %v7197
        %7764 = vmatpush.msra.mxu0 %v7196
        %7765 = vmatpush.msra.mxu0 %v7195
        %7766 = vmatpush.msra.mxu0 %v7194
        %7767 = vmatpush.msra.mxu0 %v7193
        %7768 = vmatpush.msra.mxu0 %v7192
        %7769 = vmatpush.msra.mxu0 %v7191
        %7770 = vmatpush.msra.mxu0 %v7190
        %7771 = vmatpush.msra.mxu0 %v7189
        %7772 = vmatmul.f32.gmra.mxu0 %v6873
        %v7773 = vpop.f32.mrf.mxu0
        %v7774 = vadd.f32 %v7754, %v7773
        %7775 = vdwg.mxu0
        %7776 = vmatpush.msra.mxu0 %v7220
        %7777 = vmatpush.msra.mxu0 %v7219
        %7778 = vmatpush.msra.mxu0 %v7218
        %7779 = vmatpush.msra.mxu0 %v7217
        %7780 = vmatpush.msra.mxu0 %v7216
        %7781 = vmatpush.msra.mxu0 %v7215
        %7782 = vmatpush.msra.mxu0 %v7214
        %7783 = vmatpush.msra.mxu0 %v7213
        %7784 = vmatpush.msra.mxu0 %v7212
        %7785 = vmatpush.msra.mxu0 %v7211
        %7786 = vmatpush.msra.mxu0 %v7210
        %7787 = vmatpush.msra.mxu0 %v7209
        %7788 = vmatpush.msra.mxu0 %v7208
        %7789 = vmatpush.msra.mxu0 %v7207
        %7790 = vmatpush.msra.mxu0 %v7206
        %7791 = vmatpush.msra.mxu0 %v7205
        %7792 = vmatmul.f32.gmra.mxu0 %v6874
        %v7793 = vpop.f32.mrf.mxu0
        %v7794 = vadd.f32 %v7774, %v7793
        %7795 = vdwg.mxu0
        %7796 = vmatpush.msra.mxu0 %v7236
        %7797 = vmatpush.msra.mxu0 %v7235
        %7798 = vmatpush.msra.mxu0 %v7234
        %7799 = vmatpush.msra.mxu0 %v7233
        %7800 = vmatpush.msra.mxu0 %v7232
        %7801 = vmatpush.msra.mxu0 %v7231
        %7802 = vmatpush.msra.mxu0 %v7230
        %7803 = vmatpush.msra.mxu0 %v7229
        %7804 = vmatpush.msra.mxu0 %v7228
        %7805 = vmatpush.msra.mxu0 %v7227
        %7806 = vmatpush.msra.mxu0 %v7226
        %7807 = vmatpush.msra.mxu0 %v7225
        %7808 = vmatpush.msra.mxu0 %v7224
        %7809 = vmatpush.msra.mxu0 %v7223
        %7810 = vmatpush.msra.mxu0 %v7222
        %7811 = vmatpush.msra.mxu0 %v7221
        %7812 = vmatmul.f32.gmra.mxu0 %v6875
        %v7813 = vpop.f32.mrf.mxu0
        %v7814 = vadd.f32 %v7794, %v7813
        %7815 = vdwg.mxu0
        %7816 = vmatpush.msra.mxu0 %v7252
        %7817 = vmatpush.msra.mxu0 %v7251
        %7818 = vmatpush.msra.mxu0 %v7250
        %7819 = vmatpush.msra.mxu0 %v7249
        %7820 = vmatpush.msra.mxu0 %v7248
        %7821 = vmatpush.msra.mxu0 %v7247
        %7822 = vmatpush.msra.mxu0 %v7246
        %7823 = vmatpush.msra.mxu0 %v7245
        %7824 = vmatpush.msra.mxu0 %v7244
        %7825 = vmatpush.msra.mxu0 %v7243
        %7826 = vmatpush.msra.mxu0 %v7242
        %7827 = vmatpush.msra.mxu0 %v7241
        %7828 = vmatpush.msra.mxu0 %v7240
        %7829 = vmatpush.msra.mxu0 %v7239
        %7830 = vmatpush.msra.mxu0 %v7238
        %7831 = vmatpush.msra.mxu0 %v7237
        %7832 = vmatmul.f32.gmra.mxu0 %v6876
        %v7833 = vpop.f32.mrf.mxu0
        %v7834 = vadd.f32 %v7814, %v7833
        %7835 = vdwg.mxu0
        %7836 = vmatpush.msra.mxu0 %v7268
        %7837 = vmatpush.msra.mxu0 %v7267
        %7838 = vmatpush.msra.mxu0 %v7266
        %7839 = vmatpush.msra.mxu0 %v7265
        %7840 = vmatpush.msra.mxu0 %v7264
        %7841 = vmatpush.msra.mxu0 %v7263
        %7842 = vmatpush.msra.mxu0 %v7262
        %7843 = vmatpush.msra.mxu0 %v7261
        %7844 = vmatpush.msra.mxu0 %v7260
        %7845 = vmatpush.msra.mxu0 %v7259
        %7846 = vmatpush.msra.mxu0 %v7258
        %7847 = vmatpush.msra.mxu0 %v7257
        %7848 = vmatpush.msra.mxu0 %v7256
        %7849 = vmatpush.msra.mxu0 %v7255
        %7850 = vmatpush.msra.mxu0 %v7254
        %7851 = vmatpush.msra.mxu0 %v7253
        %7852 = vmatmul.f32.gmra.mxu0 %v6877
        %v7853 = vpop.f32.mrf.mxu0
        %v7854 = vadd.f32 %v7834, %v7853
        %7855 = vdwg.mxu0
        %7856 = vmatpush.msra.mxu0 %v7284
        %7857 = vmatpush.msra.mxu0 %v7283
        %7858 = vmatpush.msra.mxu0 %v7282
        %7859 = vmatpush.msra.mxu0 %v7281
        %7860 = vmatpush.msra.mxu0 %v7280
        %7861 = vmatpush.msra.mxu0 %v7279
        %7862 = vmatpush.msra.mxu0 %v7278
        %7863 = vmatpush.msra.mxu0 %v7277
        %7864 = vmatpush.msra.mxu0 %v7276
        %7865 = vmatpush.msra.mxu0 %v7275
        %7866 = vmatpush.msra.mxu0 %v7274
        %7867 = vmatpush.msra.mxu0 %v7273
        %7868 = vmatpush.msra.mxu0 %v7272
        %7869 = vmatpush.msra.mxu0 %v7271
        %7870 = vmatpush.msra.mxu0 %v7270
        %7871 = vmatpush.msra.mxu0 %v7269
        %7872 = vmatmul.f32.gmra.mxu0 %v6878
        %v7873 = vpop.f32.mrf.mxu0
        %v7874 = vadd.f32 %v7854, %v7873
        %7875 = vdwg.mxu0
        %7876 = vmatpush.msra.mxu0 %v7300
        %7877 = vmatpush.msra.mxu0 %v7299
        %7878 = vmatpush.msra.mxu0 %v7298
        %7879 = vmatpush.msra.mxu0 %v7297
        %7880 = vmatpush.msra.mxu0 %v7296
        %7881 = vmatpush.msra.mxu0 %v7295
        %7882 = vmatpush.msra.mxu0 %v7294
        %7883 = vmatpush.msra.mxu0 %v7293
        %7884 = vmatpush.msra.mxu0 %v7292
        %7885 = vmatpush.msra.mxu0 %v7291
        %7886 = vmatpush.msra.mxu0 %v7290
        %7887 = vmatpush.msra.mxu0 %v7289
        %7888 = vmatpush.msra.mxu0 %v7288
        %7889 = vmatpush.msra.mxu0 %v7287
        %7890 = vmatpush.msra.mxu0 %v7286
        %7891 = vmatpush.msra.mxu0 %v7285
        %7892 = vmatmul.f32.gmra.mxu0 %v6879
        %v7893 = vpop.f32.mrf.mxu0
        %v7894 = vadd.f32 %v7874, %v7893
        %7895 = vdwg.mxu0
        %7896 = vmatpush.msra.mxu0 %v7316
        %7897 = vmatpush.msra.mxu0 %v7315
        %7898 = vmatpush.msra.mxu0 %v7314
        %7899 = vmatpush.msra.mxu0 %v7313
        %7900 = vmatpush.msra.mxu0 %v7312
        %7901 = vmatpush.msra.mxu0 %v7311
        %7902 = vmatpush.msra.mxu0 %v7310
        %7903 = vmatpush.msra.mxu0 %v7309
        %7904 = vmatpush.msra.mxu0 %v7308
        %7905 = vmatpush.msra.mxu0 %v7307
        %7906 = vmatpush.msra.mxu0 %v7306
        %7907 = vmatpush.msra.mxu0 %v7305
        %7908 = vmatpush.msra.mxu0 %v7304
        %7909 = vmatpush.msra.mxu0 %v7303
        %7910 = vmatpush.msra.mxu0 %v7302
        %7911 = vmatpush.msra.mxu0 %v7301
        %7912 = vmatmul.f32.gmra.mxu0 %v6880
        %v7913 = vpop.f32.mrf.mxu0
        %v7914 = vadd.f32 %v7894, %v7913
        %7915 = vdwg.mxu0
        %7916 = vmatpush.msra.mxu0 %v7332
        %7917 = vmatpush.msra.mxu0 %v7331
        %7918 = vmatpush.msra.mxu0 %v7330
        %7919 = vmatpush.msra.mxu0 %v7329
        %7920 = vmatpush.msra.mxu0 %v7328
        %7921 = vmatpush.msra.mxu0 %v7327
        %7922 = vmatpush.msra.mxu0 %v7326
        %7923 = vmatpush.msra.mxu0 %v7325
        %7924 = vmatpush.msra.mxu0 %v7324
        %7925 = vmatpush.msra.mxu0 %v7323
        %7926 = vmatpush.msra.mxu0 %v7322
        %7927 = vmatpush.msra.mxu0 %v7321
        %7928 = vmatpush.msra.mxu0 %v7320
        %7929 = vmatpush.msra.mxu0 %v7319
        %7930 = vmatpush.msra.mxu0 %v7318
        %7931 = vmatpush.msra.mxu0 %v7317
        %7932 = vmatmul.f32.gmra.mxu0 %v6881
        %v7933 = vpop.f32.mrf.mxu0
        %v7934 = vadd.f32 %v7914, %v7933
        %7935 = vdwg.mxu0
        %7936 = vmatpush.msra.mxu0 %v7348
        %7937 = vmatpush.msra.mxu0 %v7347
        %7938 = vmatpush.msra.mxu0 %v7346
        %7939 = vmatpush.msra.mxu0 %v7345
        %7940 = vmatpush.msra.mxu0 %v7344
        %7941 = vmatpush.msra.mxu0 %v7343
        %7942 = vmatpush.msra.mxu0 %v7342
        %7943 = vmatpush.msra.mxu0 %v7341
        %7944 = vmatpush.msra.mxu0 %v7340
        %7945 = vmatpush.msra.mxu0 %v7339
        %7946 = vmatpush.msra.mxu0 %v7338
        %7947 = vmatpush.msra.mxu0 %v7337
        %7948 = vmatpush.msra.mxu0 %v7336
        %7949 = vmatpush.msra.mxu0 %v7335
        %7950 = vmatpush.msra.mxu0 %v7334
        %7951 = vmatpush.msra.mxu0 %v7333
        %7952 = vmatmul.f32.gmra.mxu0 %v6882
        %v7953 = vpop.f32.mrf.mxu0
        %v7954 = vadd.f32 %v7934, %v7953
        %7955 = vdwg.mxu0
        %7956 = vmatpush.msra.mxu0 %v7364
        %7957 = vmatpush.msra.mxu0 %v7363
        %7958 = vmatpush.msra.mxu0 %v7362
        %7959 = vmatpush.msra.mxu0 %v7361
        %7960 = vmatpush.msra.mxu0 %v7360
        %7961 = vmatpush.msra.mxu0 %v7359
        %7962 = vmatpush.msra.mxu0 %v7358
        %7963 = vmatpush.msra.mxu0 %v7357
        %7964 = vmatpush.msra.mxu0 %v7356
        %7965 = vmatpush.msra.mxu0 %v7355
        %7966 = vmatpush.msra.mxu0 %v7354
        %7967 = vmatpush.msra.mxu0 %v7353
        %7968 = vmatpush.msra.mxu0 %v7352
        %7969 = vmatpush.msra.mxu0 %v7351
        %7970 = vmatpush.msra.mxu0 %v7350
        %7971 = vmatpush.msra.mxu0 %v7349
        %7972 = vmatmul.f32.gmra.mxu0 %v6883
        %v7973 = vpop.f32.mrf.mxu0
        %v7974 = vadd.f32 %v7954, %v7973
        %7975 = vdwg.mxu0
        %7976 = vmatpush.msra.mxu0 0.0
        %7977 = vmatpush.msra.mxu0 0.0
        %7978 = vmatpush.msra.mxu0 0.0
        %7979 = vmatpush.msra.mxu0 0.0
        %7980 = vmatpush.msra.mxu0 0.0
        %7981 = vmatpush.msra.mxu0 0.0
        %7982 = vmatpush.msra.mxu0 0.0
        %7983 = vmatpush.msra.mxu0 0.0
        %7984 = vmatpush.msra.mxu0 0.0
        %7985 = vmatpush.msra.mxu0 0.0
        %7986 = vmatpush.msra.mxu0 0.0
        %7987 = vmatpush.msra.mxu0 0.0
        %7988 = vmatpush.msra.mxu0 %v7368
        %7989 = vmatpush.msra.mxu0 %v7367
        %7990 = vmatpush.msra.mxu0 %v7366
        %7991 = vmatpush.msra.mxu0 %v7365
        %7992 = vmatmul.f32.gmra.mxu0 %v7374
        %v7993 = vpop.f32.mrf.mxu0
        %v7994 = vadd.f32 %v7974, %v7993
        %7995 = vdwg.mxu0
        %vm7996 = vcmask 80896
        %v7997 = vsel %vm7996, %v7994, -inf
        %7998 = vmax.xlane.f32.xlu0 %v7997
        %v7999 = vpop.xlane.xlu0 %7998
        %v8000 = vsub.f32 %v7994, %v7999
        %v8001 = vmul.f32 %v8000, 1.442695
        %v8002 = vpow.pop %v8001
        %v8003 = vsel %vm7996, %v8002, 0.0
        %8004 = vadd.xlane.f32.xlu0 %v8003
        %v8005 = vpop.xlane.xlu0 %8004
        %v8006 = vrcp.pop %v8005
        %v8007 = vmul.f32 %v8005, %v8006
        %v8008 = vsub.f32 1.0, %v8007
        %v8009 = vmul.f32 %v8006, %v8008
        %v8010 = vadd.f32 %v8006, %v8009
        %vm8011 = vweird.f32 %v8005
        %vm8012 = vweird.f32 %v8006
        %vm8013 = vmor %vm8011, %vm8012
        %v8014 = vsel %vm8013, %v8006, %v8010
        %v8015 = vand.u32 2147483647, %v8005
        %vm8016 = vcmp.eq.f32.partialorder %v8015, 8.507059e+37
        %v8017 = vand.u32 %v8005, 2147483648
        %v8018 = vor.u32 1.1754944e-38, %v8017
        %v8019 = vsel %vm8016, %v8018, %v8014
        %v8020 = vmul.f32 %v8002, %v8019
        %8021 = vst.msk [vmem:[%s328] sm:$0xff] %vm7996, %v8020
        %s8022 = sand.u32 %s225, 1
        %s8023 = scalar_lea.sflag [#allocation6], %s8022
        %s8024 = sand.u32 %s225, 1
        %s8025 = smul.addr %s8024, 8
        %s8026 = scalar_lea.vmem [#allocation5], %s8025
        // Predicated region
        $region57: #{tpu_custom_call.1} parent=55 // pred_check
          %p8027 = pneg %p235
        $region58: #{tpu_custom_call.1} parent=55 // pred_check_branch
          %8029 = sbr.rel (%p8027) target = $region60
        $region59: #{tpu_custom_call.1} parent=55 // pred_region
          %8031 = vsyncadd %s8023, 0
          %s8032 = smul.addr %s23, 8
          %s8033 = scalar_lea.hbm %s9, %s8032
          %s8035 = sshll.u32 %s8026, 4
          %s8036 = int_to_ptr.vmem [resolvable:$true] %s8035
          %s8037 = sshll.u32 %s8033, 4
          %s8038 = int_to_ptr.hbm [resolvable:$true] %s8037
          %8040 = dma.vmem_to_hbm [thread:$0]  %s8036, 128, %s8038, %s8023
        $region60: #{tpu_custom_call.1} parent=55 // pred_fallthru
          _
      $region56: #{tpu_custom_call.1} parent=5 // pred_fallthru
        _
      %p8041 = scmp.le.s32.totalorder 2, %s18
      // Predicated region
      $region61: #{tpu_custom_call.1} parent=5 // pred_check
        %p8042 = pneg %p8041
      $region62: #{tpu_custom_call.1} parent=5 // pred_check_branch
        %8044 = sbr.rel (%p8042) target = $region64
      $region63: #{tpu_custom_call.1} parent=5 // pred_region
        %s8045 = ssub.s32 %s18, 2
        // Predicated region
        $region65: #{tpu_custom_call.1} parent=63 // pred_check
          %p8046 = pneg %p241
        $region66: #{tpu_custom_call.1} parent=63 // pred_check_branch
          %8048 = sbr.rel (%p8046) target = $region68
        $region67: #{tpu_custom_call.1} parent=63 // pred_region
          %s8049 = sand.u32 %s226, 1
          %s8050 = scalar_lea.sflag [#allocation6], %s8049
          %s8051 = sand.u32 %s226, 1
          %s8052 = smul.addr %s8051, 8
          %s8053 = scalar_lea.vmem [#allocation5], %s8052
          %8055 = dma.done %s8050, 128
        $region68: #{tpu_custom_call.1} parent=63 // pred_fallthru
          _
      $region64: #{tpu_custom_call.1} parent=5 // pred_fallthru
        _
    $region6: #{tpu_custom_call.1} parent=1 // loop_footer
      %s22 = sadd.s32 1, %s18
    $region7: #{tpu_custom_call.1} parent=1 // loop_footer_branch
      %17 = sbr.rel target = $region3
    $region8: #{tpu_custom_call.1} parent=1 // loop_exit
      _
    %8056 = vsyncpa [#allocation6], 1
    %s8057 = scalar_lea.sflag [#allocation6], 1
    %8058 = vsyncpa %s8057, 1

</llo_original>
